<compile_context>
chip_gen: v7x
topology: tpu7x:2x2x1
jax: 0.10.0
libtpu: 0.0.40
codegen_flags: <defaults>
</compile_context>

<pallas_src>
import functools
import math

import jax
import jax.numpy as jnp
from jax.experimental import pallas as pl
from jax.experimental.pallas import tpu as pltpu

LN_EPS = 1e-5
BN_EPS = 1e-5   # eval-mode BatchNorm2d with default running stats -> pure 1/sqrt(1+eps) rescale


# ------------------------------ fused transformer kernel ------------------------------
def _make_transformer_kernel(*, N, W, D, heads, dim_head):
    inner = heads * dim_head
    inv_sqrt2 = 0.7071067811865476          # Python float: NOT captured as a jnp constant

    def _layernorm(x, g, b):
        mu = jnp.mean(x, axis=-1, keepdims=True)
        var = jnp.mean((x - mu) ** 2, axis=-1, keepdims=True)
        return (x - mu) * jax.lax.rsqrt(var + LN_EPS) * g + b

    def kernel(x_ref, mask_ref, ln1_g_ref, ln1_b_ref, qkv_w_ref, qkv_b_ref,
               out_w_ref, out_b_ref, ln2_g_ref, ln2_b_ref,
               ff_w1_ref, ff_b1_ref, ff_w2_ref, ff_b2_ref, o_ref):
        layer = pl.program_id(1)

        # Seed the resident (per-image) activation block with the input on the first layer.
        @pl.when(layer == 0)
        def _():
            o_ref[...] = x_ref[...]

        x = o_ref[...].reshape(N, D).astype(jnp.float32)     # carried activation (VMEM resident)
        masks = mask_ref[...]                                  # (N, 9) conv boundary masks, f32

        # ---------------- PreNorm(ConvAttention) + residual ----------------
        xn = _layernorm(x, ln1_g_ref[0].astype(jnp.float32), ln1_b_ref[0].astype(jnp.float32))

        # im2col for the 3x3 / stride-1 / zero-pad-1 conv: 9 masked token-axis rolls -> (N, 9*D).
        # Out-of-image taps are zeroed by the mask columns (so the wrap from the roll is harmless).
        cols = []
        for di in (-1, 0, 1):
            for dj in (-1, 0, 1):
                delta = di * W + dj
                tap = (di + 1) * 3 + (dj + 1)
                shifted = xn if delta == 0 else jnp.roll(xn, (-delta) % N, axis=0)
                cols.append(shifted * masks[:, tap:tap + 1])
        x9 = jnp.concatenate(cols, axis=-1)                    # (N, 9*D), tap-major columns

        # Single dense qkv matmul (depthwise * BN * pointwise pre-folded; q-scale pre-folded).
        qkv = jnp.dot(x9.astype(jnp.bfloat16), qkv_w_ref[0],
                      preferred_element_type=jnp.float32) + qkv_b_ref[0]

        q = qkv[:, :inner]
        k = qkv[:, inner:2 * inner]
        v = qkv[:, 2 * inner:]

        # All heads in one batched einsum pair.
        q3 = q.reshape(N, heads, dim_head).astype(jnp.bfloat16)
        k3 = k.reshape(N, heads, dim_head).astype(jnp.bfloat16)
        v3 = v.reshape(N, heads, dim_head).astype(jnp.bfloat16)
        s = jnp.einsum('nhd,mhd->hnm', q3, k3, preferred_element_type=jnp.float32)
        s = s - jnp.max(s, axis=-1, keepdims=True)             # softmax in f32
        p = jnp.exp(s)
        p = p * pl.reciprocal(jnp.sum(p, axis=-1, keepdims=True), approx=True)
        o3 = jnp.einsum('hnm,mhd->nhd', p.astype(jnp.bfloat16), v3,
                        preferred_element_type=jnp.float32)
        attn = o3.reshape(N, inner)                            # head-major channel concat

        attn = jnp.dot(attn.astype(jnp.bfloat16), out_w_ref[0],
                       preferred_element_type=jnp.float32) + out_b_ref[0]
        x = x + attn

        # ---------------- PreNorm(FeedForward) + residual ----------------
        xn2 = _layernorm(x, ln2_g_ref[0].astype(jnp.float32), ln2_b_ref[0].astype(jnp.float32))
        h1 = jnp.dot(xn2.astype(jnp.bfloat16), ff_w1_ref[0],
                     preferred_element_type=jnp.float32) + ff_b1_ref[0]
        h1 = 0.5 * h1 * (1.0 + jax.lax.erf(h1 * inv_sqrt2))    # exact GELU (nn.GELU default)
        h2 = jnp.dot(h1.astype(jnp.bfloat16), ff_w2_ref[0],
                     preferred_element_type=jnp.float32) + ff_b2_ref[0]
        x = x + h2

        o_ref[...] = x.reshape(1, N, D).astype(o_ref.dtype)

    return kernel


def _conv_tap_masks(H, W):
    """(H*W, 9) f32 validity masks for the 3x3 zero-padded depthwise conv taps (per image)."""
    h = jnp.arange(H)
    w = jnp.arange(W)
    cols = []
    for di in (-1, 0, 1):
        for dj in (-1, 0, 1):
            vh = (h + di >= 0) & (h + di < H)
            vw = (w + dj >= 0) & (w + dj < W)
            cols.append((vh[:, None] & vw[None, :]).reshape(H * W))
    return jnp.stack(cols, axis=-1).astype(jnp.float32)


# ------------------------------ forward wrapper ------------------------------
def transformer_forward(x, params, *, img_size, heads, dim_head):
    B, N, D = x.shape
    assert N == img_size * img_size
    depth = params["ln1_g"].shape[0]

    kernel = _make_transformer_kernel(N=N, W=img_size, D=D, heads=heads, dim_head=dim_head)
    tap_masks = _conv_tap_masks(img_size, img_size)            # (N, 9), constant-folded under jit

    def layer_spec(p):                                         # pick layer `l` of a stacked param
        return pl.BlockSpec((1,) + p.shape[1:], lambda b, l: (l, 0, 0))

    names = ["ln1_g", "ln1_b", "qkv_w", "qkv_b", "out_w", "out_b",
             "ln2_g", "ln2_b", "ff_w1", "ff_b1", "ff_w2", "ff_b2"]
    in_specs = ([pl.BlockSpec((1, N, D), lambda b, l: (b, 0, 0)),
                 pl.BlockSpec((N, 9), lambda b, l: (0, 0))]
                + [layer_spec(params[n]) for n in names])

    return pl.pallas_call(
        kernel,
        out_shape=jax.ShapeDtypeStruct((B, N, D), x.dtype),
        grid=(B, depth),                                       # batch parallel (v7x megacore),
        in_specs=in_specs,                                     # depth innermost (resident carry)
        out_specs=pl.BlockSpec((1, N, D), lambda b, l: (b, 0, 0)),
        compiler_params=pltpu.CompilerParams(
            dimension_semantics=("parallel", "arbitrary"),
            vmem_limit_bytes=32 * 1024 * 1024),
    )(x, tap_masks, *(params[n] for n in names))


# ------------------------------ parameter init ------------------------------
def init_params(key, depth, dim, heads, dim_head, mlp_dim):
    inner = heads * dim_head
    attn_scale = dim_head ** -0.5
    bn_scale = 1.0 / math.sqrt(1.0 + BN_EPS)   # eval-mode BatchNorm2d folded into the fused weight
    layers = []
    for layer_idx in range(depth):
        keys = jax.random.split(jax.random.fold_in(key, layer_idx), 20)

        def nrm(k, shape, s=0.05):
            return jax.random.normal(k, shape, dtype=jnp.float32) * s

        w_groups, b_groups = [], []
        ki = 6
        for g in range(3):                       # q, k, v conv projections
            dw_w = nrm(keys[ki], (9, dim)); ki += 1            # depthwise 3x3: (tap, channel)
            dw_b = nrm(keys[ki], (dim,));  ki += 1
            pw_w = nrm(keys[ki], (dim, inner)); ki += 1        # pointwise 1x1, stored (Cin, Cout)
            pw_b = nrm(keys[ki], (inner,)); ki += 1
            pw_eff = pw_w * bn_scale                           # fold eval-mode BN scale
            # Fused im2col weight: Wcomb[tap*dim + c, j] = dw_w[tap, c] * pw_eff[c, j]
            w = (dw_w[:, :, None] * pw_eff[None, :, :]).reshape(9 * dim, inner)
            b = dw_b @ pw_eff + pw_b                           # fold depthwise bias through pw
            if g == 0:                                         # fold attention scale into q
                w = w * attn_scale
                b = b * attn_scale
            w_groups.append(w)
            b_groups.append(b)

        layers.append({
            "ln1_g": jnp.ones((1, dim), jnp.float32),
            "ln1_b": jnp.zeros((1, dim), jnp.float32),
            "ln2_g": jnp.ones((1, dim), jnp.float32),
            "ln2_b": jnp.zeros((1, dim), jnp.float32),
            "qkv_w": jnp.concatenate(w_groups, axis=1).astype(jnp.bfloat16),   # (9*dim, 3*inner)
            "qkv_b": jnp.concatenate(b_groups).reshape(1, 3 * inner),          # f32
            "out_w": nrm(keys[0], (inner, dim)).astype(jnp.bfloat16),
            "out_b": nrm(keys[1], (dim,)).reshape(1, dim),
            "ff_w1": nrm(keys[2], (dim, mlp_dim)).astype(jnp.bfloat16),
            "ff_b1": nrm(keys[3], (mlp_dim,)).reshape(1, mlp_dim),
            "ff_w2": nrm(keys[4], (mlp_dim, dim)).astype(jnp.bfloat16),
            "ff_b2": nrm(keys[5], (dim,)).reshape(1, dim),
        })
    # Stack per-layer params along a leading depth axis so the kernel grid can block over layers.
    return {name: jnp.stack([lp[name] for lp in layers]) for name in layers[0]}


# ----------------------------------- main ----------------------------------------
if __name__ == "__main__":
    dim, img_size, depth, heads, dim_head = 32, 8, 2, 2, 16
    mlp_dim = dim * 4                 # scale_dim=4 -> 128-lane-dense FFN intermediate
    batch = 2
    n_tokens = img_size * img_size

    key = jax.random.PRNGKey(0)
    kx, kp = jax.random.split(key)
    x = jax.random.normal(kx, (batch, n_tokens, dim), dtype=jnp.float32)
    params = init_params(kp, depth, dim, heads, dim_head, mlp_dim)

    fwd = jax.jit(functools.partial(transformer_forward,
                                    img_size=img_size, heads=heads, dim_head=dim_head))
    y = fwd(x, params)
    jax.block_until_ready(y)
    assert y.shape == (batch, n_tokens, dim) and y.dtype == jnp.float32
    print("KERNEL_OK")
</pallas_src>

<mosaic_0001>
module attributes {stable_mosaic.version = 11 : i64} {
  func.func @kernel(%arg0: i32, %arg1: i32, %arg2: memref<1x64x32xf32, #tpu.memory_space<vmem>>, %arg3: memref<64x9xf32, #tpu.memory_space<vmem>>, %arg4: memref<1x1x32xf32, #tpu.memory_space<vmem>>, %arg5: memref<1x1x32xf32, #tpu.memory_space<vmem>>, %arg6: memref<1x288x96xbf16, #tpu.memory_space<vmem>>, %arg7: memref<1x1x96xf32, #tpu.memory_space<vmem>>, %arg8: memref<1x32x32xbf16, #tpu.memory_space<vmem>>, %arg9: memref<1x1x32xf32, #tpu.memory_space<vmem>>, %arg10: memref<1x1x32xf32, #tpu.memory_space<vmem>>, %arg11: memref<1x1x32xf32, #tpu.memory_space<vmem>>, %arg12: memref<1x32x128xbf16, #tpu.memory_space<vmem>>, %arg13: memref<1x1x128xf32, #tpu.memory_space<vmem>>, %arg14: memref<1x128x32xbf16, #tpu.memory_space<vmem>>, %arg15: memref<1x1x32xf32, #tpu.memory_space<vmem>>, %arg16: memref<1x64x32xf32, #tpu.memory_space<vmem>>) attributes {dimension_semantics = [#tpu.dimension_semantics<parallel>, #tpu.dimension_semantics<arbitrary>], iteration_bounds = array<i64: 2, 2>, scalar_prefetch = 0 : i64, scratch_operands = 0 : i64, tpu.core_type = #tpu.core_type<tc>, window_params = [{transform_indices = @transform_0, window_bounds = array<i64: 1, 64, 32>}, {pipeline_mode = #tpu.pipeline_mode<synchronous>, transform_indices = @transform_1, window_bounds = array<i64: 64, 9>}, {transform_indices = @transform_2, window_bounds = array<i64: 1, 1, 32>}, {transform_indices = @transform_3, window_bounds = array<i64: 1, 1, 32>}, {transform_indices = @transform_4, window_bounds = array<i64: 1, 288, 96>}, {transform_indices = @transform_5, window_bounds = array<i64: 1, 1, 96>}, {transform_indices = @transform_6, window_bounds = array<i64: 1, 32, 32>}, {transform_indices = @transform_7, window_bounds = array<i64: 1, 1, 32>}, {transform_indices = @transform_8, window_bounds = array<i64: 1, 1, 32>}, {transform_indices = @transform_9, window_bounds = array<i64: 1, 1, 32>}, {transform_indices = @transform_10, window_bounds = array<i64: 1, 32, 128>}, {transform_indices = @transform_11, window_bounds = array<i64: 1, 1, 128>}, {transform_indices = @transform_12, window_bounds = array<i64: 1, 128, 32>}, {transform_indices = @transform_13, window_bounds = array<i64: 1, 1, 32>}, {transform_indices = @transform_14, window_bounds = array<i64: 1, 64, 32>}]} {
    %c0_i32 = arith.constant 0 : i32
    %0 = arith.cmpi eq, %arg1, %c0_i32 : i32
    %1 = arith.extui %0 : i1 to i32
    %c0_i32_0 = arith.constant 0 : i32
    %2 = arith.cmpi ne, %1, %c0_i32_0 : i32
    scf.if %2 {
      %c0_64 = arith.constant 0 : index
      %c0_65 = arith.constant 0 : index
      %c0_66 = arith.constant 0 : index
      %178 = vector.load %arg2[%c0_64, %c0_65, %c0_66] : memref<1x64x32xf32, #tpu.memory_space<vmem>>, vector<1x64x32xf32>
      %c0_67 = arith.constant 0 : index
      %c0_68 = arith.constant 0 : index
      %c0_69 = arith.constant 0 : index
      %179 = vector.load %arg16[%c0_67, %c0_68, %c0_69] : memref<1x64x32xf32, #tpu.memory_space<vmem>>, vector<1x64x32xf32>
      tpu.vector_store %arg16[%c0_67, %c0_68, %c0_69], %178 {strides = array<i32>} : memref<1x64x32xf32, #tpu.memory_space<vmem>>, vector<1x64x32xf32>,
    } else {
    }
    %c0 = arith.constant 0 : index
    %c0_1 = arith.constant 0 : index
    %c0_2 = arith.constant 0 : index
    %3 = vector.load %arg16[%c0, %c0_1, %c0_2] : memref<1x64x32xf32, #tpu.memory_space<vmem>>, vector<1x64x32xf32>
    %4 = vector.shape_cast %3 : vector<1x64x32xf32> to vector<64x32xf32>
    %c0_3 = arith.constant 0 : index
    %c0_4 = arith.constant 0 : index
    %5 = vector.load %arg3[%c0_3, %c0_4] : memref<64x9xf32, #tpu.memory_space<vmem>>, vector<64x9xf32>
    %c0_5 = arith.constant 0 : index
    %c0_6 = arith.constant 0 : index
    %c0_7 = arith.constant 0 : index
    %6 = vector.load %arg4[%c0_5, %c0_6, %c0_7] : memref<1x1x32xf32, #tpu.memory_space<vmem>>, vector<1x1x32xf32>
    %7 = vector.shape_cast %6 : vector<1x1x32xf32> to vector<1x32xf32>
    %c0_8 = arith.constant 0 : index
    %c0_9 = arith.constant 0 : index
    %c0_10 = arith.constant 0 : index
    %8 = vector.load %arg5[%c0_8, %c0_9, %c0_10] : memref<1x1x32xf32, #tpu.memory_space<vmem>>, vector<1x1x32xf32>
    %9 = vector.shape_cast %8 : vector<1x1x32xf32> to vector<1x32xf32>
    %cst = arith.constant dense<0.000000e+00> : vector<64xf32>
    %10 = vector.multi_reduction <add>, %4, %cst [1] : vector<64x32xf32> to vector<64xf32>
    %11 = vector.shape_cast %10 : vector<64xf32> to vector<64x1xf32>
    %cst_11 = arith.constant 3.200000e+01 : f32
    %12 = vector.broadcast %cst_11 : f32 to vector<64x1xf32>
    %13 = arith.divf %11, %12 : vector<64x1xf32>
    %14 = vector.broadcast %13 : vector<64x1xf32> to vector<64x32xf32>
    %15 = arith.subf %4, %14 : vector<64x32xf32>
    %16 = arith.mulf %15, %15 : vector<64x32xf32>
    %cst_12 = arith.constant dense<0.000000e+00> : vector<64xf32>
    %17 = vector.multi_reduction <add>, %16, %cst_12 [1] : vector<64x32xf32> to vector<64xf32>
    %18 = vector.shape_cast %17 : vector<64xf32> to vector<64x1xf32>
    %cst_13 = arith.constant 3.200000e+01 : f32
    %19 = vector.broadcast %cst_13 : f32 to vector<64x1xf32>
    %20 = arith.divf %18, %19 : vector<64x1xf32>
    %21 = vector.broadcast %13 : vector<64x1xf32> to vector<64x32xf32>
    %22 = arith.subf %4, %21 : vector<64x32xf32>
    %cst_14 = arith.constant 9.99999974E-6 : f32
    %23 = vector.broadcast %cst_14 : f32 to vector<64x1xf32>
    %24 = arith.addf %20, %23 : vector<64x1xf32>
    %25 = math.rsqrt %24 : vector<64x1xf32>
    %26 = vector.broadcast %25 : vector<64x1xf32> to vector<64x32xf32>
    %27 = arith.mulf %22, %26 : vector<64x32xf32>
    %28 = vector.broadcast %7 : vector<1x32xf32> to vector<64x32xf32>
    %29 = arith.mulf %27, %28 : vector<64x32xf32>
    %30 = vector.broadcast %9 : vector<1x32xf32> to vector<64x32xf32>
    %31 = arith.addf %29, %30 : vector<64x32xf32>
    %32 = vector.extract_strided_slice %31 {offsets = [55, 0], sizes = [9, 32], strides = [1, 1]} : vector<64x32xf32> to vector<9x32xf32>
    %33 = vector.extract_strided_slice %31 {offsets = [0, 0], sizes = [55, 32], strides = [1, 1]} : vector<64x32xf32> to vector<55x32xf32>
    %34 = tpu.concatenate %32, %33 in 0 : vector<9x32xf32>, vector<55x32xf32> -> vector<64x32xf32>
    %35 = vector.extract_strided_slice %5 {offsets = [0, 0], sizes = [64, 1], strides = [1, 1]} : vector<64x9xf32> to vector<64x1xf32>
    %36 = vector.broadcast %35 : vector<64x1xf32> to vector<64x32xf32>
    %37 = arith.mulf %34, %36 : vector<64x32xf32>
    %38 = vector.extract_strided_slice %31 {offsets = [56, 0], sizes = [8, 32], strides = [1, 1]} : vector<64x32xf32> to vector<8x32xf32>
    %39 = vector.extract_strided_slice %31 {offsets = [0, 0], sizes = [56, 32], strides = [1, 1]} : vector<64x32xf32> to vector<56x32xf32>
    %40 = tpu.concatenate %38, %39 in 0 : vector<8x32xf32>, vector<56x32xf32> -> vector<64x32xf32>
    %41 = vector.extract_strided_slice %5 {offsets = [0, 1], sizes = [64, 1], strides = [1, 1]} : vector<64x9xf32> to vector<64x1xf32>
    %42 = vector.broadcast %41 : vector<64x1xf32> to vector<64x32xf32>
    %43 = arith.mulf %40, %42 : vector<64x32xf32>
    %44 = vector.extract_strided_slice %31 {offsets = [57, 0], sizes = [7, 32], strides = [1, 1]} : vector<64x32xf32> to vector<7x32xf32>
    %45 = vector.extract_strided_slice %31 {offsets = [0, 0], sizes = [57, 32], strides = [1, 1]} : vector<64x32xf32> to vector<57x32xf32>
    %46 = tpu.concatenate %44, %45 in 0 : vector<7x32xf32>, vector<57x32xf32> -> vector<64x32xf32>
    %47 = vector.extract_strided_slice %5 {offsets = [0, 2], sizes = [64, 1], strides = [1, 1]} : vector<64x9xf32> to vector<64x1xf32>
    %48 = vector.broadcast %47 : vector<64x1xf32> to vector<64x32xf32>
    %49 = arith.mulf %46, %48 : vector<64x32xf32>
    %50 = vector.extract_strided_slice %31 {offsets = [63, 0], sizes = [1, 32], strides = [1, 1]} : vector<64x32xf32> to vector<1x32xf32>
    %51 = vector.extract_strided_slice %31 {offsets = [0, 0], sizes = [63, 32], strides = [1, 1]} : vector<64x32xf32> to vector<63x32xf32>
    %52 = tpu.concatenate %50, %51 in 0 : vector<1x32xf32>, vector<63x32xf32> -> vector<64x32xf32>
    %53 = vector.extract_strided_slice %5 {offsets = [0, 3], sizes = [64, 1], strides = [1, 1]} : vector<64x9xf32> to vector<64x1xf32>
    %54 = vector.broadcast %53 : vector<64x1xf32> to vector<64x32xf32>
    %55 = arith.mulf %52, %54 : vector<64x32xf32>
    %56 = vector.extract_strided_slice %5 {offsets = [0, 4], sizes = [64, 1], strides = [1, 1]} : vector<64x9xf32> to vector<64x1xf32>
    %57 = vector.broadcast %56 : vector<64x1xf32> to vector<64x32xf32>
    %58 = arith.mulf %31, %57 : vector<64x32xf32>
    %59 = vector.extract_strided_slice %31 {offsets = [1, 0], sizes = [63, 32], strides = [1, 1]} : vector<64x32xf32> to vector<63x32xf32>
    %60 = vector.extract_strided_slice %31 {offsets = [0, 0], sizes = [1, 32], strides = [1, 1]} : vector<64x32xf32> to vector<1x32xf32>
    %61 = tpu.concatenate %59, %60 in 0 : vector<63x32xf32>, vector<1x32xf32> -> vector<64x32xf32>
    %62 = vector.extract_strided_slice %5 {offsets = [0, 5], sizes = [64, 1], strides = [1, 1]} : vector<64x9xf32> to vector<64x1xf32>
    %63 = vector.broadcast %62 : vector<64x1xf32> to vector<64x32xf32>
    %64 = arith.mulf %61, %63 : vector<64x32xf32>
    %65 = vector.extract_strided_slice %31 {offsets = [7, 0], sizes = [57, 32], strides = [1, 1]} : vector<64x32xf32> to vector<57x32xf32>
    %66 = vector.extract_strided_slice %31 {offsets = [0, 0], sizes = [7, 32], strides = [1, 1]} : vector<64x32xf32> to vector<7x32xf32>
    %67 = tpu.concatenate %65, %66 in 0 : vector<57x32xf32>, vector<7x32xf32> -> vector<64x32xf32>
    %68 = vector.extract_strided_slice %5 {offsets = [0, 6], sizes = [64, 1], strides = [1, 1]} : vector<64x9xf32> to vector<64x1xf32>
    %69 = vector.broadcast %68 : vector<64x1xf32> to vector<64x32xf32>
    %70 = arith.mulf %67, %69 : vector<64x32xf32>
    %71 = vector.extract_strided_slice %31 {offsets = [8, 0], sizes = [56, 32], strides = [1, 1]} : vector<64x32xf32> to vector<56x32xf32>
    %72 = vector.extract_strided_slice %31 {offsets = [0, 0], sizes = [8, 32], strides = [1, 1]} : vector<64x32xf32> to vector<8x32xf32>
    %73 = tpu.concatenate %71, %72 in 0 : vector<56x32xf32>, vector<8x32xf32> -> vector<64x32xf32>
    %74 = vector.extract_strided_slice %5 {offsets = [0, 7], sizes = [64, 1], strides = [1, 1]} : vector<64x9xf32> to vector<64x1xf32>
    %75 = vector.broadcast %74 : vector<64x1xf32> to vector<64x32xf32>
    %76 = arith.mulf %73, %75 : vector<64x32xf32>
    %77 = vector.extract_strided_slice %31 {offsets = [9, 0], sizes = [55, 32], strides = [1, 1]} : vector<64x32xf32> to vector<55x32xf32>
    %78 = vector.extract_strided_slice %31 {offsets = [0, 0], sizes = [9, 32], strides = [1, 1]} : vector<64x32xf32> to vector<9x32xf32>
    %79 = tpu.concatenate %77, %78 in 0 : vector<55x32xf32>, vector<9x32xf32> -> vector<64x32xf32>
    %80 = vector.extract_strided_slice %5 {offsets = [0, 8], sizes = [64, 1], strides = [1, 1]} : vector<64x9xf32> to vector<64x1xf32>
    %81 = vector.broadcast %80 : vector<64x1xf32> to vector<64x32xf32>
    %82 = arith.mulf %79, %81 : vector<64x32xf32>
    %83 = tpu.concatenate %37, %43, %49, %55, %58, %64, %70, %76, %82 in 1 : vector<64x32xf32>, vector<64x32xf32>, vector<64x32xf32>, vector<64x32xf32>, vector<64x32xf32>, vector<64x32xf32>, vector<64x32xf32>, vector<64x32xf32>, vector<64x32xf32> -> vector<64x288xf32>
    %84 = arith.truncf %83 : vector<64x288xf32> to vector<64x288xbf16>
    %c0_15 = arith.constant 0 : index
    %c0_16 = arith.constant 0 : index
    %c0_17 = arith.constant 0 : index
    %85 = vector.load %arg6[%c0_15, %c0_16, %c0_17] : memref<1x288x96xbf16, #tpu.memory_space<vmem>>, vector<1x288x96xbf16>
    %86 = vector.shape_cast %85 : vector<1x288x96xbf16> to vector<288x96xbf16>
    %cst_18 = arith.constant dense<0.000000e+00> : vector<64x96xf32>
    %87 = tpu.matmul %84, %86, %cst_18 {dimension_numbers = #tpu.dot_dimension_numbers<[1], [0], [0], [1], [0, 0, 1, 1], [], []>} : vector<64x288xbf16>, vector<288x96xbf16>, vector<64x96xf32> -> vector<64x96xf32>
    %c0_19 = arith.constant 0 : index
    %c0_20 = arith.constant 0 : index
    %c0_21 = arith.constant 0 : index
    %88 = vector.load %arg7[%c0_19, %c0_20, %c0_21] : memref<1x1x96xf32, #tpu.memory_space<vmem>>, vector<1x1x96xf32>
    %89 = vector.shape_cast %88 : vector<1x1x96xf32> to vector<1x96xf32>
    %90 = vector.broadcast %89 : vector<1x96xf32> to vector<64x96xf32>
    %91 = arith.addf %87, %90 : vector<64x96xf32>
    %92 = vector.extract_strided_slice %91 {offsets = [0, 0], sizes = [64, 32], strides = [1, 1]} : vector<64x96xf32> to vector<64x32xf32>
    %93 = vector.extract_strided_slice %91 {offsets = [0, 32], sizes = [64, 32], strides = [1, 1]} : vector<64x96xf32> to vector<64x32xf32>
    %94 = vector.extract_strided_slice %91 {offsets = [0, 64], sizes = [64, 32], strides = [1, 1]} : vector<64x96xf32> to vector<64x32xf32>
    %95 = vector.shape_cast %92 : vector<64x32xf32> to vector<64x2x16xf32>
    %96 = arith.truncf %95 : vector<64x2x16xf32> to vector<64x2x16xbf16>
    %97 = vector.shape_cast %93 : vector<64x32xf32> to vector<64x2x16xf32>
    %98 = arith.truncf %97 : vector<64x2x16xf32> to vector<64x2x16xbf16>
    %99 = vector.shape_cast %94 : vector<64x32xf32> to vector<64x2x16xf32>
    %100 = arith.truncf %99 : vector<64x2x16xf32> to vector<64x2x16xbf16>
    "tpu.trace_start"() <{level = 10 : i32, message = "nhd,mhd->hnm"}> : () -> ()
    %cst_22 = arith.constant dense<0.000000e+00> : vector<2x64x64xf32>
    %101 = tpu.matmul %96, %98, %cst_22 {dimension_numbers = #tpu.dot_dimension_numbers<[2], [2], [0], [0], [0, 1, 0, 0, 1, 0], [1], [1]>} : vector<64x2x16xbf16>, vector<64x2x16xbf16>, vector<2x64x64xf32> -> vector<2x64x64xf32>
    "tpu.trace_stop"() : () -> ()
    %cst_23 = arith.constant dense<0xFF800000> : vector<2x64xf32>
    %102 = vector.multi_reduction <maximumf>, %101, %cst_23 [2] : vector<2x64x64xf32> to vector<2x64xf32>
    %103 = vector.shape_cast %102 : vector<2x64xf32> to vector<2x64x1xf32>
    %104 = vector.broadcast %103 : vector<2x64x1xf32> to vector<2x64x64xf32>
    %105 = arith.subf %101, %104 : vector<2x64x64xf32>
    %106 = math.exp %105 : vector<2x64x64xf32>
    %cst_24 = arith.constant dense<0.000000e+00> : vector<2x64xf32>
    %107 = vector.multi_reduction <add>, %106, %cst_24 [2] : vector<2x64x64xf32> to vector<2x64xf32>
    %108 = vector.shape_cast %107 : vector<2x64xf32> to vector<2x64x1xf32>
    %109 = tpu.reciprocal %108 {approx = true} : vector<2x64x1xf32> -> vector<2x64x1xf32>
    %110 = vector.broadcast %109 : vector<2x64x1xf32> to vector<2x64x64xf32>
    %111 = arith.mulf %106, %110 : vector<2x64x64xf32>
    %112 = arith.truncf %111 : vector<2x64x64xf32> to vector<2x64x64xbf16>
    "tpu.trace_start"() <{level = 10 : i32, message = "hnm,mhd->nhd"}> : () -> ()
    %cst_25 = arith.constant dense<0.000000e+00> : vector<2x16x64xf32>
    %113 = tpu.matmul %100, %112, %cst_25 {dimension_numbers = #tpu.dot_dimension_numbers<[0], [2], [2], [1], [0, 1, 0, 2, 1, 1], [1], [0]>} : vector<64x2x16xbf16>, vector<2x64x64xbf16>, vector<2x16x64xf32> -> vector<2x16x64xf32>
    %114 = tpu.transpose %113, [2, 0, 1] : vector<2x16x64xf32> -> vector<64x2x16xf32>
    "tpu.trace_stop"() : () -> ()
    %115 = vector.shape_cast %114 : vector<64x2x16xf32> to vector<64x32xf32>
    %116 = arith.truncf %115 : vector<64x32xf32> to vector<64x32xbf16>
    %c0_26 = arith.constant 0 : index
    %c0_27 = arith.constant 0 : index
    %c0_28 = arith.constant 0 : index
    %117 = vector.load %arg8[%c0_26, %c0_27, %c0_28] : memref<1x32x32xbf16, #tpu.memory_space<vmem>>, vector<1x32x32xbf16>
    %118 = vector.shape_cast %117 : vector<1x32x32xbf16> to vector<32x32xbf16>
    %cst_29 = arith.constant dense<0.000000e+00> : vector<64x32xf32>
    %119 = tpu.matmul %116, %118, %cst_29 {dimension_numbers = #tpu.dot_dimension_numbers<[1], [0], [0], [1], [0, 0, 1, 1], [], []>} : vector<64x32xbf16>, vector<32x32xbf16>, vector<64x32xf32> -> vector<64x32xf32>
    %c0_30 = arith.constant 0 : index
    %c0_31 = arith.constant 0 : index
    %c0_32 = arith.constant 0 : index
    %120 = vector.load %arg9[%c0_30, %c0_31, %c0_32] : memref<1x1x32xf32, #tpu.memory_space<vmem>>, vector<1x1x32xf32>
    %121 = vector.shape_cast %120 : vector<1x1x32xf32> to vector<1x32xf32>
    %122 = vector.broadcast %121 : vector<1x32xf32> to vector<64x32xf32>
    %123 = arith.addf %119, %122 : vector<64x32xf32>
    %124 = arith.addf %4, %123 : vector<64x32xf32>
    %c0_33 = arith.constant 0 : index
    %c0_34 = arith.constant 0 : index
    %c0_35 = arith.constant 0 : index
    %125 = vector.load %arg10[%c0_33, %c0_34, %c0_35] : memref<1x1x32xf32, #tpu.memory_space<vmem>>, vector<1x1x32xf32>
    %126 = vector.shape_cast %125 : vector<1x1x32xf32> to vector<1x32xf32>
    %c0_36 = arith.constant 0 : index
    %c0_37 = arith.constant 0 : index
    %c0_38 = arith.constant 0 : index
    %127 = vector.load %arg11[%c0_36, %c0_37, %c0_38] : memref<1x1x32xf32, #tpu.memory_space<vmem>>, vector<1x1x32xf32>
    %128 = vector.shape_cast %127 : vector<1x1x32xf32> to vector<1x32xf32>
    %cst_39 = arith.constant dense<0.000000e+00> : vector<64xf32>
    %129 = vector.multi_reduction <add>, %124, %cst_39 [1] : vector<64x32xf32> to vector<64xf32>
    %130 = vector.shape_cast %129 : vector<64xf32> to vector<64x1xf32>
    %cst_40 = arith.constant 3.200000e+01 : f32
    %131 = vector.broadcast %cst_40 : f32 to vector<64x1xf32>
    %132 = arith.divf %130, %131 : vector<64x1xf32>
    %133 = vector.broadcast %132 : vector<64x1xf32> to vector<64x32xf32>
    %134 = arith.subf %124, %133 : vector<64x32xf32>
    %135 = arith.mulf %134, %134 : vector<64x32xf32>
    %cst_41 = arith.constant dense<0.000000e+00> : vector<64xf32>
    %136 = vector.multi_reduction <add>, %135, %cst_41 [1] : vector<64x32xf32> to vector<64xf32>
    %137 = vector.shape_cast %136 : vector<64xf32> to vector<64x1xf32>
    %cst_42 = arith.constant 3.200000e+01 : f32
    %138 = vector.broadcast %cst_42 : f32 to vector<64x1xf32>
    %139 = arith.divf %137, %138 : vector<64x1xf32>
    %140 = vector.broadcast %132 : vector<64x1xf32> to vector<64x32xf32>
    %141 = arith.subf %124, %140 : vector<64x32xf32>
    %cst_43 = arith.constant 9.99999974E-6 : f32
    %142 = vector.broadcast %cst_43 : f32 to vector<64x1xf32>
    %143 = arith.addf %139, %142 : vector<64x1xf32>
    %144 = math.rsqrt %143 : vector<64x1xf32>
    %145 = vector.broadcast %144 : vector<64x1xf32> to vector<64x32xf32>
    %146 = arith.mulf %141, %145 : vector<64x32xf32>
    %147 = vector.broadcast %126 : vector<1x32xf32> to vector<64x32xf32>
    %148 = arith.mulf %146, %147 : vector<64x32xf32>
    %149 = vector.broadcast %128 : vector<1x32xf32> to vector<64x32xf32>
    %150 = arith.addf %148, %149 : vector<64x32xf32>
    %151 = arith.truncf %150 : vector<64x32xf32> to vector<64x32xbf16>
    %c0_44 = arith.constant 0 : index
    %c0_45 = arith.constant 0 : index
    %c0_46 = arith.constant 0 : index
    %152 = vector.load %arg12[%c0_44, %c0_45, %c0_46] : memref<1x32x128xbf16, #tpu.memory_space<vmem>>, vector<1x32x128xbf16>
    %153 = vector.shape_cast %152 : vector<1x32x128xbf16> to vector<32x128xbf16>
    %cst_47 = arith.constant dense<0.000000e+00> : vector<64x128xf32>
    %154 = tpu.matmul %151, %153, %cst_47 {dimension_numbers = #tpu.dot_dimension_numbers<[1], [0], [0], [1], [0, 0, 1, 1], [], []>} : vector<64x32xbf16>, vector<32x128xbf16>, vector<64x128xf32> -> vector<64x128xf32>
    %c0_48 = arith.constant 0 : index
    %c0_49 = arith.constant 0 : index
    %c0_50 = arith.constant 0 : index
    %155 = vector.load %arg13[%c0_48, %c0_49, %c0_50] : memref<1x1x128xf32, #tpu.memory_space<vmem>>, vector<1x1x128xf32>
    %156 = vector.shape_cast %155 : vector<1x1x128xf32> to vector<1x128xf32>
    %157 = vector.broadcast %156 : vector<1x128xf32> to vector<64x128xf32>
    %158 = arith.addf %154, %157 : vector<64x128xf32>
    %cst_51 = arith.constant 5.000000e-01 : f32
    %159 = vector.broadcast %cst_51 : f32 to vector<64x128xf32>
    %160 = arith.mulf %159, %158 : vector<64x128xf32>
    %cst_52 = arith.constant 0.707106769 : f32
    %161 = vector.broadcast %cst_52 : f32 to vector<64x128xf32>
    %162 = arith.mulf %158, %161 : vector<64x128xf32>
    %163 = math.erf %162 : vector<64x128xf32>
    %cst_53 = arith.constant 1.000000e+00 : f32
    %164 = vector.broadcast %cst_53 : f32 to vector<64x128xf32>
    %165 = arith.addf %164, %163 : vector<64x128xf32>
    %166 = arith.mulf %160, %165 : vector<64x128xf32>
    %167 = arith.truncf %166 : vector<64x128xf32> to vector<64x128xbf16>
    %c0_54 = arith.constant 0 : index
    %c0_55 = arith.constant 0 : index
    %c0_56 = arith.constant 0 : index
    %168 = vector.load %arg14[%c0_54, %c0_55, %c0_56] : memref<1x128x32xbf16, #tpu.memory_space<vmem>>, vector<1x128x32xbf16>
    %169 = vector.shape_cast %168 : vector<1x128x32xbf16> to vector<128x32xbf16>
    %cst_57 = arith.constant dense<0.000000e+00> : vector<64x32xf32>
    %170 = tpu.matmul %167, %169, %cst_57 {dimension_numbers = #tpu.dot_dimension_numbers<[1], [0], [0], [1], [0, 0, 1, 1], [], []>} : vector<64x128xbf16>, vector<128x32xbf16>, vector<64x32xf32> -> vector<64x32xf32>
    %c0_58 = arith.constant 0 : index
    %c0_59 = arith.constant 0 : index
    %c0_60 = arith.constant 0 : index
    %171 = vector.load %arg15[%c0_58, %c0_59, %c0_60] : memref<1x1x32xf32, #tpu.memory_space<vmem>>, vector<1x1x32xf32>
    %172 = vector.shape_cast %171 : vector<1x1x32xf32> to vector<1x32xf32>
    %173 = vector.broadcast %172 : vector<1x32xf32> to vector<64x32xf32>
    %174 = arith.addf %170, %173 : vector<64x32xf32>
    %175 = arith.addf %124, %174 : vector<64x32xf32>
    %176 = vector.shape_cast %175 : vector<64x32xf32> to vector<1x64x32xf32>
    %c0_61 = arith.constant 0 : index
    %c0_62 = arith.constant 0 : index
    %c0_63 = arith.constant 0 : index
    %177 = vector.load %arg16[%c0_61, %c0_62, %c0_63] : memref<1x64x32xf32, #tpu.memory_space<vmem>>, vector<1x64x32xf32>
    tpu.vector_store %arg16[%c0_61, %c0_62, %c0_63], %176 {strides = array<i32>} : memref<1x64x32xf32, #tpu.memory_space<vmem>>, vector<1x64x32xf32>,
    return
  }
  func.func @transform_0(%arg0: i32, %arg1: i32) -> (i32, i32, i32) {
    %c0_i32 = arith.constant 0 : i32
    %c0_i32_0 = arith.constant 0 : i32
    %c0_i32_1 = arith.constant 0 : i32
    return %arg0, %c0_i32, %c0_i32_0 : i32, i32, i32
  }
  func.func @transform_1(%arg0: i32, %arg1: i32) -> (i32, i32) {
    %c0_i32 = arith.constant 0 : i32
    %c0_i32_0 = arith.constant 0 : i32
    %c0_i32_1 = arith.constant 0 : i32
    return %c0_i32, %c0_i32_0 : i32, i32
  }
  func.func @transform_2(%arg0: i32, %arg1: i32) -> (i32, i32, i32) {
    %c0_i32 = arith.constant 0 : i32
    %c0_i32_0 = arith.constant 0 : i32
    %c0_i32_1 = arith.constant 0 : i32
    return %arg1, %c0_i32, %c0_i32_0 : i32, i32, i32
  }
  func.func @transform_3(%arg0: i32, %arg1: i32) -> (i32, i32, i32) {
    %c0_i32 = arith.constant 0 : i32
    %c0_i32_0 = arith.constant 0 : i32
    %c0_i32_1 = arith.constant 0 : i32
    return %arg1, %c0_i32, %c0_i32_0 : i32, i32, i32
  }
  func.func @transform_4(%arg0: i32, %arg1: i32) -> (i32, i32, i32) {
    %c0_i32 = arith.constant 0 : i32
    %c0_i32_0 = arith.constant 0 : i32
    %c0_i32_1 = arith.constant 0 : i32
    return %arg1, %c0_i32, %c0_i32_0 : i32, i32, i32
  }
  func.func @transform_5(%arg0: i32, %arg1: i32) -> (i32, i32, i32) {
    %c0_i32 = arith.constant 0 : i32
    %c0_i32_0 = arith.constant 0 : i32
    %c0_i32_1 = arith.constant 0 : i32
    return %arg1, %c0_i32, %c0_i32_0 : i32, i32, i32
  }
  func.func @transform_6(%arg0: i32, %arg1: i32) -> (i32, i32, i32) {
    %c0_i32 = arith.constant 0 : i32
    %c0_i32_0 = arith.constant 0 : i32
    %c0_i32_1 = arith.constant 0 : i32
    return %arg1, %c0_i32, %c0_i32_0 : i32, i32, i32
  }
  func.func @transform_7(%arg0: i32, %arg1: i32) -> (i32, i32, i32) {
    %c0_i32 = arith.constant 0 : i32
    %c0_i32_0 = arith.constant 0 : i32
    %c0_i32_1 = arith.constant 0 : i32
    return %arg1, %c0_i32, %c0_i32_0 : i32, i32, i32
  }
  func.func @transform_8(%arg0: i32, %arg1: i32) -> (i32, i32, i32) {
    %c0_i32 = arith.constant 0 : i32
    %c0_i32_0 = arith.constant 0 : i32
    %c0_i32_1 = arith.constant 0 : i32
    return %arg1, %c0_i32, %c0_i32_0 : i32, i32, i32
  }
  func.func @transform_9(%arg0: i32, %arg1: i32) -> (i32, i32, i32) {
    %c0_i32 = arith.constant 0 : i32
    %c0_i32_0 = arith.constant 0 : i32
    %c0_i32_1 = arith.constant 0 : i32
    return %arg1, %c0_i32, %c0_i32_0 : i32, i32, i32
  }
  func.func @transform_10(%arg0: i32, %arg1: i32) -> (i32, i32, i32) {
    %c0_i32 = arith.constant 0 : i32
    %c0_i32_0 = arith.constant 0 : i32
    %c0_i32_1 = arith.constant 0 : i32
    return %arg1, %c0_i32, %c0_i32_0 : i32, i32, i32
  }
  func.func @transform_11(%arg0: i32, %arg1: i32) -> (i32, i32, i32) {
    %c0_i32 = arith.constant 0 : i32
    %c0_i32_0 = arith.constant 0 : i32
    %c0_i32_1 = arith.constant 0 : i32
    return %arg1, %c0_i32, %c0_i32_0 : i32, i32, i32
  }
  func.func @transform_12(%arg0: i32, %arg1: i32) -> (i32, i32, i32) {
    %c0_i32 = arith.constant 0 : i32
    %c0_i32_0 = arith.constant 0 : i32
    %c0_i32_1 = arith.constant 0 : i32
    return %arg1, %c0_i32, %c0_i32_0 : i32, i32, i32
  }
  func.func @transform_13(%arg0: i32, %arg1: i32) -> (i32, i32, i32) {
    %c0_i32 = arith.constant 0 : i32
    %c0_i32_0 = arith.constant 0 : i32
    %c0_i32_1 = arith.constant 0 : i32
    return %arg1, %c0_i32, %c0_i32_0 : i32, i32, i32
  }
  func.func @transform_14(%arg0: i32, %arg1: i32) -> (i32, i32, i32) {
    %c0_i32 = arith.constant 0 : i32
    %c0_i32_0 = arith.constant 0 : i32
    %c0_i32_1 = arith.constant 0 : i32
    return %arg0, %c0_i32, %c0_i32_0 : i32, i32, i32
  }
}

</mosaic_0001>

<llo_original>
// kernel: transformer_forward.1
$region0: #{transformer_forward.1}
  #allocation0 [shape = 'u32[]', space=smem, size = 0x4, offset = 0x4, fixed_abs, tag = 'smem constant byte address 0x4 - core index']
  #allocation1 [shape = 'u32[144,128]{1,0:T(1,128)}', space=vmem, size = 0x12000, scoped, tag = 'internal scratch']
  %s0 = inlined_call_operand.vmem [shape: f32[2,64,32], index: 0, kind: input, shape index: {}]
  %s1 = inlined_call_operand.vmem [shape: f32[64,9], index: 1, kind: input, shape index: {}]
  %s2 = inlined_call_operand.vmem [shape: f32[2,1,32], index: 2, kind: input, shape index: {}]
  %s3 = inlined_call_operand.vmem [shape: f32[2,1,32], index: 3, kind: input, shape index: {}]
  %s4 = inlined_call_operand.vmem [shape: bf16[2,288,96], index: 4, kind: input, shape index: {}]
  %s5 = inlined_call_operand.vmem [shape: f32[2,1,96], index: 5, kind: input, shape index: {}]
  %s6 = inlined_call_operand.vmem [shape: bf16[2,32,32], index: 6, kind: input, shape index: {}]
  %s7 = inlined_call_operand.vmem [shape: f32[2,1,32], index: 7, kind: input, shape index: {}]
  %s8 = inlined_call_operand.vmem [shape: f32[2,1,32], index: 8, kind: input, shape index: {}]
  %s9 = inlined_call_operand.vmem [shape: f32[2,1,32], index: 9, kind: input, shape index: {}]
  %s10 = inlined_call_operand.vmem [shape: bf16[2,32,128], index: 10, kind: input, shape index: {}]
  %s11 = inlined_call_operand.vmem [shape: f32[2,1,128], index: 11, kind: input, shape index: {}]
  %s12 = inlined_call_operand.vmem [shape: bf16[2,128,32], index: 12, kind: input, shape index: {}]
  %s13 = inlined_call_operand.vmem [shape: f32[2,1,32], index: 13, kind: input, shape index: {}]
  %s14 = inlined_call_operand.vmem [shape: f32[2,64,32], index: 14, kind: output, shape index: {}]
  %s15 = sld [smem:[#allocation0]]
  $region93: #{transformer_forward.1} parent=0
    _
  %s17 = ssub.s32 1, %s15
  %s18 = scalar_select 0, %s17, %s15
  loop: start=0, step=1, limit=6
  $region2: #{transformer_forward.1} parent=0 // loop_pre_header
    _
  $region3: #{transformer_forward.1} parent=0 // loop_header
    %s20 = sphi 0, %s24
    %p21 = scmp.ge.s32.totalorder %s20, 6
    %s27 = sphi 0, %s39
    %s28 = sphi 0, %s35
    %s29 = sphi 0, %s27
    %s30 = sphi 0, %s28
    %s31 = sphi 0, %s29
    %s32 = sphi 0, %s30
    %s42 = sphi 0, %s44
    %s45 = sphi 0, %s42
    %s46 = sphi 0, %s45
    %s62 = sphi 0, %s46
    %s66 = sphi 0, %s66
    %s68 = sphi 0, %s66
    %s69 = sphi 0, %s68
    %s83 = sphi 0, %s69
    %s89 = sphi 0, %s91
    %s92 = sphi 0, %s89
    %s93 = sphi 0, %s92
    %s109 = sphi 0, %s93
    %s115 = sphi 0, %s117
    %s118 = sphi 0, %s115
    %s119 = sphi 0, %s118
    %s135 = sphi 0, %s119
    %s141 = sphi 0, %s143
    %s144 = sphi 0, %s141
    %s145 = sphi 0, %s144
    %s161 = sphi 0, %s145
    %s167 = sphi 0, %s169
    %s170 = sphi 0, %s167
    %s171 = sphi 0, %s170
    %s187 = sphi 0, %s171
    %s193 = sphi 0, %s195
    %s196 = sphi 0, %s193
    %s197 = sphi 0, %s196
    %s213 = sphi 0, %s197
    %s219 = sphi 0, %s221
    %s222 = sphi 0, %s219
    %s223 = sphi 0, %s222
    %s239 = sphi 0, %s223
    %s245 = sphi 0, %s247
    %s248 = sphi 0, %s245
    %s249 = sphi 0, %s248
    %s265 = sphi 0, %s249
    %s271 = sphi 0, %s273
    %s274 = sphi 0, %s271
    %s275 = sphi 0, %s274
    %s291 = sphi 0, %s275
    %s297 = sphi 0, %s299
    %s300 = sphi 0, %s297
    %s301 = sphi 0, %s300
    %s317 = sphi 0, %s301
    %s323 = sphi 0, %s325
    %s326 = sphi 0, %s323
    %s327 = sphi 0, %s326
    %s343 = sphi 0, %s327
    %s349 = sphi 0, %s351
    %s352 = sphi 0, %s349
    %s353 = sphi 0, %s352
    %s369 = sphi 0, %s353
    %s375 = sphi 0, %s377
    %s378 = sphi 0, %s375
    %s379 = sphi 0, %s378
    %s395 = sphi 0, %s379
    %s401 = sphi 0, %s403
    %s404 = sphi 0, %s401
    %s405 = sphi 0, %s404
    %s421 = sphi 0, %s405
  $region4: #{transformer_forward.1} parent=0 // loop_header_branch
    %23 = sbr.rel (%p21) target = $region8
  $region5: #{transformer_forward.1} parent=0 // loop_body
    %s25 = ssub.s32 %s20, 1
    %s26 = ssub.s32 %s20, 2
    %s33 = sadd.s32 1, %s28
    %p34 = scmp.ge.s32.totalorder %s33, 2
    %s35 = scalar_select %p34, 0, %s33
    %s36 = sadd.s32 1, %s27
    %s37 = scalar_select %p34, %s36, %s27
    %p38 = scmp.ge.s32.totalorder %s37, 2
    %s39 = scalar_select %p38, 0, %s37
    %s40 = ssub.s32 %s27, %s39
    %p41 = scmp.eq.s32.totalorder %s40, 0
    %s43 = sadd.s32 %s42, 1
    %s44 = scalar_select %p41, %s42, %s43
    %p47 = pneg %p41
    %p48 = scmp.eq.s32.totalorder %s20, 3
    %p49 = por %p47, %p48
    %p50 = scmp.ne.s32.totalorder %s42, %s45
    %p51 = scmp.eq.s32.totalorder %s20, 0
    %p52 = por %p50, %p51
    %p53 = scmp.ne.s32.totalorder %s42, %s45
    %p54 = scmp.eq.s32.totalorder %s25, 3
    %p55 = por %p53, %p54
    %p56 = scmp.ne.s32.totalorder %s45, %s46
    %p57 = scmp.eq.s32.totalorder %s25, 0
    %p58 = por %p56, %p57
    %p59 = scmp.ne.s32.totalorder %s45, %s46
    %p60 = scmp.eq.s32.totalorder %s26, 3
    %p61 = por %p59, %p60
    %p63 = scmp.ne.s32.totalorder %s46, %s62
    %p64 = scmp.eq.s32.totalorder %s26, 0
    %p65 = por %p63, %p64
    %s67 = sadd.s32 %s66, 1
    %p70 = scmp.eq.s32.totalorder %s20, 3
    %p71 = scmp.ne.s32.totalorder %s66, %s68
    %p72 = scmp.eq.s32.totalorder %s20, 0
    %p73 = por %p71, %p72
    %p74 = scmp.ne.s32.totalorder %s66, %s68
    %p75 = scmp.eq.s32.totalorder %s25, 3
    %p76 = por %p74, %p75
    %p77 = scmp.ne.s32.totalorder %s68, %s69
    %p78 = scmp.eq.s32.totalorder %s25, 0
    %p79 = por %p77, %p78
    %p80 = scmp.ne.s32.totalorder %s68, %s69
    %p81 = scmp.eq.s32.totalorder %s26, 3
    %p82 = por %p80, %p81
    %p84 = scmp.ne.s32.totalorder %s69, %s83
    %p85 = scmp.eq.s32.totalorder %s26, 0
    %p86 = por %p84, %p85
    %s87 = ssub.s32 %s28, %s35
    %p88 = scmp.eq.s32.totalorder %s87, 0
    %s90 = sadd.s32 %s89, 1
    %s91 = scalar_select %p88, %s89, %s90
    %p94 = pneg %p88
    %p95 = scmp.eq.s32.totalorder %s20, 3
    %p96 = por %p94, %p95
    %p97 = scmp.ne.s32.totalorder %s89, %s92
    %p98 = scmp.eq.s32.totalorder %s20, 0
    %p99 = por %p97, %p98
    %p100 = scmp.ne.s32.totalorder %s89, %s92
    %p101 = scmp.eq.s32.totalorder %s25, 3
    %p102 = por %p100, %p101
    %p103 = scmp.ne.s32.totalorder %s92, %s93
    %p104 = scmp.eq.s32.totalorder %s25, 0
    %p105 = por %p103, %p104
    %p106 = scmp.ne.s32.totalorder %s92, %s93
    %p107 = scmp.eq.s32.totalorder %s26, 3
    %p108 = por %p106, %p107
    %p110 = scmp.ne.s32.totalorder %s93, %s109
    %p111 = scmp.eq.s32.totalorder %s26, 0
    %p112 = por %p110, %p111
    %s113 = ssub.s32 %s28, %s35
    %p114 = scmp.eq.s32.totalorder %s113, 0
    %s116 = sadd.s32 %s115, 1
    %s117 = scalar_select %p114, %s115, %s116
    %p120 = pneg %p114
    %p121 = scmp.eq.s32.totalorder %s20, 3
    %p122 = por %p120, %p121
    %p123 = scmp.ne.s32.totalorder %s115, %s118
    %p124 = scmp.eq.s32.totalorder %s20, 0
    %p125 = por %p123, %p124
    %p126 = scmp.ne.s32.totalorder %s115, %s118
    %p127 = scmp.eq.s32.totalorder %s25, 3
    %p128 = por %p126, %p127
    %p129 = scmp.ne.s32.totalorder %s118, %s119
    %p130 = scmp.eq.s32.totalorder %s25, 0
    %p131 = por %p129, %p130
    %p132 = scmp.ne.s32.totalorder %s118, %s119
    %p133 = scmp.eq.s32.totalorder %s26, 3
    %p134 = por %p132, %p133
    %p136 = scmp.ne.s32.totalorder %s119, %s135
    %p137 = scmp.eq.s32.totalorder %s26, 0
    %p138 = por %p136, %p137
    %s139 = ssub.s32 %s28, %s35
    %p140 = scmp.eq.s32.totalorder %s139, 0
    %s142 = sadd.s32 %s141, 1
    %s143 = scalar_select %p140, %s141, %s142
    %p146 = pneg %p140
    %p147 = scmp.eq.s32.totalorder %s20, 3
    %p148 = por %p146, %p147
    %p149 = scmp.ne.s32.totalorder %s141, %s144
    %p150 = scmp.eq.s32.totalorder %s20, 0
    %p151 = por %p149, %p150
    %p152 = scmp.ne.s32.totalorder %s141, %s144
    %p153 = scmp.eq.s32.totalorder %s25, 3
    %p154 = por %p152, %p153
    %p155 = scmp.ne.s32.totalorder %s144, %s145
    %p156 = scmp.eq.s32.totalorder %s25, 0
    %p157 = por %p155, %p156
    %p158 = scmp.ne.s32.totalorder %s144, %s145
    %p159 = scmp.eq.s32.totalorder %s26, 3
    %p160 = por %p158, %p159
    %p162 = scmp.ne.s32.totalorder %s145, %s161
    %p163 = scmp.eq.s32.totalorder %s26, 0
    %p164 = por %p162, %p163
    %s165 = ssub.s32 %s28, %s35
    %p166 = scmp.eq.s32.totalorder %s165, 0
    %s168 = sadd.s32 %s167, 1
    %s169 = scalar_select %p166, %s167, %s168
    %p172 = pneg %p166
    %p173 = scmp.eq.s32.totalorder %s20, 3
    %p174 = por %p172, %p173
    %p175 = scmp.ne.s32.totalorder %s167, %s170
    %p176 = scmp.eq.s32.totalorder %s20, 0
    %p177 = por %p175, %p176
    %p178 = scmp.ne.s32.totalorder %s167, %s170
    %p179 = scmp.eq.s32.totalorder %s25, 3
    %p180 = por %p178, %p179
    %p181 = scmp.ne.s32.totalorder %s170, %s171
    %p182 = scmp.eq.s32.totalorder %s25, 0
    %p183 = por %p181, %p182
    %p184 = scmp.ne.s32.totalorder %s170, %s171
    %p185 = scmp.eq.s32.totalorder %s26, 3
    %p186 = por %p184, %p185
    %p188 = scmp.ne.s32.totalorder %s171, %s187
    %p189 = scmp.eq.s32.totalorder %s26, 0
    %p190 = por %p188, %p189
    %s191 = ssub.s32 %s28, %s35
    %p192 = scmp.eq.s32.totalorder %s191, 0
    %s194 = sadd.s32 %s193, 1
    %s195 = scalar_select %p192, %s193, %s194
    %p198 = pneg %p192
    %p199 = scmp.eq.s32.totalorder %s20, 3
    %p200 = por %p198, %p199
    %p201 = scmp.ne.s32.totalorder %s193, %s196
    %p202 = scmp.eq.s32.totalorder %s20, 0
    %p203 = por %p201, %p202
    %p204 = scmp.ne.s32.totalorder %s193, %s196
    %p205 = scmp.eq.s32.totalorder %s25, 3
    %p206 = por %p204, %p205
    %p207 = scmp.ne.s32.totalorder %s196, %s197
    %p208 = scmp.eq.s32.totalorder %s25, 0
    %p209 = por %p207, %p208
    %p210 = scmp.ne.s32.totalorder %s196, %s197
    %p211 = scmp.eq.s32.totalorder %s26, 3
    %p212 = por %p210, %p211
    %p214 = scmp.ne.s32.totalorder %s197, %s213
    %p215 = scmp.eq.s32.totalorder %s26, 0
    %p216 = por %p214, %p215
    %s217 = ssub.s32 %s28, %s35
    %p218 = scmp.eq.s32.totalorder %s217, 0
    %s220 = sadd.s32 %s219, 1
    %s221 = scalar_select %p218, %s219, %s220
    %p224 = pneg %p218
    %p225 = scmp.eq.s32.totalorder %s20, 3
    %p226 = por %p224, %p225
    %p227 = scmp.ne.s32.totalorder %s219, %s222
    %p228 = scmp.eq.s32.totalorder %s20, 0
    %p229 = por %p227, %p228
    %p230 = scmp.ne.s32.totalorder %s219, %s222
    %p231 = scmp.eq.s32.totalorder %s25, 3
    %p232 = por %p230, %p231
    %p233 = scmp.ne.s32.totalorder %s222, %s223
    %p234 = scmp.eq.s32.totalorder %s25, 0
    %p235 = por %p233, %p234
    %p236 = scmp.ne.s32.totalorder %s222, %s223
    %p237 = scmp.eq.s32.totalorder %s26, 3
    %p238 = por %p236, %p237
    %p240 = scmp.ne.s32.totalorder %s223, %s239
    %p241 = scmp.eq.s32.totalorder %s26, 0
    %p242 = por %p240, %p241
    %s243 = ssub.s32 %s28, %s35
    %p244 = scmp.eq.s32.totalorder %s243, 0
    %s246 = sadd.s32 %s245, 1
    %s247 = scalar_select %p244, %s245, %s246
    %p250 = pneg %p244
    %p251 = scmp.eq.s32.totalorder %s20, 3
    %p252 = por %p250, %p251
    %p253 = scmp.ne.s32.totalorder %s245, %s248
    %p254 = scmp.eq.s32.totalorder %s20, 0
    %p255 = por %p253, %p254
    %p256 = scmp.ne.s32.totalorder %s245, %s248
    %p257 = scmp.eq.s32.totalorder %s25, 3
    %p258 = por %p256, %p257
    %p259 = scmp.ne.s32.totalorder %s248, %s249
    %p260 = scmp.eq.s32.totalorder %s25, 0
    %p261 = por %p259, %p260
    %p262 = scmp.ne.s32.totalorder %s248, %s249
    %p263 = scmp.eq.s32.totalorder %s26, 3
    %p264 = por %p262, %p263
    %p266 = scmp.ne.s32.totalorder %s249, %s265
    %p267 = scmp.eq.s32.totalorder %s26, 0
    %p268 = por %p266, %p267
    %s269 = ssub.s32 %s28, %s35
    %p270 = scmp.eq.s32.totalorder %s269, 0
    %s272 = sadd.s32 %s271, 1
    %s273 = scalar_select %p270, %s271, %s272
    %p276 = pneg %p270
    %p277 = scmp.eq.s32.totalorder %s20, 3
    %p278 = por %p276, %p277
    %p279 = scmp.ne.s32.totalorder %s271, %s274
    %p280 = scmp.eq.s32.totalorder %s20, 0
    %p281 = por %p279, %p280
    %p282 = scmp.ne.s32.totalorder %s271, %s274
    %p283 = scmp.eq.s32.totalorder %s25, 3
    %p284 = por %p282, %p283
    %p285 = scmp.ne.s32.totalorder %s274, %s275
    %p286 = scmp.eq.s32.totalorder %s25, 0
    %p287 = por %p285, %p286
    %p288 = scmp.ne.s32.totalorder %s274, %s275
    %p289 = scmp.eq.s32.totalorder %s26, 3
    %p290 = por %p288, %p289
    %p292 = scmp.ne.s32.totalorder %s275, %s291
    %p293 = scmp.eq.s32.totalorder %s26, 0
    %p294 = por %p292, %p293
    %s295 = ssub.s32 %s28, %s35
    %p296 = scmp.eq.s32.totalorder %s295, 0
    %s298 = sadd.s32 %s297, 1
    %s299 = scalar_select %p296, %s297, %s298
    %p302 = pneg %p296
    %p303 = scmp.eq.s32.totalorder %s20, 3
    %p304 = por %p302, %p303
    %p305 = scmp.ne.s32.totalorder %s297, %s300
    %p306 = scmp.eq.s32.totalorder %s20, 0
    %p307 = por %p305, %p306
    %p308 = scmp.ne.s32.totalorder %s297, %s300
    %p309 = scmp.eq.s32.totalorder %s25, 3
    %p310 = por %p308, %p309
    %p311 = scmp.ne.s32.totalorder %s300, %s301
    %p312 = scmp.eq.s32.totalorder %s25, 0
    %p313 = por %p311, %p312
    %p314 = scmp.ne.s32.totalorder %s300, %s301
    %p315 = scmp.eq.s32.totalorder %s26, 3
    %p316 = por %p314, %p315
    %p318 = scmp.ne.s32.totalorder %s301, %s317
    %p319 = scmp.eq.s32.totalorder %s26, 0
    %p320 = por %p318, %p319
    %s321 = ssub.s32 %s28, %s35
    %p322 = scmp.eq.s32.totalorder %s321, 0
    %s324 = sadd.s32 %s323, 1
    %s325 = scalar_select %p322, %s323, %s324
    %p328 = pneg %p322
    %p329 = scmp.eq.s32.totalorder %s20, 3
    %p330 = por %p328, %p329
    %p331 = scmp.ne.s32.totalorder %s323, %s326
    %p332 = scmp.eq.s32.totalorder %s20, 0
    %p333 = por %p331, %p332
    %p334 = scmp.ne.s32.totalorder %s323, %s326
    %p335 = scmp.eq.s32.totalorder %s25, 3
    %p336 = por %p334, %p335
    %p337 = scmp.ne.s32.totalorder %s326, %s327
    %p338 = scmp.eq.s32.totalorder %s25, 0
    %p339 = por %p337, %p338
    %p340 = scmp.ne.s32.totalorder %s326, %s327
    %p341 = scmp.eq.s32.totalorder %s26, 3
    %p342 = por %p340, %p341
    %p344 = scmp.ne.s32.totalorder %s327, %s343
    %p345 = scmp.eq.s32.totalorder %s26, 0
    %p346 = por %p344, %p345
    %s347 = ssub.s32 %s28, %s35
    %p348 = scmp.eq.s32.totalorder %s347, 0
    %s350 = sadd.s32 %s349, 1
    %s351 = scalar_select %p348, %s349, %s350
    %p354 = pneg %p348
    %p355 = scmp.eq.s32.totalorder %s20, 3
    %p356 = por %p354, %p355
    %p357 = scmp.ne.s32.totalorder %s349, %s352
    %p358 = scmp.eq.s32.totalorder %s20, 0
    %p359 = por %p357, %p358
    %p360 = scmp.ne.s32.totalorder %s349, %s352
    %p361 = scmp.eq.s32.totalorder %s25, 3
    %p362 = por %p360, %p361
    %p363 = scmp.ne.s32.totalorder %s352, %s353
    %p364 = scmp.eq.s32.totalorder %s25, 0
    %p365 = por %p363, %p364
    %p366 = scmp.ne.s32.totalorder %s352, %s353
    %p367 = scmp.eq.s32.totalorder %s26, 3
    %p368 = por %p366, %p367
    %p370 = scmp.ne.s32.totalorder %s353, %s369
    %p371 = scmp.eq.s32.totalorder %s26, 0
    %p372 = por %p370, %p371
    %s373 = ssub.s32 %s28, %s35
    %p374 = scmp.eq.s32.totalorder %s373, 0
    %s376 = sadd.s32 %s375, 1
    %s377 = scalar_select %p374, %s375, %s376
    %p380 = pneg %p374
    %p381 = scmp.eq.s32.totalorder %s20, 3
    %p382 = por %p380, %p381
    %p383 = scmp.ne.s32.totalorder %s375, %s378
    %p384 = scmp.eq.s32.totalorder %s20, 0
    %p385 = por %p383, %p384
    %p386 = scmp.ne.s32.totalorder %s375, %s378
    %p387 = scmp.eq.s32.totalorder %s25, 3
    %p388 = por %p386, %p387
    %p389 = scmp.ne.s32.totalorder %s378, %s379
    %p390 = scmp.eq.s32.totalorder %s25, 0
    %p391 = por %p389, %p390
    %p392 = scmp.ne.s32.totalorder %s378, %s379
    %p393 = scmp.eq.s32.totalorder %s26, 3
    %p394 = por %p392, %p393
    %p396 = scmp.ne.s32.totalorder %s379, %s395
    %p397 = scmp.eq.s32.totalorder %s26, 0
    %p398 = por %p396, %p397
    %s399 = ssub.s32 %s27, %s39
    %p400 = scmp.eq.s32.totalorder %s399, 0
    %s402 = sadd.s32 %s401, 1
    %s403 = scalar_select %p400, %s401, %s402
    %p406 = pneg %p400
    %p407 = scmp.eq.s32.totalorder %s20, 3
    %p408 = por %p406, %p407
    %p409 = scmp.ne.s32.totalorder %s401, %s404
    %p410 = scmp.eq.s32.totalorder %s20, 0
    %p411 = por %p409, %p410
    %p412 = scmp.ne.s32.totalorder %s401, %s404
    %p413 = scmp.eq.s32.totalorder %s25, 3
    %p414 = por %p412, %p413
    %p415 = scmp.ne.s32.totalorder %s404, %s405
    %p416 = scmp.eq.s32.totalorder %s25, 0
    %p417 = por %p415, %p416
    %p418 = scmp.ne.s32.totalorder %s404, %s405
    %p419 = scmp.eq.s32.totalorder %s26, 3
    %p420 = por %p418, %p419
    %p422 = scmp.ne.s32.totalorder %s405, %s421
    %p423 = scmp.eq.s32.totalorder %s26, 0
    %p424 = por %p422, %p423
    %p425 = scmp.le.s32.totalorder 1, %s20
    %p426 = scmp.lt.s32.totalorder %s20, 5
    %p427 = pnand %p425, %p426
    %p428 = pneg %p427
    // Predicated region
    $region9: #{transformer_forward.1} parent=5 // pred_check
      _
    $region10: #{transformer_forward.1} parent=5 // pred_check_branch
      %430 = sbr.rel (%p427) target = $region12
    $region11: #{transformer_forward.1} parent=5 // pred_region
      %s431 = ssub.s32 %s20, 1
      // Predicated region
      $region13: #{transformer_forward.1} parent=11 // pred_check
        %p432 = pneg %p79
      $region14: #{transformer_forward.1} parent=11 // pred_check_branch
        %434 = sbr.rel (%p432) target = $region16
      $region15: #{transformer_forward.1} parent=11 // pred_region
        _
      $region16: #{transformer_forward.1} parent=11 // pred_fallthru
        _
    $region12: #{transformer_forward.1} parent=5 // pred_fallthru
      _
    %p435 = scmp.lt.s32.totalorder %s20, 4
    // Predicated region
    $region17: #{transformer_forward.1} parent=5 // pred_check
      %p436 = pneg %p435
    $region18: #{transformer_forward.1} parent=5 // pred_check_branch
      %438 = sbr.rel (%p436) target = $region20
    $region19: #{transformer_forward.1} parent=5 // pred_region
      // Predicated region
      $region21: #{transformer_forward.1} parent=19 // pred_check
        %p439 = pneg %p52
      $region22: #{transformer_forward.1} parent=19 // pred_check_branch
        %441 = sbr.rel (%p439) target = $region24
      $region23: #{transformer_forward.1} parent=19 // pred_region
        %p442 = scmp.lt.s32.totalorder %s27, 1
        %s443 = scalar_select %p442, %s27, 1
        %s444 = smul.addr %s443, 8
        %s445 = smul.addr %s444, 8
        %s446 = scalar_lea.vmem %s0, %s445
      $region24: #{transformer_forward.1} parent=19 // pred_fallthru
        _
      // Predicated region
      $region25: #{transformer_forward.1} parent=19 // pred_check
        %p447 = pneg %p99
      $region26: #{transformer_forward.1} parent=19 // pred_check_branch
        %449 = sbr.rel (%p447) target = $region28
      $region27: #{transformer_forward.1} parent=19 // pred_region
        %p450 = scmp.lt.s32.totalorder %s28, 1
        %s451 = scalar_select %p450, %s28, 1
        %s452 = scalar_lea.vmem %s2, %s451
      $region28: #{transformer_forward.1} parent=19 // pred_fallthru
        _
      // Predicated region
      $region29: #{transformer_forward.1} parent=19 // pred_check
        %p453 = pneg %p125
      $region30: #{transformer_forward.1} parent=19 // pred_check_branch
        %455 = sbr.rel (%p453) target = $region32
      $region31: #{transformer_forward.1} parent=19 // pred_region
        %p456 = scmp.lt.s32.totalorder %s28, 1
        %s457 = scalar_select %p456, %s28, 1
        %s458 = scalar_lea.vmem %s3, %s457
      $region32: #{transformer_forward.1} parent=19 // pred_fallthru
        _
      // Predicated region
      $region33: #{transformer_forward.1} parent=19 // pred_check
        %p459 = pneg %p151
      $region34: #{transformer_forward.1} parent=19 // pred_check_branch
        %461 = sbr.rel (%p459) target = $region36
      $region35: #{transformer_forward.1} parent=19 // pred_region
        %p462 = scmp.lt.s32.totalorder %s28, 1
        %s463 = scalar_select %p462, %s28, 1
        %s464 = smul.addr %s463, 36
        %s465 = smul.addr %s464, 4
        %s466 = scalar_lea.vmem %s4, %s465
      $region36: #{transformer_forward.1} parent=19 // pred_fallthru
        _
      // Predicated region
      $region37: #{transformer_forward.1} parent=19 // pred_check
        %p467 = pneg %p177
      $region38: #{transformer_forward.1} parent=19 // pred_check_branch
        %469 = sbr.rel (%p467) target = $region40
      $region39: #{transformer_forward.1} parent=19 // pred_region
        %p470 = scmp.lt.s32.totalorder %s28, 1
        %s471 = scalar_select %p470, %s28, 1
        %s472 = scalar_lea.vmem %s5, %s471
      $region40: #{transformer_forward.1} parent=19 // pred_fallthru
        _
      // Predicated region
      $region41: #{transformer_forward.1} parent=19 // pred_check
        %p473 = pneg %p203
      $region42: #{transformer_forward.1} parent=19 // pred_check_branch
        %475 = sbr.rel (%p473) target = $region44
      $region43: #{transformer_forward.1} parent=19 // pred_region
        %p476 = scmp.lt.s32.totalorder %s28, 1
        %s477 = scalar_select %p476, %s28, 1
        %s478 = smul.addr %s477, 4
        %s479 = smul.addr %s478, 4
        %s480 = scalar_lea.vmem %s6, %s479
      $region44: #{transformer_forward.1} parent=19 // pred_fallthru
        _
      // Predicated region
      $region45: #{transformer_forward.1} parent=19 // pred_check
        %p481 = pneg %p229
      $region46: #{transformer_forward.1} parent=19 // pred_check_branch
        %483 = sbr.rel (%p481) target = $region48
      $region47: #{transformer_forward.1} parent=19 // pred_region
        %p484 = scmp.lt.s32.totalorder %s28, 1
        %s485 = scalar_select %p484, %s28, 1
        %s486 = scalar_lea.vmem %s7, %s485
      $region48: #{transformer_forward.1} parent=19 // pred_fallthru
        _
      // Predicated region
      $region49: #{transformer_forward.1} parent=19 // pred_check
        %p487 = pneg %p255
      $region50: #{transformer_forward.1} parent=19 // pred_check_branch
        %489 = sbr.rel (%p487) target = $region52
      $region51: #{transformer_forward.1} parent=19 // pred_region
        %p490 = scmp.lt.s32.totalorder %s28, 1
        %s491 = scalar_select %p490, %s28, 1
        %s492 = scalar_lea.vmem %s8, %s491
      $region52: #{transformer_forward.1} parent=19 // pred_fallthru
        _
      // Predicated region
      $region53: #{transformer_forward.1} parent=19 // pred_check
        %p493 = pneg %p281
      $region54: #{transformer_forward.1} parent=19 // pred_check_branch
        %495 = sbr.rel (%p493) target = $region56
      $region55: #{transformer_forward.1} parent=19 // pred_region
        %p496 = scmp.lt.s32.totalorder %s28, 1
        %s497 = scalar_select %p496, %s28, 1
        %s498 = scalar_lea.vmem %s9, %s497
      $region56: #{transformer_forward.1} parent=19 // pred_fallthru
        _
      // Predicated region
      $region57: #{transformer_forward.1} parent=19 // pred_check
        %p499 = pneg %p307
      $region58: #{transformer_forward.1} parent=19 // pred_check_branch
        %501 = sbr.rel (%p499) target = $region60
      $region59: #{transformer_forward.1} parent=19 // pred_region
        %p502 = scmp.lt.s32.totalorder %s28, 1
        %s503 = scalar_select %p502, %s28, 1
        %s504 = smul.addr %s503, 4
        %s505 = smul.addr %s504, 4
        %s506 = scalar_lea.vmem %s10, %s505
      $region60: #{transformer_forward.1} parent=19 // pred_fallthru
        _
      // Predicated region
      $region61: #{transformer_forward.1} parent=19 // pred_check
        %p507 = pneg %p333
      $region62: #{transformer_forward.1} parent=19 // pred_check_branch
        %509 = sbr.rel (%p507) target = $region64
      $region63: #{transformer_forward.1} parent=19 // pred_region
        %p510 = scmp.lt.s32.totalorder %s28, 1
        %s511 = scalar_select %p510, %s28, 1
        %s512 = scalar_lea.vmem %s11, %s511
      $region64: #{transformer_forward.1} parent=19 // pred_fallthru
        _
      // Predicated region
      $region65: #{transformer_forward.1} parent=19 // pred_check
        %p513 = pneg %p359
      $region66: #{transformer_forward.1} parent=19 // pred_check_branch
        %515 = sbr.rel (%p513) target = $region68
      $region67: #{transformer_forward.1} parent=19 // pred_region
        %p516 = scmp.lt.s32.totalorder %s28, 1
        %s517 = scalar_select %p516, %s28, 1
        %s518 = smul.addr %s517, 16
        %s519 = smul.addr %s518, 4
        %s520 = scalar_lea.vmem %s12, %s519
      $region68: #{transformer_forward.1} parent=19 // pred_fallthru
        _
      // Predicated region
      $region69: #{transformer_forward.1} parent=19 // pred_check
        %p521 = pneg %p385
      $region70: #{transformer_forward.1} parent=19 // pred_check_branch
        %523 = sbr.rel (%p521) target = $region72
      $region71: #{transformer_forward.1} parent=19 // pred_region
        %p524 = scmp.lt.s32.totalorder %s28, 1
        %s525 = scalar_select %p524, %s28, 1
        %s526 = scalar_lea.vmem %s13, %s525
      $region72: #{transformer_forward.1} parent=19 // pred_fallthru
        _
    $region20: #{transformer_forward.1} parent=5 // pred_fallthru
      _
    %p527 = scmp.le.s32.totalorder 1, %s20
    %p528 = scmp.lt.s32.totalorder %s20, 5
    %p529 = pnand %p527, %p528
    %p530 = pneg %p529
    // Predicated region
    $region73: #{transformer_forward.1} parent=5 // pred_check
      _
    $region74: #{transformer_forward.1} parent=5 // pred_check_branch
      %532 = sbr.rel (%p529) target = $region76
    $region75: #{transformer_forward.1} parent=5 // pred_region
      %s533 = ssub.s32 %s20, 1
      %p534 = scmp.lt.s32.totalorder %s29, 1
      %s535 = scalar_select %p534, %s29, 1
      %s536 = smul.addr %s535, 8
      %s537 = smul.addr %s536, 8
      %s538 = scalar_lea.vmem %s0, %s537
      %p539 = pneg %p58
      %p540 = pneg %p55
      %p541 = pneg %p79
      %p542 = pneg %p76
      %p543 = scmp.lt.s32.totalorder %s30, 1
      %s544 = scalar_select %p543, %s30, 1
      %s545 = scalar_lea.vmem %s2, %s544
      %p546 = pneg %p105
      %p547 = pneg %p102
      %p548 = scmp.lt.s32.totalorder %s30, 1
      %s549 = scalar_select %p548, %s30, 1
      %s550 = scalar_lea.vmem %s3, %s549
      %p551 = pneg %p131
      %p552 = pneg %p128
      %p553 = scmp.lt.s32.totalorder %s30, 1
      %s554 = scalar_select %p553, %s30, 1
      %s555 = smul.addr %s554, 36
      %s556 = smul.addr %s555, 4
      %s557 = scalar_lea.vmem %s4, %s556
      %p558 = pneg %p157
      %p559 = pneg %p154
      %p560 = scmp.lt.s32.totalorder %s30, 1
      %s561 = scalar_select %p560, %s30, 1
      %s562 = scalar_lea.vmem %s5, %s561
      %p563 = pneg %p183
      %p564 = pneg %p180
      %p565 = scmp.lt.s32.totalorder %s30, 1
      %s566 = scalar_select %p565, %s30, 1
      %s567 = smul.addr %s566, 4
      %s568 = smul.addr %s567, 4
      %s569 = scalar_lea.vmem %s6, %s568
      %p570 = pneg %p209
      %p571 = pneg %p206
      %p572 = scmp.lt.s32.totalorder %s30, 1
      %s573 = scalar_select %p572, %s30, 1
      %s574 = scalar_lea.vmem %s7, %s573
      %p575 = pneg %p235
      %p576 = pneg %p232
      %p577 = scmp.lt.s32.totalorder %s30, 1
      %s578 = scalar_select %p577, %s30, 1
      %s579 = scalar_lea.vmem %s8, %s578
      %p580 = pneg %p261
      %p581 = pneg %p258
      %p582 = scmp.lt.s32.totalorder %s30, 1
      %s583 = scalar_select %p582, %s30, 1
      %s584 = scalar_lea.vmem %s9, %s583
      %p585 = pneg %p287
      %p586 = pneg %p284
      %p587 = scmp.lt.s32.totalorder %s30, 1
      %s588 = scalar_select %p587, %s30, 1
      %s589 = smul.addr %s588, 4
      %s590 = smul.addr %s589, 4
      %s591 = scalar_lea.vmem %s10, %s590
      %p592 = pneg %p313
      %p593 = pneg %p310
      %p594 = scmp.lt.s32.totalorder %s30, 1
      %s595 = scalar_select %p594, %s30, 1
      %s596 = scalar_lea.vmem %s11, %s595
      %p597 = pneg %p339
      %p598 = pneg %p336
      %p599 = scmp.lt.s32.totalorder %s30, 1
      %s600 = scalar_select %p599, %s30, 1
      %s601 = smul.addr %s600, 16
      %s602 = smul.addr %s601, 4
      %s603 = scalar_lea.vmem %s12, %s602
      %p604 = pneg %p365
      %p605 = pneg %p362
      %p606 = scmp.lt.s32.totalorder %s30, 1
      %s607 = scalar_select %p606, %s30, 1
      %s608 = scalar_lea.vmem %s13, %s607
      %p609 = pneg %p391
      %p610 = pneg %p388
      %p611 = pneg %p417
      %p612 = pneg %p414
      %p613 = scmp.lt.s32.totalorder %s29, 1
      %s614 = scalar_select %p613, %s29, 1
      %s615 = smul.addr %s614, 8
      %s616 = smul.addr %s615, 8
      %s617 = scalar_lea.vmem %s14, %s616
      %p618 = scmp.lt.s32.totalorder %s29, 1
      %s619 = scalar_select %p618, %s29, 1
      %s620 = smul.addr %s619, 8
      %s621 = smul.addr %s620, 8
      %s622 = scalar_lea.vmem %s0, %s621
      %p623 = scmp.lt.s32.totalorder %s30, 1
      %s624 = scalar_select %p623, %s30, 1
      %s625 = scalar_lea.vmem %s2, %s624
      %p626 = scmp.lt.s32.totalorder %s30, 1
      %s627 = scalar_select %p626, %s30, 1
      %s628 = scalar_lea.vmem %s3, %s627
      %p629 = scmp.lt.s32.totalorder %s30, 1
      %s630 = scalar_select %p629, %s30, 1
      %s631 = smul.addr %s630, 36
      %s632 = smul.addr %s631, 4
      %s633 = scalar_lea.vmem %s4, %s632
      %p634 = scmp.lt.s32.totalorder %s30, 1
      %s635 = scalar_select %p634, %s30, 1
      %s636 = scalar_lea.vmem %s5, %s635
      %p637 = scmp.lt.s32.totalorder %s30, 1
      %s638 = scalar_select %p637, %s30, 1
      %s639 = smul.addr %s638, 4
      %s640 = smul.addr %s639, 4
      %s641 = scalar_lea.vmem %s6, %s640
      %p642 = scmp.lt.s32.totalorder %s30, 1
      %s643 = scalar_select %p642, %s30, 1
      %s644 = scalar_lea.vmem %s7, %s643
      %p645 = scmp.lt.s32.totalorder %s30, 1
      %s646 = scalar_select %p645, %s30, 1
      %s647 = scalar_lea.vmem %s8, %s646
      %p648 = scmp.lt.s32.totalorder %s30, 1
      %s649 = scalar_select %p648, %s30, 1
      %s650 = scalar_lea.vmem %s9, %s649
      %p651 = scmp.lt.s32.totalorder %s30, 1
      %s652 = scalar_select %p651, %s30, 1
      %s653 = smul.addr %s652, 4
      %s654 = smul.addr %s653, 4
      %s655 = scalar_lea.vmem %s10, %s654
      %p656 = scmp.lt.s32.totalorder %s30, 1
      %s657 = scalar_select %p656, %s30, 1
      %s658 = scalar_lea.vmem %s11, %s657
      %p659 = scmp.lt.s32.totalorder %s30, 1
      %s660 = scalar_select %p659, %s30, 1
      %s661 = smul.addr %s660, 16
      %s662 = smul.addr %s661, 4
      %s663 = scalar_lea.vmem %s12, %s662
      %p664 = scmp.lt.s32.totalorder %s30, 1
      %s665 = scalar_select %p664, %s30, 1
      %s666 = scalar_lea.vmem %s13, %s665
      %p667 = scmp.lt.s32.totalorder %s29, 1
      %s668 = scalar_select %p667, %s29, 1
      %s669 = smul.addr %s668, 8
      %s670 = smul.addr %s669, 8
      %s671 = scalar_lea.vmem %s14, %s670
      %p673 = scmp.eq.s32.totalorder %s30, 0
      // Predicated region
      $region77: #{transformer_forward.1} parent=75 // pred_check
        %p674 = pneg %p673
      $region78: #{transformer_forward.1} parent=75 // pred_check_branch
        %676 = sbr.rel (%p674) target = $region80
      $region79: #{transformer_forward.1} parent=75 // pred_region
        %v677 = vld [vmem:[%s622] sm:$0xff]
        %v678 = vld [vmem:[%s622 + $0x8] sm:$0xff]
        %v679 = vld [vmem:[%s622 + $0x10] sm:$0xff]
        %v680 = vld [vmem:[%s622 + $0x18] sm:$0xff]
        %v681 = vld [vmem:[%s622 + $0x20] sm:$0xff]
        %v682 = vld [vmem:[%s622 + $0x28] sm:$0xff]
        %v683 = vld [vmem:[%s622 + $0x30] sm:$0xff]
        %v684 = vld [vmem:[%s622 + $0x38] sm:$0xff]
        %vm685 = vcmask 261120
        %686 = vst.msk [vmem:[%s671] sm:$0xff] %vm685, %v677
        %687 = vst.msk [vmem:[%s671 + $0x8] sm:$0xff] %vm685, %v678
        %688 = vst.msk [vmem:[%s671 + $0x10] sm:$0xff] %vm685, %v679
        %689 = vst.msk [vmem:[%s671 + $0x18] sm:$0xff] %vm685, %v680
        %690 = vst.msk [vmem:[%s671 + $0x20] sm:$0xff] %vm685, %v681
        %691 = vst.msk [vmem:[%s671 + $0x28] sm:$0xff] %vm685, %v682
        %692 = vst.msk [vmem:[%s671 + $0x30] sm:$0xff] %vm685, %v683
        %693 = vst.msk [vmem:[%s671 + $0x38] sm:$0xff] %vm685, %v684
      $region80: #{transformer_forward.1} parent=75 // pred_fallthru
        _
      %v694 = vld [vmem:[%s671] sm:$0xff]
      %v695 = vld [vmem:[%s671 + $0x8] sm:$0xff]
      %v696 = vld [vmem:[%s671 + $0x10] sm:$0xff]
      %v697 = vld [vmem:[%s671 + $0x18] sm:$0xff]
      %v698 = vld [vmem:[%s671 + $0x20] sm:$0xff]
      %v699 = vld [vmem:[%s671 + $0x28] sm:$0xff]
      %v700 = vld [vmem:[%s671 + $0x30] sm:$0xff]
      %v701 = vld [vmem:[%s671 + $0x38] sm:$0xff]
      %v702 = vld [vmem:[%s1] sm:$0xff]
      %v703 = vld [vmem:[%s1 + $0x8] sm:$0xff]
      %v704 = vld [vmem:[%s1 + $0x10] sm:$0xff]
      %v705 = vld [vmem:[%s1 + $0x18] sm:$0xff]
      %v706 = vld [vmem:[%s1 + $0x20] sm:$0xff]
      %v707 = vld [vmem:[%s1 + $0x28] sm:$0xff]
      %v708 = vld [vmem:[%s1 + $0x30] sm:$0xff]
      %v709 = vld [vmem:[%s1 + $0x38] sm:$0xff]
      %v710 = vld [vmem:[%s625] sm:$0x1]
      %v711 = vld [vmem:[%s628] sm:$0x1]
      %vm712 = vcmask 261120
      %v713 = vsel %vm712, %v694, 0.0
      %714 = vadd.xlane.f32.xlu0 %v713
      %v715 = vpop.xlane.xlu0 %714
      %v716 = vsel %vm712, %v695, 0.0
      %717 = vadd.xlane.f32.xlu0 %v716
      %v718 = vpop.xlane.xlu0 %717
      %v719 = vsel %vm712, %v696, 0.0
      %720 = vadd.xlane.f32.xlu0 %v719
      %v721 = vpop.xlane.xlu0 %720
      %v722 = vsel %vm712, %v697, 0.0
      %723 = vadd.xlane.f32.xlu0 %v722
      %v724 = vpop.xlane.xlu0 %723
      %v725 = vsel %vm712, %v698, 0.0
      %726 = vadd.xlane.f32.xlu0 %v725
      %v727 = vpop.xlane.xlu0 %726
      %v728 = vsel %vm712, %v699, 0.0
      %729 = vadd.xlane.f32.xlu0 %v728
      %v730 = vpop.xlane.xlu0 %729
      %v731 = vsel %vm712, %v700, 0.0
      %732 = vadd.xlane.f32.xlu0 %v731
      %v733 = vpop.xlane.xlu0 %732
      %v734 = vsel %vm712, %v701, 0.0
      %735 = vadd.xlane.f32.xlu0 %v734
      %v736 = vpop.xlane.xlu0 %735
      %v737 = vrcp.pop 32.0
      %v738 = vmul.f32 %v715, %v737
      %v739 = vmul.f32 %v718, %v737
      %v740 = vmul.f32 %v721, %v737
      %v741 = vmul.f32 %v724, %v737
      %v742 = vmul.f32 %v727, %v737
      %v743 = vmul.f32 %v730, %v737
      %v744 = vmul.f32 %v733, %v737
      %v745 = vmul.f32 %v736, %v737
      %v746 = vsub.f32 %v694, %v738
      %v747 = vsub.f32 %v695, %v739
      %v748 = vsub.f32 %v696, %v740
      %v749 = vsub.f32 %v697, %v741
      %v750 = vsub.f32 %v698, %v742
      %v751 = vsub.f32 %v699, %v743
      %v752 = vsub.f32 %v700, %v744
      %v753 = vsub.f32 %v701, %v745
      %v754 = vmul.f32 %v746, %v746
      %v755 = vmul.f32 %v747, %v747
      %v756 = vmul.f32 %v748, %v748
      %v757 = vmul.f32 %v749, %v749
      %v758 = vmul.f32 %v750, %v750
      %v759 = vmul.f32 %v751, %v751
      %v760 = vmul.f32 %v752, %v752
      %v761 = vmul.f32 %v753, %v753
      %v762 = vsel %vm712, %v754, 0.0
      %763 = vadd.xlane.f32.xlu0 %v762
      %v764 = vpop.xlane.xlu0 %763
      %v765 = vsel %vm712, %v755, 0.0
      %766 = vadd.xlane.f32.xlu0 %v765
      %v767 = vpop.xlane.xlu0 %766
      %v768 = vsel %vm712, %v756, 0.0
      %769 = vadd.xlane.f32.xlu0 %v768
      %v770 = vpop.xlane.xlu0 %769
      %v771 = vsel %vm712, %v757, 0.0
      %772 = vadd.xlane.f32.xlu0 %v771
      %v773 = vpop.xlane.xlu0 %772
      %v774 = vsel %vm712, %v758, 0.0
      %775 = vadd.xlane.f32.xlu0 %v774
      %v776 = vpop.xlane.xlu0 %775
      %v777 = vsel %vm712, %v759, 0.0
      %778 = vadd.xlane.f32.xlu0 %v777
      %v779 = vpop.xlane.xlu0 %778
      %v780 = vsel %vm712, %v760, 0.0
      %781 = vadd.xlane.f32.xlu0 %v780
      %v782 = vpop.xlane.xlu0 %781
      %v783 = vsel %vm712, %v761, 0.0
      %784 = vadd.xlane.f32.xlu0 %v783
      %v785 = vpop.xlane.xlu0 %784
      %v786 = vmul.f32 %v764, %v737
      %v787 = vmul.f32 %v767, %v737
      %v788 = vmul.f32 %v770, %v737
      %v789 = vmul.f32 %v773, %v737
      %v790 = vmul.f32 %v776, %v737
      %v791 = vmul.f32 %v779, %v737
      %v792 = vmul.f32 %v782, %v737
      %v793 = vmul.f32 %v785, %v737
      %v794 = vadd.f32 %v786, 1e-05
      %v795 = vadd.f32 %v787, 1e-05
      %v796 = vadd.f32 %v788, 1e-05
      %v797 = vadd.f32 %v789, 1e-05
      %v798 = vadd.f32 %v790, 1e-05
      %v799 = vadd.f32 %v791, 1e-05
      %v800 = vadd.f32 %v792, 1e-05
      %v801 = vadd.f32 %v793, 1e-05
      %v802 = vrsqrt.pop %v794
      %v803 = vrsqrt.pop %v795
      %v804 = vrsqrt.pop %v796
      %v805 = vrsqrt.pop %v797
      %v806 = vrsqrt.pop %v798
      %v807 = vrsqrt.pop %v799
      %v808 = vrsqrt.pop %v800
      %v809 = vrsqrt.pop %v801
      %v810 = vmul.f32 %v746, %v802
      %v811 = vmul.f32 %v747, %v803
      %v812 = vmul.f32 %v748, %v804
      %v813 = vmul.f32 %v749, %v805
      %v814 = vmul.f32 %v750, %v806
      %v815 = vmul.f32 %v751, %v807
      %v816 = vmul.f32 %v752, %v808
      %v817 = vmul.f32 %v753, %v809
      %v819 = vlaneseq
      %v820 = vshrl.u32 %v819, 7
      %v821 = vsub.s32 0, %v820
      %v822 = vrot.slane %v710, %v821
      %v824 = vmul.f32 %v810, %v822
      %v825 = vmul.f32 %v811, %v822
      %v826 = vmul.f32 %v812, %v822
      %v827 = vmul.f32 %v813, %v822
      %v828 = vmul.f32 %v814, %v822
      %v829 = vmul.f32 %v815, %v822
      %v830 = vmul.f32 %v816, %v822
      %v831 = vmul.f32 %v817, %v822
      %v833 = vlaneseq
      %v834 = vshrl.u32 %v833, 7
      %v835 = vsub.s32 0, %v834
      %v836 = vrot.slane %v711, %v835
      %v838 = vadd.f32 %v824, %v836
      %v839 = vadd.f32 %v825, %v836
      %v840 = vadd.f32 %v826, %v836
      %v841 = vadd.f32 %v827, %v836
      %v842 = vadd.f32 %v828, %v836
      %v843 = vadd.f32 %v829, %v836
      %v844 = vadd.f32 %v830, %v836
      %v845 = vadd.f32 %v831, %v836
      %vm848 = vcmask 1040384
      %v849 = vrot.slane %v844, 7
      %v850 = vrot.slane %v845, 7
      %v851 = vsel %vm848, %v849, %v850
      %v860 = vrot.slane %v838, 7
      %v861 = vrot.slane %v839, 7
      %v862 = vsel %vm848, %v860, %v861
      %v863 = vrot.slane %v840, 7
      %v864 = vsel %vm848, %v861, %v863
      %v865 = vrot.slane %v841, 7
      %v866 = vsel %vm848, %v863, %v865
      %v867 = vrot.slane %v842, 7
      %v868 = vsel %vm848, %v865, %v867
      %v869 = vrot.slane %v843, 7
      %v870 = vsel %vm848, %v867, %v869
      %v871 = vsel %vm848, %v869, %v849
      %v879 = vsel %vm848, %v850, %v860
      %881 = vset.pattern.permute.xlu0 0
      %882 = vperm.xlu0 %881, %v702
      %v883 = vpop.permute.xlu0 %882
      %886 = vset.pattern.permute.xlu0 0
      %887 = vperm.xlu0 %886, %v703
      %v888 = vpop.permute.xlu0 %887
      %891 = vset.pattern.permute.xlu0 0
      %892 = vperm.xlu0 %891, %v704
      %v893 = vpop.permute.xlu0 %892
      %896 = vset.pattern.permute.xlu0 0
      %897 = vperm.xlu0 %896, %v705
      %v898 = vpop.permute.xlu0 %897
      %901 = vset.pattern.permute.xlu0 0
      %902 = vperm.xlu0 %901, %v706
      %v903 = vpop.permute.xlu0 %902
      %906 = vset.pattern.permute.xlu0 0
      %907 = vperm.xlu0 %906, %v707
      %v908 = vpop.permute.xlu0 %907
      %911 = vset.pattern.permute.xlu0 0
      %912 = vperm.xlu0 %911, %v708
      %v913 = vpop.permute.xlu0 %912
      %916 = vset.pattern.permute.xlu0 0
      %917 = vperm.xlu0 %916, %v709
      %v918 = vpop.permute.xlu0 %917
      %v920 = vmul.f32 %v851, %v883
      %v921 = vmul.f32 %v879, %v888
      %v922 = vmul.f32 %v862, %v893
      %v923 = vmul.f32 %v864, %v898
      %v924 = vmul.f32 %v866, %v903
      %v925 = vmul.f32 %v868, %v908
      %v926 = vmul.f32 %v870, %v913
      %v927 = vmul.f32 %v871, %v918
      %928 = vset.pattern.permute.xlu0 1
      %929 = vperm.xlu0 %928, %v702
      %v930 = vpop.permute.xlu0 %929
      %932 = vset.pattern.permute.xlu0 1
      %933 = vperm.xlu0 %932, %v703
      %v934 = vpop.permute.xlu0 %933
      %936 = vset.pattern.permute.xlu0 1
      %937 = vperm.xlu0 %936, %v704
      %v938 = vpop.permute.xlu0 %937
      %940 = vset.pattern.permute.xlu0 1
      %941 = vperm.xlu0 %940, %v705
      %v942 = vpop.permute.xlu0 %941
      %944 = vset.pattern.permute.xlu0 1
      %945 = vperm.xlu0 %944, %v706
      %v946 = vpop.permute.xlu0 %945
      %948 = vset.pattern.permute.xlu0 1
      %949 = vperm.xlu0 %948, %v707
      %v950 = vpop.permute.xlu0 %949
      %952 = vset.pattern.permute.xlu0 1
      %953 = vperm.xlu0 %952, %v708
      %v954 = vpop.permute.xlu0 %953
      %956 = vset.pattern.permute.xlu0 1
      %957 = vperm.xlu0 %956, %v709
      %v958 = vpop.permute.xlu0 %957
      %v960 = vmul.f32 %v845, %v930
      %v961 = vmul.f32 %v838, %v934
      %v962 = vmul.f32 %v839, %v938
      %v963 = vmul.f32 %v840, %v942
      %v964 = vmul.f32 %v841, %v946
      %v965 = vmul.f32 %v842, %v950
      %v966 = vmul.f32 %v843, %v954
      %v967 = vmul.f32 %v844, %v958
      %v968 = vrot.slane %v845, 1
      %vm970 = vcmask 1046528
      %v971 = vrot.slane %v838, 1
      %v972 = vrot.slane %v839, 1
      %v973 = vsel %vm970, %v971, %v972
      %v974 = vrot.slane %v840, 1
      %v975 = vsel %vm970, %v972, %v974
      %v976 = vrot.slane %v841, 1
      %v977 = vsel %vm970, %v974, %v976
      %v978 = vrot.slane %v842, 1
      %v979 = vsel %vm970, %v976, %v978
      %v980 = vrot.slane %v843, 1
      %v981 = vsel %vm970, %v978, %v980
      %v982 = vrot.slane %v844, 1
      %v983 = vsel %vm970, %v980, %v982
      %v984 = vsel %vm970, %v982, %v968
      %v993 = vsel %vm970, %v968, %v971
      %994 = vset.pattern.permute.xlu0 2
      %995 = vperm.xlu0 %994, %v702
      %v996 = vpop.permute.xlu0 %995
      %998 = vset.pattern.permute.xlu0 2
      %999 = vperm.xlu0 %998, %v703
      %v1000 = vpop.permute.xlu0 %999
      %1002 = vset.pattern.permute.xlu0 2
      %1003 = vperm.xlu0 %1002, %v704
      %v1004 = vpop.permute.xlu0 %1003
      %1006 = vset.pattern.permute.xlu0 2
      %1007 = vperm.xlu0 %1006, %v705
      %v1008 = vpop.permute.xlu0 %1007
      %1010 = vset.pattern.permute.xlu0 2
      %1011 = vperm.xlu0 %1010, %v706
      %v1012 = vpop.permute.xlu0 %1011
      %1014 = vset.pattern.permute.xlu0 2
      %1015 = vperm.xlu0 %1014, %v707
      %v1016 = vpop.permute.xlu0 %1015
      %1018 = vset.pattern.permute.xlu0 2
      %1019 = vperm.xlu0 %1018, %v708
      %v1020 = vpop.permute.xlu0 %1019
      %1022 = vset.pattern.permute.xlu0 2
      %1023 = vperm.xlu0 %1022, %v709
      %v1024 = vpop.permute.xlu0 %1023
      %v1026 = vmul.f32 %v993, %v996
      %v1027 = vmul.f32 %v973, %v1000
      %v1028 = vmul.f32 %v975, %v1004
      %v1029 = vmul.f32 %v977, %v1008
      %v1030 = vmul.f32 %v979, %v1012
      %v1031 = vmul.f32 %v981, %v1016
      %v1032 = vmul.f32 %v983, %v1020
      %v1033 = vmul.f32 %v984, %v1024
      %1034 = vset.pattern.permute.xlu0 3
      %1035 = vperm.xlu0 %1034, %v702
      %v1036 = vpop.permute.xlu0 %1035
      %1038 = vset.pattern.permute.xlu0 3
      %1039 = vperm.xlu0 %1038, %v703
      %v1040 = vpop.permute.xlu0 %1039
      %1042 = vset.pattern.permute.xlu0 3
      %1043 = vperm.xlu0 %1042, %v704
      %v1044 = vpop.permute.xlu0 %1043
      %1046 = vset.pattern.permute.xlu0 3
      %1047 = vperm.xlu0 %1046, %v705
      %v1048 = vpop.permute.xlu0 %1047
      %1050 = vset.pattern.permute.xlu0 3
      %1051 = vperm.xlu0 %1050, %v706
      %v1052 = vpop.permute.xlu0 %1051
      %1054 = vset.pattern.permute.xlu0 3
      %1055 = vperm.xlu0 %1054, %v707
      %v1056 = vpop.permute.xlu0 %1055
      %1058 = vset.pattern.permute.xlu0 3
      %1059 = vperm.xlu0 %1058, %v708
      %v1060 = vpop.permute.xlu0 %1059
      %1062 = vset.pattern.permute.xlu0 3
      %1063 = vperm.xlu0 %1062, %v709
      %v1064 = vpop.permute.xlu0 %1063
      %v1066 = vmul.f32 %v879, %v1036
      %v1067 = vmul.f32 %v862, %v1040
      %v1068 = vmul.f32 %v864, %v1044
      %v1069 = vmul.f32 %v866, %v1048
      %v1070 = vmul.f32 %v868, %v1052
      %v1071 = vmul.f32 %v870, %v1056
      %v1072 = vmul.f32 %v871, %v1060
      %v1073 = vmul.f32 %v851, %v1064
      %1074 = vset.pattern.permute.xlu0 4
      %1075 = vperm.xlu0 %1074, %v702
      %v1076 = vpop.permute.xlu0 %1075
      %1078 = vset.pattern.permute.xlu0 4
      %1079 = vperm.xlu0 %1078, %v703
      %v1080 = vpop.permute.xlu0 %1079
      %1082 = vset.pattern.permute.xlu0 4
      %1083 = vperm.xlu0 %1082, %v704
      %v1084 = vpop.permute.xlu0 %1083
      %1086 = vset.pattern.permute.xlu0 4
      %1087 = vperm.xlu0 %1086, %v705
      %v1088 = vpop.permute.xlu0 %1087
      %1090 = vset.pattern.permute.xlu0 4
      %1091 = vperm.xlu0 %1090, %v706
      %v1092 = vpop.permute.xlu0 %1091
      %1094 = vset.pattern.permute.xlu0 4
      %1095 = vperm.xlu0 %1094, %v707
      %v1096 = vpop.permute.xlu0 %1095
      %1098 = vset.pattern.permute.xlu0 4
      %1099 = vperm.xlu0 %1098, %v708
      %v1100 = vpop.permute.xlu0 %1099
      %1102 = vset.pattern.permute.xlu0 4
      %1103 = vperm.xlu0 %1102, %v709
      %v1104 = vpop.permute.xlu0 %1103
      %v1106 = vmul.f32 %v838, %v1076
      %v1107 = vmul.f32 %v839, %v1080
      %v1108 = vmul.f32 %v840, %v1084
      %v1109 = vmul.f32 %v841, %v1088
      %v1110 = vmul.f32 %v842, %v1092
      %v1111 = vmul.f32 %v843, %v1096
      %v1112 = vmul.f32 %v844, %v1100
      %v1113 = vmul.f32 %v845, %v1104
      %1114 = vset.pattern.permute.xlu0 5
      %1115 = vperm.xlu0 %1114, %v702
      %v1116 = vpop.permute.xlu0 %1115
      %1118 = vset.pattern.permute.xlu0 5
      %1119 = vperm.xlu0 %1118, %v703
      %v1120 = vpop.permute.xlu0 %1119
      %1122 = vset.pattern.permute.xlu0 5
      %1123 = vperm.xlu0 %1122, %v704
      %v1124 = vpop.permute.xlu0 %1123
      %1126 = vset.pattern.permute.xlu0 5
      %1127 = vperm.xlu0 %1126, %v705
      %v1128 = vpop.permute.xlu0 %1127
      %1130 = vset.pattern.permute.xlu0 5
      %1131 = vperm.xlu0 %1130, %v706
      %v1132 = vpop.permute.xlu0 %1131
      %1134 = vset.pattern.permute.xlu0 5
      %1135 = vperm.xlu0 %1134, %v707
      %v1136 = vpop.permute.xlu0 %1135
      %1138 = vset.pattern.permute.xlu0 5
      %1139 = vperm.xlu0 %1138, %v708
      %v1140 = vpop.permute.xlu0 %1139
      %1142 = vset.pattern.permute.xlu0 5
      %1143 = vperm.xlu0 %1142, %v709
      %v1144 = vpop.permute.xlu0 %1143
      %v1146 = vmul.f32 %v973, %v1116
      %v1147 = vmul.f32 %v975, %v1120
      %v1148 = vmul.f32 %v977, %v1124
      %v1149 = vmul.f32 %v979, %v1128
      %v1150 = vmul.f32 %v981, %v1132
      %v1151 = vmul.f32 %v983, %v1136
      %v1152 = vmul.f32 %v984, %v1140
      %v1153 = vmul.f32 %v993, %v1144
      %1154 = vset.pattern.permute.xlu0 6
      %1155 = vperm.xlu0 %1154, %v702
      %v1156 = vpop.permute.xlu0 %1155
      %1158 = vset.pattern.permute.xlu0 6
      %1159 = vperm.xlu0 %1158, %v703
      %v1160 = vpop.permute.xlu0 %1159
      %1162 = vset.pattern.permute.xlu0 6
      %1163 = vperm.xlu0 %1162, %v704
      %v1164 = vpop.permute.xlu0 %1163
      %1166 = vset.pattern.permute.xlu0 6
      %1167 = vperm.xlu0 %1166, %v705
      %v1168 = vpop.permute.xlu0 %1167
      %1170 = vset.pattern.permute.xlu0 6
      %1171 = vperm.xlu0 %1170, %v706
      %v1172 = vpop.permute.xlu0 %1171
      %1174 = vset.pattern.permute.xlu0 6
      %1175 = vperm.xlu0 %1174, %v707
      %v1176 = vpop.permute.xlu0 %1175
      %1178 = vset.pattern.permute.xlu0 6
      %1179 = vperm.xlu0 %1178, %v708
      %v1180 = vpop.permute.xlu0 %1179
      %1182 = vset.pattern.permute.xlu0 6
      %1183 = vperm.xlu0 %1182, %v709
      %v1184 = vpop.permute.xlu0 %1183
      %v1186 = vmul.f32 %v862, %v1156
      %v1187 = vmul.f32 %v864, %v1160
      %v1188 = vmul.f32 %v866, %v1164
      %v1189 = vmul.f32 %v868, %v1168
      %v1190 = vmul.f32 %v870, %v1172
      %v1191 = vmul.f32 %v871, %v1176
      %v1192 = vmul.f32 %v851, %v1180
      %v1193 = vmul.f32 %v879, %v1184
      %1194 = vset.pattern.permute.xlu0 7
      %1195 = vperm.xlu0 %1194, %v702
      %v1196 = vpop.permute.xlu0 %1195
      %1198 = vset.pattern.permute.xlu0 7
      %1199 = vperm.xlu0 %1198, %v703
      %v1200 = vpop.permute.xlu0 %1199
      %1202 = vset.pattern.permute.xlu0 7
      %1203 = vperm.xlu0 %1202, %v704
      %v1204 = vpop.permute.xlu0 %1203
      %1206 = vset.pattern.permute.xlu0 7
      %1207 = vperm.xlu0 %1206, %v705
      %v1208 = vpop.permute.xlu0 %1207
      %1210 = vset.pattern.permute.xlu0 7
      %1211 = vperm.xlu0 %1210, %v706
      %v1212 = vpop.permute.xlu0 %1211
      %1214 = vset.pattern.permute.xlu0 7
      %1215 = vperm.xlu0 %1214, %v707
      %v1216 = vpop.permute.xlu0 %1215
      %1218 = vset.pattern.permute.xlu0 7
      %1219 = vperm.xlu0 %1218, %v708
      %v1220 = vpop.permute.xlu0 %1219
      %1222 = vset.pattern.permute.xlu0 7
      %1223 = vperm.xlu0 %1222, %v709
      %v1224 = vpop.permute.xlu0 %1223
      %v1226 = vmul.f32 %v839, %v1196
      %v1227 = vmul.f32 %v840, %v1200
      %v1228 = vmul.f32 %v841, %v1204
      %v1229 = vmul.f32 %v842, %v1208
      %v1230 = vmul.f32 %v843, %v1212
      %v1231 = vmul.f32 %v844, %v1216
      %v1232 = vmul.f32 %v845, %v1220
      %v1233 = vmul.f32 %v838, %v1224
      %1234 = vset.pattern.permute.xlu0 8
      %1235 = vperm.xlu0 %1234, %v702
      %v1236 = vpop.permute.xlu0 %1235
      %1238 = vset.pattern.permute.xlu0 8
      %1239 = vperm.xlu0 %1238, %v703
      %v1240 = vpop.permute.xlu0 %1239
      %1242 = vset.pattern.permute.xlu0 8
      %1243 = vperm.xlu0 %1242, %v704
      %v1244 = vpop.permute.xlu0 %1243
      %1246 = vset.pattern.permute.xlu0 8
      %1247 = vperm.xlu0 %1246, %v705
      %v1248 = vpop.permute.xlu0 %1247
      %1250 = vset.pattern.permute.xlu0 8
      %1251 = vperm.xlu0 %1250, %v706
      %v1252 = vpop.permute.xlu0 %1251
      %1254 = vset.pattern.permute.xlu0 8
      %1255 = vperm.xlu0 %1254, %v707
      %v1256 = vpop.permute.xlu0 %1255
      %1258 = vset.pattern.permute.xlu0 8
      %1259 = vperm.xlu0 %1258, %v708
      %v1260 = vpop.permute.xlu0 %1259
      %1262 = vset.pattern.permute.xlu0 8
      %1263 = vperm.xlu0 %1262, %v709
      %v1264 = vpop.permute.xlu0 %1263
      %v1266 = vmul.f32 %v975, %v1236
      %v1267 = vmul.f32 %v977, %v1240
      %v1268 = vmul.f32 %v979, %v1244
      %v1269 = vmul.f32 %v981, %v1248
      %v1270 = vmul.f32 %v983, %v1252
      %v1271 = vmul.f32 %v984, %v1256
      %v1272 = vmul.f32 %v993, %v1260
      %v1273 = vmul.f32 %v973, %v1264
      %1282 = vrot.lane.b32.xlu0 %v960, 32
      %v1283 = vpop.permute.xlu0 %1282
      %1284 = vrot.lane.b32.xlu0 %v961, 32
      %v1285 = vpop.permute.xlu0 %1284
      %1286 = vrot.lane.b32.xlu0 %v962, 32
      %v1287 = vpop.permute.xlu0 %1286
      %1288 = vrot.lane.b32.xlu0 %v963, 32
      %v1289 = vpop.permute.xlu0 %1288
      %1290 = vrot.lane.b32.xlu0 %v964, 32
      %v1291 = vpop.permute.xlu0 %1290
      %1292 = vrot.lane.b32.xlu0 %v965, 32
      %v1293 = vpop.permute.xlu0 %1292
      %1294 = vrot.lane.b32.xlu0 %v966, 32
      %v1295 = vpop.permute.xlu0 %1294
      %1296 = vrot.lane.b32.xlu0 %v967, 32
      %v1297 = vpop.permute.xlu0 %1296
      %1314 = vrot.lane.b32.xlu0 %v1026, 64
      %v1315 = vpop.permute.xlu0 %1314
      %1316 = vrot.lane.b32.xlu0 %v1027, 64
      %v1317 = vpop.permute.xlu0 %1316
      %1318 = vrot.lane.b32.xlu0 %v1028, 64
      %v1319 = vpop.permute.xlu0 %1318
      %1320 = vrot.lane.b32.xlu0 %v1029, 64
      %v1321 = vpop.permute.xlu0 %1320
      %1322 = vrot.lane.b32.xlu0 %v1030, 64
      %v1323 = vpop.permute.xlu0 %1322
      %1324 = vrot.lane.b32.xlu0 %v1031, 64
      %v1325 = vpop.permute.xlu0 %1324
      %1326 = vrot.lane.b32.xlu0 %v1032, 64
      %v1327 = vpop.permute.xlu0 %1326
      %1328 = vrot.lane.b32.xlu0 %v1033, 64
      %v1329 = vpop.permute.xlu0 %1328
      %1346 = vrot.lane.b32.xlu0 %v1066, 96
      %v1347 = vpop.permute.xlu0 %1346
      %1348 = vrot.lane.b32.xlu0 %v1067, 96
      %v1349 = vpop.permute.xlu0 %1348
      %1350 = vrot.lane.b32.xlu0 %v1068, 96
      %v1351 = vpop.permute.xlu0 %1350
      %1352 = vrot.lane.b32.xlu0 %v1069, 96
      %v1353 = vpop.permute.xlu0 %1352
      %1354 = vrot.lane.b32.xlu0 %v1070, 96
      %v1355 = vpop.permute.xlu0 %1354
      %1356 = vrot.lane.b32.xlu0 %v1071, 96
      %v1357 = vpop.permute.xlu0 %1356
      %1358 = vrot.lane.b32.xlu0 %v1072, 96
      %v1359 = vpop.permute.xlu0 %1358
      %1360 = vrot.lane.b32.xlu0 %v1073, 96
      %v1361 = vpop.permute.xlu0 %1360
      %1378 = vrot.lane.b32.xlu0 %v1146, 32
      %v1379 = vpop.permute.xlu0 %1378
      %1380 = vrot.lane.b32.xlu0 %v1147, 32
      %v1381 = vpop.permute.xlu0 %1380
      %1382 = vrot.lane.b32.xlu0 %v1148, 32
      %v1383 = vpop.permute.xlu0 %1382
      %1384 = vrot.lane.b32.xlu0 %v1149, 32
      %v1385 = vpop.permute.xlu0 %1384
      %1386 = vrot.lane.b32.xlu0 %v1150, 32
      %v1387 = vpop.permute.xlu0 %1386
      %1388 = vrot.lane.b32.xlu0 %v1151, 32
      %v1389 = vpop.permute.xlu0 %1388
      %1390 = vrot.lane.b32.xlu0 %v1152, 32
      %v1391 = vpop.permute.xlu0 %1390
      %1392 = vrot.lane.b32.xlu0 %v1153, 32
      %v1393 = vpop.permute.xlu0 %1392
      %1410 = vrot.lane.b32.xlu0 %v1186, 64
      %v1411 = vpop.permute.xlu0 %1410
      %1412 = vrot.lane.b32.xlu0 %v1187, 64
      %v1413 = vpop.permute.xlu0 %1412
      %1414 = vrot.lane.b32.xlu0 %v1188, 64
      %v1415 = vpop.permute.xlu0 %1414
      %1416 = vrot.lane.b32.xlu0 %v1189, 64
      %v1417 = vpop.permute.xlu0 %1416
      %1418 = vrot.lane.b32.xlu0 %v1190, 64
      %v1419 = vpop.permute.xlu0 %1418
      %1420 = vrot.lane.b32.xlu0 %v1191, 64
      %v1421 = vpop.permute.xlu0 %1420
      %1422 = vrot.lane.b32.xlu0 %v1192, 64
      %v1423 = vpop.permute.xlu0 %1422
      %1424 = vrot.lane.b32.xlu0 %v1193, 64
      %v1425 = vpop.permute.xlu0 %1424
      %1442 = vrot.lane.b32.xlu0 %v1226, 96
      %v1443 = vpop.permute.xlu0 %1442
      %1444 = vrot.lane.b32.xlu0 %v1227, 96
      %v1445 = vpop.permute.xlu0 %1444
      %1446 = vrot.lane.b32.xlu0 %v1228, 96
      %v1447 = vpop.permute.xlu0 %1446
      %1448 = vrot.lane.b32.xlu0 %v1229, 96
      %v1449 = vpop.permute.xlu0 %1448
      %1450 = vrot.lane.b32.xlu0 %v1230, 96
      %v1451 = vpop.permute.xlu0 %1450
      %1452 = vrot.lane.b32.xlu0 %v1231, 96
      %v1453 = vpop.permute.xlu0 %1452
      %1454 = vrot.lane.b32.xlu0 %v1232, 96
      %v1455 = vpop.permute.xlu0 %1454
      %1456 = vrot.lane.b32.xlu0 %v1233, 96
      %v1457 = vpop.permute.xlu0 %1456
      %v1466 = vsel %vm712, %v920, %v1283
      %v1467 = vsel %vm712, %v921, %v1285
      %v1468 = vsel %vm712, %v922, %v1287
      %v1469 = vsel %vm712, %v923, %v1289
      %v1470 = vsel %vm712, %v924, %v1291
      %v1471 = vsel %vm712, %v925, %v1293
      %v1472 = vsel %vm712, %v926, %v1295
      %v1473 = vsel %vm712, %v927, %v1297
      %vm1474 = vcmask 523264
      %v1475 = vsel %vm1474, %v1466, %v1315
      %v1476 = vsel %vm1474, %v1467, %v1317
      %v1477 = vsel %vm1474, %v1468, %v1319
      %v1478 = vsel %vm1474, %v1469, %v1321
      %v1479 = vsel %vm1474, %v1470, %v1323
      %v1480 = vsel %vm1474, %v1471, %v1325
      %v1481 = vsel %vm1474, %v1472, %v1327
      %v1482 = vsel %vm1474, %v1473, %v1329
      %vm1483 = vcmask 785408
      %v1484 = vsel %vm1483, %v1475, %v1347
      %v1485 = vsel %vm1483, %v1476, %v1349
      %v1486 = vsel %vm1483, %v1477, %v1351
      %v1487 = vsel %vm1483, %v1478, %v1353
      %v1488 = vsel %vm1483, %v1479, %v1355
      %v1489 = vsel %vm1483, %v1480, %v1357
      %v1490 = vsel %vm1483, %v1481, %v1359
      %v1491 = vsel %vm1483, %v1482, %v1361
      %v1492 = vsel %vm712, %v1106, %v1379
      %v1493 = vsel %vm712, %v1107, %v1381
      %v1494 = vsel %vm712, %v1108, %v1383
      %v1495 = vsel %vm712, %v1109, %v1385
      %v1496 = vsel %vm712, %v1110, %v1387
      %v1497 = vsel %vm712, %v1111, %v1389
      %v1498 = vsel %vm712, %v1112, %v1391
      %v1499 = vsel %vm712, %v1113, %v1393
      %v1500 = vsel %vm1474, %v1492, %v1411
      %v1501 = vsel %vm1474, %v1493, %v1413
      %v1502 = vsel %vm1474, %v1494, %v1415
      %v1503 = vsel %vm1474, %v1495, %v1417
      %v1504 = vsel %vm1474, %v1496, %v1419
      %v1505 = vsel %vm1474, %v1497, %v1421
      %v1506 = vsel %vm1474, %v1498, %v1423
      %v1507 = vsel %vm1474, %v1499, %v1425
      %v1508 = vsel %vm1483, %v1500, %v1443
      %v1509 = vsel %vm1483, %v1501, %v1445
      %v1510 = vsel %vm1483, %v1502, %v1447
      %v1511 = vsel %vm1483, %v1503, %v1449
      %v1512 = vsel %vm1483, %v1504, %v1451
      %v1513 = vsel %vm1483, %v1505, %v1453
      %v1514 = vsel %vm1483, %v1506, %v1455
      %v1515 = vsel %vm1483, %v1507, %v1457
      %v1516 = vpack.c.bf16 %v1485, %v1484
      %v1517 = vpack.c.bf16 %v1509, %v1508
      %v1518 = vpack.c.bf16 %v1267, %v1266
      %v1519 = vpack.c.bf16 %v1487, %v1486
      %v1520 = vpack.c.bf16 %v1511, %v1510
      %v1521 = vpack.c.bf16 %v1269, %v1268
      %v1522 = vpack.c.bf16 %v1489, %v1488
      %v1523 = vpack.c.bf16 %v1513, %v1512
      %v1524 = vpack.c.bf16 %v1271, %v1270
      %v1525 = vpack.c.bf16 %v1491, %v1490
      %v1526 = vpack.c.bf16 %v1515, %v1514
      %v1527 = vpack.c.bf16 %v1273, %v1272
      %v1528 = vld [vmem:[%s633] sm:$0xf]
      %v1529 = vld [vmem:[%s633 + $0x4] sm:$0xf]
      %v1530 = vld [vmem:[%s633 + $0x8] sm:$0xf]
      %v1531 = vld [vmem:[%s633 + $0xc] sm:$0xf]
      %v1532 = vld [vmem:[%s633 + $0x10] sm:$0xf]
      %v1533 = vld [vmem:[%s633 + $0x14] sm:$0xf]
      %v1534 = vld [vmem:[%s633 + $0x18] sm:$0xf]
      %v1535 = vld [vmem:[%s633 + $0x1c] sm:$0xf]
      %v1536 = vld [vmem:[%s633 + $0x20] sm:$0xf]
      %v1537 = vld [vmem:[%s633 + $0x24] sm:$0xf]
      %v1538 = vld [vmem:[%s633 + $0x28] sm:$0xf]
      %v1539 = vld [vmem:[%s633 + $0x2c] sm:$0xf]
      %v1540 = vld [vmem:[%s633 + $0x30] sm:$0xf]
      %v1541 = vld [vmem:[%s633 + $0x34] sm:$0xf]
      %v1542 = vld [vmem:[%s633 + $0x38] sm:$0xf]
      %v1543 = vld [vmem:[%s633 + $0x3c] sm:$0xf]
      %v1544 = vld [vmem:[%s633 + $0x40] sm:$0xf]
      %v1545 = vld [vmem:[%s633 + $0x44] sm:$0xf]
      %v1546 = vld [vmem:[%s633 + $0x48] sm:$0xf]
      %v1547 = vld [vmem:[%s633 + $0x4c] sm:$0xf]
      %v1548 = vld [vmem:[%s633 + $0x50] sm:$0xf]
      %v1549 = vld [vmem:[%s633 + $0x54] sm:$0xf]
      %v1550 = vld [vmem:[%s633 + $0x58] sm:$0xf]
      %v1551 = vld [vmem:[%s633 + $0x5c] sm:$0xf]
      %v1552 = vld [vmem:[%s633 + $0x60] sm:$0xf]
      %v1553 = vld [vmem:[%s633 + $0x64] sm:$0xf]
      %v1554 = vld [vmem:[%s633 + $0x68] sm:$0xf]
      %v1555 = vld [vmem:[%s633 + $0x6c] sm:$0xf]
      %v1556 = vld [vmem:[%s633 + $0x70] sm:$0xf]
      %v1557 = vld [vmem:[%s633 + $0x74] sm:$0xf]
      %v1558 = vld [vmem:[%s633 + $0x78] sm:$0xf]
      %v1559 = vld [vmem:[%s633 + $0x7c] sm:$0xf]
      %v1560 = vld [vmem:[%s633 + $0x80] sm:$0xf]
      %v1561 = vld [vmem:[%s633 + $0x84] sm:$0xf]
      %v1562 = vld [vmem:[%s633 + $0x88] sm:$0xf]
      %v1563 = vld [vmem:[%s633 + $0x8c] sm:$0xf]
      %v1564 = vld [vmem:[%s636] sm:$0x1]
      %v1566 = vlaneseq
      %v1567 = vshrl.u32 %v1566, 7
      %v1568 = vsub.s32 0, %v1567
      %v1569 = vrot.slane %v1564, %v1568
      %v1607 = vunpack.c.l.b16 %v1528
      %v1608 = vunpack.c.l.b16 %v1529
      %v1609 = vunpack.c.l.b16 %v1530
      %v1610 = vunpack.c.l.b16 %v1531
      %v1611 = vunpack.c.l.b16 %v1532
      %v1612 = vunpack.c.l.b16 %v1533
      %v1613 = vunpack.c.l.b16 %v1534
      %v1614 = vunpack.c.l.b16 %v1535
      %v1615 = vunpack.c.l.b16 %v1536
      %v1616 = vunpack.c.l.b16 %v1537
      %v1617 = vunpack.c.l.b16 %v1538
      %v1618 = vunpack.c.l.b16 %v1539
      %v1619 = vunpack.c.l.b16 %v1540
      %v1620 = vunpack.c.l.b16 %v1541
      %v1621 = vunpack.c.l.b16 %v1542
      %v1622 = vunpack.c.l.b16 %v1543
      %v1623 = vunpack.c.l.b16 %v1544
      %v1624 = vunpack.c.l.b16 %v1545
      %v1625 = vunpack.c.l.b16 %v1546
      %v1626 = vunpack.c.l.b16 %v1547
      %v1627 = vunpack.c.l.b16 %v1548
      %v1628 = vunpack.c.l.b16 %v1549
      %v1629 = vunpack.c.l.b16 %v1550
      %v1630 = vunpack.c.l.b16 %v1551
      %v1631 = vunpack.c.l.b16 %v1552
      %v1632 = vunpack.c.l.b16 %v1553
      %v1633 = vunpack.c.l.b16 %v1554
      %v1634 = vunpack.c.l.b16 %v1555
      %v1635 = vunpack.c.l.b16 %v1556
      %v1636 = vunpack.c.l.b16 %v1557
      %v1637 = vunpack.c.l.b16 %v1558
      %v1638 = vunpack.c.l.b16 %v1559
      %v1639 = vunpack.c.l.b16 %v1560
      %v1640 = vunpack.c.l.b16 %v1561
      %v1641 = vunpack.c.l.b16 %v1562
      %v1642 = vunpack.c.l.b16 %v1563
      %v1643 = vpack.c.b16 %v1608, %v1607
      %v1644 = vpack.c.b16 %v1610, %v1609
      %v1645 = vpack.c.b16 %v1612, %v1611
      %v1646 = vpack.c.b16 %v1614, %v1613
      %v1647 = vpack.c.b16 %v1616, %v1615
      %v1648 = vpack.c.b16 %v1618, %v1617
      %v1649 = vpack.c.b16 %v1620, %v1619
      %v1650 = vpack.c.b16 %v1622, %v1621
      %v1651 = vpack.c.b16 %v1624, %v1623
      %v1652 = vpack.c.b16 %v1626, %v1625
      %v1653 = vpack.c.b16 %v1628, %v1627
      %v1654 = vpack.c.b16 %v1630, %v1629
      %v1655 = vpack.c.b16 %v1632, %v1631
      %v1656 = vpack.c.b16 %v1634, %v1633
      %v1657 = vpack.c.b16 %v1636, %v1635
      %v1658 = vpack.c.b16 %v1638, %v1637
      %v1659 = vpack.c.b16 %v1640, %v1639
      %v1660 = vpack.c.b16 %v1642, %v1641
      %v1680 = vsel %vm712, %v1518, 0
      %v1683 = vsel %vm712, %v1521, 0
      %v1686 = vsel %vm712, %v1524, 0
      %v1689 = vsel %vm712, %v1527, 0
      %1691 = vmatprep.subr.bf16.mxu0 0
      %1692 = vmatpush1.bf16.msra.mxu0 %v1643
      %1693 = vmatprep.subr.bf16.mxu0 0
      %1694 = vmatpush1.bf16.msra.mxu0 %v1644
      %1695 = vmatprep.subr.bf16.mxu0 0
      %1696 = vmatpush1.bf16.msra.mxu0 %v1645
      %1697 = vmatprep.subr.bf16.mxu0 0
      %1698 = vmatpush1.bf16.msra.mxu0 %v1646
      %1699 = vmatprep.subr.bf16.mxu0 0
      %1700 = vmatpush1.bf16.msra.mxu0 %v1647
      %1701 = vmatprep.subr.bf16.mxu0 0
      %1702 = vmatpush1.bf16.msra.mxu0 %v1648
      %1703 = vmatprep.subr.bf16.mxu0 0
      %1704 = vmatpush1.bf16.msra.mxu0 %v1649
      %1705 = vmatprep.subr.bf16.mxu0 0
      %1706 = vmatpush1.bf16.msra.mxu0 %v1650
      %1707 = vmatprep.subr.bf16.mxu0 0
      %1708 = vmatpush1.bf16.msra.mxu0 %v1651
      %1709 = vmatprep.subr.bf16.mxu0 0
      %1710 = vmatpush1.bf16.msra.mxu0 %v1652
      %1711 = vmatprep.subr.bf16.mxu0 0
      %1712 = vmatpush1.bf16.msra.mxu0 %v1653
      %1713 = vmatprep.subr.bf16.mxu0 0
      %1714 = vmatpush1.bf16.msra.mxu0 %v1654
      %1715 = vmatprep.subr.bf16.mxu0 0
      %1716 = vmatpush1.bf16.msra.mxu0 %v1655
      %1717 = vmatprep.subr.bf16.mxu0 0
      %1718 = vmatpush1.bf16.msra.mxu0 %v1656
      %1719 = vmatprep.subr.bf16.mxu0 0
      %1720 = vmatpush1.bf16.msra.mxu0 %v1657
      %1721 = vmatprep.subr.bf16.mxu0 0
      %1722 = vmatpush1.bf16.msra.mxu0 %v1658
      %1723 = vmatprep.mubr.bf16.mxu0 %v1517
      %1724 = vmatmul.mubr.bf16.gmra.mrb[0].mxu0 %v1516
      %v1725 = vpop.f32.mrb[0].mxu0
      %v1726 = vadd.f32 %v1569, %v1725
      %v1727 = vpop.f32.mrb[0].mxu0
      %v1728 = vpop.f32.mrb[0].mxu0
      %v1729 = vadd.f32 %v1569, %v1728
      %v1730 = vpop.f32.mrb[0].mxu0
      %1731 = vmatprep.mubr.bf16.mxu0 %v1520
      %1732 = vmatmul.mubr.bf16.gmra.mrb[0].mxu0 %v1519
      %v1733 = vpop.f32.mrb[0].mxu0
      %v1734 = vadd.f32 %v1569, %v1733
      %v1735 = vpop.f32.mrb[0].mxu0
      %v1736 = vpop.f32.mrb[0].mxu0
      %v1737 = vadd.f32 %v1569, %v1736
      %v1738 = vpop.f32.mrb[0].mxu0
      %1739 = vmatprep.mubr.bf16.mxu0 %v1523
      %1740 = vmatmul.mubr.bf16.gmra.mrb[0].mxu0 %v1522
      %v1741 = vpop.f32.mrb[0].mxu0
      %v1742 = vadd.f32 %v1569, %v1741
      %v1743 = vpop.f32.mrb[0].mxu0
      %v1744 = vpop.f32.mrb[0].mxu0
      %v1745 = vadd.f32 %v1569, %v1744
      %v1746 = vpop.f32.mrb[0].mxu0
      %1747 = vmatprep.mubr.bf16.mxu0 %v1526
      %1748 = vmatmul.mubr.bf16.gmra.mrb[0].mxu0 %v1525
      %v1749 = vpop.f32.mrb[0].mxu0
      %v1750 = vadd.f32 %v1569, %v1749
      %v1751 = vpop.f32.mrb[0].mxu0
      %v1752 = vpop.f32.mrb[0].mxu0
      %v1753 = vadd.f32 %v1569, %v1752
      %v1754 = vpop.f32.mrb[0].mxu0
      %1755 = vdwg.mxu0
      %1756 = vmatprep.subr.bf16.mxu0 0
      %1757 = vmatpush1.bf16.msra.mxu0 %v1659
      %1758 = vmatprep.subr.bf16.mxu0 0
      %1759 = vmatpush1.bf16.msra.mxu0 %v1660
      %1760 = vmatprep.subr.bf16.mxu0 0
      %1761 = vmatpush1.bf16.msra.mxu0 0
      %1762 = vmatprep.subr.bf16.mxu0 0
      %1763 = vmatpush1.bf16.msra.mxu0 0
      %1764 = vmatprep.subr.bf16.mxu0 0
      %1765 = vmatpush1.bf16.msra.mxu0 0
      %1766 = vmatprep.subr.bf16.mxu0 0
      %1767 = vmatpush1.bf16.msra.mxu0 0
      %1768 = vmatprep.subr.bf16.mxu0 0
      %1769 = vmatpush1.bf16.msra.mxu0 0
      %1770 = vmatprep.subr.bf16.mxu0 0
      %1771 = vmatpush1.bf16.msra.mxu0 0
      %1772 = vmatprep.subr.bf16.mxu0 0
      %1773 = vmatpush1.bf16.msra.mxu0 0
      %1774 = vmatprep.subr.bf16.mxu0 0
      %1775 = vmatpush1.bf16.msra.mxu0 0
      %1776 = vmatprep.subr.bf16.mxu0 0
      %1777 = vmatpush1.bf16.msra.mxu0 0
      %1778 = vmatprep.subr.bf16.mxu0 0
      %1779 = vmatpush1.bf16.msra.mxu0 0
      %1780 = vmatprep.subr.bf16.mxu0 0
      %1781 = vmatpush1.bf16.msra.mxu0 0
      %1782 = vmatprep.subr.bf16.mxu0 0
      %1783 = vmatpush1.bf16.msra.mxu0 0
      %1784 = vmatprep.subr.bf16.mxu0 0
      %1785 = vmatpush1.bf16.msra.mxu0 0
      %1786 = vmatprep.subr.bf16.mxu0 0
      %1787 = vmatpush1.bf16.msra.mxu0 0
      %1788 = vmatprep.mubr.bf16.mxu0 0
      %1789 = vmatmul.mubr.bf16.gmra.mrb[0].mxu0 %v1680
      %v1790 = vpop.f32.mrb[0].mxu0
      %v1791 = vadd.f32 %v1726, %v1790
      %v1792 = vpop.f32.mrb[0].mxu0
      %v1793 = vpop.f32.mrb[0].mxu0
      %v1794 = vadd.f32 %v1729, %v1793
      %v1795 = vpop.f32.mrb[0].mxu0
      %1796 = vmatprep.mubr.bf16.mxu0 0
      %1797 = vmatmul.mubr.bf16.gmra.mrb[0].mxu0 %v1683
      %v1798 = vpop.f32.mrb[0].mxu0
      %v1799 = vadd.f32 %v1734, %v1798
      %v1800 = vpop.f32.mrb[0].mxu0
      %v1801 = vpop.f32.mrb[0].mxu0
      %v1802 = vadd.f32 %v1737, %v1801
      %v1803 = vpop.f32.mrb[0].mxu0
      %1804 = vmatprep.mubr.bf16.mxu0 0
      %1805 = vmatmul.mubr.bf16.gmra.mrb[0].mxu0 %v1686
      %v1806 = vpop.f32.mrb[0].mxu0
      %v1807 = vadd.f32 %v1742, %v1806
      %v1808 = vpop.f32.mrb[0].mxu0
      %v1809 = vpop.f32.mrb[0].mxu0
      %v1810 = vadd.f32 %v1745, %v1809
      %v1811 = vpop.f32.mrb[0].mxu0
      %1812 = vmatprep.mubr.bf16.mxu0 0
      %1813 = vmatmul.mubr.bf16.gmra.mrb[0].mxu0 %v1689
      %v1814 = vpop.f32.mrb[0].mxu0
      %v1815 = vadd.f32 %v1750, %v1814
      %v1816 = vpop.f32.mrb[0].mxu0
      %v1817 = vpop.f32.mrb[0].mxu0
      %v1818 = vadd.f32 %v1753, %v1817
      %v1819 = vpop.f32.mrb[0].mxu0
      %1820 = vdwg.mxu0
      %1829 = vrot.lane.b32.xlu0 %v1791, 112
      %v1830 = vpop.permute.xlu0 %1829
      %1831 = vrot.lane.b32.xlu0 %v1794, 112
      %v1832 = vpop.permute.xlu0 %1831
      %1833 = vrot.lane.b32.xlu0 %v1799, 112
      %v1834 = vpop.permute.xlu0 %1833
      %1835 = vrot.lane.b32.xlu0 %v1802, 112
      %v1836 = vpop.permute.xlu0 %1835
      %1837 = vrot.lane.b32.xlu0 %v1807, 112
      %v1838 = vpop.permute.xlu0 %1837
      %1839 = vrot.lane.b32.xlu0 %v1810, 112
      %v1840 = vpop.permute.xlu0 %1839
      %1841 = vrot.lane.b32.xlu0 %v1815, 112
      %v1842 = vpop.permute.xlu0 %1841
      %1843 = vrot.lane.b32.xlu0 %v1818, 112
      %v1844 = vpop.permute.xlu0 %1843
      %v1853 = vcombine.high %v1791, 0.0
      %v1855 = vunpack.c.l.s4 1983009808
      %v1856 = vunpack.c.0.s8 %v1855
      %v1857 = vlaneseq
      %v1858 = vshrl.u32 %v1857, 7
      %v1859 = vsub.s32 %v1856, %v1858
      %v1860 = vrot.slane %v1791, %v1859
      %v1862 = vunpack.c.l.s4 1983009808
      %v1863 = vunpack.c.0.s8 %v1862
      %v1864 = vlaneseq
      %v1865 = vshrl.u32 %v1864, 7
      %v1866 = vsub.s32 %v1863, %v1865
      %v1867 = vrot.slane %v1853, %v1866
      %v1868 = vcombine.high %v1830, 0.0
      %v1870 = vunpack.c.l.s4 1983009808
      %v1871 = vunpack.c.0.s8 %v1870
      %v1872 = vlaneseq
      %v1873 = vshrl.u32 %v1872, 7
      %v1874 = vsub.s32 %v1871, %v1873
      %v1875 = vrot.slane %v1830, %v1874
      %v1877 = vunpack.c.l.s4 1983009808
      %v1878 = vunpack.c.0.s8 %v1877
      %v1879 = vlaneseq
      %v1880 = vshrl.u32 %v1879, 7
      %v1881 = vsub.s32 %v1878, %v1880
      %v1882 = vrot.slane %v1868, %v1881
      %v1883 = vcombine.low %v1860, %v1875
      %v1884 = vcombine.high %v1860, %v1875
      %v1886 = vunpack.c.l.s4 1934713408
      %v1887 = vunpack.c.0.s8 %v1886
      %v1888 = vlaneseq
      %v1889 = vshrl.u32 %v1888, 7
      %v1890 = vsub.s32 %v1887, %v1889
      %v1891 = vrot.slane %v1883, %v1890
      %v1893 = vunpack.c.l.s4 1934713408
      %v1894 = vunpack.c.0.s8 %v1893
      %v1895 = vlaneseq
      %v1896 = vshrl.u32 %v1895, 7
      %v1897 = vsub.s32 %v1894, %v1896
      %v1898 = vrot.slane %v1884, %v1897
      %v1899 = vcombine.low %v1867, %v1882
      %v1900 = vcombine.high %v1867, %v1882
      %v1902 = vunpack.c.l.s4 1934713408
      %v1903 = vunpack.c.0.s8 %v1902
      %v1904 = vlaneseq
      %v1905 = vshrl.u32 %v1904, 7
      %v1906 = vsub.s32 %v1903, %v1905
      %v1907 = vrot.slane %v1899, %v1906
      %v1909 = vunpack.c.l.s4 1934713408
      %v1910 = vunpack.c.0.s8 %v1909
      %v1911 = vlaneseq
      %v1912 = vshrl.u32 %v1911, 7
      %v1913 = vsub.s32 %v1910, %v1912
      %v1914 = vrot.slane %v1900, %v1913
      %v1915 = vcombine.high %v1891, 0.0
      %v1916 = vcombine.high %v1898, 0.0
      %v1917 = vcombine.high %v1907, 0.0
      %v1918 = vcombine.high %v1914, 0.0
      %v1919 = vcombine.high %v1794, 0.0
      %v1921 = vunpack.c.l.s4 1983009808
      %v1922 = vunpack.c.0.s8 %v1921
      %v1923 = vlaneseq
      %v1924 = vshrl.u32 %v1923, 7
      %v1925 = vsub.s32 %v1922, %v1924
      %v1926 = vrot.slane %v1794, %v1925
      %v1928 = vunpack.c.l.s4 1983009808
      %v1929 = vunpack.c.0.s8 %v1928
      %v1930 = vlaneseq
      %v1931 = vshrl.u32 %v1930, 7
      %v1932 = vsub.s32 %v1929, %v1931
      %v1933 = vrot.slane %v1919, %v1932
      %v1934 = vcombine.high %v1832, 0.0
      %v1936 = vunpack.c.l.s4 1983009808
      %v1937 = vunpack.c.0.s8 %v1936
      %v1938 = vlaneseq
      %v1939 = vshrl.u32 %v1938, 7
      %v1940 = vsub.s32 %v1937, %v1939
      %v1941 = vrot.slane %v1832, %v1940
      %v1943 = vunpack.c.l.s4 1983009808
      %v1944 = vunpack.c.0.s8 %v1943
      %v1945 = vlaneseq
      %v1946 = vshrl.u32 %v1945, 7
      %v1947 = vsub.s32 %v1944, %v1946
      %v1948 = vrot.slane %v1934, %v1947
      %v1949 = vcombine.low %v1926, %v1941
      %v1950 = vcombine.high %v1926, %v1941
      %v1952 = vunpack.c.l.s4 1934713408
      %v1953 = vunpack.c.0.s8 %v1952
      %v1954 = vlaneseq
      %v1955 = vshrl.u32 %v1954, 7
      %v1956 = vsub.s32 %v1953, %v1955
      %v1957 = vrot.slane %v1949, %v1956
      %v1959 = vunpack.c.l.s4 1934713408
      %v1960 = vunpack.c.0.s8 %v1959
      %v1961 = vlaneseq
      %v1962 = vshrl.u32 %v1961, 7
      %v1963 = vsub.s32 %v1960, %v1962
      %v1964 = vrot.slane %v1950, %v1963
      %v1965 = vcombine.low %v1933, %v1948
      %v1966 = vcombine.high %v1933, %v1948
      %v1968 = vunpack.c.l.s4 1934713408
      %v1969 = vunpack.c.0.s8 %v1968
      %v1970 = vlaneseq
      %v1971 = vshrl.u32 %v1970, 7
      %v1972 = vsub.s32 %v1969, %v1971
      %v1973 = vrot.slane %v1965, %v1972
      %v1975 = vunpack.c.l.s4 1934713408
      %v1976 = vunpack.c.0.s8 %v1975
      %v1977 = vlaneseq
      %v1978 = vshrl.u32 %v1977, 7
      %v1979 = vsub.s32 %v1976, %v1978
      %v1980 = vrot.slane %v1966, %v1979
      %v1981 = vcombine.high %v1957, 0.0
      %v1982 = vcombine.high %v1964, 0.0
      %v1983 = vcombine.high %v1973, 0.0
      %v1984 = vcombine.high %v1980, 0.0
      %v1985 = vcombine.high %v1799, 0.0
      %v1987 = vunpack.c.l.s4 1983009808
      %v1988 = vunpack.c.0.s8 %v1987
      %v1989 = vlaneseq
      %v1990 = vshrl.u32 %v1989, 7
      %v1991 = vsub.s32 %v1988, %v1990
      %v1992 = vrot.slane %v1799, %v1991
      %v1994 = vunpack.c.l.s4 1983009808
      %v1995 = vunpack.c.0.s8 %v1994
      %v1996 = vlaneseq
      %v1997 = vshrl.u32 %v1996, 7
      %v1998 = vsub.s32 %v1995, %v1997
      %v1999 = vrot.slane %v1985, %v1998
      %v2000 = vcombine.high %v1834, 0.0
      %v2002 = vunpack.c.l.s4 1983009808
      %v2003 = vunpack.c.0.s8 %v2002
      %v2004 = vlaneseq
      %v2005 = vshrl.u32 %v2004, 7
      %v2006 = vsub.s32 %v2003, %v2005
      %v2007 = vrot.slane %v1834, %v2006
      %v2009 = vunpack.c.l.s4 1983009808
      %v2010 = vunpack.c.0.s8 %v2009
      %v2011 = vlaneseq
      %v2012 = vshrl.u32 %v2011, 7
      %v2013 = vsub.s32 %v2010, %v2012
      %v2014 = vrot.slane %v2000, %v2013
      %v2015 = vcombine.low %v1992, %v2007
      %v2016 = vcombine.high %v1992, %v2007
      %v2018 = vunpack.c.l.s4 1934713408
      %v2019 = vunpack.c.0.s8 %v2018
      %v2020 = vlaneseq
      %v2021 = vshrl.u32 %v2020, 7
      %v2022 = vsub.s32 %v2019, %v2021
      %v2023 = vrot.slane %v2015, %v2022
      %v2025 = vunpack.c.l.s4 1934713408
      %v2026 = vunpack.c.0.s8 %v2025
      %v2027 = vlaneseq
      %v2028 = vshrl.u32 %v2027, 7
      %v2029 = vsub.s32 %v2026, %v2028
      %v2030 = vrot.slane %v2016, %v2029
      %v2031 = vcombine.low %v1999, %v2014
      %v2032 = vcombine.high %v1999, %v2014
      %v2034 = vunpack.c.l.s4 1934713408
      %v2035 = vunpack.c.0.s8 %v2034
      %v2036 = vlaneseq
      %v2037 = vshrl.u32 %v2036, 7
      %v2038 = vsub.s32 %v2035, %v2037
      %v2039 = vrot.slane %v2031, %v2038
      %v2041 = vunpack.c.l.s4 1934713408
      %v2042 = vunpack.c.0.s8 %v2041
      %v2043 = vlaneseq
      %v2044 = vshrl.u32 %v2043, 7
      %v2045 = vsub.s32 %v2042, %v2044
      %v2046 = vrot.slane %v2032, %v2045
      %v2047 = vcombine.high %v2023, 0.0
      %v2048 = vcombine.high %v2030, 0.0
      %v2049 = vcombine.high %v2039, 0.0
      %v2050 = vcombine.high %v2046, 0.0
      %v2051 = vcombine.high %v1802, 0.0
      %v2053 = vunpack.c.l.s4 1983009808
      %v2054 = vunpack.c.0.s8 %v2053
      %v2055 = vlaneseq
      %v2056 = vshrl.u32 %v2055, 7
      %v2057 = vsub.s32 %v2054, %v2056
      %v2058 = vrot.slane %v1802, %v2057
      %v2060 = vunpack.c.l.s4 1983009808
      %v2061 = vunpack.c.0.s8 %v2060
      %v2062 = vlaneseq
      %v2063 = vshrl.u32 %v2062, 7
      %v2064 = vsub.s32 %v2061, %v2063
      %v2065 = vrot.slane %v2051, %v2064
      %v2066 = vcombine.high %v1836, 0.0
      %v2068 = vunpack.c.l.s4 1983009808
      %v2069 = vunpack.c.0.s8 %v2068
      %v2070 = vlaneseq
      %v2071 = vshrl.u32 %v2070, 7
      %v2072 = vsub.s32 %v2069, %v2071
      %v2073 = vrot.slane %v1836, %v2072
      %v2075 = vunpack.c.l.s4 1983009808
      %v2076 = vunpack.c.0.s8 %v2075
      %v2077 = vlaneseq
      %v2078 = vshrl.u32 %v2077, 7
      %v2079 = vsub.s32 %v2076, %v2078
      %v2080 = vrot.slane %v2066, %v2079
      %v2081 = vcombine.low %v2058, %v2073
      %v2082 = vcombine.high %v2058, %v2073
      %v2084 = vunpack.c.l.s4 1934713408
      %v2085 = vunpack.c.0.s8 %v2084
      %v2086 = vlaneseq
      %v2087 = vshrl.u32 %v2086, 7
      %v2088 = vsub.s32 %v2085, %v2087
      %v2089 = vrot.slane %v2081, %v2088
      %v2091 = vunpack.c.l.s4 1934713408
      %v2092 = vunpack.c.0.s8 %v2091
      %v2093 = vlaneseq
      %v2094 = vshrl.u32 %v2093, 7
      %v2095 = vsub.s32 %v2092, %v2094
      %v2096 = vrot.slane %v2082, %v2095
      %v2097 = vcombine.low %v2065, %v2080
      %v2098 = vcombine.high %v2065, %v2080
      %v2100 = vunpack.c.l.s4 1934713408
      %v2101 = vunpack.c.0.s8 %v2100
      %v2102 = vlaneseq
      %v2103 = vshrl.u32 %v2102, 7
      %v2104 = vsub.s32 %v2101, %v2103
      %v2105 = vrot.slane %v2097, %v2104
      %v2107 = vunpack.c.l.s4 1934713408
      %v2108 = vunpack.c.0.s8 %v2107
      %v2109 = vlaneseq
      %v2110 = vshrl.u32 %v2109, 7
      %v2111 = vsub.s32 %v2108, %v2110
      %v2112 = vrot.slane %v2098, %v2111
      %v2113 = vcombine.high %v2089, 0.0
      %v2114 = vcombine.high %v2096, 0.0
      %v2115 = vcombine.high %v2105, 0.0
      %v2116 = vcombine.high %v2112, 0.0
      %v2117 = vcombine.high %v1807, 0.0
      %v2119 = vunpack.c.l.s4 1983009808
      %v2120 = vunpack.c.0.s8 %v2119
      %v2121 = vlaneseq
      %v2122 = vshrl.u32 %v2121, 7
      %v2123 = vsub.s32 %v2120, %v2122
      %v2124 = vrot.slane %v1807, %v2123
      %v2126 = vunpack.c.l.s4 1983009808
      %v2127 = vunpack.c.0.s8 %v2126
      %v2128 = vlaneseq
      %v2129 = vshrl.u32 %v2128, 7
      %v2130 = vsub.s32 %v2127, %v2129
      %v2131 = vrot.slane %v2117, %v2130
      %v2132 = vcombine.high %v1838, 0.0
      %v2134 = vunpack.c.l.s4 1983009808
      %v2135 = vunpack.c.0.s8 %v2134
      %v2136 = vlaneseq
      %v2137 = vshrl.u32 %v2136, 7
      %v2138 = vsub.s32 %v2135, %v2137
      %v2139 = vrot.slane %v1838, %v2138
      %v2141 = vunpack.c.l.s4 1983009808
      %v2142 = vunpack.c.0.s8 %v2141
      %v2143 = vlaneseq
      %v2144 = vshrl.u32 %v2143, 7
      %v2145 = vsub.s32 %v2142, %v2144
      %v2146 = vrot.slane %v2132, %v2145
      %v2147 = vcombine.low %v2124, %v2139
      %v2148 = vcombine.high %v2124, %v2139
      %v2150 = vunpack.c.l.s4 1934713408
      %v2151 = vunpack.c.0.s8 %v2150
      %v2152 = vlaneseq
      %v2153 = vshrl.u32 %v2152, 7
      %v2154 = vsub.s32 %v2151, %v2153
      %v2155 = vrot.slane %v2147, %v2154
      %v2157 = vunpack.c.l.s4 1934713408
      %v2158 = vunpack.c.0.s8 %v2157
      %v2159 = vlaneseq
      %v2160 = vshrl.u32 %v2159, 7
      %v2161 = vsub.s32 %v2158, %v2160
      %v2162 = vrot.slane %v2148, %v2161
      %v2163 = vcombine.low %v2131, %v2146
      %v2164 = vcombine.high %v2131, %v2146
      %v2166 = vunpack.c.l.s4 1934713408
      %v2167 = vunpack.c.0.s8 %v2166
      %v2168 = vlaneseq
      %v2169 = vshrl.u32 %v2168, 7
      %v2170 = vsub.s32 %v2167, %v2169
      %v2171 = vrot.slane %v2163, %v2170
      %v2173 = vunpack.c.l.s4 1934713408
      %v2174 = vunpack.c.0.s8 %v2173
      %v2175 = vlaneseq
      %v2176 = vshrl.u32 %v2175, 7
      %v2177 = vsub.s32 %v2174, %v2176
      %v2178 = vrot.slane %v2164, %v2177
      %v2179 = vcombine.high %v2155, 0.0
      %v2180 = vcombine.high %v2162, 0.0
      %v2181 = vcombine.high %v2171, 0.0
      %v2182 = vcombine.high %v2178, 0.0
      %v2183 = vcombine.high %v1810, 0.0
      %v2185 = vunpack.c.l.s4 1983009808
      %v2186 = vunpack.c.0.s8 %v2185
      %v2187 = vlaneseq
      %v2188 = vshrl.u32 %v2187, 7
      %v2189 = vsub.s32 %v2186, %v2188
      %v2190 = vrot.slane %v1810, %v2189
      %v2192 = vunpack.c.l.s4 1983009808
      %v2193 = vunpack.c.0.s8 %v2192
      %v2194 = vlaneseq
      %v2195 = vshrl.u32 %v2194, 7
      %v2196 = vsub.s32 %v2193, %v2195
      %v2197 = vrot.slane %v2183, %v2196
      %v2198 = vcombine.high %v1840, 0.0
      %v2200 = vunpack.c.l.s4 1983009808
      %v2201 = vunpack.c.0.s8 %v2200
      %v2202 = vlaneseq
      %v2203 = vshrl.u32 %v2202, 7
      %v2204 = vsub.s32 %v2201, %v2203
      %v2205 = vrot.slane %v1840, %v2204
      %v2207 = vunpack.c.l.s4 1983009808
      %v2208 = vunpack.c.0.s8 %v2207
      %v2209 = vlaneseq
      %v2210 = vshrl.u32 %v2209, 7
      %v2211 = vsub.s32 %v2208, %v2210
      %v2212 = vrot.slane %v2198, %v2211
      %v2213 = vcombine.low %v2190, %v2205
      %v2214 = vcombine.high %v2190, %v2205
      %v2216 = vunpack.c.l.s4 1934713408
      %v2217 = vunpack.c.0.s8 %v2216
      %v2218 = vlaneseq
      %v2219 = vshrl.u32 %v2218, 7
      %v2220 = vsub.s32 %v2217, %v2219
      %v2221 = vrot.slane %v2213, %v2220
      %v2223 = vunpack.c.l.s4 1934713408
      %v2224 = vunpack.c.0.s8 %v2223
      %v2225 = vlaneseq
      %v2226 = vshrl.u32 %v2225, 7
      %v2227 = vsub.s32 %v2224, %v2226
      %v2228 = vrot.slane %v2214, %v2227
      %v2229 = vcombine.low %v2197, %v2212
      %v2230 = vcombine.high %v2197, %v2212
      %v2232 = vunpack.c.l.s4 1934713408
      %v2233 = vunpack.c.0.s8 %v2232
      %v2234 = vlaneseq
      %v2235 = vshrl.u32 %v2234, 7
      %v2236 = vsub.s32 %v2233, %v2235
      %v2237 = vrot.slane %v2229, %v2236
      %v2239 = vunpack.c.l.s4 1934713408
      %v2240 = vunpack.c.0.s8 %v2239
      %v2241 = vlaneseq
      %v2242 = vshrl.u32 %v2241, 7
      %v2243 = vsub.s32 %v2240, %v2242
      %v2244 = vrot.slane %v2230, %v2243
      %v2245 = vcombine.high %v2221, 0.0
      %v2246 = vcombine.high %v2228, 0.0
      %v2247 = vcombine.high %v2237, 0.0
      %v2248 = vcombine.high %v2244, 0.0
      %v2249 = vcombine.high %v1815, 0.0
      %v2251 = vunpack.c.l.s4 1983009808
      %v2252 = vunpack.c.0.s8 %v2251
      %v2253 = vlaneseq
      %v2254 = vshrl.u32 %v2253, 7
      %v2255 = vsub.s32 %v2252, %v2254
      %v2256 = vrot.slane %v1815, %v2255
      %v2258 = vunpack.c.l.s4 1983009808
      %v2259 = vunpack.c.0.s8 %v2258
      %v2260 = vlaneseq
      %v2261 = vshrl.u32 %v2260, 7
      %v2262 = vsub.s32 %v2259, %v2261
      %v2263 = vrot.slane %v2249, %v2262
      %v2264 = vcombine.high %v1842, 0.0
      %v2266 = vunpack.c.l.s4 1983009808
      %v2267 = vunpack.c.0.s8 %v2266
      %v2268 = vlaneseq
      %v2269 = vshrl.u32 %v2268, 7
      %v2270 = vsub.s32 %v2267, %v2269
      %v2271 = vrot.slane %v1842, %v2270
      %v2273 = vunpack.c.l.s4 1983009808
      %v2274 = vunpack.c.0.s8 %v2273
      %v2275 = vlaneseq
      %v2276 = vshrl.u32 %v2275, 7
      %v2277 = vsub.s32 %v2274, %v2276
      %v2278 = vrot.slane %v2264, %v2277
      %v2279 = vcombine.low %v2256, %v2271
      %v2280 = vcombine.high %v2256, %v2271
      %v2282 = vunpack.c.l.s4 1934713408
      %v2283 = vunpack.c.0.s8 %v2282
      %v2284 = vlaneseq
      %v2285 = vshrl.u32 %v2284, 7
      %v2286 = vsub.s32 %v2283, %v2285
      %v2287 = vrot.slane %v2279, %v2286
      %v2289 = vunpack.c.l.s4 1934713408
      %v2290 = vunpack.c.0.s8 %v2289
      %v2291 = vlaneseq
      %v2292 = vshrl.u32 %v2291, 7
      %v2293 = vsub.s32 %v2290, %v2292
      %v2294 = vrot.slane %v2280, %v2293
      %v2295 = vcombine.low %v2263, %v2278
      %v2296 = vcombine.high %v2263, %v2278
      %v2298 = vunpack.c.l.s4 1934713408
      %v2299 = vunpack.c.0.s8 %v2298
      %v2300 = vlaneseq
      %v2301 = vshrl.u32 %v2300, 7
      %v2302 = vsub.s32 %v2299, %v2301
      %v2303 = vrot.slane %v2295, %v2302
      %v2305 = vunpack.c.l.s4 1934713408
      %v2306 = vunpack.c.0.s8 %v2305
      %v2307 = vlaneseq
      %v2308 = vshrl.u32 %v2307, 7
      %v2309 = vsub.s32 %v2306, %v2308
      %v2310 = vrot.slane %v2296, %v2309
      %v2311 = vcombine.high %v2287, 0.0
      %v2312 = vcombine.high %v2294, 0.0
      %v2313 = vcombine.high %v2303, 0.0
      %v2314 = vcombine.high %v2310, 0.0
      %v2315 = vcombine.high %v1818, 0.0
      %v2317 = vunpack.c.l.s4 1983009808
      %v2318 = vunpack.c.0.s8 %v2317
      %v2319 = vlaneseq
      %v2320 = vshrl.u32 %v2319, 7
      %v2321 = vsub.s32 %v2318, %v2320
      %v2322 = vrot.slane %v1818, %v2321
      %v2324 = vunpack.c.l.s4 1983009808
      %v2325 = vunpack.c.0.s8 %v2324
      %v2326 = vlaneseq
      %v2327 = vshrl.u32 %v2326, 7
      %v2328 = vsub.s32 %v2325, %v2327
      %v2329 = vrot.slane %v2315, %v2328
      %v2330 = vcombine.high %v1844, 0.0
      %v2332 = vunpack.c.l.s4 1983009808
      %v2333 = vunpack.c.0.s8 %v2332
      %v2334 = vlaneseq
      %v2335 = vshrl.u32 %v2334, 7
      %v2336 = vsub.s32 %v2333, %v2335
      %v2337 = vrot.slane %v1844, %v2336
      %v2339 = vunpack.c.l.s4 1983009808
      %v2340 = vunpack.c.0.s8 %v2339
      %v2341 = vlaneseq
      %v2342 = vshrl.u32 %v2341, 7
      %v2343 = vsub.s32 %v2340, %v2342
      %v2344 = vrot.slane %v2330, %v2343
      %v2345 = vcombine.low %v2322, %v2337
      %v2346 = vcombine.high %v2322, %v2337
      %v2348 = vunpack.c.l.s4 1934713408
      %v2349 = vunpack.c.0.s8 %v2348
      %v2350 = vlaneseq
      %v2351 = vshrl.u32 %v2350, 7
      %v2352 = vsub.s32 %v2349, %v2351
      %v2353 = vrot.slane %v2345, %v2352
      %v2355 = vunpack.c.l.s4 1934713408
      %v2356 = vunpack.c.0.s8 %v2355
      %v2357 = vlaneseq
      %v2358 = vshrl.u32 %v2357, 7
      %v2359 = vsub.s32 %v2356, %v2358
      %v2360 = vrot.slane %v2346, %v2359
      %v2361 = vcombine.low %v2329, %v2344
      %v2362 = vcombine.high %v2329, %v2344
      %v2364 = vunpack.c.l.s4 1934713408
      %v2365 = vunpack.c.0.s8 %v2364
      %v2366 = vlaneseq
      %v2367 = vshrl.u32 %v2366, 7
      %v2368 = vsub.s32 %v2365, %v2367
      %v2369 = vrot.slane %v2361, %v2368
      %v2371 = vunpack.c.l.s4 1934713408
      %v2372 = vunpack.c.0.s8 %v2371
      %v2373 = vlaneseq
      %v2374 = vshrl.u32 %v2373, 7
      %v2375 = vsub.s32 %v2372, %v2374
      %v2376 = vrot.slane %v2362, %v2375
      %v2377 = vcombine.high %v2353, 0.0
      %v2378 = vcombine.high %v2360, 0.0
      %v2379 = vcombine.high %v2369, 0.0
      %v2380 = vcombine.high %v2376, 0.0
      %v2381 = vpack.c.bf16 %v1891, %v1891
      %v2382 = vpack.c.bf16 %v1915, %v1915
      %v2383 = vpack.c.bf16 %v1898, %v1898
      %v2384 = vpack.c.bf16 %v1916, %v1916
      %v2385 = vpack.c.bf16 %v1907, %v1907
      %v2386 = vpack.c.bf16 %v1917, %v1917
      %v2387 = vpack.c.bf16 %v1914, %v1914
      %v2388 = vpack.c.bf16 %v1918, %v1918
      %v2389 = vpack.c.bf16 %v1957, %v1957
      %v2390 = vpack.c.bf16 %v1981, %v1981
      %v2391 = vpack.c.bf16 %v1964, %v1964
      %v2392 = vpack.c.bf16 %v1982, %v1982
      %v2393 = vpack.c.bf16 %v1973, %v1973
      %v2394 = vpack.c.bf16 %v1983, %v1983
      %v2395 = vpack.c.bf16 %v1980, %v1980
      %v2396 = vpack.c.bf16 %v1984, %v1984
      %v2397 = vpack.c.bf16 %v2023, %v2023
      %v2398 = vpack.c.bf16 %v2047, %v2047
      %v2399 = vpack.c.bf16 %v2030, %v2030
      %v2400 = vpack.c.bf16 %v2048, %v2048
      %v2401 = vpack.c.bf16 %v2039, %v2039
      %v2402 = vpack.c.bf16 %v2049, %v2049
      %v2403 = vpack.c.bf16 %v2046, %v2046
      %v2404 = vpack.c.bf16 %v2050, %v2050
      %v2405 = vpack.c.bf16 %v2089, %v2089
      %v2406 = vpack.c.bf16 %v2113, %v2113
      %v2407 = vpack.c.bf16 %v2096, %v2096
      %v2408 = vpack.c.bf16 %v2114, %v2114
      %v2409 = vpack.c.bf16 %v2105, %v2105
      %v2410 = vpack.c.bf16 %v2115, %v2115
      %v2411 = vpack.c.bf16 %v2112, %v2112
      %v2412 = vpack.c.bf16 %v2116, %v2116
      %v2413 = vpack.c.bf16 %v2155, %v2155
      %v2414 = vpack.c.bf16 %v2179, %v2179
      %v2415 = vpack.c.bf16 %v2162, %v2162
      %v2416 = vpack.c.bf16 %v2180, %v2180
      %v2417 = vpack.c.bf16 %v2171, %v2171
      %v2418 = vpack.c.bf16 %v2181, %v2181
      %v2419 = vpack.c.bf16 %v2178, %v2178
      %v2420 = vpack.c.bf16 %v2182, %v2182
      %v2421 = vpack.c.bf16 %v2221, %v2221
      %v2422 = vpack.c.bf16 %v2245, %v2245
      %v2423 = vpack.c.bf16 %v2228, %v2228
      %v2424 = vpack.c.bf16 %v2246, %v2246
      %v2425 = vpack.c.bf16 %v2237, %v2237
      %v2426 = vpack.c.bf16 %v2247, %v2247
      %v2427 = vpack.c.bf16 %v2244, %v2244
      %v2428 = vpack.c.bf16 %v2248, %v2248
      %v2429 = vpack.c.bf16 %v2287, %v2287
      %v2430 = vpack.c.bf16 %v2311, %v2311
      %v2431 = vpack.c.bf16 %v2294, %v2294
      %v2432 = vpack.c.bf16 %v2312, %v2312
      %v2433 = vpack.c.bf16 %v2303, %v2303
      %v2434 = vpack.c.bf16 %v2313, %v2313
      %v2435 = vpack.c.bf16 %v2310, %v2310
      %v2436 = vpack.c.bf16 %v2314, %v2314
      %v2437 = vpack.c.bf16 %v2353, %v2353
      %v2438 = vpack.c.bf16 %v2377, %v2377
      %v2439 = vpack.c.bf16 %v2360, %v2360
      %v2440 = vpack.c.bf16 %v2378, %v2378
      %v2441 = vpack.c.bf16 %v2369, %v2369
      %v2442 = vpack.c.bf16 %v2379, %v2379
      %v2443 = vpack.c.bf16 %v2376, %v2376
      %v2444 = vpack.c.bf16 %v2380, %v2380
      %2445 = vrot.lane.b32.xlu0 %v1791, 96
      %v2446 = vpop.permute.xlu0 %2445
      %2447 = vrot.lane.b32.xlu0 %v1794, 96
      %v2448 = vpop.permute.xlu0 %2447
      %2449 = vrot.lane.b32.xlu0 %v1799, 96
      %v2450 = vpop.permute.xlu0 %2449
      %2451 = vrot.lane.b32.xlu0 %v1802, 96
      %v2452 = vpop.permute.xlu0 %2451
      %2453 = vrot.lane.b32.xlu0 %v1807, 96
      %v2454 = vpop.permute.xlu0 %2453
      %2455 = vrot.lane.b32.xlu0 %v1810, 96
      %v2456 = vpop.permute.xlu0 %2455
      %2457 = vrot.lane.b32.xlu0 %v1815, 96
      %v2458 = vpop.permute.xlu0 %2457
      %2459 = vrot.lane.b32.xlu0 %v1818, 96
      %v2460 = vpop.permute.xlu0 %2459
      %2461 = vrot.lane.b32.xlu0 %v1830, 96
      %v2462 = vpop.permute.xlu0 %2461
      %2463 = vrot.lane.b32.xlu0 %v1832, 96
      %v2464 = vpop.permute.xlu0 %2463
      %2465 = vrot.lane.b32.xlu0 %v1834, 96
      %v2466 = vpop.permute.xlu0 %2465
      %2467 = vrot.lane.b32.xlu0 %v1836, 96
      %v2468 = vpop.permute.xlu0 %2467
      %2469 = vrot.lane.b32.xlu0 %v1838, 96
      %v2470 = vpop.permute.xlu0 %2469
      %2471 = vrot.lane.b32.xlu0 %v1840, 96
      %v2472 = vpop.permute.xlu0 %2471
      %2473 = vrot.lane.b32.xlu0 %v1842, 96
      %v2474 = vpop.permute.xlu0 %2473
      %2475 = vrot.lane.b32.xlu0 %v1844, 96
      %v2476 = vpop.permute.xlu0 %2475
      %v2493 = vcombine.high %v2446, 0.0
      %v2495 = vunpack.c.l.s4 1983009808
      %v2496 = vunpack.c.0.s8 %v2495
      %v2497 = vlaneseq
      %v2498 = vshrl.u32 %v2497, 7
      %v2499 = vsub.s32 %v2496, %v2498
      %v2500 = vrot.slane %v2446, %v2499
      %v2502 = vunpack.c.l.s4 1983009808
      %v2503 = vunpack.c.0.s8 %v2502
      %v2504 = vlaneseq
      %v2505 = vshrl.u32 %v2504, 7
      %v2506 = vsub.s32 %v2503, %v2505
      %v2507 = vrot.slane %v2493, %v2506
      %v2508 = vcombine.high %v2462, 0.0
      %v2510 = vunpack.c.l.s4 1983009808
      %v2511 = vunpack.c.0.s8 %v2510
      %v2512 = vlaneseq
      %v2513 = vshrl.u32 %v2512, 7
      %v2514 = vsub.s32 %v2511, %v2513
      %v2515 = vrot.slane %v2462, %v2514
      %v2517 = vunpack.c.l.s4 1983009808
      %v2518 = vunpack.c.0.s8 %v2517
      %v2519 = vlaneseq
      %v2520 = vshrl.u32 %v2519, 7
      %v2521 = vsub.s32 %v2518, %v2520
      %v2522 = vrot.slane %v2508, %v2521
      %v2523 = vcombine.low %v2500, %v2515
      %v2524 = vcombine.high %v2500, %v2515
      %v2526 = vunpack.c.l.s4 1934713408
      %v2527 = vunpack.c.0.s8 %v2526
      %v2528 = vlaneseq
      %v2529 = vshrl.u32 %v2528, 7
      %v2530 = vsub.s32 %v2527, %v2529
      %v2531 = vrot.slane %v2523, %v2530
      %v2533 = vunpack.c.l.s4 1934713408
      %v2534 = vunpack.c.0.s8 %v2533
      %v2535 = vlaneseq
      %v2536 = vshrl.u32 %v2535, 7
      %v2537 = vsub.s32 %v2534, %v2536
      %v2538 = vrot.slane %v2524, %v2537
      %v2539 = vcombine.low %v2507, %v2522
      %v2540 = vcombine.high %v2507, %v2522
      %v2542 = vunpack.c.l.s4 1934713408
      %v2543 = vunpack.c.0.s8 %v2542
      %v2544 = vlaneseq
      %v2545 = vshrl.u32 %v2544, 7
      %v2546 = vsub.s32 %v2543, %v2545
      %v2547 = vrot.slane %v2539, %v2546
      %v2549 = vunpack.c.l.s4 1934713408
      %v2550 = vunpack.c.0.s8 %v2549
      %v2551 = vlaneseq
      %v2552 = vshrl.u32 %v2551, 7
      %v2553 = vsub.s32 %v2550, %v2552
      %v2554 = vrot.slane %v2540, %v2553
      %v2555 = vcombine.high %v2531, 0.0
      %v2556 = vcombine.high %v2538, 0.0
      %v2557 = vcombine.high %v2547, 0.0
      %v2558 = vcombine.high %v2554, 0.0
      %v2559 = vcombine.high %v2448, 0.0
      %v2561 = vunpack.c.l.s4 1983009808
      %v2562 = vunpack.c.0.s8 %v2561
      %v2563 = vlaneseq
      %v2564 = vshrl.u32 %v2563, 7
      %v2565 = vsub.s32 %v2562, %v2564
      %v2566 = vrot.slane %v2448, %v2565
      %v2568 = vunpack.c.l.s4 1983009808
      %v2569 = vunpack.c.0.s8 %v2568
      %v2570 = vlaneseq
      %v2571 = vshrl.u32 %v2570, 7
      %v2572 = vsub.s32 %v2569, %v2571
      %v2573 = vrot.slane %v2559, %v2572
      %v2574 = vcombine.high %v2464, 0.0
      %v2576 = vunpack.c.l.s4 1983009808
      %v2577 = vunpack.c.0.s8 %v2576
      %v2578 = vlaneseq
      %v2579 = vshrl.u32 %v2578, 7
      %v2580 = vsub.s32 %v2577, %v2579
      %v2581 = vrot.slane %v2464, %v2580
      %v2583 = vunpack.c.l.s4 1983009808
      %v2584 = vunpack.c.0.s8 %v2583
      %v2585 = vlaneseq
      %v2586 = vshrl.u32 %v2585, 7
      %v2587 = vsub.s32 %v2584, %v2586
      %v2588 = vrot.slane %v2574, %v2587
      %v2589 = vcombine.low %v2566, %v2581
      %v2590 = vcombine.high %v2566, %v2581
      %v2592 = vunpack.c.l.s4 1934713408
      %v2593 = vunpack.c.0.s8 %v2592
      %v2594 = vlaneseq
      %v2595 = vshrl.u32 %v2594, 7
      %v2596 = vsub.s32 %v2593, %v2595
      %v2597 = vrot.slane %v2589, %v2596
      %v2599 = vunpack.c.l.s4 1934713408
      %v2600 = vunpack.c.0.s8 %v2599
      %v2601 = vlaneseq
      %v2602 = vshrl.u32 %v2601, 7
      %v2603 = vsub.s32 %v2600, %v2602
      %v2604 = vrot.slane %v2590, %v2603
      %v2605 = vcombine.low %v2573, %v2588
      %v2606 = vcombine.high %v2573, %v2588
      %v2608 = vunpack.c.l.s4 1934713408
      %v2609 = vunpack.c.0.s8 %v2608
      %v2610 = vlaneseq
      %v2611 = vshrl.u32 %v2610, 7
      %v2612 = vsub.s32 %v2609, %v2611
      %v2613 = vrot.slane %v2605, %v2612
      %v2615 = vunpack.c.l.s4 1934713408
      %v2616 = vunpack.c.0.s8 %v2615
      %v2617 = vlaneseq
      %v2618 = vshrl.u32 %v2617, 7
      %v2619 = vsub.s32 %v2616, %v2618
      %v2620 = vrot.slane %v2606, %v2619
      %v2621 = vcombine.high %v2597, 0.0
      %v2622 = vcombine.high %v2604, 0.0
      %v2623 = vcombine.high %v2613, 0.0
      %v2624 = vcombine.high %v2620, 0.0
      %v2625 = vcombine.high %v2450, 0.0
      %v2627 = vunpack.c.l.s4 1983009808
      %v2628 = vunpack.c.0.s8 %v2627
      %v2629 = vlaneseq
      %v2630 = vshrl.u32 %v2629, 7
      %v2631 = vsub.s32 %v2628, %v2630
      %v2632 = vrot.slane %v2450, %v2631
      %v2634 = vunpack.c.l.s4 1983009808
      %v2635 = vunpack.c.0.s8 %v2634
      %v2636 = vlaneseq
      %v2637 = vshrl.u32 %v2636, 7
      %v2638 = vsub.s32 %v2635, %v2637
      %v2639 = vrot.slane %v2625, %v2638
      %v2640 = vcombine.high %v2466, 0.0
      %v2642 = vunpack.c.l.s4 1983009808
      %v2643 = vunpack.c.0.s8 %v2642
      %v2644 = vlaneseq
      %v2645 = vshrl.u32 %v2644, 7
      %v2646 = vsub.s32 %v2643, %v2645
      %v2647 = vrot.slane %v2466, %v2646
      %v2649 = vunpack.c.l.s4 1983009808
      %v2650 = vunpack.c.0.s8 %v2649
      %v2651 = vlaneseq
      %v2652 = vshrl.u32 %v2651, 7
      %v2653 = vsub.s32 %v2650, %v2652
      %v2654 = vrot.slane %v2640, %v2653
      %v2655 = vcombine.low %v2632, %v2647
      %v2656 = vcombine.high %v2632, %v2647
      %v2658 = vunpack.c.l.s4 1934713408
      %v2659 = vunpack.c.0.s8 %v2658
      %v2660 = vlaneseq
      %v2661 = vshrl.u32 %v2660, 7
      %v2662 = vsub.s32 %v2659, %v2661
      %v2663 = vrot.slane %v2655, %v2662
      %v2665 = vunpack.c.l.s4 1934713408
      %v2666 = vunpack.c.0.s8 %v2665
      %v2667 = vlaneseq
      %v2668 = vshrl.u32 %v2667, 7
      %v2669 = vsub.s32 %v2666, %v2668
      %v2670 = vrot.slane %v2656, %v2669
      %v2671 = vcombine.low %v2639, %v2654
      %v2672 = vcombine.high %v2639, %v2654
      %v2674 = vunpack.c.l.s4 1934713408
      %v2675 = vunpack.c.0.s8 %v2674
      %v2676 = vlaneseq
      %v2677 = vshrl.u32 %v2676, 7
      %v2678 = vsub.s32 %v2675, %v2677
      %v2679 = vrot.slane %v2671, %v2678
      %v2681 = vunpack.c.l.s4 1934713408
      %v2682 = vunpack.c.0.s8 %v2681
      %v2683 = vlaneseq
      %v2684 = vshrl.u32 %v2683, 7
      %v2685 = vsub.s32 %v2682, %v2684
      %v2686 = vrot.slane %v2672, %v2685
      %v2687 = vcombine.high %v2663, 0.0
      %v2688 = vcombine.high %v2670, 0.0
      %v2689 = vcombine.high %v2679, 0.0
      %v2690 = vcombine.high %v2686, 0.0
      %v2691 = vcombine.high %v2452, 0.0
      %v2693 = vunpack.c.l.s4 1983009808
      %v2694 = vunpack.c.0.s8 %v2693
      %v2695 = vlaneseq
      %v2696 = vshrl.u32 %v2695, 7
      %v2697 = vsub.s32 %v2694, %v2696
      %v2698 = vrot.slane %v2452, %v2697
      %v2700 = vunpack.c.l.s4 1983009808
      %v2701 = vunpack.c.0.s8 %v2700
      %v2702 = vlaneseq
      %v2703 = vshrl.u32 %v2702, 7
      %v2704 = vsub.s32 %v2701, %v2703
      %v2705 = vrot.slane %v2691, %v2704
      %v2706 = vcombine.high %v2468, 0.0
      %v2708 = vunpack.c.l.s4 1983009808
      %v2709 = vunpack.c.0.s8 %v2708
      %v2710 = vlaneseq
      %v2711 = vshrl.u32 %v2710, 7
      %v2712 = vsub.s32 %v2709, %v2711
      %v2713 = vrot.slane %v2468, %v2712
      %v2715 = vunpack.c.l.s4 1983009808
      %v2716 = vunpack.c.0.s8 %v2715
      %v2717 = vlaneseq
      %v2718 = vshrl.u32 %v2717, 7
      %v2719 = vsub.s32 %v2716, %v2718
      %v2720 = vrot.slane %v2706, %v2719
      %v2721 = vcombine.low %v2698, %v2713
      %v2722 = vcombine.high %v2698, %v2713
      %v2724 = vunpack.c.l.s4 1934713408
      %v2725 = vunpack.c.0.s8 %v2724
      %v2726 = vlaneseq
      %v2727 = vshrl.u32 %v2726, 7
      %v2728 = vsub.s32 %v2725, %v2727
      %v2729 = vrot.slane %v2721, %v2728
      %v2731 = vunpack.c.l.s4 1934713408
      %v2732 = vunpack.c.0.s8 %v2731
      %v2733 = vlaneseq
      %v2734 = vshrl.u32 %v2733, 7
      %v2735 = vsub.s32 %v2732, %v2734
      %v2736 = vrot.slane %v2722, %v2735
      %v2737 = vcombine.low %v2705, %v2720
      %v2738 = vcombine.high %v2705, %v2720
      %v2740 = vunpack.c.l.s4 1934713408
      %v2741 = vunpack.c.0.s8 %v2740
      %v2742 = vlaneseq
      %v2743 = vshrl.u32 %v2742, 7
      %v2744 = vsub.s32 %v2741, %v2743
      %v2745 = vrot.slane %v2737, %v2744
      %v2747 = vunpack.c.l.s4 1934713408
      %v2748 = vunpack.c.0.s8 %v2747
      %v2749 = vlaneseq
      %v2750 = vshrl.u32 %v2749, 7
      %v2751 = vsub.s32 %v2748, %v2750
      %v2752 = vrot.slane %v2738, %v2751
      %v2753 = vcombine.high %v2729, 0.0
      %v2754 = vcombine.high %v2736, 0.0
      %v2755 = vcombine.high %v2745, 0.0
      %v2756 = vcombine.high %v2752, 0.0
      %v2757 = vcombine.high %v2454, 0.0
      %v2759 = vunpack.c.l.s4 1983009808
      %v2760 = vunpack.c.0.s8 %v2759
      %v2761 = vlaneseq
      %v2762 = vshrl.u32 %v2761, 7
      %v2763 = vsub.s32 %v2760, %v2762
      %v2764 = vrot.slane %v2454, %v2763
      %v2766 = vunpack.c.l.s4 1983009808
      %v2767 = vunpack.c.0.s8 %v2766
      %v2768 = vlaneseq
      %v2769 = vshrl.u32 %v2768, 7
      %v2770 = vsub.s32 %v2767, %v2769
      %v2771 = vrot.slane %v2757, %v2770
      %v2772 = vcombine.high %v2470, 0.0
      %v2774 = vunpack.c.l.s4 1983009808
      %v2775 = vunpack.c.0.s8 %v2774
      %v2776 = vlaneseq
      %v2777 = vshrl.u32 %v2776, 7
      %v2778 = vsub.s32 %v2775, %v2777
      %v2779 = vrot.slane %v2470, %v2778
      %v2781 = vunpack.c.l.s4 1983009808
      %v2782 = vunpack.c.0.s8 %v2781
      %v2783 = vlaneseq
      %v2784 = vshrl.u32 %v2783, 7
      %v2785 = vsub.s32 %v2782, %v2784
      %v2786 = vrot.slane %v2772, %v2785
      %v2787 = vcombine.low %v2764, %v2779
      %v2788 = vcombine.high %v2764, %v2779
      %v2790 = vunpack.c.l.s4 1934713408
      %v2791 = vunpack.c.0.s8 %v2790
      %v2792 = vlaneseq
      %v2793 = vshrl.u32 %v2792, 7
      %v2794 = vsub.s32 %v2791, %v2793
      %v2795 = vrot.slane %v2787, %v2794
      %v2797 = vunpack.c.l.s4 1934713408
      %v2798 = vunpack.c.0.s8 %v2797
      %v2799 = vlaneseq
      %v2800 = vshrl.u32 %v2799, 7
      %v2801 = vsub.s32 %v2798, %v2800
      %v2802 = vrot.slane %v2788, %v2801
      %v2803 = vcombine.low %v2771, %v2786
      %v2804 = vcombine.high %v2771, %v2786
      %v2806 = vunpack.c.l.s4 1934713408
      %v2807 = vunpack.c.0.s8 %v2806
      %v2808 = vlaneseq
      %v2809 = vshrl.u32 %v2808, 7
      %v2810 = vsub.s32 %v2807, %v2809
      %v2811 = vrot.slane %v2803, %v2810
      %v2813 = vunpack.c.l.s4 1934713408
      %v2814 = vunpack.c.0.s8 %v2813
      %v2815 = vlaneseq
      %v2816 = vshrl.u32 %v2815, 7
      %v2817 = vsub.s32 %v2814, %v2816
      %v2818 = vrot.slane %v2804, %v2817
      %v2819 = vcombine.high %v2795, 0.0
      %v2820 = vcombine.high %v2802, 0.0
      %v2821 = vcombine.high %v2811, 0.0
      %v2822 = vcombine.high %v2818, 0.0
      %v2823 = vcombine.high %v2456, 0.0
      %v2825 = vunpack.c.l.s4 1983009808
      %v2826 = vunpack.c.0.s8 %v2825
      %v2827 = vlaneseq
      %v2828 = vshrl.u32 %v2827, 7
      %v2829 = vsub.s32 %v2826, %v2828
      %v2830 = vrot.slane %v2456, %v2829
      %v2832 = vunpack.c.l.s4 1983009808
      %v2833 = vunpack.c.0.s8 %v2832
      %v2834 = vlaneseq
      %v2835 = vshrl.u32 %v2834, 7
      %v2836 = vsub.s32 %v2833, %v2835
      %v2837 = vrot.slane %v2823, %v2836
      %v2838 = vcombine.high %v2472, 0.0
      %v2840 = vunpack.c.l.s4 1983009808
      %v2841 = vunpack.c.0.s8 %v2840
      %v2842 = vlaneseq
      %v2843 = vshrl.u32 %v2842, 7
      %v2844 = vsub.s32 %v2841, %v2843
      %v2845 = vrot.slane %v2472, %v2844
      %v2847 = vunpack.c.l.s4 1983009808
      %v2848 = vunpack.c.0.s8 %v2847
      %v2849 = vlaneseq
      %v2850 = vshrl.u32 %v2849, 7
      %v2851 = vsub.s32 %v2848, %v2850
      %v2852 = vrot.slane %v2838, %v2851
      %v2853 = vcombine.low %v2830, %v2845
      %v2854 = vcombine.high %v2830, %v2845
      %v2856 = vunpack.c.l.s4 1934713408
      %v2857 = vunpack.c.0.s8 %v2856
      %v2858 = vlaneseq
      %v2859 = vshrl.u32 %v2858, 7
      %v2860 = vsub.s32 %v2857, %v2859
      %v2861 = vrot.slane %v2853, %v2860
      %v2863 = vunpack.c.l.s4 1934713408
      %v2864 = vunpack.c.0.s8 %v2863
      %v2865 = vlaneseq
      %v2866 = vshrl.u32 %v2865, 7
      %v2867 = vsub.s32 %v2864, %v2866
      %v2868 = vrot.slane %v2854, %v2867
      %v2869 = vcombine.low %v2837, %v2852
      %v2870 = vcombine.high %v2837, %v2852
      %v2872 = vunpack.c.l.s4 1934713408
      %v2873 = vunpack.c.0.s8 %v2872
      %v2874 = vlaneseq
      %v2875 = vshrl.u32 %v2874, 7
      %v2876 = vsub.s32 %v2873, %v2875
      %v2877 = vrot.slane %v2869, %v2876
      %v2879 = vunpack.c.l.s4 1934713408
      %v2880 = vunpack.c.0.s8 %v2879
      %v2881 = vlaneseq
      %v2882 = vshrl.u32 %v2881, 7
      %v2883 = vsub.s32 %v2880, %v2882
      %v2884 = vrot.slane %v2870, %v2883
      %v2885 = vcombine.high %v2861, 0.0
      %v2886 = vcombine.high %v2868, 0.0
      %v2887 = vcombine.high %v2877, 0.0
      %v2888 = vcombine.high %v2884, 0.0
      %v2889 = vcombine.high %v2458, 0.0
      %v2891 = vunpack.c.l.s4 1983009808
      %v2892 = vunpack.c.0.s8 %v2891
      %v2893 = vlaneseq
      %v2894 = vshrl.u32 %v2893, 7
      %v2895 = vsub.s32 %v2892, %v2894
      %v2896 = vrot.slane %v2458, %v2895
      %v2898 = vunpack.c.l.s4 1983009808
      %v2899 = vunpack.c.0.s8 %v2898
      %v2900 = vlaneseq
      %v2901 = vshrl.u32 %v2900, 7
      %v2902 = vsub.s32 %v2899, %v2901
      %v2903 = vrot.slane %v2889, %v2902
      %v2904 = vcombine.high %v2474, 0.0
      %v2906 = vunpack.c.l.s4 1983009808
      %v2907 = vunpack.c.0.s8 %v2906
      %v2908 = vlaneseq
      %v2909 = vshrl.u32 %v2908, 7
      %v2910 = vsub.s32 %v2907, %v2909
      %v2911 = vrot.slane %v2474, %v2910
      %v2913 = vunpack.c.l.s4 1983009808
      %v2914 = vunpack.c.0.s8 %v2913
      %v2915 = vlaneseq
      %v2916 = vshrl.u32 %v2915, 7
      %v2917 = vsub.s32 %v2914, %v2916
      %v2918 = vrot.slane %v2904, %v2917
      %v2919 = vcombine.low %v2896, %v2911
      %v2920 = vcombine.high %v2896, %v2911
      %v2922 = vunpack.c.l.s4 1934713408
      %v2923 = vunpack.c.0.s8 %v2922
      %v2924 = vlaneseq
      %v2925 = vshrl.u32 %v2924, 7
      %v2926 = vsub.s32 %v2923, %v2925
      %v2927 = vrot.slane %v2919, %v2926
      %v2929 = vunpack.c.l.s4 1934713408
      %v2930 = vunpack.c.0.s8 %v2929
      %v2931 = vlaneseq
      %v2932 = vshrl.u32 %v2931, 7
      %v2933 = vsub.s32 %v2930, %v2932
      %v2934 = vrot.slane %v2920, %v2933
      %v2935 = vcombine.low %v2903, %v2918
      %v2936 = vcombine.high %v2903, %v2918
      %v2938 = vunpack.c.l.s4 1934713408
      %v2939 = vunpack.c.0.s8 %v2938
      %v2940 = vlaneseq
      %v2941 = vshrl.u32 %v2940, 7
      %v2942 = vsub.s32 %v2939, %v2941
      %v2943 = vrot.slane %v2935, %v2942
      %v2945 = vunpack.c.l.s4 1934713408
      %v2946 = vunpack.c.0.s8 %v2945
      %v2947 = vlaneseq
      %v2948 = vshrl.u32 %v2947, 7
      %v2949 = vsub.s32 %v2946, %v2948
      %v2950 = vrot.slane %v2936, %v2949
      %v2951 = vcombine.high %v2927, 0.0
      %v2952 = vcombine.high %v2934, 0.0
      %v2953 = vcombine.high %v2943, 0.0
      %v2954 = vcombine.high %v2950, 0.0
      %v2955 = vcombine.high %v2460, 0.0
      %v2957 = vunpack.c.l.s4 1983009808
      %v2958 = vunpack.c.0.s8 %v2957
      %v2959 = vlaneseq
      %v2960 = vshrl.u32 %v2959, 7
      %v2961 = vsub.s32 %v2958, %v2960
      %v2962 = vrot.slane %v2460, %v2961
      %v2964 = vunpack.c.l.s4 1983009808
      %v2965 = vunpack.c.0.s8 %v2964
      %v2966 = vlaneseq
      %v2967 = vshrl.u32 %v2966, 7
      %v2968 = vsub.s32 %v2965, %v2967
      %v2969 = vrot.slane %v2955, %v2968
      %v2970 = vcombine.high %v2476, 0.0
      %v2972 = vunpack.c.l.s4 1983009808
      %v2973 = vunpack.c.0.s8 %v2972
      %v2974 = vlaneseq
      %v2975 = vshrl.u32 %v2974, 7
      %v2976 = vsub.s32 %v2973, %v2975
      %v2977 = vrot.slane %v2476, %v2976
      %v2979 = vunpack.c.l.s4 1983009808
      %v2980 = vunpack.c.0.s8 %v2979
      %v2981 = vlaneseq
      %v2982 = vshrl.u32 %v2981, 7
      %v2983 = vsub.s32 %v2980, %v2982
      %v2984 = vrot.slane %v2970, %v2983
      %v2985 = vcombine.low %v2962, %v2977
      %v2986 = vcombine.high %v2962, %v2977
      %v2988 = vunpack.c.l.s4 1934713408
      %v2989 = vunpack.c.0.s8 %v2988
      %v2990 = vlaneseq
      %v2991 = vshrl.u32 %v2990, 7
      %v2992 = vsub.s32 %v2989, %v2991
      %v2993 = vrot.slane %v2985, %v2992
      %v2995 = vunpack.c.l.s4 1934713408
      %v2996 = vunpack.c.0.s8 %v2995
      %v2997 = vlaneseq
      %v2998 = vshrl.u32 %v2997, 7
      %v2999 = vsub.s32 %v2996, %v2998
      %v3000 = vrot.slane %v2986, %v2999
      %v3001 = vcombine.low %v2969, %v2984
      %v3002 = vcombine.high %v2969, %v2984
      %v3004 = vunpack.c.l.s4 1934713408
      %v3005 = vunpack.c.0.s8 %v3004
      %v3006 = vlaneseq
      %v3007 = vshrl.u32 %v3006, 7
      %v3008 = vsub.s32 %v3005, %v3007
      %v3009 = vrot.slane %v3001, %v3008
      %v3011 = vunpack.c.l.s4 1934713408
      %v3012 = vunpack.c.0.s8 %v3011
      %v3013 = vlaneseq
      %v3014 = vshrl.u32 %v3013, 7
      %v3015 = vsub.s32 %v3012, %v3014
      %v3016 = vrot.slane %v3002, %v3015
      %v3017 = vcombine.high %v2993, 0.0
      %v3018 = vcombine.high %v3000, 0.0
      %v3019 = vcombine.high %v3009, 0.0
      %v3020 = vcombine.high %v3016, 0.0
      %v3021 = vpack.c.bf16 %v2531, %v2531
      %v3022 = vpack.c.bf16 %v2555, %v2555
      %v3023 = vpack.c.bf16 %v2538, %v2538
      %v3024 = vpack.c.bf16 %v2556, %v2556
      %v3025 = vpack.c.bf16 %v2547, %v2547
      %v3026 = vpack.c.bf16 %v2557, %v2557
      %v3027 = vpack.c.bf16 %v2554, %v2554
      %v3028 = vpack.c.bf16 %v2558, %v2558
      %v3029 = vpack.c.bf16 %v2597, %v2597
      %v3030 = vpack.c.bf16 %v2621, %v2621
      %v3031 = vpack.c.bf16 %v2604, %v2604
      %v3032 = vpack.c.bf16 %v2622, %v2622
      %v3033 = vpack.c.bf16 %v2613, %v2613
      %v3034 = vpack.c.bf16 %v2623, %v2623
      %v3035 = vpack.c.bf16 %v2620, %v2620
      %v3036 = vpack.c.bf16 %v2624, %v2624
      %v3037 = vpack.c.bf16 %v2663, %v2663
      %v3038 = vpack.c.bf16 %v2687, %v2687
      %v3039 = vpack.c.bf16 %v2670, %v2670
      %v3040 = vpack.c.bf16 %v2688, %v2688
      %v3041 = vpack.c.bf16 %v2679, %v2679
      %v3042 = vpack.c.bf16 %v2689, %v2689
      %v3043 = vpack.c.bf16 %v2686, %v2686
      %v3044 = vpack.c.bf16 %v2690, %v2690
      %v3045 = vpack.c.bf16 %v2729, %v2729
      %v3046 = vpack.c.bf16 %v2753, %v2753
      %v3047 = vpack.c.bf16 %v2736, %v2736
      %v3048 = vpack.c.bf16 %v2754, %v2754
      %v3049 = vpack.c.bf16 %v2745, %v2745
      %v3050 = vpack.c.bf16 %v2755, %v2755
      %v3051 = vpack.c.bf16 %v2752, %v2752
      %v3052 = vpack.c.bf16 %v2756, %v2756
      %v3053 = vpack.c.bf16 %v2795, %v2795
      %v3054 = vpack.c.bf16 %v2819, %v2819
      %v3055 = vpack.c.bf16 %v2802, %v2802
      %v3056 = vpack.c.bf16 %v2820, %v2820
      %v3057 = vpack.c.bf16 %v2811, %v2811
      %v3058 = vpack.c.bf16 %v2821, %v2821
      %v3059 = vpack.c.bf16 %v2818, %v2818
      %v3060 = vpack.c.bf16 %v2822, %v2822
      %v3061 = vpack.c.bf16 %v2861, %v2861
      %v3062 = vpack.c.bf16 %v2885, %v2885
      %v3063 = vpack.c.bf16 %v2868, %v2868
      %v3064 = vpack.c.bf16 %v2886, %v2886
      %v3065 = vpack.c.bf16 %v2877, %v2877
      %v3066 = vpack.c.bf16 %v2887, %v2887
      %v3067 = vpack.c.bf16 %v2884, %v2884
      %v3068 = vpack.c.bf16 %v2888, %v2888
      %v3069 = vpack.c.bf16 %v2927, %v2927
      %v3070 = vpack.c.bf16 %v2951, %v2951
      %v3071 = vpack.c.bf16 %v2934, %v2934
      %v3072 = vpack.c.bf16 %v2952, %v2952
      %v3073 = vpack.c.bf16 %v2943, %v2943
      %v3074 = vpack.c.bf16 %v2953, %v2953
      %v3075 = vpack.c.bf16 %v2950, %v2950
      %v3076 = vpack.c.bf16 %v2954, %v2954
      %v3077 = vpack.c.bf16 %v2993, %v2993
      %v3078 = vpack.c.bf16 %v3017, %v3017
      %v3079 = vpack.c.bf16 %v3000, %v3000
      %v3080 = vpack.c.bf16 %v3018, %v3018
      %v3081 = vpack.c.bf16 %v3009, %v3009
      %v3082 = vpack.c.bf16 %v3019, %v3019
      %v3083 = vpack.c.bf16 %v3016, %v3016
      %v3084 = vpack.c.bf16 %v3020, %v3020
      %3085 = vrot.lane.b32.xlu0 %v1791, 64
      %v3086 = vpop.permute.xlu0 %3085
      %3087 = vrot.lane.b32.xlu0 %v1794, 64
      %v3088 = vpop.permute.xlu0 %3087
      %3089 = vrot.lane.b32.xlu0 %v1799, 64
      %v3090 = vpop.permute.xlu0 %3089
      %3091 = vrot.lane.b32.xlu0 %v1802, 64
      %v3092 = vpop.permute.xlu0 %3091
      %3093 = vrot.lane.b32.xlu0 %v1807, 64
      %v3094 = vpop.permute.xlu0 %3093
      %3095 = vrot.lane.b32.xlu0 %v1810, 64
      %v3096 = vpop.permute.xlu0 %3095
      %3097 = vrot.lane.b32.xlu0 %v1815, 64
      %v3098 = vpop.permute.xlu0 %3097
      %3099 = vrot.lane.b32.xlu0 %v1818, 64
      %v3100 = vpop.permute.xlu0 %3099
      %3101 = vrot.lane.b32.xlu0 %v1830, 64
      %v3102 = vpop.permute.xlu0 %3101
      %3103 = vrot.lane.b32.xlu0 %v1832, 64
      %v3104 = vpop.permute.xlu0 %3103
      %3105 = vrot.lane.b32.xlu0 %v1834, 64
      %v3106 = vpop.permute.xlu0 %3105
      %3107 = vrot.lane.b32.xlu0 %v1836, 64
      %v3108 = vpop.permute.xlu0 %3107
      %3109 = vrot.lane.b32.xlu0 %v1838, 64
      %v3110 = vpop.permute.xlu0 %3109
      %3111 = vrot.lane.b32.xlu0 %v1840, 64
      %v3112 = vpop.permute.xlu0 %3111
      %3113 = vrot.lane.b32.xlu0 %v1842, 64
      %v3114 = vpop.permute.xlu0 %3113
      %3115 = vrot.lane.b32.xlu0 %v1844, 64
      %v3116 = vpop.permute.xlu0 %3115
      %v3133 = vcombine.high %v3086, 0.0
      %v3135 = vunpack.c.l.s4 1983009808
      %v3136 = vunpack.c.0.s8 %v3135
      %v3137 = vlaneseq
      %v3138 = vshrl.u32 %v3137, 7
      %v3139 = vsub.s32 %v3136, %v3138
      %v3140 = vrot.slane %v3086, %v3139
      %v3142 = vunpack.c.l.s4 1983009808
      %v3143 = vunpack.c.0.s8 %v3142
      %v3144 = vlaneseq
      %v3145 = vshrl.u32 %v3144, 7
      %v3146 = vsub.s32 %v3143, %v3145
      %v3147 = vrot.slane %v3133, %v3146
      %v3148 = vcombine.high %v3102, 0.0
      %v3150 = vunpack.c.l.s4 1983009808
      %v3151 = vunpack.c.0.s8 %v3150
      %v3152 = vlaneseq
      %v3153 = vshrl.u32 %v3152, 7
      %v3154 = vsub.s32 %v3151, %v3153
      %v3155 = vrot.slane %v3102, %v3154
      %v3157 = vunpack.c.l.s4 1983009808
      %v3158 = vunpack.c.0.s8 %v3157
      %v3159 = vlaneseq
      %v3160 = vshrl.u32 %v3159, 7
      %v3161 = vsub.s32 %v3158, %v3160
      %v3162 = vrot.slane %v3148, %v3161
      %v3163 = vcombine.low %v3140, %v3155
      %v3164 = vcombine.high %v3140, %v3155
      %v3166 = vunpack.c.l.s4 1934713408
      %v3167 = vunpack.c.0.s8 %v3166
      %v3168 = vlaneseq
      %v3169 = vshrl.u32 %v3168, 7
      %v3170 = vsub.s32 %v3167, %v3169
      %v3171 = vrot.slane %v3163, %v3170
      %v3173 = vunpack.c.l.s4 1934713408
      %v3174 = vunpack.c.0.s8 %v3173
      %v3175 = vlaneseq
      %v3176 = vshrl.u32 %v3175, 7
      %v3177 = vsub.s32 %v3174, %v3176
      %v3178 = vrot.slane %v3164, %v3177
      %v3179 = vcombine.low %v3147, %v3162
      %v3180 = vcombine.high %v3147, %v3162
      %v3182 = vunpack.c.l.s4 1934713408
      %v3183 = vunpack.c.0.s8 %v3182
      %v3184 = vlaneseq
      %v3185 = vshrl.u32 %v3184, 7
      %v3186 = vsub.s32 %v3183, %v3185
      %v3187 = vrot.slane %v3179, %v3186
      %v3189 = vunpack.c.l.s4 1934713408
      %v3190 = vunpack.c.0.s8 %v3189
      %v3191 = vlaneseq
      %v3192 = vshrl.u32 %v3191, 7
      %v3193 = vsub.s32 %v3190, %v3192
      %v3194 = vrot.slane %v3180, %v3193
      %v3195 = vcombine.high %v3171, 0.0
      %v3196 = vcombine.high %v3178, 0.0
      %v3197 = vcombine.high %v3187, 0.0
      %v3198 = vcombine.high %v3194, 0.0
      %v3199 = vcombine.high %v3088, 0.0
      %v3201 = vunpack.c.l.s4 1983009808
      %v3202 = vunpack.c.0.s8 %v3201
      %v3203 = vlaneseq
      %v3204 = vshrl.u32 %v3203, 7
      %v3205 = vsub.s32 %v3202, %v3204
      %v3206 = vrot.slane %v3088, %v3205
      %v3208 = vunpack.c.l.s4 1983009808
      %v3209 = vunpack.c.0.s8 %v3208
      %v3210 = vlaneseq
      %v3211 = vshrl.u32 %v3210, 7
      %v3212 = vsub.s32 %v3209, %v3211
      %v3213 = vrot.slane %v3199, %v3212
      %v3214 = vcombine.high %v3104, 0.0
      %v3216 = vunpack.c.l.s4 1983009808
      %v3217 = vunpack.c.0.s8 %v3216
      %v3218 = vlaneseq
      %v3219 = vshrl.u32 %v3218, 7
      %v3220 = vsub.s32 %v3217, %v3219
      %v3221 = vrot.slane %v3104, %v3220
      %v3223 = vunpack.c.l.s4 1983009808
      %v3224 = vunpack.c.0.s8 %v3223
      %v3225 = vlaneseq
      %v3226 = vshrl.u32 %v3225, 7
      %v3227 = vsub.s32 %v3224, %v3226
      %v3228 = vrot.slane %v3214, %v3227
      %v3229 = vcombine.low %v3206, %v3221
      %v3230 = vcombine.high %v3206, %v3221
      %v3232 = vunpack.c.l.s4 1934713408
      %v3233 = vunpack.c.0.s8 %v3232
      %v3234 = vlaneseq
      %v3235 = vshrl.u32 %v3234, 7
      %v3236 = vsub.s32 %v3233, %v3235
      %v3237 = vrot.slane %v3229, %v3236
      %v3239 = vunpack.c.l.s4 1934713408
      %v3240 = vunpack.c.0.s8 %v3239
      %v3241 = vlaneseq
      %v3242 = vshrl.u32 %v3241, 7
      %v3243 = vsub.s32 %v3240, %v3242
      %v3244 = vrot.slane %v3230, %v3243
      %v3245 = vcombine.low %v3213, %v3228
      %v3246 = vcombine.high %v3213, %v3228
      %v3248 = vunpack.c.l.s4 1934713408
      %v3249 = vunpack.c.0.s8 %v3248
      %v3250 = vlaneseq
      %v3251 = vshrl.u32 %v3250, 7
      %v3252 = vsub.s32 %v3249, %v3251
      %v3253 = vrot.slane %v3245, %v3252
      %v3255 = vunpack.c.l.s4 1934713408
      %v3256 = vunpack.c.0.s8 %v3255
      %v3257 = vlaneseq
      %v3258 = vshrl.u32 %v3257, 7
      %v3259 = vsub.s32 %v3256, %v3258
      %v3260 = vrot.slane %v3246, %v3259
      %v3261 = vcombine.high %v3237, 0.0
      %v3262 = vcombine.high %v3244, 0.0
      %v3263 = vcombine.high %v3253, 0.0
      %v3264 = vcombine.high %v3260, 0.0
      %v3265 = vcombine.high %v3090, 0.0
      %v3267 = vunpack.c.l.s4 1983009808
      %v3268 = vunpack.c.0.s8 %v3267
      %v3269 = vlaneseq
      %v3270 = vshrl.u32 %v3269, 7
      %v3271 = vsub.s32 %v3268, %v3270
      %v3272 = vrot.slane %v3090, %v3271
      %v3274 = vunpack.c.l.s4 1983009808
      %v3275 = vunpack.c.0.s8 %v3274
      %v3276 = vlaneseq
      %v3277 = vshrl.u32 %v3276, 7
      %v3278 = vsub.s32 %v3275, %v3277
      %v3279 = vrot.slane %v3265, %v3278
      %v3280 = vcombine.high %v3106, 0.0
      %v3282 = vunpack.c.l.s4 1983009808
      %v3283 = vunpack.c.0.s8 %v3282
      %v3284 = vlaneseq
      %v3285 = vshrl.u32 %v3284, 7
      %v3286 = vsub.s32 %v3283, %v3285
      %v3287 = vrot.slane %v3106, %v3286
      %v3289 = vunpack.c.l.s4 1983009808
      %v3290 = vunpack.c.0.s8 %v3289
      %v3291 = vlaneseq
      %v3292 = vshrl.u32 %v3291, 7
      %v3293 = vsub.s32 %v3290, %v3292
      %v3294 = vrot.slane %v3280, %v3293
      %v3295 = vcombine.low %v3272, %v3287
      %v3296 = vcombine.high %v3272, %v3287
      %v3298 = vunpack.c.l.s4 1934713408
      %v3299 = vunpack.c.0.s8 %v3298
      %v3300 = vlaneseq
      %v3301 = vshrl.u32 %v3300, 7
      %v3302 = vsub.s32 %v3299, %v3301
      %v3303 = vrot.slane %v3295, %v3302
      %v3305 = vunpack.c.l.s4 1934713408
      %v3306 = vunpack.c.0.s8 %v3305
      %v3307 = vlaneseq
      %v3308 = vshrl.u32 %v3307, 7
      %v3309 = vsub.s32 %v3306, %v3308
      %v3310 = vrot.slane %v3296, %v3309
      %v3311 = vcombine.low %v3279, %v3294
      %v3312 = vcombine.high %v3279, %v3294
      %v3314 = vunpack.c.l.s4 1934713408
      %v3315 = vunpack.c.0.s8 %v3314
      %v3316 = vlaneseq
      %v3317 = vshrl.u32 %v3316, 7
      %v3318 = vsub.s32 %v3315, %v3317
      %v3319 = vrot.slane %v3311, %v3318
      %v3321 = vunpack.c.l.s4 1934713408
      %v3322 = vunpack.c.0.s8 %v3321
      %v3323 = vlaneseq
      %v3324 = vshrl.u32 %v3323, 7
      %v3325 = vsub.s32 %v3322, %v3324
      %v3326 = vrot.slane %v3312, %v3325
      %v3327 = vcombine.high %v3303, 0.0
      %v3328 = vcombine.high %v3310, 0.0
      %v3329 = vcombine.high %v3319, 0.0
      %v3330 = vcombine.high %v3326, 0.0
      %v3331 = vcombine.high %v3092, 0.0
      %v3333 = vunpack.c.l.s4 1983009808
      %v3334 = vunpack.c.0.s8 %v3333
      %v3335 = vlaneseq
      %v3336 = vshrl.u32 %v3335, 7
      %v3337 = vsub.s32 %v3334, %v3336
      %v3338 = vrot.slane %v3092, %v3337
      %v3340 = vunpack.c.l.s4 1983009808
      %v3341 = vunpack.c.0.s8 %v3340
      %v3342 = vlaneseq
      %v3343 = vshrl.u32 %v3342, 7
      %v3344 = vsub.s32 %v3341, %v3343
      %v3345 = vrot.slane %v3331, %v3344
      %v3346 = vcombine.high %v3108, 0.0
      %v3348 = vunpack.c.l.s4 1983009808
      %v3349 = vunpack.c.0.s8 %v3348
      %v3350 = vlaneseq
      %v3351 = vshrl.u32 %v3350, 7
      %v3352 = vsub.s32 %v3349, %v3351
      %v3353 = vrot.slane %v3108, %v3352
      %v3355 = vunpack.c.l.s4 1983009808
      %v3356 = vunpack.c.0.s8 %v3355
      %v3357 = vlaneseq
      %v3358 = vshrl.u32 %v3357, 7
      %v3359 = vsub.s32 %v3356, %v3358
      %v3360 = vrot.slane %v3346, %v3359
      %v3361 = vcombine.low %v3338, %v3353
      %v3362 = vcombine.high %v3338, %v3353
      %v3364 = vunpack.c.l.s4 1934713408
      %v3365 = vunpack.c.0.s8 %v3364
      %v3366 = vlaneseq
      %v3367 = vshrl.u32 %v3366, 7
      %v3368 = vsub.s32 %v3365, %v3367
      %v3369 = vrot.slane %v3361, %v3368
      %v3371 = vunpack.c.l.s4 1934713408
      %v3372 = vunpack.c.0.s8 %v3371
      %v3373 = vlaneseq
      %v3374 = vshrl.u32 %v3373, 7
      %v3375 = vsub.s32 %v3372, %v3374
      %v3376 = vrot.slane %v3362, %v3375
      %v3377 = vcombine.low %v3345, %v3360
      %v3378 = vcombine.high %v3345, %v3360
      %v3380 = vunpack.c.l.s4 1934713408
      %v3381 = vunpack.c.0.s8 %v3380
      %v3382 = vlaneseq
      %v3383 = vshrl.u32 %v3382, 7
      %v3384 = vsub.s32 %v3381, %v3383
      %v3385 = vrot.slane %v3377, %v3384
      %v3387 = vunpack.c.l.s4 1934713408
      %v3388 = vunpack.c.0.s8 %v3387
      %v3389 = vlaneseq
      %v3390 = vshrl.u32 %v3389, 7
      %v3391 = vsub.s32 %v3388, %v3390
      %v3392 = vrot.slane %v3378, %v3391
      %v3393 = vcombine.high %v3369, 0.0
      %v3394 = vcombine.high %v3376, 0.0
      %v3395 = vcombine.high %v3385, 0.0
      %v3396 = vcombine.high %v3392, 0.0
      %v3397 = vcombine.high %v3094, 0.0
      %v3399 = vunpack.c.l.s4 1983009808
      %v3400 = vunpack.c.0.s8 %v3399
      %v3401 = vlaneseq
      %v3402 = vshrl.u32 %v3401, 7
      %v3403 = vsub.s32 %v3400, %v3402
      %v3404 = vrot.slane %v3094, %v3403
      %v3406 = vunpack.c.l.s4 1983009808
      %v3407 = vunpack.c.0.s8 %v3406
      %v3408 = vlaneseq
      %v3409 = vshrl.u32 %v3408, 7
      %v3410 = vsub.s32 %v3407, %v3409
      %v3411 = vrot.slane %v3397, %v3410
      %v3412 = vcombine.high %v3110, 0.0
      %v3414 = vunpack.c.l.s4 1983009808
      %v3415 = vunpack.c.0.s8 %v3414
      %v3416 = vlaneseq
      %v3417 = vshrl.u32 %v3416, 7
      %v3418 = vsub.s32 %v3415, %v3417
      %v3419 = vrot.slane %v3110, %v3418
      %v3421 = vunpack.c.l.s4 1983009808
      %v3422 = vunpack.c.0.s8 %v3421
      %v3423 = vlaneseq
      %v3424 = vshrl.u32 %v3423, 7
      %v3425 = vsub.s32 %v3422, %v3424
      %v3426 = vrot.slane %v3412, %v3425
      %v3427 = vcombine.low %v3404, %v3419
      %v3428 = vcombine.high %v3404, %v3419
      %v3430 = vunpack.c.l.s4 1934713408
      %v3431 = vunpack.c.0.s8 %v3430
      %v3432 = vlaneseq
      %v3433 = vshrl.u32 %v3432, 7
      %v3434 = vsub.s32 %v3431, %v3433
      %v3435 = vrot.slane %v3427, %v3434
      %v3437 = vunpack.c.l.s4 1934713408
      %v3438 = vunpack.c.0.s8 %v3437
      %v3439 = vlaneseq
      %v3440 = vshrl.u32 %v3439, 7
      %v3441 = vsub.s32 %v3438, %v3440
      %v3442 = vrot.slane %v3428, %v3441
      %v3443 = vcombine.low %v3411, %v3426
      %v3444 = vcombine.high %v3411, %v3426
      %v3446 = vunpack.c.l.s4 1934713408
      %v3447 = vunpack.c.0.s8 %v3446
      %v3448 = vlaneseq
      %v3449 = vshrl.u32 %v3448, 7
      %v3450 = vsub.s32 %v3447, %v3449
      %v3451 = vrot.slane %v3443, %v3450
      %v3453 = vunpack.c.l.s4 1934713408
      %v3454 = vunpack.c.0.s8 %v3453
      %v3455 = vlaneseq
      %v3456 = vshrl.u32 %v3455, 7
      %v3457 = vsub.s32 %v3454, %v3456
      %v3458 = vrot.slane %v3444, %v3457
      %v3459 = vcombine.high %v3435, 0.0
      %v3460 = vcombine.high %v3442, 0.0
      %v3461 = vcombine.high %v3451, 0.0
      %v3462 = vcombine.high %v3458, 0.0
      %v3463 = vcombine.high %v3096, 0.0
      %v3465 = vunpack.c.l.s4 1983009808
      %v3466 = vunpack.c.0.s8 %v3465
      %v3467 = vlaneseq
      %v3468 = vshrl.u32 %v3467, 7
      %v3469 = vsub.s32 %v3466, %v3468
      %v3470 = vrot.slane %v3096, %v3469
      %v3472 = vunpack.c.l.s4 1983009808
      %v3473 = vunpack.c.0.s8 %v3472
      %v3474 = vlaneseq
      %v3475 = vshrl.u32 %v3474, 7
      %v3476 = vsub.s32 %v3473, %v3475
      %v3477 = vrot.slane %v3463, %v3476
      %v3478 = vcombine.high %v3112, 0.0
      %v3480 = vunpack.c.l.s4 1983009808
      %v3481 = vunpack.c.0.s8 %v3480
      %v3482 = vlaneseq
      %v3483 = vshrl.u32 %v3482, 7
      %v3484 = vsub.s32 %v3481, %v3483
      %v3485 = vrot.slane %v3112, %v3484
      %v3487 = vunpack.c.l.s4 1983009808
      %v3488 = vunpack.c.0.s8 %v3487
      %v3489 = vlaneseq
      %v3490 = vshrl.u32 %v3489, 7
      %v3491 = vsub.s32 %v3488, %v3490
      %v3492 = vrot.slane %v3478, %v3491
      %v3493 = vcombine.low %v3470, %v3485
      %v3494 = vcombine.high %v3470, %v3485
      %v3496 = vunpack.c.l.s4 1934713408
      %v3497 = vunpack.c.0.s8 %v3496
      %v3498 = vlaneseq
      %v3499 = vshrl.u32 %v3498, 7
      %v3500 = vsub.s32 %v3497, %v3499
      %v3501 = vrot.slane %v3493, %v3500
      %v3503 = vunpack.c.l.s4 1934713408
      %v3504 = vunpack.c.0.s8 %v3503
      %v3505 = vlaneseq
      %v3506 = vshrl.u32 %v3505, 7
      %v3507 = vsub.s32 %v3504, %v3506
      %v3508 = vrot.slane %v3494, %v3507
      %v3509 = vcombine.low %v3477, %v3492
      %v3510 = vcombine.high %v3477, %v3492
      %v3512 = vunpack.c.l.s4 1934713408
      %v3513 = vunpack.c.0.s8 %v3512
      %v3514 = vlaneseq
      %v3515 = vshrl.u32 %v3514, 7
      %v3516 = vsub.s32 %v3513, %v3515
      %v3517 = vrot.slane %v3509, %v3516
      %v3519 = vunpack.c.l.s4 1934713408
      %v3520 = vunpack.c.0.s8 %v3519
      %v3521 = vlaneseq
      %v3522 = vshrl.u32 %v3521, 7
      %v3523 = vsub.s32 %v3520, %v3522
      %v3524 = vrot.slane %v3510, %v3523
      %v3525 = vcombine.high %v3501, 0.0
      %v3526 = vcombine.high %v3508, 0.0
      %v3527 = vcombine.high %v3517, 0.0
      %v3528 = vcombine.high %v3524, 0.0
      %v3529 = vcombine.high %v3098, 0.0
      %v3531 = vunpack.c.l.s4 1983009808
      %v3532 = vunpack.c.0.s8 %v3531
      %v3533 = vlaneseq
      %v3534 = vshrl.u32 %v3533, 7
      %v3535 = vsub.s32 %v3532, %v3534
      %v3536 = vrot.slane %v3098, %v3535
      %v3538 = vunpack.c.l.s4 1983009808
      %v3539 = vunpack.c.0.s8 %v3538
      %v3540 = vlaneseq
      %v3541 = vshrl.u32 %v3540, 7
      %v3542 = vsub.s32 %v3539, %v3541
      %v3543 = vrot.slane %v3529, %v3542
      %v3544 = vcombine.high %v3114, 0.0
      %v3546 = vunpack.c.l.s4 1983009808
      %v3547 = vunpack.c.0.s8 %v3546
      %v3548 = vlaneseq
      %v3549 = vshrl.u32 %v3548, 7
      %v3550 = vsub.s32 %v3547, %v3549
      %v3551 = vrot.slane %v3114, %v3550
      %v3553 = vunpack.c.l.s4 1983009808
      %v3554 = vunpack.c.0.s8 %v3553
      %v3555 = vlaneseq
      %v3556 = vshrl.u32 %v3555, 7
      %v3557 = vsub.s32 %v3554, %v3556
      %v3558 = vrot.slane %v3544, %v3557
      %v3559 = vcombine.low %v3536, %v3551
      %v3560 = vcombine.high %v3536, %v3551
      %v3562 = vunpack.c.l.s4 1934713408
      %v3563 = vunpack.c.0.s8 %v3562
      %v3564 = vlaneseq
      %v3565 = vshrl.u32 %v3564, 7
      %v3566 = vsub.s32 %v3563, %v3565
      %v3567 = vrot.slane %v3559, %v3566
      %v3569 = vunpack.c.l.s4 1934713408
      %v3570 = vunpack.c.0.s8 %v3569
      %v3571 = vlaneseq
      %v3572 = vshrl.u32 %v3571, 7
      %v3573 = vsub.s32 %v3570, %v3572
      %v3574 = vrot.slane %v3560, %v3573
      %v3575 = vcombine.low %v3543, %v3558
      %v3576 = vcombine.high %v3543, %v3558
      %v3578 = vunpack.c.l.s4 1934713408
      %v3579 = vunpack.c.0.s8 %v3578
      %v3580 = vlaneseq
      %v3581 = vshrl.u32 %v3580, 7
      %v3582 = vsub.s32 %v3579, %v3581
      %v3583 = vrot.slane %v3575, %v3582
      %v3585 = vunpack.c.l.s4 1934713408
      %v3586 = vunpack.c.0.s8 %v3585
      %v3587 = vlaneseq
      %v3588 = vshrl.u32 %v3587, 7
      %v3589 = vsub.s32 %v3586, %v3588
      %v3590 = vrot.slane %v3576, %v3589
      %v3591 = vcombine.high %v3567, 0.0
      %v3592 = vcombine.high %v3574, 0.0
      %v3593 = vcombine.high %v3583, 0.0
      %v3594 = vcombine.high %v3590, 0.0
      %v3595 = vcombine.high %v3100, 0.0
      %v3597 = vunpack.c.l.s4 1983009808
      %v3598 = vunpack.c.0.s8 %v3597
      %v3599 = vlaneseq
      %v3600 = vshrl.u32 %v3599, 7
      %v3601 = vsub.s32 %v3598, %v3600
      %v3602 = vrot.slane %v3100, %v3601
      %v3604 = vunpack.c.l.s4 1983009808
      %v3605 = vunpack.c.0.s8 %v3604
      %v3606 = vlaneseq
      %v3607 = vshrl.u32 %v3606, 7
      %v3608 = vsub.s32 %v3605, %v3607
      %v3609 = vrot.slane %v3595, %v3608
      %v3610 = vcombine.high %v3116, 0.0
      %v3612 = vunpack.c.l.s4 1983009808
      %v3613 = vunpack.c.0.s8 %v3612
      %v3614 = vlaneseq
      %v3615 = vshrl.u32 %v3614, 7
      %v3616 = vsub.s32 %v3613, %v3615
      %v3617 = vrot.slane %v3116, %v3616
      %v3619 = vunpack.c.l.s4 1983009808
      %v3620 = vunpack.c.0.s8 %v3619
      %v3621 = vlaneseq
      %v3622 = vshrl.u32 %v3621, 7
      %v3623 = vsub.s32 %v3620, %v3622
      %v3624 = vrot.slane %v3610, %v3623
      %v3625 = vcombine.low %v3602, %v3617
      %v3626 = vcombine.high %v3602, %v3617
      %v3628 = vunpack.c.l.s4 1934713408
      %v3629 = vunpack.c.0.s8 %v3628
      %v3630 = vlaneseq
      %v3631 = vshrl.u32 %v3630, 7
      %v3632 = vsub.s32 %v3629, %v3631
      %v3633 = vrot.slane %v3625, %v3632
      %v3635 = vunpack.c.l.s4 1934713408
      %v3636 = vunpack.c.0.s8 %v3635
      %v3637 = vlaneseq
      %v3638 = vshrl.u32 %v3637, 7
      %v3639 = vsub.s32 %v3636, %v3638
      %v3640 = vrot.slane %v3626, %v3639
      %v3641 = vcombine.low %v3609, %v3624
      %v3642 = vcombine.high %v3609, %v3624
      %v3644 = vunpack.c.l.s4 1934713408
      %v3645 = vunpack.c.0.s8 %v3644
      %v3646 = vlaneseq
      %v3647 = vshrl.u32 %v3646, 7
      %v3648 = vsub.s32 %v3645, %v3647
      %v3649 = vrot.slane %v3641, %v3648
      %v3651 = vunpack.c.l.s4 1934713408
      %v3652 = vunpack.c.0.s8 %v3651
      %v3653 = vlaneseq
      %v3654 = vshrl.u32 %v3653, 7
      %v3655 = vsub.s32 %v3652, %v3654
      %v3656 = vrot.slane %v3642, %v3655
      %v3657 = vcombine.high %v3633, 0.0
      %v3658 = vcombine.high %v3640, 0.0
      %v3659 = vcombine.high %v3649, 0.0
      %v3660 = vcombine.high %v3656, 0.0
      %v3661 = vpack.c.bf16 %v3171, %v3171
      %v3662 = vpack.c.bf16 %v3195, %v3195
      %v3663 = vpack.c.bf16 %v3178, %v3178
      %v3664 = vpack.c.bf16 %v3196, %v3196
      %v3665 = vpack.c.bf16 %v3187, %v3187
      %v3666 = vpack.c.bf16 %v3197, %v3197
      %v3667 = vpack.c.bf16 %v3194, %v3194
      %v3668 = vpack.c.bf16 %v3198, %v3198
      %v3669 = vpack.c.bf16 %v3237, %v3237
      %v3670 = vpack.c.bf16 %v3261, %v3261
      %v3671 = vpack.c.bf16 %v3244, %v3244
      %v3672 = vpack.c.bf16 %v3262, %v3262
      %v3673 = vpack.c.bf16 %v3253, %v3253
      %v3674 = vpack.c.bf16 %v3263, %v3263
      %v3675 = vpack.c.bf16 %v3260, %v3260
      %v3676 = vpack.c.bf16 %v3264, %v3264
      %v3677 = vpack.c.bf16 %v3303, %v3303
      %v3678 = vpack.c.bf16 %v3327, %v3327
      %v3679 = vpack.c.bf16 %v3310, %v3310
      %v3680 = vpack.c.bf16 %v3328, %v3328
      %v3681 = vpack.c.bf16 %v3319, %v3319
      %v3682 = vpack.c.bf16 %v3329, %v3329
      %v3683 = vpack.c.bf16 %v3326, %v3326
      %v3684 = vpack.c.bf16 %v3330, %v3330
      %v3685 = vpack.c.bf16 %v3369, %v3369
      %v3686 = vpack.c.bf16 %v3393, %v3393
      %v3687 = vpack.c.bf16 %v3376, %v3376
      %v3688 = vpack.c.bf16 %v3394, %v3394
      %v3689 = vpack.c.bf16 %v3385, %v3385
      %v3690 = vpack.c.bf16 %v3395, %v3395
      %v3691 = vpack.c.bf16 %v3392, %v3392
      %v3692 = vpack.c.bf16 %v3396, %v3396
      %v3693 = vpack.c.bf16 %v3435, %v3435
      %v3694 = vpack.c.bf16 %v3459, %v3459
      %v3695 = vpack.c.bf16 %v3442, %v3442
      %v3696 = vpack.c.bf16 %v3460, %v3460
      %v3697 = vpack.c.bf16 %v3451, %v3451
      %v3698 = vpack.c.bf16 %v3461, %v3461
      %v3699 = vpack.c.bf16 %v3458, %v3458
      %v3700 = vpack.c.bf16 %v3462, %v3462
      %v3701 = vpack.c.bf16 %v3501, %v3501
      %v3702 = vpack.c.bf16 %v3525, %v3525
      %v3703 = vpack.c.bf16 %v3508, %v3508
      %v3704 = vpack.c.bf16 %v3526, %v3526
      %v3705 = vpack.c.bf16 %v3517, %v3517
      %v3706 = vpack.c.bf16 %v3527, %v3527
      %v3707 = vpack.c.bf16 %v3524, %v3524
      %v3708 = vpack.c.bf16 %v3528, %v3528
      %v3709 = vpack.c.bf16 %v3567, %v3567
      %v3710 = vpack.c.bf16 %v3591, %v3591
      %v3711 = vpack.c.bf16 %v3574, %v3574
      %v3712 = vpack.c.bf16 %v3592, %v3592
      %v3713 = vpack.c.bf16 %v3583, %v3583
      %v3714 = vpack.c.bf16 %v3593, %v3593
      %v3715 = vpack.c.bf16 %v3590, %v3590
      %v3716 = vpack.c.bf16 %v3594, %v3594
      %v3717 = vpack.c.bf16 %v3633, %v3633
      %v3718 = vpack.c.bf16 %v3657, %v3657
      %v3719 = vpack.c.bf16 %v3640, %v3640
      %v3720 = vpack.c.bf16 %v3658, %v3658
      %v3721 = vpack.c.bf16 %v3649, %v3649
      %v3722 = vpack.c.bf16 %v3659, %v3659
      %v3723 = vpack.c.bf16 %v3656, %v3656
      %v3724 = vpack.c.bf16 %v3660, %v3660
      %v3725 = vcombine.low %v2381, %v2385
      %v3727 = vunpack.c.l.s4 1983009808
      %v3728 = vunpack.c.0.s8 %v3727
      %v3729 = vlaneseq
      %v3730 = vshrl.u32 %v3729, 7
      %v3731 = vsub.s32 %v3728, %v3730
      %v3732 = vrot.slane %v3725, %v3731
      %v3733 = vcombine.low %v2383, %v2387
      %v3735 = vunpack.c.l.s4 1983009808
      %v3736 = vunpack.c.0.s8 %v3735
      %v3737 = vlaneseq
      %v3738 = vshrl.u32 %v3737, 7
      %v3739 = vsub.s32 %v3736, %v3738
      %v3740 = vrot.slane %v3733, %v3739
      %v3741 = vcombine.low %v2389, %v2393
      %v3743 = vunpack.c.l.s4 1983009808
      %v3744 = vunpack.c.0.s8 %v3743
      %v3745 = vlaneseq
      %v3746 = vshrl.u32 %v3745, 7
      %v3747 = vsub.s32 %v3744, %v3746
      %v3748 = vrot.slane %v3741, %v3747
      %v3749 = vcombine.low %v2391, %v2395
      %v3751 = vunpack.c.l.s4 1983009808
      %v3752 = vunpack.c.0.s8 %v3751
      %v3753 = vlaneseq
      %v3754 = vshrl.u32 %v3753, 7
      %v3755 = vsub.s32 %v3752, %v3754
      %v3756 = vrot.slane %v3749, %v3755
      %v3757 = vcombine.low %v3732, %v3740
      %v3759 = vunpack.c.l.s4 1934713408
      %v3760 = vunpack.c.0.s8 %v3759
      %v3761 = vlaneseq
      %v3762 = vshrl.u32 %v3761, 7
      %v3763 = vsub.s32 %v3760, %v3762
      %v3764 = vrot.slane %v3757, %v3763
      %v3765 = vcombine.low %v3748, %v3756
      %v3767 = vunpack.c.l.s4 1934713408
      %v3768 = vunpack.c.0.s8 %v3767
      %v3769 = vlaneseq
      %v3770 = vshrl.u32 %v3769, 7
      %v3771 = vsub.s32 %v3768, %v3770
      %v3772 = vrot.slane %v3765, %v3771
      %v3773 = vcombine.low %v3764, %v3772
      %v3774 = vcombine.low %v2382, %v2386
      %v3776 = vunpack.c.l.s4 1983009808
      %v3777 = vunpack.c.0.s8 %v3776
      %v3778 = vlaneseq
      %v3779 = vshrl.u32 %v3778, 7
      %v3780 = vsub.s32 %v3777, %v3779
      %v3781 = vrot.slane %v3774, %v3780
      %v3782 = vcombine.low %v2384, %v2388
      %v3784 = vunpack.c.l.s4 1983009808
      %v3785 = vunpack.c.0.s8 %v3784
      %v3786 = vlaneseq
      %v3787 = vshrl.u32 %v3786, 7
      %v3788 = vsub.s32 %v3785, %v3787
      %v3789 = vrot.slane %v3782, %v3788
      %v3790 = vcombine.low %v2390, %v2394
      %v3792 = vunpack.c.l.s4 1983009808
      %v3793 = vunpack.c.0.s8 %v3792
      %v3794 = vlaneseq
      %v3795 = vshrl.u32 %v3794, 7
      %v3796 = vsub.s32 %v3793, %v3795
      %v3797 = vrot.slane %v3790, %v3796
      %v3798 = vcombine.low %v2392, %v2396
      %v3800 = vunpack.c.l.s4 1983009808
      %v3801 = vunpack.c.0.s8 %v3800
      %v3802 = vlaneseq
      %v3803 = vshrl.u32 %v3802, 7
      %v3804 = vsub.s32 %v3801, %v3803
      %v3805 = vrot.slane %v3798, %v3804
      %v3806 = vcombine.low %v3781, %v3789
      %v3808 = vunpack.c.l.s4 1934713408
      %v3809 = vunpack.c.0.s8 %v3808
      %v3810 = vlaneseq
      %v3811 = vshrl.u32 %v3810, 7
      %v3812 = vsub.s32 %v3809, %v3811
      %v3813 = vrot.slane %v3806, %v3812
      %v3814 = vcombine.low %v3797, %v3805
      %v3816 = vunpack.c.l.s4 1934713408
      %v3817 = vunpack.c.0.s8 %v3816
      %v3818 = vlaneseq
      %v3819 = vshrl.u32 %v3818, 7
      %v3820 = vsub.s32 %v3817, %v3819
      %v3821 = vrot.slane %v3814, %v3820
      %v3822 = vcombine.low %v3813, %v3821
      %v3823 = vcombine.low %v2397, %v2401
      %v3825 = vunpack.c.l.s4 1983009808
      %v3826 = vunpack.c.0.s8 %v3825
      %v3827 = vlaneseq
      %v3828 = vshrl.u32 %v3827, 7
      %v3829 = vsub.s32 %v3826, %v3828
      %v3830 = vrot.slane %v3823, %v3829
      %v3831 = vcombine.low %v2399, %v2403
      %v3833 = vunpack.c.l.s4 1983009808
      %v3834 = vunpack.c.0.s8 %v3833
      %v3835 = vlaneseq
      %v3836 = vshrl.u32 %v3835, 7
      %v3837 = vsub.s32 %v3834, %v3836
      %v3838 = vrot.slane %v3831, %v3837
      %v3839 = vcombine.low %v2405, %v2409
      %v3841 = vunpack.c.l.s4 1983009808
      %v3842 = vunpack.c.0.s8 %v3841
      %v3843 = vlaneseq
      %v3844 = vshrl.u32 %v3843, 7
      %v3845 = vsub.s32 %v3842, %v3844
      %v3846 = vrot.slane %v3839, %v3845
      %v3847 = vcombine.low %v2407, %v2411
      %v3849 = vunpack.c.l.s4 1983009808
      %v3850 = vunpack.c.0.s8 %v3849
      %v3851 = vlaneseq
      %v3852 = vshrl.u32 %v3851, 7
      %v3853 = vsub.s32 %v3850, %v3852
      %v3854 = vrot.slane %v3847, %v3853
      %v3855 = vcombine.low %v3830, %v3838
      %v3857 = vunpack.c.l.s4 1934713408
      %v3858 = vunpack.c.0.s8 %v3857
      %v3859 = vlaneseq
      %v3860 = vshrl.u32 %v3859, 7
      %v3861 = vsub.s32 %v3858, %v3860
      %v3862 = vrot.slane %v3855, %v3861
      %v3863 = vcombine.low %v3846, %v3854
      %v3865 = vunpack.c.l.s4 1934713408
      %v3866 = vunpack.c.0.s8 %v3865
      %v3867 = vlaneseq
      %v3868 = vshrl.u32 %v3867, 7
      %v3869 = vsub.s32 %v3866, %v3868
      %v3870 = vrot.slane %v3863, %v3869
      %v3871 = vcombine.low %v3862, %v3870
      %v3872 = vcombine.low %v2398, %v2402
      %v3874 = vunpack.c.l.s4 1983009808
      %v3875 = vunpack.c.0.s8 %v3874
      %v3876 = vlaneseq
      %v3877 = vshrl.u32 %v3876, 7
      %v3878 = vsub.s32 %v3875, %v3877
      %v3879 = vrot.slane %v3872, %v3878
      %v3880 = vcombine.low %v2400, %v2404
      %v3882 = vunpack.c.l.s4 1983009808
      %v3883 = vunpack.c.0.s8 %v3882
      %v3884 = vlaneseq
      %v3885 = vshrl.u32 %v3884, 7
      %v3886 = vsub.s32 %v3883, %v3885
      %v3887 = vrot.slane %v3880, %v3886
      %v3888 = vcombine.low %v2406, %v2410
      %v3890 = vunpack.c.l.s4 1983009808
      %v3891 = vunpack.c.0.s8 %v3890
      %v3892 = vlaneseq
      %v3893 = vshrl.u32 %v3892, 7
      %v3894 = vsub.s32 %v3891, %v3893
      %v3895 = vrot.slane %v3888, %v3894
      %v3896 = vcombine.low %v2408, %v2412
      %v3898 = vunpack.c.l.s4 1983009808
      %v3899 = vunpack.c.0.s8 %v3898
      %v3900 = vlaneseq
      %v3901 = vshrl.u32 %v3900, 7
      %v3902 = vsub.s32 %v3899, %v3901
      %v3903 = vrot.slane %v3896, %v3902
      %v3904 = vcombine.low %v3879, %v3887
      %v3906 = vunpack.c.l.s4 1934713408
      %v3907 = vunpack.c.0.s8 %v3906
      %v3908 = vlaneseq
      %v3909 = vshrl.u32 %v3908, 7
      %v3910 = vsub.s32 %v3907, %v3909
      %v3911 = vrot.slane %v3904, %v3910
      %v3912 = vcombine.low %v3895, %v3903
      %v3914 = vunpack.c.l.s4 1934713408
      %v3915 = vunpack.c.0.s8 %v3914
      %v3916 = vlaneseq
      %v3917 = vshrl.u32 %v3916, 7
      %v3918 = vsub.s32 %v3915, %v3917
      %v3919 = vrot.slane %v3912, %v3918
      %v3920 = vcombine.low %v3911, %v3919
      %v3921 = vcombine.low %v2413, %v2417
      %v3923 = vunpack.c.l.s4 1983009808
      %v3924 = vunpack.c.0.s8 %v3923
      %v3925 = vlaneseq
      %v3926 = vshrl.u32 %v3925, 7
      %v3927 = vsub.s32 %v3924, %v3926
      %v3928 = vrot.slane %v3921, %v3927
      %v3929 = vcombine.low %v2415, %v2419
      %v3931 = vunpack.c.l.s4 1983009808
      %v3932 = vunpack.c.0.s8 %v3931
      %v3933 = vlaneseq
      %v3934 = vshrl.u32 %v3933, 7
      %v3935 = vsub.s32 %v3932, %v3934
      %v3936 = vrot.slane %v3929, %v3935
      %v3937 = vcombine.low %v2421, %v2425
      %v3939 = vunpack.c.l.s4 1983009808
      %v3940 = vunpack.c.0.s8 %v3939
      %v3941 = vlaneseq
      %v3942 = vshrl.u32 %v3941, 7
      %v3943 = vsub.s32 %v3940, %v3942
      %v3944 = vrot.slane %v3937, %v3943
      %v3945 = vcombine.low %v2423, %v2427
      %v3947 = vunpack.c.l.s4 1983009808
      %v3948 = vunpack.c.0.s8 %v3947
      %v3949 = vlaneseq
      %v3950 = vshrl.u32 %v3949, 7
      %v3951 = vsub.s32 %v3948, %v3950
      %v3952 = vrot.slane %v3945, %v3951
      %v3953 = vcombine.low %v3928, %v3936
      %v3955 = vunpack.c.l.s4 1934713408
      %v3956 = vunpack.c.0.s8 %v3955
      %v3957 = vlaneseq
      %v3958 = vshrl.u32 %v3957, 7
      %v3959 = vsub.s32 %v3956, %v3958
      %v3960 = vrot.slane %v3953, %v3959
      %v3961 = vcombine.low %v3944, %v3952
      %v3963 = vunpack.c.l.s4 1934713408
      %v3964 = vunpack.c.0.s8 %v3963
      %v3965 = vlaneseq
      %v3966 = vshrl.u32 %v3965, 7
      %v3967 = vsub.s32 %v3964, %v3966
      %v3968 = vrot.slane %v3961, %v3967
      %v3969 = vcombine.low %v3960, %v3968
      %v3970 = vcombine.low %v2414, %v2418
      %v3972 = vunpack.c.l.s4 1983009808
      %v3973 = vunpack.c.0.s8 %v3972
      %v3974 = vlaneseq
      %v3975 = vshrl.u32 %v3974, 7
      %v3976 = vsub.s32 %v3973, %v3975
      %v3977 = vrot.slane %v3970, %v3976
      %v3978 = vcombine.low %v2416, %v2420
      %v3980 = vunpack.c.l.s4 1983009808
      %v3981 = vunpack.c.0.s8 %v3980
      %v3982 = vlaneseq
      %v3983 = vshrl.u32 %v3982, 7
      %v3984 = vsub.s32 %v3981, %v3983
      %v3985 = vrot.slane %v3978, %v3984
      %v3986 = vcombine.low %v2422, %v2426
      %v3988 = vunpack.c.l.s4 1983009808
      %v3989 = vunpack.c.0.s8 %v3988
      %v3990 = vlaneseq
      %v3991 = vshrl.u32 %v3990, 7
      %v3992 = vsub.s32 %v3989, %v3991
      %v3993 = vrot.slane %v3986, %v3992
      %v3994 = vcombine.low %v2424, %v2428
      %v3996 = vunpack.c.l.s4 1983009808
      %v3997 = vunpack.c.0.s8 %v3996
      %v3998 = vlaneseq
      %v3999 = vshrl.u32 %v3998, 7
      %v4000 = vsub.s32 %v3997, %v3999
      %v4001 = vrot.slane %v3994, %v4000
      %v4002 = vcombine.low %v3977, %v3985
      %v4004 = vunpack.c.l.s4 1934713408
      %v4005 = vunpack.c.0.s8 %v4004
      %v4006 = vlaneseq
      %v4007 = vshrl.u32 %v4006, 7
      %v4008 = vsub.s32 %v4005, %v4007
      %v4009 = vrot.slane %v4002, %v4008
      %v4010 = vcombine.low %v3993, %v4001
      %v4012 = vunpack.c.l.s4 1934713408
      %v4013 = vunpack.c.0.s8 %v4012
      %v4014 = vlaneseq
      %v4015 = vshrl.u32 %v4014, 7
      %v4016 = vsub.s32 %v4013, %v4015
      %v4017 = vrot.slane %v4010, %v4016
      %v4018 = vcombine.low %v4009, %v4017
      %v4019 = vcombine.low %v2429, %v2433
      %v4021 = vunpack.c.l.s4 1983009808
      %v4022 = vunpack.c.0.s8 %v4021
      %v4023 = vlaneseq
      %v4024 = vshrl.u32 %v4023, 7
      %v4025 = vsub.s32 %v4022, %v4024
      %v4026 = vrot.slane %v4019, %v4025
      %v4027 = vcombine.low %v2431, %v2435
      %v4029 = vunpack.c.l.s4 1983009808
      %v4030 = vunpack.c.0.s8 %v4029
      %v4031 = vlaneseq
      %v4032 = vshrl.u32 %v4031, 7
      %v4033 = vsub.s32 %v4030, %v4032
      %v4034 = vrot.slane %v4027, %v4033
      %v4035 = vcombine.low %v2437, %v2441
      %v4037 = vunpack.c.l.s4 1983009808
      %v4038 = vunpack.c.0.s8 %v4037
      %v4039 = vlaneseq
      %v4040 = vshrl.u32 %v4039, 7
      %v4041 = vsub.s32 %v4038, %v4040
      %v4042 = vrot.slane %v4035, %v4041
      %v4043 = vcombine.low %v2439, %v2443
      %v4045 = vunpack.c.l.s4 1983009808
      %v4046 = vunpack.c.0.s8 %v4045
      %v4047 = vlaneseq
      %v4048 = vshrl.u32 %v4047, 7
      %v4049 = vsub.s32 %v4046, %v4048
      %v4050 = vrot.slane %v4043, %v4049
      %v4051 = vcombine.low %v4026, %v4034
      %v4053 = vunpack.c.l.s4 1934713408
      %v4054 = vunpack.c.0.s8 %v4053
      %v4055 = vlaneseq
      %v4056 = vshrl.u32 %v4055, 7
      %v4057 = vsub.s32 %v4054, %v4056
      %v4058 = vrot.slane %v4051, %v4057
      %v4059 = vcombine.low %v4042, %v4050
      %v4061 = vunpack.c.l.s4 1934713408
      %v4062 = vunpack.c.0.s8 %v4061
      %v4063 = vlaneseq
      %v4064 = vshrl.u32 %v4063, 7
      %v4065 = vsub.s32 %v4062, %v4064
      %v4066 = vrot.slane %v4059, %v4065
      %v4067 = vcombine.low %v4058, %v4066
      %v4068 = vcombine.low %v2430, %v2434
      %v4070 = vunpack.c.l.s4 1983009808
      %v4071 = vunpack.c.0.s8 %v4070
      %v4072 = vlaneseq
      %v4073 = vshrl.u32 %v4072, 7
      %v4074 = vsub.s32 %v4071, %v4073
      %v4075 = vrot.slane %v4068, %v4074
      %v4076 = vcombine.low %v2432, %v2436
      %v4078 = vunpack.c.l.s4 1983009808
      %v4079 = vunpack.c.0.s8 %v4078
      %v4080 = vlaneseq
      %v4081 = vshrl.u32 %v4080, 7
      %v4082 = vsub.s32 %v4079, %v4081
      %v4083 = vrot.slane %v4076, %v4082
      %v4084 = vcombine.low %v2438, %v2442
      %v4086 = vunpack.c.l.s4 1983009808
      %v4087 = vunpack.c.0.s8 %v4086
      %v4088 = vlaneseq
      %v4089 = vshrl.u32 %v4088, 7
      %v4090 = vsub.s32 %v4087, %v4089
      %v4091 = vrot.slane %v4084, %v4090
      %v4092 = vcombine.low %v2440, %v2444
      %v4094 = vunpack.c.l.s4 1983009808
      %v4095 = vunpack.c.0.s8 %v4094
      %v4096 = vlaneseq
      %v4097 = vshrl.u32 %v4096, 7
      %v4098 = vsub.s32 %v4095, %v4097
      %v4099 = vrot.slane %v4092, %v4098
      %v4100 = vcombine.low %v4075, %v4083
      %v4102 = vunpack.c.l.s4 1934713408
      %v4103 = vunpack.c.0.s8 %v4102
      %v4104 = vlaneseq
      %v4105 = vshrl.u32 %v4104, 7
      %v4106 = vsub.s32 %v4103, %v4105
      %v4107 = vrot.slane %v4100, %v4106
      %v4108 = vcombine.low %v4091, %v4099
      %v4110 = vunpack.c.l.s4 1934713408
      %v4111 = vunpack.c.0.s8 %v4110
      %v4112 = vlaneseq
      %v4113 = vshrl.u32 %v4112, 7
      %v4114 = vsub.s32 %v4111, %v4113
      %v4115 = vrot.slane %v4108, %v4114
      %v4116 = vcombine.low %v4107, %v4115
      %v4119 = vpack.i.b16 %v3822, %v3773
      %v4120 = vshrl.u32 %v3773, 16
      %v4121 = vshrl.u32 %v3822, 16
      %v4122 = vpack.i.b16 %v4121, %v4120
      %v4125 = vpack.i.b16 %v3920, %v3871
      %v4126 = vshrl.u32 %v3871, 16
      %v4127 = vshrl.u32 %v3920, 16
      %v4128 = vpack.i.b16 %v4127, %v4126
      %v4131 = vpack.i.b16 %v4018, %v3969
      %v4132 = vshrl.u32 %v3969, 16
      %v4133 = vshrl.u32 %v4018, 16
      %v4134 = vpack.i.b16 %v4133, %v4132
      %v4137 = vpack.i.b16 %v4116, %v4067
      %v4138 = vshrl.u32 %v4067, 16
      %v4139 = vshrl.u32 %v4116, 16
      %v4140 = vpack.i.b16 %v4139, %v4138
      %4141 = vxpose.xlu0.c.b16.start [1/8] %v3021, 128
      %4142 = vxpose.xlu0.c.b16.cont [2/8] 0, 128
      %4143 = vxpose.xlu0.c.b16.cont [3/8] 0, 128
      %4144 = vxpose.xlu0.c.b16.cont [4/8] 0, 128
      %4145 = vxpose.xlu0.c.b16.cont [5/8] 0, 128
      %4146 = vxpose.xlu0.c.b16.cont [6/8] 0, 128
      %4147 = vxpose.xlu0.c.b16.cont [7/8] 0, 128
      %4148 = vxpose.xlu0.c.b16.end [8/8] 0, 128
      %v4149 = vpop.trf.xlu0
      %v4150 = vpop.trf.xlu0
      %v4151 = vpop.trf.xlu0
      %v4152 = vpop.trf.xlu0
      %v4153 = vpop.trf.xlu0
      %v4154 = vpop.trf.xlu0
      %v4155 = vpop.trf.xlu0
      %v4156 = vpop.trf.xlu0
      %4157 = vxpose.xlu0.c.b16.start [1/8] %v3022, 128
      %4158 = vxpose.xlu0.c.b16.cont [2/8] 0, 128
      %4159 = vxpose.xlu0.c.b16.cont [3/8] 0, 128
      %4160 = vxpose.xlu0.c.b16.cont [4/8] 0, 128
      %4161 = vxpose.xlu0.c.b16.cont [5/8] 0, 128
      %4162 = vxpose.xlu0.c.b16.cont [6/8] 0, 128
      %4163 = vxpose.xlu0.c.b16.cont [7/8] 0, 128
      %4164 = vxpose.xlu0.c.b16.end [8/8] 0, 128
      %v4165 = vpop.trf.xlu0
      %v4166 = vpop.trf.xlu0
      %v4167 = vpop.trf.xlu0
      %v4168 = vpop.trf.xlu0
      %v4169 = vpop.trf.xlu0
      %v4170 = vpop.trf.xlu0
      %v4171 = vpop.trf.xlu0
      %v4172 = vpop.trf.xlu0
      %4173 = vxpose.xlu0.c.b16.start [1/8] %v3023, 128
      %4174 = vxpose.xlu0.c.b16.cont [2/8] 0, 128
      %4175 = vxpose.xlu0.c.b16.cont [3/8] 0, 128
      %4176 = vxpose.xlu0.c.b16.cont [4/8] 0, 128
      %4177 = vxpose.xlu0.c.b16.cont [5/8] 0, 128
      %4178 = vxpose.xlu0.c.b16.cont [6/8] 0, 128
      %4179 = vxpose.xlu0.c.b16.cont [7/8] 0, 128
      %4180 = vxpose.xlu0.c.b16.end [8/8] 0, 128
      %v4181 = vpop.trf.xlu0
      %v4182 = vpop.trf.xlu0
      %v4183 = vpop.trf.xlu0
      %v4184 = vpop.trf.xlu0
      %v4185 = vpop.trf.xlu0
      %v4186 = vpop.trf.xlu0
      %v4187 = vpop.trf.xlu0
      %v4188 = vpop.trf.xlu0
      %4189 = vxpose.xlu0.c.b16.start [1/8] %v3024, 128
      %4190 = vxpose.xlu0.c.b16.cont [2/8] 0, 128
      %4191 = vxpose.xlu0.c.b16.cont [3/8] 0, 128
      %4192 = vxpose.xlu0.c.b16.cont [4/8] 0, 128
      %4193 = vxpose.xlu0.c.b16.cont [5/8] 0, 128
      %4194 = vxpose.xlu0.c.b16.cont [6/8] 0, 128
      %4195 = vxpose.xlu0.c.b16.cont [7/8] 0, 128
      %4196 = vxpose.xlu0.c.b16.end [8/8] 0, 128
      %v4197 = vpop.trf.xlu0
      %v4198 = vpop.trf.xlu0
      %v4199 = vpop.trf.xlu0
      %v4200 = vpop.trf.xlu0
      %v4201 = vpop.trf.xlu0
      %v4202 = vpop.trf.xlu0
      %v4203 = vpop.trf.xlu0
      %v4204 = vpop.trf.xlu0
      %4205 = vxpose.xlu0.c.b16.start [1/8] %v3025, 128
      %4206 = vxpose.xlu0.c.b16.cont [2/8] 0, 128
      %4207 = vxpose.xlu0.c.b16.cont [3/8] 0, 128
      %4208 = vxpose.xlu0.c.b16.cont [4/8] 0, 128
      %4209 = vxpose.xlu0.c.b16.cont [5/8] 0, 128
      %4210 = vxpose.xlu0.c.b16.cont [6/8] 0, 128
      %4211 = vxpose.xlu0.c.b16.cont [7/8] 0, 128
      %4212 = vxpose.xlu0.c.b16.end [8/8] 0, 128
      %v4213 = vpop.trf.xlu0
      %v4214 = vpop.trf.xlu0
      %v4215 = vpop.trf.xlu0
      %v4216 = vpop.trf.xlu0
      %v4217 = vpop.trf.xlu0
      %v4218 = vpop.trf.xlu0
      %v4219 = vpop.trf.xlu0
      %v4220 = vpop.trf.xlu0
      %4221 = vxpose.xlu0.c.b16.start [1/8] %v3026, 128
      %4222 = vxpose.xlu0.c.b16.cont [2/8] 0, 128
      %4223 = vxpose.xlu0.c.b16.cont [3/8] 0, 128
      %4224 = vxpose.xlu0.c.b16.cont [4/8] 0, 128
      %4225 = vxpose.xlu0.c.b16.cont [5/8] 0, 128
      %4226 = vxpose.xlu0.c.b16.cont [6/8] 0, 128
      %4227 = vxpose.xlu0.c.b16.cont [7/8] 0, 128
      %4228 = vxpose.xlu0.c.b16.end [8/8] 0, 128
      %v4229 = vpop.trf.xlu0
      %v4230 = vpop.trf.xlu0
      %v4231 = vpop.trf.xlu0
      %v4232 = vpop.trf.xlu0
      %v4233 = vpop.trf.xlu0
      %v4234 = vpop.trf.xlu0
      %v4235 = vpop.trf.xlu0
      %v4236 = vpop.trf.xlu0
      %4237 = vxpose.xlu0.c.b16.start [1/8] %v3027, 128
      %4238 = vxpose.xlu0.c.b16.cont [2/8] 0, 128
      %4239 = vxpose.xlu0.c.b16.cont [3/8] 0, 128
      %4240 = vxpose.xlu0.c.b16.cont [4/8] 0, 128
      %4241 = vxpose.xlu0.c.b16.cont [5/8] 0, 128
      %4242 = vxpose.xlu0.c.b16.cont [6/8] 0, 128
      %4243 = vxpose.xlu0.c.b16.cont [7/8] 0, 128
      %4244 = vxpose.xlu0.c.b16.end [8/8] 0, 128
      %v4245 = vpop.trf.xlu0
      %v4246 = vpop.trf.xlu0
      %v4247 = vpop.trf.xlu0
      %v4248 = vpop.trf.xlu0
      %v4249 = vpop.trf.xlu0
      %v4250 = vpop.trf.xlu0
      %v4251 = vpop.trf.xlu0
      %v4252 = vpop.trf.xlu0
      %4253 = vxpose.xlu0.c.b16.start [1/8] %v3028, 128
      %4254 = vxpose.xlu0.c.b16.cont [2/8] 0, 128
      %4255 = vxpose.xlu0.c.b16.cont [3/8] 0, 128
      %4256 = vxpose.xlu0.c.b16.cont [4/8] 0, 128
      %4257 = vxpose.xlu0.c.b16.cont [5/8] 0, 128
      %4258 = vxpose.xlu0.c.b16.cont [6/8] 0, 128
      %4259 = vxpose.xlu0.c.b16.cont [7/8] 0, 128
      %4260 = vxpose.xlu0.c.b16.end [8/8] 0, 128
      %v4261 = vpop.trf.xlu0
      %v4262 = vpop.trf.xlu0
      %v4263 = vpop.trf.xlu0
      %v4264 = vpop.trf.xlu0
      %v4265 = vpop.trf.xlu0
      %v4266 = vpop.trf.xlu0
      %v4267 = vpop.trf.xlu0
      %v4268 = vpop.trf.xlu0
      %4269 = vxpose.xlu0.c.b16.start [1/8] %v3029, 128
      %4270 = vxpose.xlu0.c.b16.cont [2/8] 0, 128
      %4271 = vxpose.xlu0.c.b16.cont [3/8] 0, 128
      %4272 = vxpose.xlu0.c.b16.cont [4/8] 0, 128
      %4273 = vxpose.xlu0.c.b16.cont [5/8] 0, 128
      %4274 = vxpose.xlu0.c.b16.cont [6/8] 0, 128
      %4275 = vxpose.xlu0.c.b16.cont [7/8] 0, 128
      %4276 = vxpose.xlu0.c.b16.end [8/8] 0, 128
      %v4277 = vpop.trf.xlu0
      %v4278 = vpop.trf.xlu0
      %v4279 = vpop.trf.xlu0
      %v4280 = vpop.trf.xlu0
      %v4281 = vpop.trf.xlu0
      %v4282 = vpop.trf.xlu0
      %v4283 = vpop.trf.xlu0
      %v4284 = vpop.trf.xlu0
      %4285 = vxpose.xlu0.c.b16.start [1/8] %v3030, 128
      %4286 = vxpose.xlu0.c.b16.cont [2/8] 0, 128
      %4287 = vxpose.xlu0.c.b16.cont [3/8] 0, 128
      %4288 = vxpose.xlu0.c.b16.cont [4/8] 0, 128
      %4289 = vxpose.xlu0.c.b16.cont [5/8] 0, 128
      %4290 = vxpose.xlu0.c.b16.cont [6/8] 0, 128
      %4291 = vxpose.xlu0.c.b16.cont [7/8] 0, 128
      %4292 = vxpose.xlu0.c.b16.end [8/8] 0, 128
      %v4293 = vpop.trf.xlu0
      %v4294 = vpop.trf.xlu0
      %v4295 = vpop.trf.xlu0
      %v4296 = vpop.trf.xlu0
      %v4297 = vpop.trf.xlu0
      %v4298 = vpop.trf.xlu0
      %v4299 = vpop.trf.xlu0
      %v4300 = vpop.trf.xlu0
      %4301 = vxpose.xlu0.c.b16.start [1/8] %v3031, 128
      %4302 = vxpose.xlu0.c.b16.cont [2/8] 0, 128
      %4303 = vxpose.xlu0.c.b16.cont [3/8] 0, 128
      %4304 = vxpose.xlu0.c.b16.cont [4/8] 0, 128
      %4305 = vxpose.xlu0.c.b16.cont [5/8] 0, 128
      %4306 = vxpose.xlu0.c.b16.cont [6/8] 0, 128
      %4307 = vxpose.xlu0.c.b16.cont [7/8] 0, 128
      %4308 = vxpose.xlu0.c.b16.end [8/8] 0, 128
      %v4309 = vpop.trf.xlu0
      %v4310 = vpop.trf.xlu0
      %v4311 = vpop.trf.xlu0
      %v4312 = vpop.trf.xlu0
      %v4313 = vpop.trf.xlu0
      %v4314 = vpop.trf.xlu0
      %v4315 = vpop.trf.xlu0
      %v4316 = vpop.trf.xlu0
      %4317 = vxpose.xlu0.c.b16.start [1/8] %v3032, 128
      %4318 = vxpose.xlu0.c.b16.cont [2/8] 0, 128
      %4319 = vxpose.xlu0.c.b16.cont [3/8] 0, 128
      %4320 = vxpose.xlu0.c.b16.cont [4/8] 0, 128
      %4321 = vxpose.xlu0.c.b16.cont [5/8] 0, 128
      %4322 = vxpose.xlu0.c.b16.cont [6/8] 0, 128
      %4323 = vxpose.xlu0.c.b16.cont [7/8] 0, 128
      %4324 = vxpose.xlu0.c.b16.end [8/8] 0, 128
      %v4325 = vpop.trf.xlu0
      %v4326 = vpop.trf.xlu0
      %v4327 = vpop.trf.xlu0
      %v4328 = vpop.trf.xlu0
      %v4329 = vpop.trf.xlu0
      %v4330 = vpop.trf.xlu0
      %v4331 = vpop.trf.xlu0
      %v4332 = vpop.trf.xlu0
      %4333 = vxpose.xlu0.c.b16.start [1/8] %v3033, 128
      %4334 = vxpose.xlu0.c.b16.cont [2/8] 0, 128
      %4335 = vxpose.xlu0.c.b16.cont [3/8] 0, 128
      %4336 = vxpose.xlu0.c.b16.cont [4/8] 0, 128
      %4337 = vxpose.xlu0.c.b16.cont [5/8] 0, 128
      %4338 = vxpose.xlu0.c.b16.cont [6/8] 0, 128
      %4339 = vxpose.xlu0.c.b16.cont [7/8] 0, 128
      %4340 = vxpose.xlu0.c.b16.end [8/8] 0, 128
      %v4341 = vpop.trf.xlu0
      %v4342 = vpop.trf.xlu0
      %v4343 = vpop.trf.xlu0
      %v4344 = vpop.trf.xlu0
      %v4345 = vpop.trf.xlu0
      %v4346 = vpop.trf.xlu0
      %v4347 = vpop.trf.xlu0
      %v4348 = vpop.trf.xlu0
      %4349 = vxpose.xlu0.c.b16.start [1/8] %v3034, 128
      %4350 = vxpose.xlu0.c.b16.cont [2/8] 0, 128
      %4351 = vxpose.xlu0.c.b16.cont [3/8] 0, 128
      %4352 = vxpose.xlu0.c.b16.cont [4/8] 0, 128
      %4353 = vxpose.xlu0.c.b16.cont [5/8] 0, 128
      %4354 = vxpose.xlu0.c.b16.cont [6/8] 0, 128
      %4355 = vxpose.xlu0.c.b16.cont [7/8] 0, 128
      %4356 = vxpose.xlu0.c.b16.end [8/8] 0, 128
      %v4357 = vpop.trf.xlu0
      %v4358 = vpop.trf.xlu0
      %v4359 = vpop.trf.xlu0
      %v4360 = vpop.trf.xlu0
      %v4361 = vpop.trf.xlu0
      %v4362 = vpop.trf.xlu0
      %v4363 = vpop.trf.xlu0
      %v4364 = vpop.trf.xlu0
      %4365 = vxpose.xlu0.c.b16.start [1/8] %v3035, 128
      %4366 = vxpose.xlu0.c.b16.cont [2/8] 0, 128
      %4367 = vxpose.xlu0.c.b16.cont [3/8] 0, 128
      %4368 = vxpose.xlu0.c.b16.cont [4/8] 0, 128
      %4369 = vxpose.xlu0.c.b16.cont [5/8] 0, 128
      %4370 = vxpose.xlu0.c.b16.cont [6/8] 0, 128
      %4371 = vxpose.xlu0.c.b16.cont [7/8] 0, 128
      %4372 = vxpose.xlu0.c.b16.end [8/8] 0, 128
      %v4373 = vpop.trf.xlu0
      %v4374 = vpop.trf.xlu0
      %v4375 = vpop.trf.xlu0
      %v4376 = vpop.trf.xlu0
      %v4377 = vpop.trf.xlu0
      %v4378 = vpop.trf.xlu0
      %v4379 = vpop.trf.xlu0
      %v4380 = vpop.trf.xlu0
      %4381 = vxpose.xlu0.c.b16.start [1/8] %v3036, 128
      %4382 = vxpose.xlu0.c.b16.cont [2/8] 0, 128
      %4383 = vxpose.xlu0.c.b16.cont [3/8] 0, 128
      %4384 = vxpose.xlu0.c.b16.cont [4/8] 0, 128
      %4385 = vxpose.xlu0.c.b16.cont [5/8] 0, 128
      %4386 = vxpose.xlu0.c.b16.cont [6/8] 0, 128
      %4387 = vxpose.xlu0.c.b16.cont [7/8] 0, 128
      %4388 = vxpose.xlu0.c.b16.end [8/8] 0, 128
      %v4389 = vpop.trf.xlu0
      %v4390 = vpop.trf.xlu0
      %v4391 = vpop.trf.xlu0
      %v4392 = vpop.trf.xlu0
      %v4393 = vpop.trf.xlu0
      %v4394 = vpop.trf.xlu0
      %v4395 = vpop.trf.xlu0
      %v4396 = vpop.trf.xlu0
      %4397 = vxpose.xlu0.c.b16.start [1/8] %v3037, 128
      %4398 = vxpose.xlu0.c.b16.cont [2/8] 0, 128
      %4399 = vxpose.xlu0.c.b16.cont [3/8] 0, 128
      %4400 = vxpose.xlu0.c.b16.cont [4/8] 0, 128
      %4401 = vxpose.xlu0.c.b16.cont [5/8] 0, 128
      %4402 = vxpose.xlu0.c.b16.cont [6/8] 0, 128
      %4403 = vxpose.xlu0.c.b16.cont [7/8] 0, 128
      %4404 = vxpose.xlu0.c.b16.end [8/8] 0, 128
      %v4405 = vpop.trf.xlu0
      %v4406 = vpop.trf.xlu0
      %v4407 = vpop.trf.xlu0
      %v4408 = vpop.trf.xlu0
      %v4409 = vpop.trf.xlu0
      %v4410 = vpop.trf.xlu0
      %v4411 = vpop.trf.xlu0
      %v4412 = vpop.trf.xlu0
      %4413 = vxpose.xlu0.c.b16.start [1/8] %v3038, 128
      %4414 = vxpose.xlu0.c.b16.cont [2/8] 0, 128
      %4415 = vxpose.xlu0.c.b16.cont [3/8] 0, 128
      %4416 = vxpose.xlu0.c.b16.cont [4/8] 0, 128
      %4417 = vxpose.xlu0.c.b16.cont [5/8] 0, 128
      %4418 = vxpose.xlu0.c.b16.cont [6/8] 0, 128
      %4419 = vxpose.xlu0.c.b16.cont [7/8] 0, 128
      %4420 = vxpose.xlu0.c.b16.end [8/8] 0, 128
      %v4421 = vpop.trf.xlu0
      %v4422 = vpop.trf.xlu0
      %v4423 = vpop.trf.xlu0
      %v4424 = vpop.trf.xlu0
      %v4425 = vpop.trf.xlu0
      %v4426 = vpop.trf.xlu0
      %v4427 = vpop.trf.xlu0
      %v4428 = vpop.trf.xlu0
      %4429 = vxpose.xlu0.c.b16.start [1/8] %v3039, 128
      %4430 = vxpose.xlu0.c.b16.cont [2/8] 0, 128
      %4431 = vxpose.xlu0.c.b16.cont [3/8] 0, 128
      %4432 = vxpose.xlu0.c.b16.cont [4/8] 0, 128
      %4433 = vxpose.xlu0.c.b16.cont [5/8] 0, 128
      %4434 = vxpose.xlu0.c.b16.cont [6/8] 0, 128
      %4435 = vxpose.xlu0.c.b16.cont [7/8] 0, 128
      %4436 = vxpose.xlu0.c.b16.end [8/8] 0, 128
      %v4437 = vpop.trf.xlu0
      %v4438 = vpop.trf.xlu0
      %v4439 = vpop.trf.xlu0
      %v4440 = vpop.trf.xlu0
      %v4441 = vpop.trf.xlu0
      %v4442 = vpop.trf.xlu0
      %v4443 = vpop.trf.xlu0
      %v4444 = vpop.trf.xlu0
      %4445 = vxpose.xlu0.c.b16.start [1/8] %v3040, 128
      %4446 = vxpose.xlu0.c.b16.cont [2/8] 0, 128
      %4447 = vxpose.xlu0.c.b16.cont [3/8] 0, 128
      %4448 = vxpose.xlu0.c.b16.cont [4/8] 0, 128
      %4449 = vxpose.xlu0.c.b16.cont [5/8] 0, 128
      %4450 = vxpose.xlu0.c.b16.cont [6/8] 0, 128
      %4451 = vxpose.xlu0.c.b16.cont [7/8] 0, 128
      %4452 = vxpose.xlu0.c.b16.end [8/8] 0, 128
      %v4453 = vpop.trf.xlu0
      %v4454 = vpop.trf.xlu0
      %v4455 = vpop.trf.xlu0
      %v4456 = vpop.trf.xlu0
      %v4457 = vpop.trf.xlu0
      %v4458 = vpop.trf.xlu0
      %v4459 = vpop.trf.xlu0
      %v4460 = vpop.trf.xlu0
      %4461 = vxpose.xlu0.c.b16.start [1/8] %v3041, 128
      %4462 = vxpose.xlu0.c.b16.cont [2/8] 0, 128
      %4463 = vxpose.xlu0.c.b16.cont [3/8] 0, 128
      %4464 = vxpose.xlu0.c.b16.cont [4/8] 0, 128
      %4465 = vxpose.xlu0.c.b16.cont [5/8] 0, 128
      %4466 = vxpose.xlu0.c.b16.cont [6/8] 0, 128
      %4467 = vxpose.xlu0.c.b16.cont [7/8] 0, 128
      %4468 = vxpose.xlu0.c.b16.end [8/8] 0, 128
      %v4469 = vpop.trf.xlu0
      %v4470 = vpop.trf.xlu0
      %v4471 = vpop.trf.xlu0
      %v4472 = vpop.trf.xlu0
      %v4473 = vpop.trf.xlu0
      %v4474 = vpop.trf.xlu0
      %v4475 = vpop.trf.xlu0
      %v4476 = vpop.trf.xlu0
      %4477 = vxpose.xlu0.c.b16.start [1/8] %v3042, 128
      %4478 = vxpose.xlu0.c.b16.cont [2/8] 0, 128
      %4479 = vxpose.xlu0.c.b16.cont [3/8] 0, 128
      %4480 = vxpose.xlu0.c.b16.cont [4/8] 0, 128
      %4481 = vxpose.xlu0.c.b16.cont [5/8] 0, 128
      %4482 = vxpose.xlu0.c.b16.cont [6/8] 0, 128
      %4483 = vxpose.xlu0.c.b16.cont [7/8] 0, 128
      %4484 = vxpose.xlu0.c.b16.end [8/8] 0, 128
      %v4485 = vpop.trf.xlu0
      %v4486 = vpop.trf.xlu0
      %v4487 = vpop.trf.xlu0
      %v4488 = vpop.trf.xlu0
      %v4489 = vpop.trf.xlu0
      %v4490 = vpop.trf.xlu0
      %v4491 = vpop.trf.xlu0
      %v4492 = vpop.trf.xlu0
      %4493 = vxpose.xlu0.c.b16.start [1/8] %v3043, 128
      %4494 = vxpose.xlu0.c.b16.cont [2/8] 0, 128
      %4495 = vxpose.xlu0.c.b16.cont [3/8] 0, 128
      %4496 = vxpose.xlu0.c.b16.cont [4/8] 0, 128
      %4497 = vxpose.xlu0.c.b16.cont [5/8] 0, 128
      %4498 = vxpose.xlu0.c.b16.cont [6/8] 0, 128
      %4499 = vxpose.xlu0.c.b16.cont [7/8] 0, 128
      %4500 = vxpose.xlu0.c.b16.end [8/8] 0, 128
      %v4501 = vpop.trf.xlu0
      %v4502 = vpop.trf.xlu0
      %v4503 = vpop.trf.xlu0
      %v4504 = vpop.trf.xlu0
      %v4505 = vpop.trf.xlu0
      %v4506 = vpop.trf.xlu0
      %v4507 = vpop.trf.xlu0
      %v4508 = vpop.trf.xlu0
      %4509 = vxpose.xlu0.c.b16.start [1/8] %v3044, 128
      %4510 = vxpose.xlu0.c.b16.cont [2/8] 0, 128
      %4511 = vxpose.xlu0.c.b16.cont [3/8] 0, 128
      %4512 = vxpose.xlu0.c.b16.cont [4/8] 0, 128
      %4513 = vxpose.xlu0.c.b16.cont [5/8] 0, 128
      %4514 = vxpose.xlu0.c.b16.cont [6/8] 0, 128
      %4515 = vxpose.xlu0.c.b16.cont [7/8] 0, 128
      %4516 = vxpose.xlu0.c.b16.end [8/8] 0, 128
      %v4517 = vpop.trf.xlu0
      %v4518 = vpop.trf.xlu0
      %v4519 = vpop.trf.xlu0
      %v4520 = vpop.trf.xlu0
      %v4521 = vpop.trf.xlu0
      %v4522 = vpop.trf.xlu0
      %v4523 = vpop.trf.xlu0
      %v4524 = vpop.trf.xlu0
      %4525 = vxpose.xlu0.c.b16.start [1/8] %v3045, 128
      %4526 = vxpose.xlu0.c.b16.cont [2/8] 0, 128
      %4527 = vxpose.xlu0.c.b16.cont [3/8] 0, 128
      %4528 = vxpose.xlu0.c.b16.cont [4/8] 0, 128
      %4529 = vxpose.xlu0.c.b16.cont [5/8] 0, 128
      %4530 = vxpose.xlu0.c.b16.cont [6/8] 0, 128
      %4531 = vxpose.xlu0.c.b16.cont [7/8] 0, 128
      %4532 = vxpose.xlu0.c.b16.end [8/8] 0, 128
      %v4533 = vpop.trf.xlu0
      %v4534 = vpop.trf.xlu0
      %v4535 = vpop.trf.xlu0
      %v4536 = vpop.trf.xlu0
      %v4537 = vpop.trf.xlu0
      %v4538 = vpop.trf.xlu0
      %v4539 = vpop.trf.xlu0
      %v4540 = vpop.trf.xlu0
      %4541 = vxpose.xlu0.c.b16.start [1/8] %v3046, 128
      %4542 = vxpose.xlu0.c.b16.cont [2/8] 0, 128
      %4543 = vxpose.xlu0.c.b16.cont [3/8] 0, 128
      %4544 = vxpose.xlu0.c.b16.cont [4/8] 0, 128
      %4545 = vxpose.xlu0.c.b16.cont [5/8] 0, 128
      %4546 = vxpose.xlu0.c.b16.cont [6/8] 0, 128
      %4547 = vxpose.xlu0.c.b16.cont [7/8] 0, 128
      %4548 = vxpose.xlu0.c.b16.end [8/8] 0, 128
      %v4549 = vpop.trf.xlu0
      %v4550 = vpop.trf.xlu0
      %v4551 = vpop.trf.xlu0
      %v4552 = vpop.trf.xlu0
      %v4553 = vpop.trf.xlu0
      %v4554 = vpop.trf.xlu0
      %v4555 = vpop.trf.xlu0
      %v4556 = vpop.trf.xlu0
      %4557 = vxpose.xlu0.c.b16.start [1/8] %v3047, 128
      %4558 = vxpose.xlu0.c.b16.cont [2/8] 0, 128
      %4559 = vxpose.xlu0.c.b16.cont [3/8] 0, 128
      %4560 = vxpose.xlu0.c.b16.cont [4/8] 0, 128
      %4561 = vxpose.xlu0.c.b16.cont [5/8] 0, 128
      %4562 = vxpose.xlu0.c.b16.cont [6/8] 0, 128
      %4563 = vxpose.xlu0.c.b16.cont [7/8] 0, 128
      %4564 = vxpose.xlu0.c.b16.end [8/8] 0, 128
      %v4565 = vpop.trf.xlu0
      %v4566 = vpop.trf.xlu0
      %v4567 = vpop.trf.xlu0
      %v4568 = vpop.trf.xlu0
      %v4569 = vpop.trf.xlu0
      %v4570 = vpop.trf.xlu0
      %v4571 = vpop.trf.xlu0
      %v4572 = vpop.trf.xlu0
      %4573 = vxpose.xlu0.c.b16.start [1/8] %v3048, 128
      %4574 = vxpose.xlu0.c.b16.cont [2/8] 0, 128
      %4575 = vxpose.xlu0.c.b16.cont [3/8] 0, 128
      %4576 = vxpose.xlu0.c.b16.cont [4/8] 0, 128
      %4577 = vxpose.xlu0.c.b16.cont [5/8] 0, 128
      %4578 = vxpose.xlu0.c.b16.cont [6/8] 0, 128
      %4579 = vxpose.xlu0.c.b16.cont [7/8] 0, 128
      %4580 = vxpose.xlu0.c.b16.end [8/8] 0, 128
      %v4581 = vpop.trf.xlu0
      %v4582 = vpop.trf.xlu0
      %v4583 = vpop.trf.xlu0
      %v4584 = vpop.trf.xlu0
      %v4585 = vpop.trf.xlu0
      %v4586 = vpop.trf.xlu0
      %v4587 = vpop.trf.xlu0
      %v4588 = vpop.trf.xlu0
      %4589 = vxpose.xlu0.c.b16.start [1/8] %v3049, 128
      %4590 = vxpose.xlu0.c.b16.cont [2/8] 0, 128
      %4591 = vxpose.xlu0.c.b16.cont [3/8] 0, 128
      %4592 = vxpose.xlu0.c.b16.cont [4/8] 0, 128
      %4593 = vxpose.xlu0.c.b16.cont [5/8] 0, 128
      %4594 = vxpose.xlu0.c.b16.cont [6/8] 0, 128
      %4595 = vxpose.xlu0.c.b16.cont [7/8] 0, 128
      %4596 = vxpose.xlu0.c.b16.end [8/8] 0, 128
      %v4597 = vpop.trf.xlu0
      %v4598 = vpop.trf.xlu0
      %v4599 = vpop.trf.xlu0
      %v4600 = vpop.trf.xlu0
      %v4601 = vpop.trf.xlu0
      %v4602 = vpop.trf.xlu0
      %v4603 = vpop.trf.xlu0
      %v4604 = vpop.trf.xlu0
      %4605 = vxpose.xlu0.c.b16.start [1/8] %v3050, 128
      %4606 = vxpose.xlu0.c.b16.cont [2/8] 0, 128
      %4607 = vxpose.xlu0.c.b16.cont [3/8] 0, 128
      %4608 = vxpose.xlu0.c.b16.cont [4/8] 0, 128
      %4609 = vxpose.xlu0.c.b16.cont [5/8] 0, 128
      %4610 = vxpose.xlu0.c.b16.cont [6/8] 0, 128
      %4611 = vxpose.xlu0.c.b16.cont [7/8] 0, 128
      %4612 = vxpose.xlu0.c.b16.end [8/8] 0, 128
      %v4613 = vpop.trf.xlu0
      %v4614 = vpop.trf.xlu0
      %v4615 = vpop.trf.xlu0
      %v4616 = vpop.trf.xlu0
      %v4617 = vpop.trf.xlu0
      %v4618 = vpop.trf.xlu0
      %v4619 = vpop.trf.xlu0
      %v4620 = vpop.trf.xlu0
      %4621 = vxpose.xlu0.c.b16.start [1/8] %v3051, 128
      %4622 = vxpose.xlu0.c.b16.cont [2/8] 0, 128
      %4623 = vxpose.xlu0.c.b16.cont [3/8] 0, 128
      %4624 = vxpose.xlu0.c.b16.cont [4/8] 0, 128
      %4625 = vxpose.xlu0.c.b16.cont [5/8] 0, 128
      %4626 = vxpose.xlu0.c.b16.cont [6/8] 0, 128
      %4627 = vxpose.xlu0.c.b16.cont [7/8] 0, 128
      %4628 = vxpose.xlu0.c.b16.end [8/8] 0, 128
      %v4629 = vpop.trf.xlu0
      %v4630 = vpop.trf.xlu0
      %v4631 = vpop.trf.xlu0
      %v4632 = vpop.trf.xlu0
      %v4633 = vpop.trf.xlu0
      %v4634 = vpop.trf.xlu0
      %v4635 = vpop.trf.xlu0
      %v4636 = vpop.trf.xlu0
      %4637 = vxpose.xlu0.c.b16.start [1/8] %v3052, 128
      %4638 = vxpose.xlu0.c.b16.cont [2/8] 0, 128
      %4639 = vxpose.xlu0.c.b16.cont [3/8] 0, 128
      %4640 = vxpose.xlu0.c.b16.cont [4/8] 0, 128
      %4641 = vxpose.xlu0.c.b16.cont [5/8] 0, 128
      %4642 = vxpose.xlu0.c.b16.cont [6/8] 0, 128
      %4643 = vxpose.xlu0.c.b16.cont [7/8] 0, 128
      %4644 = vxpose.xlu0.c.b16.end [8/8] 0, 128
      %v4645 = vpop.trf.xlu0
      %v4646 = vpop.trf.xlu0
      %v4647 = vpop.trf.xlu0
      %v4648 = vpop.trf.xlu0
      %v4649 = vpop.trf.xlu0
      %v4650 = vpop.trf.xlu0
      %v4651 = vpop.trf.xlu0
      %v4652 = vpop.trf.xlu0
      %4653 = vxpose.xlu0.c.b16.start [1/8] %v3053, 128
      %4654 = vxpose.xlu0.c.b16.cont [2/8] 0, 128
      %4655 = vxpose.xlu0.c.b16.cont [3/8] 0, 128
      %4656 = vxpose.xlu0.c.b16.cont [4/8] 0, 128
      %4657 = vxpose.xlu0.c.b16.cont [5/8] 0, 128
      %4658 = vxpose.xlu0.c.b16.cont [6/8] 0, 128
      %4659 = vxpose.xlu0.c.b16.cont [7/8] 0, 128
      %4660 = vxpose.xlu0.c.b16.end [8/8] 0, 128
      %v4661 = vpop.trf.xlu0
      %v4662 = vpop.trf.xlu0
      %v4663 = vpop.trf.xlu0
      %v4664 = vpop.trf.xlu0
      %v4665 = vpop.trf.xlu0
      %v4666 = vpop.trf.xlu0
      %v4667 = vpop.trf.xlu0
      %v4668 = vpop.trf.xlu0
      %4669 = vxpose.xlu0.c.b16.start [1/8] %v3054, 128
      %4670 = vxpose.xlu0.c.b16.cont [2/8] 0, 128
      %4671 = vxpose.xlu0.c.b16.cont [3/8] 0, 128
      %4672 = vxpose.xlu0.c.b16.cont [4/8] 0, 128
      %4673 = vxpose.xlu0.c.b16.cont [5/8] 0, 128
      %4674 = vxpose.xlu0.c.b16.cont [6/8] 0, 128
      %4675 = vxpose.xlu0.c.b16.cont [7/8] 0, 128
      %4676 = vxpose.xlu0.c.b16.end [8/8] 0, 128
      %v4677 = vpop.trf.xlu0
      %v4678 = vpop.trf.xlu0
      %v4679 = vpop.trf.xlu0
      %v4680 = vpop.trf.xlu0
      %v4681 = vpop.trf.xlu0
      %v4682 = vpop.trf.xlu0
      %v4683 = vpop.trf.xlu0
      %v4684 = vpop.trf.xlu0
      %4685 = vxpose.xlu0.c.b16.start [1/8] %v3055, 128
      %4686 = vxpose.xlu0.c.b16.cont [2/8] 0, 128
      %4687 = vxpose.xlu0.c.b16.cont [3/8] 0, 128
      %4688 = vxpose.xlu0.c.b16.cont [4/8] 0, 128
      %4689 = vxpose.xlu0.c.b16.cont [5/8] 0, 128
      %4690 = vxpose.xlu0.c.b16.cont [6/8] 0, 128
      %4691 = vxpose.xlu0.c.b16.cont [7/8] 0, 128
      %4692 = vxpose.xlu0.c.b16.end [8/8] 0, 128
      %v4693 = vpop.trf.xlu0
      %v4694 = vpop.trf.xlu0
      %v4695 = vpop.trf.xlu0
      %v4696 = vpop.trf.xlu0
      %v4697 = vpop.trf.xlu0
      %v4698 = vpop.trf.xlu0
      %v4699 = vpop.trf.xlu0
      %v4700 = vpop.trf.xlu0
      %4701 = vxpose.xlu0.c.b16.start [1/8] %v3056, 128
      %4702 = vxpose.xlu0.c.b16.cont [2/8] 0, 128
      %4703 = vxpose.xlu0.c.b16.cont [3/8] 0, 128
      %4704 = vxpose.xlu0.c.b16.cont [4/8] 0, 128
      %4705 = vxpose.xlu0.c.b16.cont [5/8] 0, 128
      %4706 = vxpose.xlu0.c.b16.cont [6/8] 0, 128
      %4707 = vxpose.xlu0.c.b16.cont [7/8] 0, 128
      %4708 = vxpose.xlu0.c.b16.end [8/8] 0, 128
      %v4709 = vpop.trf.xlu0
      %v4710 = vpop.trf.xlu0
      %v4711 = vpop.trf.xlu0
      %v4712 = vpop.trf.xlu0
      %v4713 = vpop.trf.xlu0
      %v4714 = vpop.trf.xlu0
      %v4715 = vpop.trf.xlu0
      %v4716 = vpop.trf.xlu0
      %4717 = vxpose.xlu0.c.b16.start [1/8] %v3057, 128
      %4718 = vxpose.xlu0.c.b16.cont [2/8] 0, 128
      %4719 = vxpose.xlu0.c.b16.cont [3/8] 0, 128
      %4720 = vxpose.xlu0.c.b16.cont [4/8] 0, 128
      %4721 = vxpose.xlu0.c.b16.cont [5/8] 0, 128
      %4722 = vxpose.xlu0.c.b16.cont [6/8] 0, 128
      %4723 = vxpose.xlu0.c.b16.cont [7/8] 0, 128
      %4724 = vxpose.xlu0.c.b16.end [8/8] 0, 128
      %v4725 = vpop.trf.xlu0
      %v4726 = vpop.trf.xlu0
      %v4727 = vpop.trf.xlu0
      %v4728 = vpop.trf.xlu0
      %v4729 = vpop.trf.xlu0
      %v4730 = vpop.trf.xlu0
      %v4731 = vpop.trf.xlu0
      %v4732 = vpop.trf.xlu0
      %4733 = vxpose.xlu0.c.b16.start [1/8] %v3058, 128
      %4734 = vxpose.xlu0.c.b16.cont [2/8] 0, 128
      %4735 = vxpose.xlu0.c.b16.cont [3/8] 0, 128
      %4736 = vxpose.xlu0.c.b16.cont [4/8] 0, 128
      %4737 = vxpose.xlu0.c.b16.cont [5/8] 0, 128
      %4738 = vxpose.xlu0.c.b16.cont [6/8] 0, 128
      %4739 = vxpose.xlu0.c.b16.cont [7/8] 0, 128
      %4740 = vxpose.xlu0.c.b16.end [8/8] 0, 128
      %v4741 = vpop.trf.xlu0
      %v4742 = vpop.trf.xlu0
      %v4743 = vpop.trf.xlu0
      %v4744 = vpop.trf.xlu0
      %v4745 = vpop.trf.xlu0
      %v4746 = vpop.trf.xlu0
      %v4747 = vpop.trf.xlu0
      %v4748 = vpop.trf.xlu0
      %4749 = vxpose.xlu0.c.b16.start [1/8] %v3059, 128
      %4750 = vxpose.xlu0.c.b16.cont [2/8] 0, 128
      %4751 = vxpose.xlu0.c.b16.cont [3/8] 0, 128
      %4752 = vxpose.xlu0.c.b16.cont [4/8] 0, 128
      %4753 = vxpose.xlu0.c.b16.cont [5/8] 0, 128
      %4754 = vxpose.xlu0.c.b16.cont [6/8] 0, 128
      %4755 = vxpose.xlu0.c.b16.cont [7/8] 0, 128
      %4756 = vxpose.xlu0.c.b16.end [8/8] 0, 128
      %v4757 = vpop.trf.xlu0
      %v4758 = vpop.trf.xlu0
      %v4759 = vpop.trf.xlu0
      %v4760 = vpop.trf.xlu0
      %v4761 = vpop.trf.xlu0
      %v4762 = vpop.trf.xlu0
      %v4763 = vpop.trf.xlu0
      %v4764 = vpop.trf.xlu0
      %4765 = vxpose.xlu0.c.b16.start [1/8] %v3060, 128
      %4766 = vxpose.xlu0.c.b16.cont [2/8] 0, 128
      %4767 = vxpose.xlu0.c.b16.cont [3/8] 0, 128
      %4768 = vxpose.xlu0.c.b16.cont [4/8] 0, 128
      %4769 = vxpose.xlu0.c.b16.cont [5/8] 0, 128
      %4770 = vxpose.xlu0.c.b16.cont [6/8] 0, 128
      %4771 = vxpose.xlu0.c.b16.cont [7/8] 0, 128
      %4772 = vxpose.xlu0.c.b16.end [8/8] 0, 128
      %v4773 = vpop.trf.xlu0
      %v4774 = vpop.trf.xlu0
      %v4775 = vpop.trf.xlu0
      %v4776 = vpop.trf.xlu0
      %v4777 = vpop.trf.xlu0
      %v4778 = vpop.trf.xlu0
      %v4779 = vpop.trf.xlu0
      %v4780 = vpop.trf.xlu0
      %4781 = vxpose.xlu0.c.b16.start [1/8] %v3061, 128
      %4782 = vxpose.xlu0.c.b16.cont [2/8] 0, 128
      %4783 = vxpose.xlu0.c.b16.cont [3/8] 0, 128
      %4784 = vxpose.xlu0.c.b16.cont [4/8] 0, 128
      %4785 = vxpose.xlu0.c.b16.cont [5/8] 0, 128
      %4786 = vxpose.xlu0.c.b16.cont [6/8] 0, 128
      %4787 = vxpose.xlu0.c.b16.cont [7/8] 0, 128
      %4788 = vxpose.xlu0.c.b16.end [8/8] 0, 128
      %v4789 = vpop.trf.xlu0
      %v4790 = vpop.trf.xlu0
      %v4791 = vpop.trf.xlu0
      %v4792 = vpop.trf.xlu0
      %v4793 = vpop.trf.xlu0
      %v4794 = vpop.trf.xlu0
      %v4795 = vpop.trf.xlu0
      %v4796 = vpop.trf.xlu0
      %4797 = vxpose.xlu0.c.b16.start [1/8] %v3062, 128
      %4798 = vxpose.xlu0.c.b16.cont [2/8] 0, 128
      %4799 = vxpose.xlu0.c.b16.cont [3/8] 0, 128
      %4800 = vxpose.xlu0.c.b16.cont [4/8] 0, 128
      %4801 = vxpose.xlu0.c.b16.cont [5/8] 0, 128
      %4802 = vxpose.xlu0.c.b16.cont [6/8] 0, 128
      %4803 = vxpose.xlu0.c.b16.cont [7/8] 0, 128
      %4804 = vxpose.xlu0.c.b16.end [8/8] 0, 128
      %v4805 = vpop.trf.xlu0
      %v4806 = vpop.trf.xlu0
      %v4807 = vpop.trf.xlu0
      %v4808 = vpop.trf.xlu0
      %v4809 = vpop.trf.xlu0
      %v4810 = vpop.trf.xlu0
      %v4811 = vpop.trf.xlu0
      %v4812 = vpop.trf.xlu0
      %4813 = vxpose.xlu0.c.b16.start [1/8] %v3063, 128
      %4814 = vxpose.xlu0.c.b16.cont [2/8] 0, 128
      %4815 = vxpose.xlu0.c.b16.cont [3/8] 0, 128
      %4816 = vxpose.xlu0.c.b16.cont [4/8] 0, 128
      %4817 = vxpose.xlu0.c.b16.cont [5/8] 0, 128
      %4818 = vxpose.xlu0.c.b16.cont [6/8] 0, 128
      %4819 = vxpose.xlu0.c.b16.cont [7/8] 0, 128
      %4820 = vxpose.xlu0.c.b16.end [8/8] 0, 128
      %v4821 = vpop.trf.xlu0
      %v4822 = vpop.trf.xlu0
      %v4823 = vpop.trf.xlu0
      %v4824 = vpop.trf.xlu0
      %v4825 = vpop.trf.xlu0
      %v4826 = vpop.trf.xlu0
      %v4827 = vpop.trf.xlu0
      %v4828 = vpop.trf.xlu0
      %4829 = vxpose.xlu0.c.b16.start [1/8] %v3064, 128
      %4830 = vxpose.xlu0.c.b16.cont [2/8] 0, 128
      %4831 = vxpose.xlu0.c.b16.cont [3/8] 0, 128
      %4832 = vxpose.xlu0.c.b16.cont [4/8] 0, 128
      %4833 = vxpose.xlu0.c.b16.cont [5/8] 0, 128
      %4834 = vxpose.xlu0.c.b16.cont [6/8] 0, 128
      %4835 = vxpose.xlu0.c.b16.cont [7/8] 0, 128
      %4836 = vxpose.xlu0.c.b16.end [8/8] 0, 128
      %v4837 = vpop.trf.xlu0
      %v4838 = vpop.trf.xlu0
      %v4839 = vpop.trf.xlu0
      %v4840 = vpop.trf.xlu0
      %v4841 = vpop.trf.xlu0
      %v4842 = vpop.trf.xlu0
      %v4843 = vpop.trf.xlu0
      %v4844 = vpop.trf.xlu0
      %4845 = vxpose.xlu0.c.b16.start [1/8] %v3065, 128
      %4846 = vxpose.xlu0.c.b16.cont [2/8] 0, 128
      %4847 = vxpose.xlu0.c.b16.cont [3/8] 0, 128
      %4848 = vxpose.xlu0.c.b16.cont [4/8] 0, 128
      %4849 = vxpose.xlu0.c.b16.cont [5/8] 0, 128
      %4850 = vxpose.xlu0.c.b16.cont [6/8] 0, 128
      %4851 = vxpose.xlu0.c.b16.cont [7/8] 0, 128
      %4852 = vxpose.xlu0.c.b16.end [8/8] 0, 128
      %v4853 = vpop.trf.xlu0
      %v4854 = vpop.trf.xlu0
      %v4855 = vpop.trf.xlu0
      %v4856 = vpop.trf.xlu0
      %v4857 = vpop.trf.xlu0
      %v4858 = vpop.trf.xlu0
      %v4859 = vpop.trf.xlu0
      %v4860 = vpop.trf.xlu0
      %4861 = vxpose.xlu0.c.b16.start [1/8] %v3066, 128
      %4862 = vxpose.xlu0.c.b16.cont [2/8] 0, 128
      %4863 = vxpose.xlu0.c.b16.cont [3/8] 0, 128
      %4864 = vxpose.xlu0.c.b16.cont [4/8] 0, 128
      %4865 = vxpose.xlu0.c.b16.cont [5/8] 0, 128
      %4866 = vxpose.xlu0.c.b16.cont [6/8] 0, 128
      %4867 = vxpose.xlu0.c.b16.cont [7/8] 0, 128
      %4868 = vxpose.xlu0.c.b16.end [8/8] 0, 128
      %v4869 = vpop.trf.xlu0
      %v4870 = vpop.trf.xlu0
      %v4871 = vpop.trf.xlu0
      %v4872 = vpop.trf.xlu0
      %v4873 = vpop.trf.xlu0
      %v4874 = vpop.trf.xlu0
      %v4875 = vpop.trf.xlu0
      %v4876 = vpop.trf.xlu0
      %4877 = vxpose.xlu0.c.b16.start [1/8] %v3067, 128
      %4878 = vxpose.xlu0.c.b16.cont [2/8] 0, 128
      %4879 = vxpose.xlu0.c.b16.cont [3/8] 0, 128
      %4880 = vxpose.xlu0.c.b16.cont [4/8] 0, 128
      %4881 = vxpose.xlu0.c.b16.cont [5/8] 0, 128
      %4882 = vxpose.xlu0.c.b16.cont [6/8] 0, 128
      %4883 = vxpose.xlu0.c.b16.cont [7/8] 0, 128
      %4884 = vxpose.xlu0.c.b16.end [8/8] 0, 128
      %v4885 = vpop.trf.xlu0
      %v4886 = vpop.trf.xlu0
      %v4887 = vpop.trf.xlu0
      %v4888 = vpop.trf.xlu0
      %v4889 = vpop.trf.xlu0
      %v4890 = vpop.trf.xlu0
      %v4891 = vpop.trf.xlu0
      %v4892 = vpop.trf.xlu0
      %4893 = vxpose.xlu0.c.b16.start [1/8] %v3068, 128
      %4894 = vxpose.xlu0.c.b16.cont [2/8] 0, 128
      %4895 = vxpose.xlu0.c.b16.cont [3/8] 0, 128
      %4896 = vxpose.xlu0.c.b16.cont [4/8] 0, 128
      %4897 = vxpose.xlu0.c.b16.cont [5/8] 0, 128
      %4898 = vxpose.xlu0.c.b16.cont [6/8] 0, 128
      %4899 = vxpose.xlu0.c.b16.cont [7/8] 0, 128
      %4900 = vxpose.xlu0.c.b16.end [8/8] 0, 128
      %v4901 = vpop.trf.xlu0
      %v4902 = vpop.trf.xlu0
      %v4903 = vpop.trf.xlu0
      %v4904 = vpop.trf.xlu0
      %v4905 = vpop.trf.xlu0
      %v4906 = vpop.trf.xlu0
      %v4907 = vpop.trf.xlu0
      %v4908 = vpop.trf.xlu0
      %4909 = vxpose.xlu0.c.b16.start [1/8] %v3069, 128
      %4910 = vxpose.xlu0.c.b16.cont [2/8] 0, 128
      %4911 = vxpose.xlu0.c.b16.cont [3/8] 0, 128
      %4912 = vxpose.xlu0.c.b16.cont [4/8] 0, 128
      %4913 = vxpose.xlu0.c.b16.cont [5/8] 0, 128
      %4914 = vxpose.xlu0.c.b16.cont [6/8] 0, 128
      %4915 = vxpose.xlu0.c.b16.cont [7/8] 0, 128
      %4916 = vxpose.xlu0.c.b16.end [8/8] 0, 128
      %v4917 = vpop.trf.xlu0
      %v4918 = vpop.trf.xlu0
      %v4919 = vpop.trf.xlu0
      %v4920 = vpop.trf.xlu0
      %v4921 = vpop.trf.xlu0
      %v4922 = vpop.trf.xlu0
      %v4923 = vpop.trf.xlu0
      %v4924 = vpop.trf.xlu0
      %4925 = vxpose.xlu0.c.b16.start [1/8] %v3070, 128
      %4926 = vxpose.xlu0.c.b16.cont [2/8] 0, 128
      %4927 = vxpose.xlu0.c.b16.cont [3/8] 0, 128
      %4928 = vxpose.xlu0.c.b16.cont [4/8] 0, 128
      %4929 = vxpose.xlu0.c.b16.cont [5/8] 0, 128
      %4930 = vxpose.xlu0.c.b16.cont [6/8] 0, 128
      %4931 = vxpose.xlu0.c.b16.cont [7/8] 0, 128
      %4932 = vxpose.xlu0.c.b16.end [8/8] 0, 128
      %v4933 = vpop.trf.xlu0
      %v4934 = vpop.trf.xlu0
      %v4935 = vpop.trf.xlu0
      %v4936 = vpop.trf.xlu0
      %v4937 = vpop.trf.xlu0
      %v4938 = vpop.trf.xlu0
      %v4939 = vpop.trf.xlu0
      %v4940 = vpop.trf.xlu0
      %4941 = vxpose.xlu0.c.b16.start [1/8] %v3071, 128
      %4942 = vxpose.xlu0.c.b16.cont [2/8] 0, 128
      %4943 = vxpose.xlu0.c.b16.cont [3/8] 0, 128
      %4944 = vxpose.xlu0.c.b16.cont [4/8] 0, 128
      %4945 = vxpose.xlu0.c.b16.cont [5/8] 0, 128
      %4946 = vxpose.xlu0.c.b16.cont [6/8] 0, 128
      %4947 = vxpose.xlu0.c.b16.cont [7/8] 0, 128
      %4948 = vxpose.xlu0.c.b16.end [8/8] 0, 128
      %v4949 = vpop.trf.xlu0
      %v4950 = vpop.trf.xlu0
      %v4951 = vpop.trf.xlu0
      %v4952 = vpop.trf.xlu0
      %v4953 = vpop.trf.xlu0
      %v4954 = vpop.trf.xlu0
      %v4955 = vpop.trf.xlu0
      %v4956 = vpop.trf.xlu0
      %4957 = vxpose.xlu0.c.b16.start [1/8] %v3072, 128
      %4958 = vxpose.xlu0.c.b16.cont [2/8] 0, 128
      %4959 = vxpose.xlu0.c.b16.cont [3/8] 0, 128
      %4960 = vxpose.xlu0.c.b16.cont [4/8] 0, 128
      %4961 = vxpose.xlu0.c.b16.cont [5/8] 0, 128
      %4962 = vxpose.xlu0.c.b16.cont [6/8] 0, 128
      %4963 = vxpose.xlu0.c.b16.cont [7/8] 0, 128
      %4964 = vxpose.xlu0.c.b16.end [8/8] 0, 128
      %v4965 = vpop.trf.xlu0
      %v4966 = vpop.trf.xlu0
      %v4967 = vpop.trf.xlu0
      %v4968 = vpop.trf.xlu0
      %v4969 = vpop.trf.xlu0
      %v4970 = vpop.trf.xlu0
      %v4971 = vpop.trf.xlu0
      %v4972 = vpop.trf.xlu0
      %4973 = vxpose.xlu0.c.b16.start [1/8] %v3073, 128
      %4974 = vxpose.xlu0.c.b16.cont [2/8] 0, 128
      %4975 = vxpose.xlu0.c.b16.cont [3/8] 0, 128
      %4976 = vxpose.xlu0.c.b16.cont [4/8] 0, 128
      %4977 = vxpose.xlu0.c.b16.cont [5/8] 0, 128
      %4978 = vxpose.xlu0.c.b16.cont [6/8] 0, 128
      %4979 = vxpose.xlu0.c.b16.cont [7/8] 0, 128
      %4980 = vxpose.xlu0.c.b16.end [8/8] 0, 128
      %v4981 = vpop.trf.xlu0
      %v4982 = vpop.trf.xlu0
      %v4983 = vpop.trf.xlu0
      %v4984 = vpop.trf.xlu0
      %v4985 = vpop.trf.xlu0
      %v4986 = vpop.trf.xlu0
      %v4987 = vpop.trf.xlu0
      %v4988 = vpop.trf.xlu0
      %4989 = vxpose.xlu0.c.b16.start [1/8] %v3074, 128
      %4990 = vxpose.xlu0.c.b16.cont [2/8] 0, 128
      %4991 = vxpose.xlu0.c.b16.cont [3/8] 0, 128
      %4992 = vxpose.xlu0.c.b16.cont [4/8] 0, 128
      %4993 = vxpose.xlu0.c.b16.cont [5/8] 0, 128
      %4994 = vxpose.xlu0.c.b16.cont [6/8] 0, 128
      %4995 = vxpose.xlu0.c.b16.cont [7/8] 0, 128
      %4996 = vxpose.xlu0.c.b16.end [8/8] 0, 128
      %v4997 = vpop.trf.xlu0
      %v4998 = vpop.trf.xlu0
      %v4999 = vpop.trf.xlu0
      %v5000 = vpop.trf.xlu0
      %v5001 = vpop.trf.xlu0
      %v5002 = vpop.trf.xlu0
      %v5003 = vpop.trf.xlu0
      %v5004 = vpop.trf.xlu0
      %5005 = vxpose.xlu0.c.b16.start [1/8] %v3075, 128
      %5006 = vxpose.xlu0.c.b16.cont [2/8] 0, 128
      %5007 = vxpose.xlu0.c.b16.cont [3/8] 0, 128
      %5008 = vxpose.xlu0.c.b16.cont [4/8] 0, 128
      %5009 = vxpose.xlu0.c.b16.cont [5/8] 0, 128
      %5010 = vxpose.xlu0.c.b16.cont [6/8] 0, 128
      %5011 = vxpose.xlu0.c.b16.cont [7/8] 0, 128
      %5012 = vxpose.xlu0.c.b16.end [8/8] 0, 128
      %v5013 = vpop.trf.xlu0
      %v5014 = vpop.trf.xlu0
      %v5015 = vpop.trf.xlu0
      %v5016 = vpop.trf.xlu0
      %v5017 = vpop.trf.xlu0
      %v5018 = vpop.trf.xlu0
      %v5019 = vpop.trf.xlu0
      %v5020 = vpop.trf.xlu0
      %5021 = vxpose.xlu0.c.b16.start [1/8] %v3076, 128
      %5022 = vxpose.xlu0.c.b16.cont [2/8] 0, 128
      %5023 = vxpose.xlu0.c.b16.cont [3/8] 0, 128
      %5024 = vxpose.xlu0.c.b16.cont [4/8] 0, 128
      %5025 = vxpose.xlu0.c.b16.cont [5/8] 0, 128
      %5026 = vxpose.xlu0.c.b16.cont [6/8] 0, 128
      %5027 = vxpose.xlu0.c.b16.cont [7/8] 0, 128
      %5028 = vxpose.xlu0.c.b16.end [8/8] 0, 128
      %v5029 = vpop.trf.xlu0
      %v5030 = vpop.trf.xlu0
      %v5031 = vpop.trf.xlu0
      %v5032 = vpop.trf.xlu0
      %v5033 = vpop.trf.xlu0
      %v5034 = vpop.trf.xlu0
      %v5035 = vpop.trf.xlu0
      %v5036 = vpop.trf.xlu0
      %5037 = vxpose.xlu0.c.b16.start [1/8] %v3077, 128
      %5038 = vxpose.xlu0.c.b16.cont [2/8] 0, 128
      %5039 = vxpose.xlu0.c.b16.cont [3/8] 0, 128
      %5040 = vxpose.xlu0.c.b16.cont [4/8] 0, 128
      %5041 = vxpose.xlu0.c.b16.cont [5/8] 0, 128
      %5042 = vxpose.xlu0.c.b16.cont [6/8] 0, 128
      %5043 = vxpose.xlu0.c.b16.cont [7/8] 0, 128
      %5044 = vxpose.xlu0.c.b16.end [8/8] 0, 128
      %v5045 = vpop.trf.xlu0
      %v5046 = vpop.trf.xlu0
      %v5047 = vpop.trf.xlu0
      %v5048 = vpop.trf.xlu0
      %v5049 = vpop.trf.xlu0
      %v5050 = vpop.trf.xlu0
      %v5051 = vpop.trf.xlu0
      %v5052 = vpop.trf.xlu0
      %5053 = vxpose.xlu0.c.b16.start [1/8] %v3078, 128
      %5054 = vxpose.xlu0.c.b16.cont [2/8] 0, 128
      %5055 = vxpose.xlu0.c.b16.cont [3/8] 0, 128
      %5056 = vxpose.xlu0.c.b16.cont [4/8] 0, 128
      %5057 = vxpose.xlu0.c.b16.cont [5/8] 0, 128
      %5058 = vxpose.xlu0.c.b16.cont [6/8] 0, 128
      %5059 = vxpose.xlu0.c.b16.cont [7/8] 0, 128
      %5060 = vxpose.xlu0.c.b16.end [8/8] 0, 128
      %v5061 = vpop.trf.xlu0
      %v5062 = vpop.trf.xlu0
      %v5063 = vpop.trf.xlu0
      %v5064 = vpop.trf.xlu0
      %v5065 = vpop.trf.xlu0
      %v5066 = vpop.trf.xlu0
      %v5067 = vpop.trf.xlu0
      %v5068 = vpop.trf.xlu0
      %5069 = vxpose.xlu0.c.b16.start [1/8] %v3079, 128
      %5070 = vxpose.xlu0.c.b16.cont [2/8] 0, 128
      %5071 = vxpose.xlu0.c.b16.cont [3/8] 0, 128
      %5072 = vxpose.xlu0.c.b16.cont [4/8] 0, 128
      %5073 = vxpose.xlu0.c.b16.cont [5/8] 0, 128
      %5074 = vxpose.xlu0.c.b16.cont [6/8] 0, 128
      %5075 = vxpose.xlu0.c.b16.cont [7/8] 0, 128
      %5076 = vxpose.xlu0.c.b16.end [8/8] 0, 128
      %v5077 = vpop.trf.xlu0
      %v5078 = vpop.trf.xlu0
      %v5079 = vpop.trf.xlu0
      %v5080 = vpop.trf.xlu0
      %v5081 = vpop.trf.xlu0
      %v5082 = vpop.trf.xlu0
      %v5083 = vpop.trf.xlu0
      %v5084 = vpop.trf.xlu0
      %5085 = vxpose.xlu0.c.b16.start [1/8] %v3080, 128
      %5086 = vxpose.xlu0.c.b16.cont [2/8] 0, 128
      %5087 = vxpose.xlu0.c.b16.cont [3/8] 0, 128
      %5088 = vxpose.xlu0.c.b16.cont [4/8] 0, 128
      %5089 = vxpose.xlu0.c.b16.cont [5/8] 0, 128
      %5090 = vxpose.xlu0.c.b16.cont [6/8] 0, 128
      %5091 = vxpose.xlu0.c.b16.cont [7/8] 0, 128
      %5092 = vxpose.xlu0.c.b16.end [8/8] 0, 128
      %v5093 = vpop.trf.xlu0
      %v5094 = vpop.trf.xlu0
      %v5095 = vpop.trf.xlu0
      %v5096 = vpop.trf.xlu0
      %v5097 = vpop.trf.xlu0
      %v5098 = vpop.trf.xlu0
      %v5099 = vpop.trf.xlu0
      %v5100 = vpop.trf.xlu0
      %5101 = vxpose.xlu0.c.b16.start [1/8] %v3081, 128
      %5102 = vxpose.xlu0.c.b16.cont [2/8] 0, 128
      %5103 = vxpose.xlu0.c.b16.cont [3/8] 0, 128
      %5104 = vxpose.xlu0.c.b16.cont [4/8] 0, 128
      %5105 = vxpose.xlu0.c.b16.cont [5/8] 0, 128
      %5106 = vxpose.xlu0.c.b16.cont [6/8] 0, 128
      %5107 = vxpose.xlu0.c.b16.cont [7/8] 0, 128
      %5108 = vxpose.xlu0.c.b16.end [8/8] 0, 128
      %v5109 = vpop.trf.xlu0
      %v5110 = vpop.trf.xlu0
      %v5111 = vpop.trf.xlu0
      %v5112 = vpop.trf.xlu0
      %v5113 = vpop.trf.xlu0
      %v5114 = vpop.trf.xlu0
      %v5115 = vpop.trf.xlu0
      %v5116 = vpop.trf.xlu0
      %5117 = vxpose.xlu0.c.b16.start [1/8] %v3082, 128
      %5118 = vxpose.xlu0.c.b16.cont [2/8] 0, 128
      %5119 = vxpose.xlu0.c.b16.cont [3/8] 0, 128
      %5120 = vxpose.xlu0.c.b16.cont [4/8] 0, 128
      %5121 = vxpose.xlu0.c.b16.cont [5/8] 0, 128
      %5122 = vxpose.xlu0.c.b16.cont [6/8] 0, 128
      %5123 = vxpose.xlu0.c.b16.cont [7/8] 0, 128
      %5124 = vxpose.xlu0.c.b16.end [8/8] 0, 128
      %v5125 = vpop.trf.xlu0
      %v5126 = vpop.trf.xlu0
      %v5127 = vpop.trf.xlu0
      %v5128 = vpop.trf.xlu0
      %v5129 = vpop.trf.xlu0
      %v5130 = vpop.trf.xlu0
      %v5131 = vpop.trf.xlu0
      %v5132 = vpop.trf.xlu0
      %5133 = vxpose.xlu0.c.b16.start [1/8] %v3083, 128
      %5134 = vxpose.xlu0.c.b16.cont [2/8] 0, 128
      %5135 = vxpose.xlu0.c.b16.cont [3/8] 0, 128
      %5136 = vxpose.xlu0.c.b16.cont [4/8] 0, 128
      %5137 = vxpose.xlu0.c.b16.cont [5/8] 0, 128
      %5138 = vxpose.xlu0.c.b16.cont [6/8] 0, 128
      %5139 = vxpose.xlu0.c.b16.cont [7/8] 0, 128
      %5140 = vxpose.xlu0.c.b16.end [8/8] 0, 128
      %v5141 = vpop.trf.xlu0
      %v5142 = vpop.trf.xlu0
      %v5143 = vpop.trf.xlu0
      %v5144 = vpop.trf.xlu0
      %v5145 = vpop.trf.xlu0
      %v5146 = vpop.trf.xlu0
      %v5147 = vpop.trf.xlu0
      %v5148 = vpop.trf.xlu0
      %5149 = vxpose.xlu0.c.b16.start [1/8] %v3084, 128
      %5150 = vxpose.xlu0.c.b16.cont [2/8] 0, 128
      %5151 = vxpose.xlu0.c.b16.cont [3/8] 0, 128
      %5152 = vxpose.xlu0.c.b16.cont [4/8] 0, 128
      %5153 = vxpose.xlu0.c.b16.cont [5/8] 0, 128
      %5154 = vxpose.xlu0.c.b16.cont [6/8] 0, 128
      %5155 = vxpose.xlu0.c.b16.cont [7/8] 0, 128
      %5156 = vxpose.xlu0.c.b16.end [8/8] 0, 128
      %v5157 = vpop.trf.xlu0
      %v5158 = vpop.trf.xlu0
      %v5159 = vpop.trf.xlu0
      %v5160 = vpop.trf.xlu0
      %v5161 = vpop.trf.xlu0
      %v5162 = vpop.trf.xlu0
      %v5163 = vpop.trf.xlu0
      %v5164 = vpop.trf.xlu0
      %v5165 = vcombine.low %v4149, %v4213
      %v5166 = vcombine.high %v4149, %v4213
      %v5168 = vunpack.c.l.s4 1983009808
      %v5169 = vunpack.c.0.s8 %v5168
      %v5170 = vlaneseq
      %v5171 = vshrl.u32 %v5170, 7
      %v5172 = vsub.s32 %v5169, %v5171
      %v5173 = vrot.slane %v5165, %v5172
      %v5175 = vunpack.c.l.s4 1983009808
      %v5176 = vunpack.c.0.s8 %v5175
      %v5177 = vlaneseq
      %v5178 = vshrl.u32 %v5177, 7
      %v5179 = vsub.s32 %v5176, %v5178
      %v5180 = vrot.slane %v5166, %v5179
      %v5181 = vcombine.low %v4181, %v4245
      %v5182 = vcombine.high %v4181, %v4245
      %v5184 = vunpack.c.l.s4 1983009808
      %v5185 = vunpack.c.0.s8 %v5184
      %v5186 = vlaneseq
      %v5187 = vshrl.u32 %v5186, 7
      %v5188 = vsub.s32 %v5185, %v5187
      %v5189 = vrot.slane %v5181, %v5188
      %v5191 = vunpack.c.l.s4 1983009808
      %v5192 = vunpack.c.0.s8 %v5191
      %v5193 = vlaneseq
      %v5194 = vshrl.u32 %v5193, 7
      %v5195 = vsub.s32 %v5192, %v5194
      %v5196 = vrot.slane %v5182, %v5195
      %v5197 = vcombine.low %v4277, %v4341
      %v5198 = vcombine.high %v4277, %v4341
      %v5200 = vunpack.c.l.s4 1983009808
      %v5201 = vunpack.c.0.s8 %v5200
      %v5202 = vlaneseq
      %v5203 = vshrl.u32 %v5202, 7
      %v5204 = vsub.s32 %v5201, %v5203
      %v5205 = vrot.slane %v5197, %v5204
      %v5207 = vunpack.c.l.s4 1983009808
      %v5208 = vunpack.c.0.s8 %v5207
      %v5209 = vlaneseq
      %v5210 = vshrl.u32 %v5209, 7
      %v5211 = vsub.s32 %v5208, %v5210
      %v5212 = vrot.slane %v5198, %v5211
      %v5213 = vcombine.low %v4309, %v4373
      %v5214 = vcombine.high %v4309, %v4373
      %v5216 = vunpack.c.l.s4 1983009808
      %v5217 = vunpack.c.0.s8 %v5216
      %v5218 = vlaneseq
      %v5219 = vshrl.u32 %v5218, 7
      %v5220 = vsub.s32 %v5217, %v5219
      %v5221 = vrot.slane %v5213, %v5220
      %v5223 = vunpack.c.l.s4 1983009808
      %v5224 = vunpack.c.0.s8 %v5223
      %v5225 = vlaneseq
      %v5226 = vshrl.u32 %v5225, 7
      %v5227 = vsub.s32 %v5224, %v5226
      %v5228 = vrot.slane %v5214, %v5227
      %v5229 = vcombine.low %v5173, %v5189
      %v5230 = vcombine.high %v5173, %v5189
      %v5232 = vunpack.c.l.s4 1934713408
      %v5233 = vunpack.c.0.s8 %v5232
      %v5234 = vlaneseq
      %v5235 = vshrl.u32 %v5234, 7
      %v5236 = vsub.s32 %v5233, %v5235
      %v5237 = vrot.slane %v5229, %v5236
      %v5239 = vunpack.c.l.s4 1934713408
      %v5240 = vunpack.c.0.s8 %v5239
      %v5241 = vlaneseq
      %v5242 = vshrl.u32 %v5241, 7
      %v5243 = vsub.s32 %v5240, %v5242
      %v5244 = vrot.slane %v5230, %v5243
      %v5245 = vcombine.low %v5180, %v5196
      %v5246 = vcombine.high %v5180, %v5196
      %v5248 = vunpack.c.l.s4 1934713408
      %v5249 = vunpack.c.0.s8 %v5248
      %v5250 = vlaneseq
      %v5251 = vshrl.u32 %v5250, 7
      %v5252 = vsub.s32 %v5249, %v5251
      %v5253 = vrot.slane %v5245, %v5252
      %v5255 = vunpack.c.l.s4 1934713408
      %v5256 = vunpack.c.0.s8 %v5255
      %v5257 = vlaneseq
      %v5258 = vshrl.u32 %v5257, 7
      %v5259 = vsub.s32 %v5256, %v5258
      %v5260 = vrot.slane %v5246, %v5259
      %v5261 = vcombine.low %v5205, %v5221
      %v5262 = vcombine.high %v5205, %v5221
      %v5264 = vunpack.c.l.s4 1934713408
      %v5265 = vunpack.c.0.s8 %v5264
      %v5266 = vlaneseq
      %v5267 = vshrl.u32 %v5266, 7
      %v5268 = vsub.s32 %v5265, %v5267
      %v5269 = vrot.slane %v5261, %v5268
      %v5271 = vunpack.c.l.s4 1934713408
      %v5272 = vunpack.c.0.s8 %v5271
      %v5273 = vlaneseq
      %v5274 = vshrl.u32 %v5273, 7
      %v5275 = vsub.s32 %v5272, %v5274
      %v5276 = vrot.slane %v5262, %v5275
      %v5277 = vcombine.low %v5212, %v5228
      %v5278 = vcombine.high %v5212, %v5228
      %v5280 = vunpack.c.l.s4 1934713408
      %v5281 = vunpack.c.0.s8 %v5280
      %v5282 = vlaneseq
      %v5283 = vshrl.u32 %v5282, 7
      %v5284 = vsub.s32 %v5281, %v5283
      %v5285 = vrot.slane %v5277, %v5284
      %v5287 = vunpack.c.l.s4 1934713408
      %v5288 = vunpack.c.0.s8 %v5287
      %v5289 = vlaneseq
      %v5290 = vshrl.u32 %v5289, 7
      %v5291 = vsub.s32 %v5288, %v5290
      %v5292 = vrot.slane %v5278, %v5291
      %v5293 = vcombine.low %v5237, %v5269
      %v5294 = vcombine.high %v5237, %v5269
      %v5295 = vcombine.low %v5244, %v5276
      %v5296 = vcombine.high %v5244, %v5276
      %v5297 = vcombine.low %v5253, %v5285
      %v5298 = vcombine.high %v5253, %v5285
      %v5299 = vcombine.low %v5260, %v5292
      %v5300 = vcombine.high %v5260, %v5292
      %v5301 = vcombine.low %v4165, %v4229
      %v5302 = vcombine.high %v4165, %v4229
      %v5304 = vunpack.c.l.s4 1983009808
      %v5305 = vunpack.c.0.s8 %v5304
      %v5306 = vlaneseq
      %v5307 = vshrl.u32 %v5306, 7
      %v5308 = vsub.s32 %v5305, %v5307
      %v5309 = vrot.slane %v5301, %v5308
      %v5311 = vunpack.c.l.s4 1983009808
      %v5312 = vunpack.c.0.s8 %v5311
      %v5313 = vlaneseq
      %v5314 = vshrl.u32 %v5313, 7
      %v5315 = vsub.s32 %v5312, %v5314
      %v5316 = vrot.slane %v5302, %v5315
      %v5317 = vcombine.low %v4197, %v4261
      %v5318 = vcombine.high %v4197, %v4261
      %v5320 = vunpack.c.l.s4 1983009808
      %v5321 = vunpack.c.0.s8 %v5320
      %v5322 = vlaneseq
      %v5323 = vshrl.u32 %v5322, 7
      %v5324 = vsub.s32 %v5321, %v5323
      %v5325 = vrot.slane %v5317, %v5324
      %v5327 = vunpack.c.l.s4 1983009808
      %v5328 = vunpack.c.0.s8 %v5327
      %v5329 = vlaneseq
      %v5330 = vshrl.u32 %v5329, 7
      %v5331 = vsub.s32 %v5328, %v5330
      %v5332 = vrot.slane %v5318, %v5331
      %v5333 = vcombine.low %v4293, %v4357
      %v5334 = vcombine.high %v4293, %v4357
      %v5336 = vunpack.c.l.s4 1983009808
      %v5337 = vunpack.c.0.s8 %v5336
      %v5338 = vlaneseq
      %v5339 = vshrl.u32 %v5338, 7
      %v5340 = vsub.s32 %v5337, %v5339
      %v5341 = vrot.slane %v5333, %v5340
      %v5343 = vunpack.c.l.s4 1983009808
      %v5344 = vunpack.c.0.s8 %v5343
      %v5345 = vlaneseq
      %v5346 = vshrl.u32 %v5345, 7
      %v5347 = vsub.s32 %v5344, %v5346
      %v5348 = vrot.slane %v5334, %v5347
      %v5349 = vcombine.low %v4325, %v4389
      %v5350 = vcombine.high %v4325, %v4389
      %v5352 = vunpack.c.l.s4 1983009808
      %v5353 = vunpack.c.0.s8 %v5352
      %v5354 = vlaneseq
      %v5355 = vshrl.u32 %v5354, 7
      %v5356 = vsub.s32 %v5353, %v5355
      %v5357 = vrot.slane %v5349, %v5356
      %v5359 = vunpack.c.l.s4 1983009808
      %v5360 = vunpack.c.0.s8 %v5359
      %v5361 = vlaneseq
      %v5362 = vshrl.u32 %v5361, 7
      %v5363 = vsub.s32 %v5360, %v5362
      %v5364 = vrot.slane %v5350, %v5363
      %v5365 = vcombine.low %v5309, %v5325
      %v5366 = vcombine.high %v5309, %v5325
      %v5368 = vunpack.c.l.s4 1934713408
      %v5369 = vunpack.c.0.s8 %v5368
      %v5370 = vlaneseq
      %v5371 = vshrl.u32 %v5370, 7
      %v5372 = vsub.s32 %v5369, %v5371
      %v5373 = vrot.slane %v5365, %v5372
      %v5375 = vunpack.c.l.s4 1934713408
      %v5376 = vunpack.c.0.s8 %v5375
      %v5377 = vlaneseq
      %v5378 = vshrl.u32 %v5377, 7
      %v5379 = vsub.s32 %v5376, %v5378
      %v5380 = vrot.slane %v5366, %v5379
      %v5381 = vcombine.low %v5316, %v5332
      %v5382 = vcombine.high %v5316, %v5332
      %v5384 = vunpack.c.l.s4 1934713408
      %v5385 = vunpack.c.0.s8 %v5384
      %v5386 = vlaneseq
      %v5387 = vshrl.u32 %v5386, 7
      %v5388 = vsub.s32 %v5385, %v5387
      %v5389 = vrot.slane %v5381, %v5388
      %v5391 = vunpack.c.l.s4 1934713408
      %v5392 = vunpack.c.0.s8 %v5391
      %v5393 = vlaneseq
      %v5394 = vshrl.u32 %v5393, 7
      %v5395 = vsub.s32 %v5392, %v5394
      %v5396 = vrot.slane %v5382, %v5395
      %v5397 = vcombine.low %v5341, %v5357
      %v5398 = vcombine.high %v5341, %v5357
      %v5400 = vunpack.c.l.s4 1934713408
      %v5401 = vunpack.c.0.s8 %v5400
      %v5402 = vlaneseq
      %v5403 = vshrl.u32 %v5402, 7
      %v5404 = vsub.s32 %v5401, %v5403
      %v5405 = vrot.slane %v5397, %v5404
      %v5407 = vunpack.c.l.s4 1934713408
      %v5408 = vunpack.c.0.s8 %v5407
      %v5409 = vlaneseq
      %v5410 = vshrl.u32 %v5409, 7
      %v5411 = vsub.s32 %v5408, %v5410
      %v5412 = vrot.slane %v5398, %v5411
      %v5413 = vcombine.low %v5348, %v5364
      %v5414 = vcombine.high %v5348, %v5364
      %v5416 = vunpack.c.l.s4 1934713408
      %v5417 = vunpack.c.0.s8 %v5416
      %v5418 = vlaneseq
      %v5419 = vshrl.u32 %v5418, 7
      %v5420 = vsub.s32 %v5417, %v5419
      %v5421 = vrot.slane %v5413, %v5420
      %v5423 = vunpack.c.l.s4 1934713408
      %v5424 = vunpack.c.0.s8 %v5423
      %v5425 = vlaneseq
      %v5426 = vshrl.u32 %v5425, 7
      %v5427 = vsub.s32 %v5424, %v5426
      %v5428 = vrot.slane %v5414, %v5427
      %v5429 = vcombine.low %v5373, %v5405
      %v5430 = vcombine.high %v5373, %v5405
      %v5431 = vcombine.low %v5380, %v5412
      %v5432 = vcombine.high %v5380, %v5412
      %v5433 = vcombine.low %v5389, %v5421
      %v5434 = vcombine.high %v5389, %v5421
      %v5435 = vcombine.low %v5396, %v5428
      %v5436 = vcombine.high %v5396, %v5428
      %v5437 = vcombine.low %v4405, %v4469
      %v5438 = vcombine.high %v4405, %v4469
      %v5440 = vunpack.c.l.s4 1983009808
      %v5441 = vunpack.c.0.s8 %v5440
      %v5442 = vlaneseq
      %v5443 = vshrl.u32 %v5442, 7
      %v5444 = vsub.s32 %v5441, %v5443
      %v5445 = vrot.slane %v5437, %v5444
      %v5447 = vunpack.c.l.s4 1983009808
      %v5448 = vunpack.c.0.s8 %v5447
      %v5449 = vlaneseq
      %v5450 = vshrl.u32 %v5449, 7
      %v5451 = vsub.s32 %v5448, %v5450
      %v5452 = vrot.slane %v5438, %v5451
      %v5453 = vcombine.low %v4437, %v4501
      %v5454 = vcombine.high %v4437, %v4501
      %v5456 = vunpack.c.l.s4 1983009808
      %v5457 = vunpack.c.0.s8 %v5456
      %v5458 = vlaneseq
      %v5459 = vshrl.u32 %v5458, 7
      %v5460 = vsub.s32 %v5457, %v5459
      %v5461 = vrot.slane %v5453, %v5460
      %v5463 = vunpack.c.l.s4 1983009808
      %v5464 = vunpack.c.0.s8 %v5463
      %v5465 = vlaneseq
      %v5466 = vshrl.u32 %v5465, 7
      %v5467 = vsub.s32 %v5464, %v5466
      %v5468 = vrot.slane %v5454, %v5467
      %v5469 = vcombine.low %v4533, %v4597
      %v5470 = vcombine.high %v4533, %v4597
      %v5472 = vunpack.c.l.s4 1983009808
      %v5473 = vunpack.c.0.s8 %v5472
      %v5474 = vlaneseq
      %v5475 = vshrl.u32 %v5474, 7
      %v5476 = vsub.s32 %v5473, %v5475
      %v5477 = vrot.slane %v5469, %v5476
      %v5479 = vunpack.c.l.s4 1983009808
      %v5480 = vunpack.c.0.s8 %v5479
      %v5481 = vlaneseq
      %v5482 = vshrl.u32 %v5481, 7
      %v5483 = vsub.s32 %v5480, %v5482
      %v5484 = vrot.slane %v5470, %v5483
      %v5485 = vcombine.low %v4565, %v4629
      %v5486 = vcombine.high %v4565, %v4629
      %v5488 = vunpack.c.l.s4 1983009808
      %v5489 = vunpack.c.0.s8 %v5488
      %v5490 = vlaneseq
      %v5491 = vshrl.u32 %v5490, 7
      %v5492 = vsub.s32 %v5489, %v5491
      %v5493 = vrot.slane %v5485, %v5492
      %v5495 = vunpack.c.l.s4 1983009808
      %v5496 = vunpack.c.0.s8 %v5495
      %v5497 = vlaneseq
      %v5498 = vshrl.u32 %v5497, 7
      %v5499 = vsub.s32 %v5496, %v5498
      %v5500 = vrot.slane %v5486, %v5499
      %v5501 = vcombine.low %v5445, %v5461
      %v5502 = vcombine.high %v5445, %v5461
      %v5504 = vunpack.c.l.s4 1934713408
      %v5505 = vunpack.c.0.s8 %v5504
      %v5506 = vlaneseq
      %v5507 = vshrl.u32 %v5506, 7
      %v5508 = vsub.s32 %v5505, %v5507
      %v5509 = vrot.slane %v5501, %v5508
      %v5511 = vunpack.c.l.s4 1934713408
      %v5512 = vunpack.c.0.s8 %v5511
      %v5513 = vlaneseq
      %v5514 = vshrl.u32 %v5513, 7
      %v5515 = vsub.s32 %v5512, %v5514
      %v5516 = vrot.slane %v5502, %v5515
      %v5517 = vcombine.low %v5452, %v5468
      %v5518 = vcombine.high %v5452, %v5468
      %v5520 = vunpack.c.l.s4 1934713408
      %v5521 = vunpack.c.0.s8 %v5520
      %v5522 = vlaneseq
      %v5523 = vshrl.u32 %v5522, 7
      %v5524 = vsub.s32 %v5521, %v5523
      %v5525 = vrot.slane %v5517, %v5524
      %v5527 = vunpack.c.l.s4 1934713408
      %v5528 = vunpack.c.0.s8 %v5527
      %v5529 = vlaneseq
      %v5530 = vshrl.u32 %v5529, 7
      %v5531 = vsub.s32 %v5528, %v5530
      %v5532 = vrot.slane %v5518, %v5531
      %v5533 = vcombine.low %v5477, %v5493
      %v5534 = vcombine.high %v5477, %v5493
      %v5536 = vunpack.c.l.s4 1934713408
      %v5537 = vunpack.c.0.s8 %v5536
      %v5538 = vlaneseq
      %v5539 = vshrl.u32 %v5538, 7
      %v5540 = vsub.s32 %v5537, %v5539
      %v5541 = vrot.slane %v5533, %v5540
      %v5543 = vunpack.c.l.s4 1934713408
      %v5544 = vunpack.c.0.s8 %v5543
      %v5545 = vlaneseq
      %v5546 = vshrl.u32 %v5545, 7
      %v5547 = vsub.s32 %v5544, %v5546
      %v5548 = vrot.slane %v5534, %v5547
      %v5549 = vcombine.low %v5484, %v5500
      %v5550 = vcombine.high %v5484, %v5500
      %v5552 = vunpack.c.l.s4 1934713408
      %v5553 = vunpack.c.0.s8 %v5552
      %v5554 = vlaneseq
      %v5555 = vshrl.u32 %v5554, 7
      %v5556 = vsub.s32 %v5553, %v5555
      %v5557 = vrot.slane %v5549, %v5556
      %v5559 = vunpack.c.l.s4 1934713408
      %v5560 = vunpack.c.0.s8 %v5559
      %v5561 = vlaneseq
      %v5562 = vshrl.u32 %v5561, 7
      %v5563 = vsub.s32 %v5560, %v5562
      %v5564 = vrot.slane %v5550, %v5563
      %v5565 = vcombine.low %v5509, %v5541
      %v5566 = vcombine.high %v5509, %v5541
      %v5567 = vcombine.low %v5516, %v5548
      %v5568 = vcombine.high %v5516, %v5548
      %v5569 = vcombine.low %v5525, %v5557
      %v5570 = vcombine.high %v5525, %v5557
      %v5571 = vcombine.low %v5532, %v5564
      %v5572 = vcombine.high %v5532, %v5564
      %v5573 = vcombine.low %v4421, %v4485
      %v5574 = vcombine.high %v4421, %v4485
      %v5576 = vunpack.c.l.s4 1983009808
      %v5577 = vunpack.c.0.s8 %v5576
      %v5578 = vlaneseq
      %v5579 = vshrl.u32 %v5578, 7
      %v5580 = vsub.s32 %v5577, %v5579
      %v5581 = vrot.slane %v5573, %v5580
      %v5583 = vunpack.c.l.s4 1983009808
      %v5584 = vunpack.c.0.s8 %v5583
      %v5585 = vlaneseq
      %v5586 = vshrl.u32 %v5585, 7
      %v5587 = vsub.s32 %v5584, %v5586
      %v5588 = vrot.slane %v5574, %v5587
      %v5589 = vcombine.low %v4453, %v4517
      %v5590 = vcombine.high %v4453, %v4517
      %v5592 = vunpack.c.l.s4 1983009808
      %v5593 = vunpack.c.0.s8 %v5592
      %v5594 = vlaneseq
      %v5595 = vshrl.u32 %v5594, 7
      %v5596 = vsub.s32 %v5593, %v5595
      %v5597 = vrot.slane %v5589, %v5596
      %v5599 = vunpack.c.l.s4 1983009808
      %v5600 = vunpack.c.0.s8 %v5599
      %v5601 = vlaneseq
      %v5602 = vshrl.u32 %v5601, 7
      %v5603 = vsub.s32 %v5600, %v5602
      %v5604 = vrot.slane %v5590, %v5603
      %v5605 = vcombine.low %v4549, %v4613
      %v5606 = vcombine.high %v4549, %v4613
      %v5608 = vunpack.c.l.s4 1983009808
      %v5609 = vunpack.c.0.s8 %v5608
      %v5610 = vlaneseq
      %v5611 = vshrl.u32 %v5610, 7
      %v5612 = vsub.s32 %v5609, %v5611
      %v5613 = vrot.slane %v5605, %v5612
      %v5615 = vunpack.c.l.s4 1983009808
      %v5616 = vunpack.c.0.s8 %v5615
      %v5617 = vlaneseq
      %v5618 = vshrl.u32 %v5617, 7
      %v5619 = vsub.s32 %v5616, %v5618
      %v5620 = vrot.slane %v5606, %v5619
      %v5621 = vcombine.low %v4581, %v4645
      %v5622 = vcombine.high %v4581, %v4645
      %v5624 = vunpack.c.l.s4 1983009808
      %v5625 = vunpack.c.0.s8 %v5624
      %v5626 = vlaneseq
      %v5627 = vshrl.u32 %v5626, 7
      %v5628 = vsub.s32 %v5625, %v5627
      %v5629 = vrot.slane %v5621, %v5628
      %v5631 = vunpack.c.l.s4 1983009808
      %v5632 = vunpack.c.0.s8 %v5631
      %v5633 = vlaneseq
      %v5634 = vshrl.u32 %v5633, 7
      %v5635 = vsub.s32 %v5632, %v5634
      %v5636 = vrot.slane %v5622, %v5635
      %v5637 = vcombine.low %v5581, %v5597
      %v5638 = vcombine.high %v5581, %v5597
      %v5640 = vunpack.c.l.s4 1934713408
      %v5641 = vunpack.c.0.s8 %v5640
      %v5642 = vlaneseq
      %v5643 = vshrl.u32 %v5642, 7
      %v5644 = vsub.s32 %v5641, %v5643
      %v5645 = vrot.slane %v5637, %v5644
      %v5647 = vunpack.c.l.s4 1934713408
      %v5648 = vunpack.c.0.s8 %v5647
      %v5649 = vlaneseq
      %v5650 = vshrl.u32 %v5649, 7
      %v5651 = vsub.s32 %v5648, %v5650
      %v5652 = vrot.slane %v5638, %v5651
      %v5653 = vcombine.low %v5588, %v5604
      %v5654 = vcombine.high %v5588, %v5604
      %v5656 = vunpack.c.l.s4 1934713408
      %v5657 = vunpack.c.0.s8 %v5656
      %v5658 = vlaneseq
      %v5659 = vshrl.u32 %v5658, 7
      %v5660 = vsub.s32 %v5657, %v5659
      %v5661 = vrot.slane %v5653, %v5660
      %v5663 = vunpack.c.l.s4 1934713408
      %v5664 = vunpack.c.0.s8 %v5663
      %v5665 = vlaneseq
      %v5666 = vshrl.u32 %v5665, 7
      %v5667 = vsub.s32 %v5664, %v5666
      %v5668 = vrot.slane %v5654, %v5667
      %v5669 = vcombine.low %v5613, %v5629
      %v5670 = vcombine.high %v5613, %v5629
      %v5672 = vunpack.c.l.s4 1934713408
      %v5673 = vunpack.c.0.s8 %v5672
      %v5674 = vlaneseq
      %v5675 = vshrl.u32 %v5674, 7
      %v5676 = vsub.s32 %v5673, %v5675
      %v5677 = vrot.slane %v5669, %v5676
      %v5679 = vunpack.c.l.s4 1934713408
      %v5680 = vunpack.c.0.s8 %v5679
      %v5681 = vlaneseq
      %v5682 = vshrl.u32 %v5681, 7
      %v5683 = vsub.s32 %v5680, %v5682
      %v5684 = vrot.slane %v5670, %v5683
      %v5685 = vcombine.low %v5620, %v5636
      %v5686 = vcombine.high %v5620, %v5636
      %v5688 = vunpack.c.l.s4 1934713408
      %v5689 = vunpack.c.0.s8 %v5688
      %v5690 = vlaneseq
      %v5691 = vshrl.u32 %v5690, 7
      %v5692 = vsub.s32 %v5689, %v5691
      %v5693 = vrot.slane %v5685, %v5692
      %v5695 = vunpack.c.l.s4 1934713408
      %v5696 = vunpack.c.0.s8 %v5695
      %v5697 = vlaneseq
      %v5698 = vshrl.u32 %v5697, 7
      %v5699 = vsub.s32 %v5696, %v5698
      %v5700 = vrot.slane %v5686, %v5699
      %v5701 = vcombine.low %v5645, %v5677
      %v5702 = vcombine.high %v5645, %v5677
      %v5703 = vcombine.low %v5652, %v5684
      %v5704 = vcombine.high %v5652, %v5684
      %v5705 = vcombine.low %v5661, %v5693
      %v5706 = vcombine.high %v5661, %v5693
      %v5707 = vcombine.low %v5668, %v5700
      %v5708 = vcombine.high %v5668, %v5700
      %v5709 = vcombine.low %v4661, %v4725
      %v5710 = vcombine.high %v4661, %v4725
      %v5712 = vunpack.c.l.s4 1983009808
      %v5713 = vunpack.c.0.s8 %v5712
      %v5714 = vlaneseq
      %v5715 = vshrl.u32 %v5714, 7
      %v5716 = vsub.s32 %v5713, %v5715
      %v5717 = vrot.slane %v5709, %v5716
      %v5719 = vunpack.c.l.s4 1983009808
      %v5720 = vunpack.c.0.s8 %v5719
      %v5721 = vlaneseq
      %v5722 = vshrl.u32 %v5721, 7
      %v5723 = vsub.s32 %v5720, %v5722
      %v5724 = vrot.slane %v5710, %v5723
      %v5725 = vcombine.low %v4693, %v4757
      %v5726 = vcombine.high %v4693, %v4757
      %v5728 = vunpack.c.l.s4 1983009808
      %v5729 = vunpack.c.0.s8 %v5728
      %v5730 = vlaneseq
      %v5731 = vshrl.u32 %v5730, 7
      %v5732 = vsub.s32 %v5729, %v5731
      %v5733 = vrot.slane %v5725, %v5732
      %v5735 = vunpack.c.l.s4 1983009808
      %v5736 = vunpack.c.0.s8 %v5735
      %v5737 = vlaneseq
      %v5738 = vshrl.u32 %v5737, 7
      %v5739 = vsub.s32 %v5736, %v5738
      %v5740 = vrot.slane %v5726, %v5739
      %v5741 = vcombine.low %v4789, %v4853
      %v5742 = vcombine.high %v4789, %v4853
      %v5744 = vunpack.c.l.s4 1983009808
      %v5745 = vunpack.c.0.s8 %v5744
      %v5746 = vlaneseq
      %v5747 = vshrl.u32 %v5746, 7
      %v5748 = vsub.s32 %v5745, %v5747
      %v5749 = vrot.slane %v5741, %v5748
      %v5751 = vunpack.c.l.s4 1983009808
      %v5752 = vunpack.c.0.s8 %v5751
      %v5753 = vlaneseq
      %v5754 = vshrl.u32 %v5753, 7
      %v5755 = vsub.s32 %v5752, %v5754
      %v5756 = vrot.slane %v5742, %v5755
      %v5757 = vcombine.low %v4821, %v4885
      %v5758 = vcombine.high %v4821, %v4885
      %v5760 = vunpack.c.l.s4 1983009808
      %v5761 = vunpack.c.0.s8 %v5760
      %v5762 = vlaneseq
      %v5763 = vshrl.u32 %v5762, 7
      %v5764 = vsub.s32 %v5761, %v5763
      %v5765 = vrot.slane %v5757, %v5764
      %v5767 = vunpack.c.l.s4 1983009808
      %v5768 = vunpack.c.0.s8 %v5767
      %v5769 = vlaneseq
      %v5770 = vshrl.u32 %v5769, 7
      %v5771 = vsub.s32 %v5768, %v5770
      %v5772 = vrot.slane %v5758, %v5771
      %v5773 = vcombine.low %v5717, %v5733
      %v5774 = vcombine.high %v5717, %v5733
      %v5776 = vunpack.c.l.s4 1934713408
      %v5777 = vunpack.c.0.s8 %v5776
      %v5778 = vlaneseq
      %v5779 = vshrl.u32 %v5778, 7
      %v5780 = vsub.s32 %v5777, %v5779
      %v5781 = vrot.slane %v5773, %v5780
      %v5783 = vunpack.c.l.s4 1934713408
      %v5784 = vunpack.c.0.s8 %v5783
      %v5785 = vlaneseq
      %v5786 = vshrl.u32 %v5785, 7
      %v5787 = vsub.s32 %v5784, %v5786
      %v5788 = vrot.slane %v5774, %v5787
      %v5789 = vcombine.low %v5724, %v5740
      %v5790 = vcombine.high %v5724, %v5740
      %v5792 = vunpack.c.l.s4 1934713408
      %v5793 = vunpack.c.0.s8 %v5792
      %v5794 = vlaneseq
      %v5795 = vshrl.u32 %v5794, 7
      %v5796 = vsub.s32 %v5793, %v5795
      %v5797 = vrot.slane %v5789, %v5796
      %v5799 = vunpack.c.l.s4 1934713408
      %v5800 = vunpack.c.0.s8 %v5799
      %v5801 = vlaneseq
      %v5802 = vshrl.u32 %v5801, 7
      %v5803 = vsub.s32 %v5800, %v5802
      %v5804 = vrot.slane %v5790, %v5803
      %v5805 = vcombine.low %v5749, %v5765
      %v5806 = vcombine.high %v5749, %v5765
      %v5808 = vunpack.c.l.s4 1934713408
      %v5809 = vunpack.c.0.s8 %v5808
      %v5810 = vlaneseq
      %v5811 = vshrl.u32 %v5810, 7
      %v5812 = vsub.s32 %v5809, %v5811
      %v5813 = vrot.slane %v5805, %v5812
      %v5815 = vunpack.c.l.s4 1934713408
      %v5816 = vunpack.c.0.s8 %v5815
      %v5817 = vlaneseq
      %v5818 = vshrl.u32 %v5817, 7
      %v5819 = vsub.s32 %v5816, %v5818
      %v5820 = vrot.slane %v5806, %v5819
      %v5821 = vcombine.low %v5756, %v5772
      %v5822 = vcombine.high %v5756, %v5772
      %v5824 = vunpack.c.l.s4 1934713408
      %v5825 = vunpack.c.0.s8 %v5824
      %v5826 = vlaneseq
      %v5827 = vshrl.u32 %v5826, 7
      %v5828 = vsub.s32 %v5825, %v5827
      %v5829 = vrot.slane %v5821, %v5828
      %v5831 = vunpack.c.l.s4 1934713408
      %v5832 = vunpack.c.0.s8 %v5831
      %v5833 = vlaneseq
      %v5834 = vshrl.u32 %v5833, 7
      %v5835 = vsub.s32 %v5832, %v5834
      %v5836 = vrot.slane %v5822, %v5835
      %v5837 = vcombine.low %v5781, %v5813
      %v5838 = vcombine.high %v5781, %v5813
      %v5839 = vcombine.low %v5788, %v5820
      %v5840 = vcombine.high %v5788, %v5820
      %v5841 = vcombine.low %v5797, %v5829
      %v5842 = vcombine.high %v5797, %v5829
      %v5843 = vcombine.low %v5804, %v5836
      %v5844 = vcombine.high %v5804, %v5836
      %v5845 = vcombine.low %v4677, %v4741
      %v5846 = vcombine.high %v4677, %v4741
      %v5848 = vunpack.c.l.s4 1983009808
      %v5849 = vunpack.c.0.s8 %v5848
      %v5850 = vlaneseq
      %v5851 = vshrl.u32 %v5850, 7
      %v5852 = vsub.s32 %v5849, %v5851
      %v5853 = vrot.slane %v5845, %v5852
      %v5855 = vunpack.c.l.s4 1983009808
      %v5856 = vunpack.c.0.s8 %v5855
      %v5857 = vlaneseq
      %v5858 = vshrl.u32 %v5857, 7
      %v5859 = vsub.s32 %v5856, %v5858
      %v5860 = vrot.slane %v5846, %v5859
      %v5861 = vcombine.low %v4709, %v4773
      %v5862 = vcombine.high %v4709, %v4773
      %v5864 = vunpack.c.l.s4 1983009808
      %v5865 = vunpack.c.0.s8 %v5864
      %v5866 = vlaneseq
      %v5867 = vshrl.u32 %v5866, 7
      %v5868 = vsub.s32 %v5865, %v5867
      %v5869 = vrot.slane %v5861, %v5868
      %v5871 = vunpack.c.l.s4 1983009808
      %v5872 = vunpack.c.0.s8 %v5871
      %v5873 = vlaneseq
      %v5874 = vshrl.u32 %v5873, 7
      %v5875 = vsub.s32 %v5872, %v5874
      %v5876 = vrot.slane %v5862, %v5875
      %v5877 = vcombine.low %v4805, %v4869
      %v5878 = vcombine.high %v4805, %v4869
      %v5880 = vunpack.c.l.s4 1983009808
      %v5881 = vunpack.c.0.s8 %v5880
      %v5882 = vlaneseq
      %v5883 = vshrl.u32 %v5882, 7
      %v5884 = vsub.s32 %v5881, %v5883
      %v5885 = vrot.slane %v5877, %v5884
      %v5887 = vunpack.c.l.s4 1983009808
      %v5888 = vunpack.c.0.s8 %v5887
      %v5889 = vlaneseq
      %v5890 = vshrl.u32 %v5889, 7
      %v5891 = vsub.s32 %v5888, %v5890
      %v5892 = vrot.slane %v5878, %v5891
      %v5893 = vcombine.low %v4837, %v4901
      %v5894 = vcombine.high %v4837, %v4901
      %v5896 = vunpack.c.l.s4 1983009808
      %v5897 = vunpack.c.0.s8 %v5896
      %v5898 = vlaneseq
      %v5899 = vshrl.u32 %v5898, 7
      %v5900 = vsub.s32 %v5897, %v5899
      %v5901 = vrot.slane %v5893, %v5900
      %v5903 = vunpack.c.l.s4 1983009808
      %v5904 = vunpack.c.0.s8 %v5903
      %v5905 = vlaneseq
      %v5906 = vshrl.u32 %v5905, 7
      %v5907 = vsub.s32 %v5904, %v5906
      %v5908 = vrot.slane %v5894, %v5907
      %v5909 = vcombine.low %v5853, %v5869
      %v5910 = vcombine.high %v5853, %v5869
      %v5912 = vunpack.c.l.s4 1934713408
      %v5913 = vunpack.c.0.s8 %v5912
      %v5914 = vlaneseq
      %v5915 = vshrl.u32 %v5914, 7
      %v5916 = vsub.s32 %v5913, %v5915
      %v5917 = vrot.slane %v5909, %v5916
      %v5919 = vunpack.c.l.s4 1934713408
      %v5920 = vunpack.c.0.s8 %v5919
      %v5921 = vlaneseq
      %v5922 = vshrl.u32 %v5921, 7
      %v5923 = vsub.s32 %v5920, %v5922
      %v5924 = vrot.slane %v5910, %v5923
      %v5925 = vcombine.low %v5860, %v5876
      %v5926 = vcombine.high %v5860, %v5876
      %v5928 = vunpack.c.l.s4 1934713408
      %v5929 = vunpack.c.0.s8 %v5928
      %v5930 = vlaneseq
      %v5931 = vshrl.u32 %v5930, 7
      %v5932 = vsub.s32 %v5929, %v5931
      %v5933 = vrot.slane %v5925, %v5932
      %v5935 = vunpack.c.l.s4 1934713408
      %v5936 = vunpack.c.0.s8 %v5935
      %v5937 = vlaneseq
      %v5938 = vshrl.u32 %v5937, 7
      %v5939 = vsub.s32 %v5936, %v5938
      %v5940 = vrot.slane %v5926, %v5939
      %v5941 = vcombine.low %v5885, %v5901
      %v5942 = vcombine.high %v5885, %v5901
      %v5944 = vunpack.c.l.s4 1934713408
      %v5945 = vunpack.c.0.s8 %v5944
      %v5946 = vlaneseq
      %v5947 = vshrl.u32 %v5946, 7
      %v5948 = vsub.s32 %v5945, %v5947
      %v5949 = vrot.slane %v5941, %v5948
      %v5951 = vunpack.c.l.s4 1934713408
      %v5952 = vunpack.c.0.s8 %v5951
      %v5953 = vlaneseq
      %v5954 = vshrl.u32 %v5953, 7
      %v5955 = vsub.s32 %v5952, %v5954
      %v5956 = vrot.slane %v5942, %v5955
      %v5957 = vcombine.low %v5892, %v5908
      %v5958 = vcombine.high %v5892, %v5908
      %v5960 = vunpack.c.l.s4 1934713408
      %v5961 = vunpack.c.0.s8 %v5960
      %v5962 = vlaneseq
      %v5963 = vshrl.u32 %v5962, 7
      %v5964 = vsub.s32 %v5961, %v5963
      %v5965 = vrot.slane %v5957, %v5964
      %v5967 = vunpack.c.l.s4 1934713408
      %v5968 = vunpack.c.0.s8 %v5967
      %v5969 = vlaneseq
      %v5970 = vshrl.u32 %v5969, 7
      %v5971 = vsub.s32 %v5968, %v5970
      %v5972 = vrot.slane %v5958, %v5971
      %v5973 = vcombine.low %v5917, %v5949
      %v5974 = vcombine.high %v5917, %v5949
      %v5975 = vcombine.low %v5924, %v5956
      %v5976 = vcombine.high %v5924, %v5956
      %v5977 = vcombine.low %v5933, %v5965
      %v5978 = vcombine.high %v5933, %v5965
      %v5979 = vcombine.low %v5940, %v5972
      %v5980 = vcombine.high %v5940, %v5972
      %v5981 = vcombine.low %v4917, %v4981
      %v5982 = vcombine.high %v4917, %v4981
      %v5984 = vunpack.c.l.s4 1983009808
      %v5985 = vunpack.c.0.s8 %v5984
      %v5986 = vlaneseq
      %v5987 = vshrl.u32 %v5986, 7
      %v5988 = vsub.s32 %v5985, %v5987
      %v5989 = vrot.slane %v5981, %v5988
      %v5991 = vunpack.c.l.s4 1983009808
      %v5992 = vunpack.c.0.s8 %v5991
      %v5993 = vlaneseq
      %v5994 = vshrl.u32 %v5993, 7
      %v5995 = vsub.s32 %v5992, %v5994
      %v5996 = vrot.slane %v5982, %v5995
      %v5997 = vcombine.low %v4949, %v5013
      %v5998 = vcombine.high %v4949, %v5013
      %v6000 = vunpack.c.l.s4 1983009808
      %v6001 = vunpack.c.0.s8 %v6000
      %v6002 = vlaneseq
      %v6003 = vshrl.u32 %v6002, 7
      %v6004 = vsub.s32 %v6001, %v6003
      %v6005 = vrot.slane %v5997, %v6004
      %v6007 = vunpack.c.l.s4 1983009808
      %v6008 = vunpack.c.0.s8 %v6007
      %v6009 = vlaneseq
      %v6010 = vshrl.u32 %v6009, 7
      %v6011 = vsub.s32 %v6008, %v6010
      %v6012 = vrot.slane %v5998, %v6011
      %v6013 = vcombine.low %v5045, %v5109
      %v6014 = vcombine.high %v5045, %v5109
      %v6016 = vunpack.c.l.s4 1983009808
      %v6017 = vunpack.c.0.s8 %v6016
      %v6018 = vlaneseq
      %v6019 = vshrl.u32 %v6018, 7
      %v6020 = vsub.s32 %v6017, %v6019
      %v6021 = vrot.slane %v6013, %v6020
      %v6023 = vunpack.c.l.s4 1983009808
      %v6024 = vunpack.c.0.s8 %v6023
      %v6025 = vlaneseq
      %v6026 = vshrl.u32 %v6025, 7
      %v6027 = vsub.s32 %v6024, %v6026
      %v6028 = vrot.slane %v6014, %v6027
      %v6029 = vcombine.low %v5077, %v5141
      %v6030 = vcombine.high %v5077, %v5141
      %v6032 = vunpack.c.l.s4 1983009808
      %v6033 = vunpack.c.0.s8 %v6032
      %v6034 = vlaneseq
      %v6035 = vshrl.u32 %v6034, 7
      %v6036 = vsub.s32 %v6033, %v6035
      %v6037 = vrot.slane %v6029, %v6036
      %v6039 = vunpack.c.l.s4 1983009808
      %v6040 = vunpack.c.0.s8 %v6039
      %v6041 = vlaneseq
      %v6042 = vshrl.u32 %v6041, 7
      %v6043 = vsub.s32 %v6040, %v6042
      %v6044 = vrot.slane %v6030, %v6043
      %v6045 = vcombine.low %v5989, %v6005
      %v6046 = vcombine.high %v5989, %v6005
      %v6048 = vunpack.c.l.s4 1934713408
      %v6049 = vunpack.c.0.s8 %v6048
      %v6050 = vlaneseq
      %v6051 = vshrl.u32 %v6050, 7
      %v6052 = vsub.s32 %v6049, %v6051
      %v6053 = vrot.slane %v6045, %v6052
      %v6055 = vunpack.c.l.s4 1934713408
      %v6056 = vunpack.c.0.s8 %v6055
      %v6057 = vlaneseq
      %v6058 = vshrl.u32 %v6057, 7
      %v6059 = vsub.s32 %v6056, %v6058
      %v6060 = vrot.slane %v6046, %v6059
      %v6061 = vcombine.low %v5996, %v6012
      %v6062 = vcombine.high %v5996, %v6012
      %v6064 = vunpack.c.l.s4 1934713408
      %v6065 = vunpack.c.0.s8 %v6064
      %v6066 = vlaneseq
      %v6067 = vshrl.u32 %v6066, 7
      %v6068 = vsub.s32 %v6065, %v6067
      %v6069 = vrot.slane %v6061, %v6068
      %v6071 = vunpack.c.l.s4 1934713408
      %v6072 = vunpack.c.0.s8 %v6071
      %v6073 = vlaneseq
      %v6074 = vshrl.u32 %v6073, 7
      %v6075 = vsub.s32 %v6072, %v6074
      %v6076 = vrot.slane %v6062, %v6075
      %v6077 = vcombine.low %v6021, %v6037
      %v6078 = vcombine.high %v6021, %v6037
      %v6080 = vunpack.c.l.s4 1934713408
      %v6081 = vunpack.c.0.s8 %v6080
      %v6082 = vlaneseq
      %v6083 = vshrl.u32 %v6082, 7
      %v6084 = vsub.s32 %v6081, %v6083
      %v6085 = vrot.slane %v6077, %v6084
      %v6087 = vunpack.c.l.s4 1934713408
      %v6088 = vunpack.c.0.s8 %v6087
      %v6089 = vlaneseq
      %v6090 = vshrl.u32 %v6089, 7
      %v6091 = vsub.s32 %v6088, %v6090
      %v6092 = vrot.slane %v6078, %v6091
      %v6093 = vcombine.low %v6028, %v6044
      %v6094 = vcombine.high %v6028, %v6044
      %v6096 = vunpack.c.l.s4 1934713408
      %v6097 = vunpack.c.0.s8 %v6096
      %v6098 = vlaneseq
      %v6099 = vshrl.u32 %v6098, 7
      %v6100 = vsub.s32 %v6097, %v6099
      %v6101 = vrot.slane %v6093, %v6100
      %v6103 = vunpack.c.l.s4 1934713408
      %v6104 = vunpack.c.0.s8 %v6103
      %v6105 = vlaneseq
      %v6106 = vshrl.u32 %v6105, 7
      %v6107 = vsub.s32 %v6104, %v6106
      %v6108 = vrot.slane %v6094, %v6107
      %v6109 = vcombine.low %v6053, %v6085
      %v6110 = vcombine.high %v6053, %v6085
      %v6111 = vcombine.low %v6060, %v6092
      %v6112 = vcombine.high %v6060, %v6092
      %v6113 = vcombine.low %v6069, %v6101
      %v6114 = vcombine.high %v6069, %v6101
      %v6115 = vcombine.low %v6076, %v6108
      %v6116 = vcombine.high %v6076, %v6108
      %v6117 = vcombine.low %v4933, %v4997
      %v6118 = vcombine.high %v4933, %v4997
      %v6120 = vunpack.c.l.s4 1983009808
      %v6121 = vunpack.c.0.s8 %v6120
      %v6122 = vlaneseq
      %v6123 = vshrl.u32 %v6122, 7
      %v6124 = vsub.s32 %v6121, %v6123
      %v6125 = vrot.slane %v6117, %v6124
      %v6127 = vunpack.c.l.s4 1983009808
      %v6128 = vunpack.c.0.s8 %v6127
      %v6129 = vlaneseq
      %v6130 = vshrl.u32 %v6129, 7
      %v6131 = vsub.s32 %v6128, %v6130
      %v6132 = vrot.slane %v6118, %v6131
      %v6133 = vcombine.low %v4965, %v5029
      %v6134 = vcombine.high %v4965, %v5029
      %v6136 = vunpack.c.l.s4 1983009808
      %v6137 = vunpack.c.0.s8 %v6136
      %v6138 = vlaneseq
      %v6139 = vshrl.u32 %v6138, 7
      %v6140 = vsub.s32 %v6137, %v6139
      %v6141 = vrot.slane %v6133, %v6140
      %v6143 = vunpack.c.l.s4 1983009808
      %v6144 = vunpack.c.0.s8 %v6143
      %v6145 = vlaneseq
      %v6146 = vshrl.u32 %v6145, 7
      %v6147 = vsub.s32 %v6144, %v6146
      %v6148 = vrot.slane %v6134, %v6147
      %v6149 = vcombine.low %v5061, %v5125
      %v6150 = vcombine.high %v5061, %v5125
      %v6152 = vunpack.c.l.s4 1983009808
      %v6153 = vunpack.c.0.s8 %v6152
      %v6154 = vlaneseq
      %v6155 = vshrl.u32 %v6154, 7
      %v6156 = vsub.s32 %v6153, %v6155
      %v6157 = vrot.slane %v6149, %v6156
      %v6159 = vunpack.c.l.s4 1983009808
      %v6160 = vunpack.c.0.s8 %v6159
      %v6161 = vlaneseq
      %v6162 = vshrl.u32 %v6161, 7
      %v6163 = vsub.s32 %v6160, %v6162
      %v6164 = vrot.slane %v6150, %v6163
      %v6165 = vcombine.low %v5093, %v5157
      %v6166 = vcombine.high %v5093, %v5157
      %v6168 = vunpack.c.l.s4 1983009808
      %v6169 = vunpack.c.0.s8 %v6168
      %v6170 = vlaneseq
      %v6171 = vshrl.u32 %v6170, 7
      %v6172 = vsub.s32 %v6169, %v6171
      %v6173 = vrot.slane %v6165, %v6172
      %v6175 = vunpack.c.l.s4 1983009808
      %v6176 = vunpack.c.0.s8 %v6175
      %v6177 = vlaneseq
      %v6178 = vshrl.u32 %v6177, 7
      %v6179 = vsub.s32 %v6176, %v6178
      %v6180 = vrot.slane %v6166, %v6179
      %v6181 = vcombine.low %v6125, %v6141
      %v6182 = vcombine.high %v6125, %v6141
      %v6184 = vunpack.c.l.s4 1934713408
      %v6185 = vunpack.c.0.s8 %v6184
      %v6186 = vlaneseq
      %v6187 = vshrl.u32 %v6186, 7
      %v6188 = vsub.s32 %v6185, %v6187
      %v6189 = vrot.slane %v6181, %v6188
      %v6191 = vunpack.c.l.s4 1934713408
      %v6192 = vunpack.c.0.s8 %v6191
      %v6193 = vlaneseq
      %v6194 = vshrl.u32 %v6193, 7
      %v6195 = vsub.s32 %v6192, %v6194
      %v6196 = vrot.slane %v6182, %v6195
      %v6197 = vcombine.low %v6132, %v6148
      %v6198 = vcombine.high %v6132, %v6148
      %v6200 = vunpack.c.l.s4 1934713408
      %v6201 = vunpack.c.0.s8 %v6200
      %v6202 = vlaneseq
      %v6203 = vshrl.u32 %v6202, 7
      %v6204 = vsub.s32 %v6201, %v6203
      %v6205 = vrot.slane %v6197, %v6204
      %v6207 = vunpack.c.l.s4 1934713408
      %v6208 = vunpack.c.0.s8 %v6207
      %v6209 = vlaneseq
      %v6210 = vshrl.u32 %v6209, 7
      %v6211 = vsub.s32 %v6208, %v6210
      %v6212 = vrot.slane %v6198, %v6211
      %v6213 = vcombine.low %v6157, %v6173
      %v6214 = vcombine.high %v6157, %v6173
      %v6216 = vunpack.c.l.s4 1934713408
      %v6217 = vunpack.c.0.s8 %v6216
      %v6218 = vlaneseq
      %v6219 = vshrl.u32 %v6218, 7
      %v6220 = vsub.s32 %v6217, %v6219
      %v6221 = vrot.slane %v6213, %v6220
      %v6223 = vunpack.c.l.s4 1934713408
      %v6224 = vunpack.c.0.s8 %v6223
      %v6225 = vlaneseq
      %v6226 = vshrl.u32 %v6225, 7
      %v6227 = vsub.s32 %v6224, %v6226
      %v6228 = vrot.slane %v6214, %v6227
      %v6229 = vcombine.low %v6164, %v6180
      %v6230 = vcombine.high %v6164, %v6180
      %v6232 = vunpack.c.l.s4 1934713408
      %v6233 = vunpack.c.0.s8 %v6232
      %v6234 = vlaneseq
      %v6235 = vshrl.u32 %v6234, 7
      %v6236 = vsub.s32 %v6233, %v6235
      %v6237 = vrot.slane %v6229, %v6236
      %v6239 = vunpack.c.l.s4 1934713408
      %v6240 = vunpack.c.0.s8 %v6239
      %v6241 = vlaneseq
      %v6242 = vshrl.u32 %v6241, 7
      %v6243 = vsub.s32 %v6240, %v6242
      %v6244 = vrot.slane %v6230, %v6243
      %v6245 = vcombine.low %v6189, %v6221
      %v6246 = vcombine.high %v6189, %v6221
      %v6247 = vcombine.low %v6196, %v6228
      %v6248 = vcombine.high %v6196, %v6228
      %v6249 = vcombine.low %v6205, %v6237
      %v6250 = vcombine.high %v6205, %v6237
      %v6251 = vcombine.low %v6212, %v6244
      %v6252 = vcombine.high %v6212, %v6244
      %v6255 = vpack.i.b16 %v5429, %v5293
      %v6257 = vshrl.u32 %v5293, 16
      %v6258 = vshrl.u32 %v5429, 16
      %v6259 = vpack.i.b16 %v6258, %v6257
      %v6263 = vpack.i.b16 %v5430, %v5294
      %v6265 = vshrl.u32 %v5294, 16
      %v6266 = vshrl.u32 %v5430, 16
      %v6267 = vpack.i.b16 %v6266, %v6265
      %v6271 = vpack.i.b16 %v5431, %v5295
      %v6273 = vshrl.u32 %v5295, 16
      %v6274 = vshrl.u32 %v5431, 16
      %v6275 = vpack.i.b16 %v6274, %v6273
      %v6279 = vpack.i.b16 %v5432, %v5296
      %v6281 = vshrl.u32 %v5296, 16
      %v6282 = vshrl.u32 %v5432, 16
      %v6283 = vpack.i.b16 %v6282, %v6281
      %v6287 = vpack.i.b16 %v5433, %v5297
      %v6289 = vshrl.u32 %v5297, 16
      %v6290 = vshrl.u32 %v5433, 16
      %v6291 = vpack.i.b16 %v6290, %v6289
      %v6295 = vpack.i.b16 %v5434, %v5298
      %v6297 = vshrl.u32 %v5298, 16
      %v6298 = vshrl.u32 %v5434, 16
      %v6299 = vpack.i.b16 %v6298, %v6297
      %v6303 = vpack.i.b16 %v5435, %v5299
      %v6305 = vshrl.u32 %v5299, 16
      %v6306 = vshrl.u32 %v5435, 16
      %v6307 = vpack.i.b16 %v6306, %v6305
      %v6311 = vpack.i.b16 %v5436, %v5300
      %v6313 = vshrl.u32 %v5300, 16
      %v6314 = vshrl.u32 %v5436, 16
      %v6315 = vpack.i.b16 %v6314, %v6313
      %v6319 = vpack.i.b16 %v5701, %v5565
      %v6321 = vshrl.u32 %v5565, 16
      %v6322 = vshrl.u32 %v5701, 16
      %v6323 = vpack.i.b16 %v6322, %v6321
      %v6327 = vpack.i.b16 %v5702, %v5566
      %v6329 = vshrl.u32 %v5566, 16
      %v6330 = vshrl.u32 %v5702, 16
      %v6331 = vpack.i.b16 %v6330, %v6329
      %v6335 = vpack.i.b16 %v5703, %v5567
      %v6337 = vshrl.u32 %v5567, 16
      %v6338 = vshrl.u32 %v5703, 16
      %v6339 = vpack.i.b16 %v6338, %v6337
      %v6343 = vpack.i.b16 %v5704, %v5568
      %v6345 = vshrl.u32 %v5568, 16
      %v6346 = vshrl.u32 %v5704, 16
      %v6347 = vpack.i.b16 %v6346, %v6345
      %v6351 = vpack.i.b16 %v5705, %v5569
      %v6353 = vshrl.u32 %v5569, 16
      %v6354 = vshrl.u32 %v5705, 16
      %v6355 = vpack.i.b16 %v6354, %v6353
      %v6359 = vpack.i.b16 %v5706, %v5570
      %v6361 = vshrl.u32 %v5570, 16
      %v6362 = vshrl.u32 %v5706, 16
      %v6363 = vpack.i.b16 %v6362, %v6361
      %v6367 = vpack.i.b16 %v5707, %v5571
      %v6369 = vshrl.u32 %v5571, 16
      %v6370 = vshrl.u32 %v5707, 16
      %v6371 = vpack.i.b16 %v6370, %v6369
      %v6375 = vpack.i.b16 %v5708, %v5572
      %v6377 = vshrl.u32 %v5572, 16
      %v6378 = vshrl.u32 %v5708, 16
      %v6379 = vpack.i.b16 %v6378, %v6377
      %v6383 = vpack.i.b16 %v5973, %v5837
      %v6385 = vshrl.u32 %v5837, 16
      %v6386 = vshrl.u32 %v5973, 16
      %v6387 = vpack.i.b16 %v6386, %v6385
      %v6391 = vpack.i.b16 %v5974, %v5838
      %v6393 = vshrl.u32 %v5838, 16
      %v6394 = vshrl.u32 %v5974, 16
      %v6395 = vpack.i.b16 %v6394, %v6393
      %v6399 = vpack.i.b16 %v5975, %v5839
      %v6401 = vshrl.u32 %v5839, 16
      %v6402 = vshrl.u32 %v5975, 16
      %v6403 = vpack.i.b16 %v6402, %v6401
      %v6407 = vpack.i.b16 %v5976, %v5840
      %v6409 = vshrl.u32 %v5840, 16
      %v6410 = vshrl.u32 %v5976, 16
      %v6411 = vpack.i.b16 %v6410, %v6409
      %v6415 = vpack.i.b16 %v5977, %v5841
      %v6417 = vshrl.u32 %v5841, 16
      %v6418 = vshrl.u32 %v5977, 16
      %v6419 = vpack.i.b16 %v6418, %v6417
      %v6423 = vpack.i.b16 %v5978, %v5842
      %v6425 = vshrl.u32 %v5842, 16
      %v6426 = vshrl.u32 %v5978, 16
      %v6427 = vpack.i.b16 %v6426, %v6425
      %v6431 = vpack.i.b16 %v5979, %v5843
      %v6433 = vshrl.u32 %v5843, 16
      %v6434 = vshrl.u32 %v5979, 16
      %v6435 = vpack.i.b16 %v6434, %v6433
      %v6439 = vpack.i.b16 %v5980, %v5844
      %v6441 = vshrl.u32 %v5844, 16
      %v6442 = vshrl.u32 %v5980, 16
      %v6443 = vpack.i.b16 %v6442, %v6441
      %v6447 = vpack.i.b16 %v6245, %v6109
      %v6449 = vshrl.u32 %v6109, 16
      %v6450 = vshrl.u32 %v6245, 16
      %v6451 = vpack.i.b16 %v6450, %v6449
      %v6455 = vpack.i.b16 %v6246, %v6110
      %v6457 = vshrl.u32 %v6110, 16
      %v6458 = vshrl.u32 %v6246, 16
      %v6459 = vpack.i.b16 %v6458, %v6457
      %v6463 = vpack.i.b16 %v6247, %v6111
      %v6465 = vshrl.u32 %v6111, 16
      %v6466 = vshrl.u32 %v6247, 16
      %v6467 = vpack.i.b16 %v6466, %v6465
      %v6471 = vpack.i.b16 %v6248, %v6112
      %v6473 = vshrl.u32 %v6112, 16
      %v6474 = vshrl.u32 %v6248, 16
      %v6475 = vpack.i.b16 %v6474, %v6473
      %v6479 = vpack.i.b16 %v6249, %v6113
      %v6481 = vshrl.u32 %v6113, 16
      %v6482 = vshrl.u32 %v6249, 16
      %v6483 = vpack.i.b16 %v6482, %v6481
      %v6487 = vpack.i.b16 %v6250, %v6114
      %v6489 = vshrl.u32 %v6114, 16
      %v6490 = vshrl.u32 %v6250, 16
      %v6491 = vpack.i.b16 %v6490, %v6489
      %v6495 = vpack.i.b16 %v6251, %v6115
      %v6497 = vshrl.u32 %v6115, 16
      %v6498 = vshrl.u32 %v6251, 16
      %v6499 = vpack.i.b16 %v6498, %v6497
      %v6503 = vpack.i.b16 %v6252, %v6116
      %v6505 = vshrl.u32 %v6116, 16
      %v6506 = vshrl.u32 %v6252, 16
      %v6507 = vpack.i.b16 %v6506, %v6505
      %6509 = vxpose.xlu0.c.b16.start [1/8] %v6255, 128
      %6510 = vxpose.xlu0.c.b16.cont [2/8] %v6319, 128
      %6511 = vxpose.xlu0.c.b16.cont [3/8] %v6383, 128
      %6512 = vxpose.xlu0.c.b16.cont [4/8] %v6447, 128
      %6513 = vxpose.xlu0.c.b16.cont [5/8] 0, 128
      %6514 = vxpose.xlu0.c.b16.cont [6/8] 0, 128
      %6515 = vxpose.xlu0.c.b16.cont [7/8] 0, 128
      %6516 = vxpose.xlu0.c.b16.end [8/8] 0, 128
      %v6517 = vpop.trf.xlu0
      %v6518 = vpop.trf.xlu0
      %v6519 = vpop.trf.xlu0
      %v6520 = vpop.trf.xlu0
      %v6521 = vpop.trf.xlu0
      %v6522 = vpop.trf.xlu0
      %v6523 = vpop.trf.xlu0
      %v6524 = vpop.trf.xlu0
      %6525 = vxpose.xlu0.c.b16.start [1/8] %v6259, 128
      %6526 = vxpose.xlu0.c.b16.cont [2/8] %v6323, 128
      %6527 = vxpose.xlu0.c.b16.cont [3/8] %v6387, 128
      %6528 = vxpose.xlu0.c.b16.cont [4/8] %v6451, 128
      %6529 = vxpose.xlu0.c.b16.cont [5/8] 0, 128
      %6530 = vxpose.xlu0.c.b16.cont [6/8] 0, 128
      %6531 = vxpose.xlu0.c.b16.cont [7/8] 0, 128
      %6532 = vxpose.xlu0.c.b16.end [8/8] 0, 128
      %v6533 = vpop.trf.xlu0
      %v6534 = vpop.trf.xlu0
      %v6535 = vpop.trf.xlu0
      %v6536 = vpop.trf.xlu0
      %v6537 = vpop.trf.xlu0
      %v6538 = vpop.trf.xlu0
      %v6539 = vpop.trf.xlu0
      %v6540 = vpop.trf.xlu0
      %6541 = vxpose.xlu0.c.b16.start [1/8] %v6263, 128
      %6542 = vxpose.xlu0.c.b16.cont [2/8] %v6327, 128
      %6543 = vxpose.xlu0.c.b16.cont [3/8] %v6391, 128
      %6544 = vxpose.xlu0.c.b16.cont [4/8] %v6455, 128
      %6545 = vxpose.xlu0.c.b16.cont [5/8] 0, 128
      %6546 = vxpose.xlu0.c.b16.cont [6/8] 0, 128
      %6547 = vxpose.xlu0.c.b16.cont [7/8] 0, 128
      %6548 = vxpose.xlu0.c.b16.end [8/8] 0, 128
      %v6549 = vpop.trf.xlu0
      %v6550 = vpop.trf.xlu0
      %v6551 = vpop.trf.xlu0
      %v6552 = vpop.trf.xlu0
      %v6553 = vpop.trf.xlu0
      %v6554 = vpop.trf.xlu0
      %v6555 = vpop.trf.xlu0
      %v6556 = vpop.trf.xlu0
      %6557 = vxpose.xlu0.c.b16.start [1/8] %v6267, 128
      %6558 = vxpose.xlu0.c.b16.cont [2/8] %v6331, 128
      %6559 = vxpose.xlu0.c.b16.cont [3/8] %v6395, 128
      %6560 = vxpose.xlu0.c.b16.cont [4/8] %v6459, 128
      %6561 = vxpose.xlu0.c.b16.cont [5/8] 0, 128
      %6562 = vxpose.xlu0.c.b16.cont [6/8] 0, 128
      %6563 = vxpose.xlu0.c.b16.cont [7/8] 0, 128
      %6564 = vxpose.xlu0.c.b16.end [8/8] 0, 128
      %v6565 = vpop.trf.xlu0
      %v6566 = vpop.trf.xlu0
      %v6567 = vpop.trf.xlu0
      %v6568 = vpop.trf.xlu0
      %v6569 = vpop.trf.xlu0
      %v6570 = vpop.trf.xlu0
      %v6571 = vpop.trf.xlu0
      %v6572 = vpop.trf.xlu0
      %6573 = vxpose.xlu0.c.b16.start [1/8] %v6271, 128
      %6574 = vxpose.xlu0.c.b16.cont [2/8] %v6335, 128
      %6575 = vxpose.xlu0.c.b16.cont [3/8] %v6399, 128
      %6576 = vxpose.xlu0.c.b16.cont [4/8] %v6463, 128
      %6577 = vxpose.xlu0.c.b16.cont [5/8] 0, 128
      %6578 = vxpose.xlu0.c.b16.cont [6/8] 0, 128
      %6579 = vxpose.xlu0.c.b16.cont [7/8] 0, 128
      %6580 = vxpose.xlu0.c.b16.end [8/8] 0, 128
      %v6581 = vpop.trf.xlu0
      %v6582 = vpop.trf.xlu0
      %v6583 = vpop.trf.xlu0
      %v6584 = vpop.trf.xlu0
      %v6585 = vpop.trf.xlu0
      %v6586 = vpop.trf.xlu0
      %v6587 = vpop.trf.xlu0
      %v6588 = vpop.trf.xlu0
      %6589 = vxpose.xlu0.c.b16.start [1/8] %v6275, 128
      %6590 = vxpose.xlu0.c.b16.cont [2/8] %v6339, 128
      %6591 = vxpose.xlu0.c.b16.cont [3/8] %v6403, 128
      %6592 = vxpose.xlu0.c.b16.cont [4/8] %v6467, 128
      %6593 = vxpose.xlu0.c.b16.cont [5/8] 0, 128
      %6594 = vxpose.xlu0.c.b16.cont [6/8] 0, 128
      %6595 = vxpose.xlu0.c.b16.cont [7/8] 0, 128
      %6596 = vxpose.xlu0.c.b16.end [8/8] 0, 128
      %v6597 = vpop.trf.xlu0
      %v6598 = vpop.trf.xlu0
      %v6599 = vpop.trf.xlu0
      %v6600 = vpop.trf.xlu0
      %v6601 = vpop.trf.xlu0
      %v6602 = vpop.trf.xlu0
      %v6603 = vpop.trf.xlu0
      %v6604 = vpop.trf.xlu0
      %6605 = vxpose.xlu0.c.b16.start [1/8] %v6279, 128
      %6606 = vxpose.xlu0.c.b16.cont [2/8] %v6343, 128
      %6607 = vxpose.xlu0.c.b16.cont [3/8] %v6407, 128
      %6608 = vxpose.xlu0.c.b16.cont [4/8] %v6471, 128
      %6609 = vxpose.xlu0.c.b16.cont [5/8] 0, 128
      %6610 = vxpose.xlu0.c.b16.cont [6/8] 0, 128
      %6611 = vxpose.xlu0.c.b16.cont [7/8] 0, 128
      %6612 = vxpose.xlu0.c.b16.end [8/8] 0, 128
      %v6613 = vpop.trf.xlu0
      %v6614 = vpop.trf.xlu0
      %v6615 = vpop.trf.xlu0
      %v6616 = vpop.trf.xlu0
      %v6617 = vpop.trf.xlu0
      %v6618 = vpop.trf.xlu0
      %v6619 = vpop.trf.xlu0
      %v6620 = vpop.trf.xlu0
      %6621 = vxpose.xlu0.c.b16.start [1/8] %v6283, 128
      %6622 = vxpose.xlu0.c.b16.cont [2/8] %v6347, 128
      %6623 = vxpose.xlu0.c.b16.cont [3/8] %v6411, 128
      %6624 = vxpose.xlu0.c.b16.cont [4/8] %v6475, 128
      %6625 = vxpose.xlu0.c.b16.cont [5/8] 0, 128
      %6626 = vxpose.xlu0.c.b16.cont [6/8] 0, 128
      %6627 = vxpose.xlu0.c.b16.cont [7/8] 0, 128
      %6628 = vxpose.xlu0.c.b16.end [8/8] 0, 128
      %v6629 = vpop.trf.xlu0
      %v6630 = vpop.trf.xlu0
      %v6631 = vpop.trf.xlu0
      %v6632 = vpop.trf.xlu0
      %v6633 = vpop.trf.xlu0
      %v6634 = vpop.trf.xlu0
      %v6635 = vpop.trf.xlu0
      %v6636 = vpop.trf.xlu0
      %6637 = vxpose.xlu0.c.b16.start [1/8] %v6287, 128
      %6638 = vxpose.xlu0.c.b16.cont [2/8] %v6351, 128
      %6639 = vxpose.xlu0.c.b16.cont [3/8] %v6415, 128
      %6640 = vxpose.xlu0.c.b16.cont [4/8] %v6479, 128
      %6641 = vxpose.xlu0.c.b16.cont [5/8] 0, 128
      %6642 = vxpose.xlu0.c.b16.cont [6/8] 0, 128
      %6643 = vxpose.xlu0.c.b16.cont [7/8] 0, 128
      %6644 = vxpose.xlu0.c.b16.end [8/8] 0, 128
      %v6645 = vpop.trf.xlu0
      %v6646 = vpop.trf.xlu0
      %v6647 = vpop.trf.xlu0
      %v6648 = vpop.trf.xlu0
      %v6649 = vpop.trf.xlu0
      %v6650 = vpop.trf.xlu0
      %v6651 = vpop.trf.xlu0
      %v6652 = vpop.trf.xlu0
      %6653 = vxpose.xlu0.c.b16.start [1/8] %v6291, 128
      %6654 = vxpose.xlu0.c.b16.cont [2/8] %v6355, 128
      %6655 = vxpose.xlu0.c.b16.cont [3/8] %v6419, 128
      %6656 = vxpose.xlu0.c.b16.cont [4/8] %v6483, 128
      %6657 = vxpose.xlu0.c.b16.cont [5/8] 0, 128
      %6658 = vxpose.xlu0.c.b16.cont [6/8] 0, 128
      %6659 = vxpose.xlu0.c.b16.cont [7/8] 0, 128
      %6660 = vxpose.xlu0.c.b16.end [8/8] 0, 128
      %v6661 = vpop.trf.xlu0
      %v6662 = vpop.trf.xlu0
      %v6663 = vpop.trf.xlu0
      %v6664 = vpop.trf.xlu0
      %v6665 = vpop.trf.xlu0
      %v6666 = vpop.trf.xlu0
      %v6667 = vpop.trf.xlu0
      %v6668 = vpop.trf.xlu0
      %6669 = vxpose.xlu0.c.b16.start [1/8] %v6295, 128
      %6670 = vxpose.xlu0.c.b16.cont [2/8] %v6359, 128
      %6671 = vxpose.xlu0.c.b16.cont [3/8] %v6423, 128
      %6672 = vxpose.xlu0.c.b16.cont [4/8] %v6487, 128
      %6673 = vxpose.xlu0.c.b16.cont [5/8] 0, 128
      %6674 = vxpose.xlu0.c.b16.cont [6/8] 0, 128
      %6675 = vxpose.xlu0.c.b16.cont [7/8] 0, 128
      %6676 = vxpose.xlu0.c.b16.end [8/8] 0, 128
      %v6677 = vpop.trf.xlu0
      %v6678 = vpop.trf.xlu0
      %v6679 = vpop.trf.xlu0
      %v6680 = vpop.trf.xlu0
      %v6681 = vpop.trf.xlu0
      %v6682 = vpop.trf.xlu0
      %v6683 = vpop.trf.xlu0
      %v6684 = vpop.trf.xlu0
      %6685 = vxpose.xlu0.c.b16.start [1/8] %v6299, 128
      %6686 = vxpose.xlu0.c.b16.cont [2/8] %v6363, 128
      %6687 = vxpose.xlu0.c.b16.cont [3/8] %v6427, 128
      %6688 = vxpose.xlu0.c.b16.cont [4/8] %v6491, 128
      %6689 = vxpose.xlu0.c.b16.cont [5/8] 0, 128
      %6690 = vxpose.xlu0.c.b16.cont [6/8] 0, 128
      %6691 = vxpose.xlu0.c.b16.cont [7/8] 0, 128
      %6692 = vxpose.xlu0.c.b16.end [8/8] 0, 128
      %v6693 = vpop.trf.xlu0
      %v6694 = vpop.trf.xlu0
      %v6695 = vpop.trf.xlu0
      %v6696 = vpop.trf.xlu0
      %v6697 = vpop.trf.xlu0
      %v6698 = vpop.trf.xlu0
      %v6699 = vpop.trf.xlu0
      %v6700 = vpop.trf.xlu0
      %6701 = vxpose.xlu0.c.b16.start [1/8] %v6303, 128
      %6702 = vxpose.xlu0.c.b16.cont [2/8] %v6367, 128
      %6703 = vxpose.xlu0.c.b16.cont [3/8] %v6431, 128
      %6704 = vxpose.xlu0.c.b16.cont [4/8] %v6495, 128
      %6705 = vxpose.xlu0.c.b16.cont [5/8] 0, 128
      %6706 = vxpose.xlu0.c.b16.cont [6/8] 0, 128
      %6707 = vxpose.xlu0.c.b16.cont [7/8] 0, 128
      %6708 = vxpose.xlu0.c.b16.end [8/8] 0, 128
      %v6709 = vpop.trf.xlu0
      %v6710 = vpop.trf.xlu0
      %v6711 = vpop.trf.xlu0
      %v6712 = vpop.trf.xlu0
      %v6713 = vpop.trf.xlu0
      %v6714 = vpop.trf.xlu0
      %v6715 = vpop.trf.xlu0
      %v6716 = vpop.trf.xlu0
      %6717 = vxpose.xlu0.c.b16.start [1/8] %v6307, 128
      %6718 = vxpose.xlu0.c.b16.cont [2/8] %v6371, 128
      %6719 = vxpose.xlu0.c.b16.cont [3/8] %v6435, 128
      %6720 = vxpose.xlu0.c.b16.cont [4/8] %v6499, 128
      %6721 = vxpose.xlu0.c.b16.cont [5/8] 0, 128
      %6722 = vxpose.xlu0.c.b16.cont [6/8] 0, 128
      %6723 = vxpose.xlu0.c.b16.cont [7/8] 0, 128
      %6724 = vxpose.xlu0.c.b16.end [8/8] 0, 128
      %v6725 = vpop.trf.xlu0
      %v6726 = vpop.trf.xlu0
      %v6727 = vpop.trf.xlu0
      %v6728 = vpop.trf.xlu0
      %v6729 = vpop.trf.xlu0
      %v6730 = vpop.trf.xlu0
      %v6731 = vpop.trf.xlu0
      %v6732 = vpop.trf.xlu0
      %6733 = vxpose.xlu0.c.b16.start [1/8] %v6311, 128
      %6734 = vxpose.xlu0.c.b16.cont [2/8] %v6375, 128
      %6735 = vxpose.xlu0.c.b16.cont [3/8] %v6439, 128
      %6736 = vxpose.xlu0.c.b16.cont [4/8] %v6503, 128
      %6737 = vxpose.xlu0.c.b16.cont [5/8] 0, 128
      %6738 = vxpose.xlu0.c.b16.cont [6/8] 0, 128
      %6739 = vxpose.xlu0.c.b16.cont [7/8] 0, 128
      %6740 = vxpose.xlu0.c.b16.end [8/8] 0, 128
      %v6741 = vpop.trf.xlu0
      %v6742 = vpop.trf.xlu0
      %v6743 = vpop.trf.xlu0
      %v6744 = vpop.trf.xlu0
      %v6745 = vpop.trf.xlu0
      %v6746 = vpop.trf.xlu0
      %v6747 = vpop.trf.xlu0
      %v6748 = vpop.trf.xlu0
      %6749 = vxpose.xlu0.c.b16.start [1/8] %v6315, 128
      %6750 = vxpose.xlu0.c.b16.cont [2/8] %v6379, 128
      %6751 = vxpose.xlu0.c.b16.cont [3/8] %v6443, 128
      %6752 = vxpose.xlu0.c.b16.cont [4/8] %v6507, 128
      %6753 = vxpose.xlu0.c.b16.cont [5/8] 0, 128
      %6754 = vxpose.xlu0.c.b16.cont [6/8] 0, 128
      %6755 = vxpose.xlu0.c.b16.cont [7/8] 0, 128
      %6756 = vxpose.xlu0.c.b16.end [8/8] 0, 128
      %v6757 = vpop.trf.xlu0
      %v6758 = vpop.trf.xlu0
      %v6759 = vpop.trf.xlu0
      %v6760 = vpop.trf.xlu0
      %v6761 = vpop.trf.xlu0
      %v6762 = vpop.trf.xlu0
      %v6763 = vpop.trf.xlu0
      %v6764 = vpop.trf.xlu0
      %v6765 = vcombine.low %v6517, %v6581
      %v6767 = vunpack.c.l.s4 1983009808
      %v6768 = vunpack.c.0.s8 %v6767
      %v6769 = vlaneseq
      %v6770 = vshrl.u32 %v6769, 7
      %v6771 = vsub.s32 %v6768, %v6770
      %v6772 = vrot.slane %v6765, %v6771
      %v6773 = vcombine.low %v6549, %v6613
      %v6775 = vunpack.c.l.s4 1983009808
      %v6776 = vunpack.c.0.s8 %v6775
      %v6777 = vlaneseq
      %v6778 = vshrl.u32 %v6777, 7
      %v6779 = vsub.s32 %v6776, %v6778
      %v6780 = vrot.slane %v6773, %v6779
      %v6781 = vcombine.low %v6645, %v6709
      %v6783 = vunpack.c.l.s4 1983009808
      %v6784 = vunpack.c.0.s8 %v6783
      %v6785 = vlaneseq
      %v6786 = vshrl.u32 %v6785, 7
      %v6787 = vsub.s32 %v6784, %v6786
      %v6788 = vrot.slane %v6781, %v6787
      %v6789 = vcombine.low %v6677, %v6741
      %v6791 = vunpack.c.l.s4 1983009808
      %v6792 = vunpack.c.0.s8 %v6791
      %v6793 = vlaneseq
      %v6794 = vshrl.u32 %v6793, 7
      %v6795 = vsub.s32 %v6792, %v6794
      %v6796 = vrot.slane %v6789, %v6795
      %v6797 = vcombine.low %v6772, %v6780
      %v6799 = vunpack.c.l.s4 1934713408
      %v6800 = vunpack.c.0.s8 %v6799
      %v6801 = vlaneseq
      %v6802 = vshrl.u32 %v6801, 7
      %v6803 = vsub.s32 %v6800, %v6802
      %v6804 = vrot.slane %v6797, %v6803
      %v6805 = vcombine.low %v6788, %v6796
      %v6807 = vunpack.c.l.s4 1934713408
      %v6808 = vunpack.c.0.s8 %v6807
      %v6809 = vlaneseq
      %v6810 = vshrl.u32 %v6809, 7
      %v6811 = vsub.s32 %v6808, %v6810
      %v6812 = vrot.slane %v6805, %v6811
      %v6813 = vcombine.low %v6804, %v6812
      %v6814 = vcombine.low %v6533, %v6597
      %v6816 = vunpack.c.l.s4 1983009808
      %v6817 = vunpack.c.0.s8 %v6816
      %v6818 = vlaneseq
      %v6819 = vshrl.u32 %v6818, 7
      %v6820 = vsub.s32 %v6817, %v6819
      %v6821 = vrot.slane %v6814, %v6820
      %v6822 = vcombine.low %v6565, %v6629
      %v6824 = vunpack.c.l.s4 1983009808
      %v6825 = vunpack.c.0.s8 %v6824
      %v6826 = vlaneseq
      %v6827 = vshrl.u32 %v6826, 7
      %v6828 = vsub.s32 %v6825, %v6827
      %v6829 = vrot.slane %v6822, %v6828
      %v6830 = vcombine.low %v6661, %v6725
      %v6832 = vunpack.c.l.s4 1983009808
      %v6833 = vunpack.c.0.s8 %v6832
      %v6834 = vlaneseq
      %v6835 = vshrl.u32 %v6834, 7
      %v6836 = vsub.s32 %v6833, %v6835
      %v6837 = vrot.slane %v6830, %v6836
      %v6838 = vcombine.low %v6693, %v6757
      %v6840 = vunpack.c.l.s4 1983009808
      %v6841 = vunpack.c.0.s8 %v6840
      %v6842 = vlaneseq
      %v6843 = vshrl.u32 %v6842, 7
      %v6844 = vsub.s32 %v6841, %v6843
      %v6845 = vrot.slane %v6838, %v6844
      %v6846 = vcombine.low %v6821, %v6829
      %v6848 = vunpack.c.l.s4 1934713408
      %v6849 = vunpack.c.0.s8 %v6848
      %v6850 = vlaneseq
      %v6851 = vshrl.u32 %v6850, 7
      %v6852 = vsub.s32 %v6849, %v6851
      %v6853 = vrot.slane %v6846, %v6852
      %v6854 = vcombine.low %v6837, %v6845
      %v6856 = vunpack.c.l.s4 1934713408
      %v6857 = vunpack.c.0.s8 %v6856
      %v6858 = vlaneseq
      %v6859 = vshrl.u32 %v6858, 7
      %v6860 = vsub.s32 %v6857, %v6859
      %v6861 = vrot.slane %v6854, %v6860
      %v6862 = vcombine.low %v6853, %v6861
      %v6865 = vpack.i.b16 %v6862, %v6813
      %v6867 = vshrl.u32 %v6813, 16
      %v6868 = vshrl.u32 %v6862, 16
      %v6869 = vpack.i.b16 %v6868, %v6867
      %vm6871 = vcmask 130048
      %v6873 = vsel %vm6871, %v4119, 0
      %v6876 = vsel %vm6871, %v4125, 0
      %v6879 = vsel %vm6871, %v4131, 0
      %v6882 = vsel %vm6871, %v4137, 0
      %6884 = vmatprep.subr.bf16.mxu0 0
      %6885 = vmatpush1.bf16.msra.mxu0 %v6865
      %6886 = vmatprep.subr.bf16.mxu0 0
      %6887 = vmatpush1.bf16.msra.mxu0 0
      %6888 = vmatprep.subr.bf16.mxu0 0
      %6889 = vmatpush1.bf16.msra.mxu0 0
      %6890 = vmatprep.subr.bf16.mxu0 0
      %6891 = vmatpush1.bf16.msra.mxu0 0
      %6892 = vmatprep.subr.bf16.mxu0 0
      %6893 = vmatpush1.bf16.msra.mxu0 0
      %6894 = vmatprep.subr.bf16.mxu0 0
      %6895 = vmatpush1.bf16.msra.mxu0 0
      %6896 = vmatprep.subr.bf16.mxu0 0
      %6897 = vmatpush1.bf16.msra.mxu0 0
      %6898 = vmatprep.subr.bf16.mxu0 0
      %6899 = vmatpush1.bf16.msra.mxu0 0
      %6900 = vmatprep.subr.bf16.mxu0 0
      %6901 = vmatpush1.bf16.msra.mxu0 0
      %6902 = vmatprep.subr.bf16.mxu0 0
      %6903 = vmatpush1.bf16.msra.mxu0 0
      %6904 = vmatprep.subr.bf16.mxu0 0
      %6905 = vmatpush1.bf16.msra.mxu0 0
      %6906 = vmatprep.subr.bf16.mxu0 0
      %6907 = vmatpush1.bf16.msra.mxu0 0
      %6908 = vmatprep.subr.bf16.mxu0 0
      %6909 = vmatpush1.bf16.msra.mxu0 0
      %6910 = vmatprep.subr.bf16.mxu0 0
      %6911 = vmatpush1.bf16.msra.mxu0 0
      %6912 = vmatprep.subr.bf16.mxu0 0
      %6913 = vmatpush1.bf16.msra.mxu0 0
      %6914 = vmatprep.subr.bf16.mxu0 0
      %6915 = vmatpush1.bf16.msra.mxu0 0
      %6916 = vmatprep.mubr.bf16.mxu0 0
      %6917 = vmatmul.mubr.bf16.gmra.mrb[0].mxu0 %v6873
      %v6918 = vpop.f32.mrb[0].mxu0
      %v6919 = vadd.f32 0.0, %v6918
      %v6920 = vpop.f32.mrb[0].mxu0
      %v6921 = vpop.f32.mrb[0].mxu0
      %v6922 = vadd.f32 0.0, %v6921
      %v6923 = vpop.f32.mrb[0].mxu0
      %6924 = vmatprep.mubr.bf16.mxu0 0
      %6925 = vmatmul.mubr.bf16.gmra.mrb[0].mxu0 %v6876
      %v6926 = vpop.f32.mrb[0].mxu0
      %v6927 = vadd.f32 0.0, %v6926
      %v6928 = vpop.f32.mrb[0].mxu0
      %v6929 = vpop.f32.mrb[0].mxu0
      %v6930 = vadd.f32 0.0, %v6929
      %v6931 = vpop.f32.mrb[0].mxu0
      %6932 = vmatprep.mubr.bf16.mxu0 0
      %6933 = vmatmul.mubr.bf16.gmra.mrb[0].mxu0 %v6879
      %v6934 = vpop.f32.mrb[0].mxu0
      %v6935 = vadd.f32 0.0, %v6934
      %v6936 = vpop.f32.mrb[0].mxu0
      %v6937 = vpop.f32.mrb[0].mxu0
      %v6938 = vadd.f32 0.0, %v6937
      %v6939 = vpop.f32.mrb[0].mxu0
      %6940 = vmatprep.mubr.bf16.mxu0 0
      %6941 = vmatmul.mubr.bf16.gmra.mrb[0].mxu0 %v6882
      %v6942 = vpop.f32.mrb[0].mxu0
      %v6943 = vadd.f32 0.0, %v6942
      %v6944 = vpop.f32.mrb[0].mxu0
      %v6945 = vpop.f32.mrb[0].mxu0
      %v6946 = vadd.f32 0.0, %v6945
      %v6947 = vpop.f32.mrb[0].mxu0
      %6948 = vdwg.mxu0
      %v6950 = vsel %vm6871, %v4122, 0
      %v6953 = vsel %vm6871, %v4128, 0
      %v6956 = vsel %vm6871, %v4134, 0
      %v6959 = vsel %vm6871, %v4140, 0
      %6961 = vmatprep.subr.bf16.mxu0 0
      %6962 = vmatpush1.bf16.msra.mxu0 %v6869
      %6963 = vmatprep.subr.bf16.mxu0 0
      %6964 = vmatpush1.bf16.msra.mxu0 0
      %6965 = vmatprep.subr.bf16.mxu0 0
      %6966 = vmatpush1.bf16.msra.mxu0 0
      %6967 = vmatprep.subr.bf16.mxu0 0
      %6968 = vmatpush1.bf16.msra.mxu0 0
      %6969 = vmatprep.subr.bf16.mxu0 0
      %6970 = vmatpush1.bf16.msra.mxu0 0
      %6971 = vmatprep.subr.bf16.mxu0 0
      %6972 = vmatpush1.bf16.msra.mxu0 0
      %6973 = vmatprep.subr.bf16.mxu0 0
      %6974 = vmatpush1.bf16.msra.mxu0 0
      %6975 = vmatprep.subr.bf16.mxu0 0
      %6976 = vmatpush1.bf16.msra.mxu0 0
      %6977 = vmatprep.subr.bf16.mxu0 0
      %6978 = vmatpush1.bf16.msra.mxu0 0
      %6979 = vmatprep.subr.bf16.mxu0 0
      %6980 = vmatpush1.bf16.msra.mxu0 0
      %6981 = vmatprep.subr.bf16.mxu0 0
      %6982 = vmatpush1.bf16.msra.mxu0 0
      %6983 = vmatprep.subr.bf16.mxu0 0
      %6984 = vmatpush1.bf16.msra.mxu0 0
      %6985 = vmatprep.subr.bf16.mxu0 0
      %6986 = vmatpush1.bf16.msra.mxu0 0
      %6987 = vmatprep.subr.bf16.mxu0 0
      %6988 = vmatpush1.bf16.msra.mxu0 0
      %6989 = vmatprep.subr.bf16.mxu0 0
      %6990 = vmatpush1.bf16.msra.mxu0 0
      %6991 = vmatprep.subr.bf16.mxu0 0
      %6992 = vmatpush1.bf16.msra.mxu0 0
      %6993 = vmatprep.mubr.bf16.mxu0 0
      %6994 = vmatmul.mubr.bf16.gmra.mrb[0].mxu0 %v6950
      %v6995 = vpop.f32.mrb[0].mxu0
      %v6996 = vadd.f32 0.0, %v6995
      %v6997 = vpop.f32.mrb[0].mxu0
      %v6998 = vpop.f32.mrb[0].mxu0
      %v6999 = vadd.f32 0.0, %v6998
      %v7000 = vpop.f32.mrb[0].mxu0
      %7001 = vmatprep.mubr.bf16.mxu0 0
      %7002 = vmatmul.mubr.bf16.gmra.mrb[0].mxu0 %v6953
      %v7003 = vpop.f32.mrb[0].mxu0
      %v7004 = vadd.f32 0.0, %v7003
      %v7005 = vpop.f32.mrb[0].mxu0
      %v7006 = vpop.f32.mrb[0].mxu0
      %v7007 = vadd.f32 0.0, %v7006
      %v7008 = vpop.f32.mrb[0].mxu0
      %7009 = vmatprep.mubr.bf16.mxu0 0
      %7010 = vmatmul.mubr.bf16.gmra.mrb[0].mxu0 %v6956
      %v7011 = vpop.f32.mrb[0].mxu0
      %v7012 = vadd.f32 0.0, %v7011
      %v7013 = vpop.f32.mrb[0].mxu0
      %v7014 = vpop.f32.mrb[0].mxu0
      %v7015 = vadd.f32 0.0, %v7014
      %v7016 = vpop.f32.mrb[0].mxu0
      %7017 = vmatprep.mubr.bf16.mxu0 0
      %7018 = vmatmul.mubr.bf16.gmra.mrb[0].mxu0 %v6959
      %v7019 = vpop.f32.mrb[0].mxu0
      %v7020 = vadd.f32 0.0, %v7019
      %v7021 = vpop.f32.mrb[0].mxu0
      %v7022 = vpop.f32.mrb[0].mxu0
      %v7023 = vadd.f32 0.0, %v7022
      %v7024 = vpop.f32.mrb[0].mxu0
      %7025 = vdwg.mxu0
      %v7026 = vsel %vm1474, %v6919, -inf
      %7027 = vmax.xlane.f32.xlu0 %v7026
      %v7028 = vpop.xlane.xlu0 %7027
      %v7029 = vsel %vm1474, %v6922, -inf
      %7030 = vmax.xlane.f32.xlu0 %v7029
      %v7031 = vpop.xlane.xlu0 %7030
      %v7032 = vsel %vm1474, %v6927, -inf
      %7033 = vmax.xlane.f32.xlu0 %v7032
      %v7034 = vpop.xlane.xlu0 %7033
      %v7035 = vsel %vm1474, %v6930, -inf
      %7036 = vmax.xlane.f32.xlu0 %v7035
      %v7037 = vpop.xlane.xlu0 %7036
      %v7038 = vsel %vm1474, %v6935, -inf
      %7039 = vmax.xlane.f32.xlu0 %v7038
      %v7040 = vpop.xlane.xlu0 %7039
      %v7041 = vsel %vm1474, %v6938, -inf
      %7042 = vmax.xlane.f32.xlu0 %v7041
      %v7043 = vpop.xlane.xlu0 %7042
      %v7044 = vsel %vm1474, %v6943, -inf
      %7045 = vmax.xlane.f32.xlu0 %v7044
      %v7046 = vpop.xlane.xlu0 %7045
      %v7047 = vsel %vm1474, %v6946, -inf
      %7048 = vmax.xlane.f32.xlu0 %v7047
      %v7049 = vpop.xlane.xlu0 %7048
      %v7050 = vsel %vm1474, %v6996, -inf
      %7051 = vmax.xlane.f32.xlu0 %v7050
      %v7052 = vpop.xlane.xlu0 %7051
      %v7053 = vsel %vm1474, %v6999, -inf
      %7054 = vmax.xlane.f32.xlu0 %v7053
      %v7055 = vpop.xlane.xlu0 %7054
      %v7056 = vsel %vm1474, %v7004, -inf
      %7057 = vmax.xlane.f32.xlu0 %v7056
      %v7058 = vpop.xlane.xlu0 %7057
      %v7059 = vsel %vm1474, %v7007, -inf
      %7060 = vmax.xlane.f32.xlu0 %v7059
      %v7061 = vpop.xlane.xlu0 %7060
      %v7062 = vsel %vm1474, %v7012, -inf
      %7063 = vmax.xlane.f32.xlu0 %v7062
      %v7064 = vpop.xlane.xlu0 %7063
      %v7065 = vsel %vm1474, %v7015, -inf
      %7066 = vmax.xlane.f32.xlu0 %v7065
      %v7067 = vpop.xlane.xlu0 %7066
      %v7068 = vsel %vm1474, %v7020, -inf
      %7069 = vmax.xlane.f32.xlu0 %v7068
      %v7070 = vpop.xlane.xlu0 %7069
      %v7071 = vsel %vm1474, %v7023, -inf
      %7072 = vmax.xlane.f32.xlu0 %v7071
      %v7073 = vpop.xlane.xlu0 %7072
      %v7074 = vsub.f32 %v6919, %v7028
      %v7075 = vsub.f32 %v6922, %v7031
      %v7076 = vsub.f32 %v6927, %v7034
      %v7077 = vsub.f32 %v6930, %v7037
      %v7078 = vsub.f32 %v6935, %v7040
      %v7079 = vsub.f32 %v6938, %v7043
      %v7080 = vsub.f32 %v6943, %v7046
      %v7081 = vsub.f32 %v6946, %v7049
      %v7082 = vsub.f32 %v6996, %v7052
      %v7083 = vsub.f32 %v6999, %v7055
      %v7084 = vsub.f32 %v7004, %v7058
      %v7085 = vsub.f32 %v7007, %v7061
      %v7086 = vsub.f32 %v7012, %v7064
      %v7087 = vsub.f32 %v7015, %v7067
      %v7088 = vsub.f32 %v7020, %v7070
      %v7089 = vsub.f32 %v7023, %v7073
      %v7090 = vmul.f32 %v7074, 1.442695
      %v7091 = vpow.pop %v7090
      %v7092 = vmul.f32 %v7075, 1.442695
      %v7093 = vpow.pop %v7092
      %v7094 = vmul.f32 %v7076, 1.442695
      %v7095 = vpow.pop %v7094
      %v7096 = vmul.f32 %v7077, 1.442695
      %v7097 = vpow.pop %v7096
      %v7098 = vmul.f32 %v7078, 1.442695
      %v7099 = vpow.pop %v7098
      %v7100 = vmul.f32 %v7079, 1.442695
      %v7101 = vpow.pop %v7100
      %v7102 = vmul.f32 %v7080, 1.442695
      %v7103 = vpow.pop %v7102
      %v7104 = vmul.f32 %v7081, 1.442695
      %v7105 = vpow.pop %v7104
      %v7106 = vmul.f32 %v7082, 1.442695
      %v7107 = vpow.pop %v7106
      %v7108 = vmul.f32 %v7083, 1.442695
      %v7109 = vpow.pop %v7108
      %v7110 = vmul.f32 %v7084, 1.442695
      %v7111 = vpow.pop %v7110
      %v7112 = vmul.f32 %v7085, 1.442695
      %v7113 = vpow.pop %v7112
      %v7114 = vmul.f32 %v7086, 1.442695
      %v7115 = vpow.pop %v7114
      %v7116 = vmul.f32 %v7087, 1.442695
      %v7117 = vpow.pop %v7116
      %v7118 = vmul.f32 %v7088, 1.442695
      %v7119 = vpow.pop %v7118
      %v7120 = vmul.f32 %v7089, 1.442695
      %v7121 = vpow.pop %v7120
      %v7122 = vsel %vm1474, %v7091, 0.0
      %7123 = vadd.xlane.f32.xlu0 %v7122
      %v7124 = vpop.xlane.xlu0 %7123
      %v7125 = vsel %vm1474, %v7093, 0.0
      %7126 = vadd.xlane.f32.xlu0 %v7125
      %v7127 = vpop.xlane.xlu0 %7126
      %v7128 = vsel %vm1474, %v7095, 0.0
      %7129 = vadd.xlane.f32.xlu0 %v7128
      %v7130 = vpop.xlane.xlu0 %7129
      %v7131 = vsel %vm1474, %v7097, 0.0
      %7132 = vadd.xlane.f32.xlu0 %v7131
      %v7133 = vpop.xlane.xlu0 %7132
      %v7134 = vsel %vm1474, %v7099, 0.0
      %7135 = vadd.xlane.f32.xlu0 %v7134
      %v7136 = vpop.xlane.xlu0 %7135
      %v7137 = vsel %vm1474, %v7101, 0.0
      %7138 = vadd.xlane.f32.xlu0 %v7137
      %v7139 = vpop.xlane.xlu0 %7138
      %v7140 = vsel %vm1474, %v7103, 0.0
      %7141 = vadd.xlane.f32.xlu0 %v7140
      %v7142 = vpop.xlane.xlu0 %7141
      %v7143 = vsel %vm1474, %v7105, 0.0
      %7144 = vadd.xlane.f32.xlu0 %v7143
      %v7145 = vpop.xlane.xlu0 %7144
      %v7146 = vsel %vm1474, %v7107, 0.0
      %7147 = vadd.xlane.f32.xlu0 %v7146
      %v7148 = vpop.xlane.xlu0 %7147
      %v7149 = vsel %vm1474, %v7109, 0.0
      %7150 = vadd.xlane.f32.xlu0 %v7149
      %v7151 = vpop.xlane.xlu0 %7150
      %v7152 = vsel %vm1474, %v7111, 0.0
      %7153 = vadd.xlane.f32.xlu0 %v7152
      %v7154 = vpop.xlane.xlu0 %7153
      %v7155 = vsel %vm1474, %v7113, 0.0
      %7156 = vadd.xlane.f32.xlu0 %v7155
      %v7157 = vpop.xlane.xlu0 %7156
      %v7158 = vsel %vm1474, %v7115, 0.0
      %7159 = vadd.xlane.f32.xlu0 %v7158
      %v7160 = vpop.xlane.xlu0 %7159
      %v7161 = vsel %vm1474, %v7117, 0.0
      %7162 = vadd.xlane.f32.xlu0 %v7161
      %v7163 = vpop.xlane.xlu0 %7162
      %v7164 = vsel %vm1474, %v7119, 0.0
      %7165 = vadd.xlane.f32.xlu0 %v7164
      %v7166 = vpop.xlane.xlu0 %7165
      %v7167 = vsel %vm1474, %v7121, 0.0
      %7168 = vadd.xlane.f32.xlu0 %v7167
      %v7169 = vpop.xlane.xlu0 %7168
      %v7170 = vrcp.pop %v7124
      %v7171 = vrcp.pop %v7127
      %v7172 = vrcp.pop %v7130
      %v7173 = vrcp.pop %v7133
      %v7174 = vrcp.pop %v7136
      %v7175 = vrcp.pop %v7139
      %v7176 = vrcp.pop %v7142
      %v7177 = vrcp.pop %v7145
      %v7178 = vrcp.pop %v7148
      %v7179 = vrcp.pop %v7151
      %v7180 = vrcp.pop %v7154
      %v7181 = vrcp.pop %v7157
      %v7182 = vrcp.pop %v7160
      %v7183 = vrcp.pop %v7163
      %v7184 = vrcp.pop %v7166
      %v7185 = vrcp.pop %v7169
      %v7186 = vmul.f32 %v7091, %v7170
      %v7187 = vmul.f32 %v7093, %v7171
      %v7188 = vmul.f32 %v7095, %v7172
      %v7189 = vmul.f32 %v7097, %v7173
      %v7190 = vmul.f32 %v7099, %v7174
      %v7191 = vmul.f32 %v7101, %v7175
      %v7192 = vmul.f32 %v7103, %v7176
      %v7193 = vmul.f32 %v7105, %v7177
      %v7194 = vmul.f32 %v7107, %v7178
      %v7195 = vmul.f32 %v7109, %v7179
      %v7196 = vmul.f32 %v7111, %v7180
      %v7197 = vmul.f32 %v7113, %v7181
      %v7198 = vmul.f32 %v7115, %v7182
      %v7199 = vmul.f32 %v7117, %v7183
      %v7200 = vmul.f32 %v7119, %v7184
      %v7201 = vmul.f32 %v7121, %v7185
      %v7202 = vpack.c.bf16 %v7187, %v7186
      %v7203 = vpack.c.bf16 %v7189, %v7188
      %v7204 = vpack.c.bf16 %v7191, %v7190
      %v7205 = vpack.c.bf16 %v7193, %v7192
      %v7206 = vpack.c.bf16 %v7195, %v7194
      %v7207 = vpack.c.bf16 %v7197, %v7196
      %v7208 = vpack.c.bf16 %v7199, %v7198
      %v7209 = vpack.c.bf16 %v7201, %v7200
      %7210 = vxpose.xlu0.c.b16.start [1/8] %v3661, 128
      %7211 = vxpose.xlu0.c.b16.cont [2/8] 0, 128
      %7212 = vxpose.xlu0.c.b16.cont [3/8] 0, 128
      %7213 = vxpose.xlu0.c.b16.cont [4/8] 0, 128
      %7214 = vxpose.xlu0.c.b16.cont [5/8] 0, 128
      %7215 = vxpose.xlu0.c.b16.cont [6/8] 0, 128
      %7216 = vxpose.xlu0.c.b16.cont [7/8] 0, 128
      %7217 = vxpose.xlu0.c.b16.end [8/8] 0, 128
      %v7218 = vpop.trf.xlu0
      %v7219 = vpop.trf.xlu0
      %v7220 = vpop.trf.xlu0
      %v7221 = vpop.trf.xlu0
      %v7222 = vpop.trf.xlu0
      %v7223 = vpop.trf.xlu0
      %v7224 = vpop.trf.xlu0
      %v7225 = vpop.trf.xlu0
      %7226 = vxpose.xlu0.c.b16.start [1/8] %v3662, 128
      %7227 = vxpose.xlu0.c.b16.cont [2/8] 0, 128
      %7228 = vxpose.xlu0.c.b16.cont [3/8] 0, 128
      %7229 = vxpose.xlu0.c.b16.cont [4/8] 0, 128
      %7230 = vxpose.xlu0.c.b16.cont [5/8] 0, 128
      %7231 = vxpose.xlu0.c.b16.cont [6/8] 0, 128
      %7232 = vxpose.xlu0.c.b16.cont [7/8] 0, 128
      %7233 = vxpose.xlu0.c.b16.end [8/8] 0, 128
      %v7234 = vpop.trf.xlu0
      %v7235 = vpop.trf.xlu0
      %v7236 = vpop.trf.xlu0
      %v7237 = vpop.trf.xlu0
      %v7238 = vpop.trf.xlu0
      %v7239 = vpop.trf.xlu0
      %v7240 = vpop.trf.xlu0
      %v7241 = vpop.trf.xlu0
      %7242 = vxpose.xlu0.c.b16.start [1/8] %v3663, 128
      %7243 = vxpose.xlu0.c.b16.cont [2/8] 0, 128
      %7244 = vxpose.xlu0.c.b16.cont [3/8] 0, 128
      %7245 = vxpose.xlu0.c.b16.cont [4/8] 0, 128
      %7246 = vxpose.xlu0.c.b16.cont [5/8] 0, 128
      %7247 = vxpose.xlu0.c.b16.cont [6/8] 0, 128
      %7248 = vxpose.xlu0.c.b16.cont [7/8] 0, 128
      %7249 = vxpose.xlu0.c.b16.end [8/8] 0, 128
      %v7250 = vpop.trf.xlu0
      %v7251 = vpop.trf.xlu0
      %v7252 = vpop.trf.xlu0
      %v7253 = vpop.trf.xlu0
      %v7254 = vpop.trf.xlu0
      %v7255 = vpop.trf.xlu0
      %v7256 = vpop.trf.xlu0
      %v7257 = vpop.trf.xlu0
      %7258 = vxpose.xlu0.c.b16.start [1/8] %v3664, 128
      %7259 = vxpose.xlu0.c.b16.cont [2/8] 0, 128
      %7260 = vxpose.xlu0.c.b16.cont [3/8] 0, 128
      %7261 = vxpose.xlu0.c.b16.cont [4/8] 0, 128
      %7262 = vxpose.xlu0.c.b16.cont [5/8] 0, 128
      %7263 = vxpose.xlu0.c.b16.cont [6/8] 0, 128
      %7264 = vxpose.xlu0.c.b16.cont [7/8] 0, 128
      %7265 = vxpose.xlu0.c.b16.end [8/8] 0, 128
      %v7266 = vpop.trf.xlu0
      %v7267 = vpop.trf.xlu0
      %v7268 = vpop.trf.xlu0
      %v7269 = vpop.trf.xlu0
      %v7270 = vpop.trf.xlu0
      %v7271 = vpop.trf.xlu0
      %v7272 = vpop.trf.xlu0
      %v7273 = vpop.trf.xlu0
      %7274 = vxpose.xlu0.c.b16.start [1/8] %v3665, 128
      %7275 = vxpose.xlu0.c.b16.cont [2/8] 0, 128
      %7276 = vxpose.xlu0.c.b16.cont [3/8] 0, 128
      %7277 = vxpose.xlu0.c.b16.cont [4/8] 0, 128
      %7278 = vxpose.xlu0.c.b16.cont [5/8] 0, 128
      %7279 = vxpose.xlu0.c.b16.cont [6/8] 0, 128
      %7280 = vxpose.xlu0.c.b16.cont [7/8] 0, 128
      %7281 = vxpose.xlu0.c.b16.end [8/8] 0, 128
      %v7282 = vpop.trf.xlu0
      %v7283 = vpop.trf.xlu0
      %v7284 = vpop.trf.xlu0
      %v7285 = vpop.trf.xlu0
      %v7286 = vpop.trf.xlu0
      %v7287 = vpop.trf.xlu0
      %v7288 = vpop.trf.xlu0
      %v7289 = vpop.trf.xlu0
      %7290 = vxpose.xlu0.c.b16.start [1/8] %v3666, 128
      %7291 = vxpose.xlu0.c.b16.cont [2/8] 0, 128
      %7292 = vxpose.xlu0.c.b16.cont [3/8] 0, 128
      %7293 = vxpose.xlu0.c.b16.cont [4/8] 0, 128
      %7294 = vxpose.xlu0.c.b16.cont [5/8] 0, 128
      %7295 = vxpose.xlu0.c.b16.cont [6/8] 0, 128
      %7296 = vxpose.xlu0.c.b16.cont [7/8] 0, 128
      %7297 = vxpose.xlu0.c.b16.end [8/8] 0, 128
      %v7298 = vpop.trf.xlu0
      %v7299 = vpop.trf.xlu0
      %v7300 = vpop.trf.xlu0
      %v7301 = vpop.trf.xlu0
      %v7302 = vpop.trf.xlu0
      %v7303 = vpop.trf.xlu0
      %v7304 = vpop.trf.xlu0
      %v7305 = vpop.trf.xlu0
      %7306 = vxpose.xlu0.c.b16.start [1/8] %v3667, 128
      %7307 = vxpose.xlu0.c.b16.cont [2/8] 0, 128
      %7308 = vxpose.xlu0.c.b16.cont [3/8] 0, 128
      %7309 = vxpose.xlu0.c.b16.cont [4/8] 0, 128
      %7310 = vxpose.xlu0.c.b16.cont [5/8] 0, 128
      %7311 = vxpose.xlu0.c.b16.cont [6/8] 0, 128
      %7312 = vxpose.xlu0.c.b16.cont [7/8] 0, 128
      %7313 = vxpose.xlu0.c.b16.end [8/8] 0, 128
      %v7314 = vpop.trf.xlu0
      %v7315 = vpop.trf.xlu0
      %v7316 = vpop.trf.xlu0
      %v7317 = vpop.trf.xlu0
      %v7318 = vpop.trf.xlu0
      %v7319 = vpop.trf.xlu0
      %v7320 = vpop.trf.xlu0
      %v7321 = vpop.trf.xlu0
      %7322 = vxpose.xlu0.c.b16.start [1/8] %v3668, 128
      %7323 = vxpose.xlu0.c.b16.cont [2/8] 0, 128
      %7324 = vxpose.xlu0.c.b16.cont [3/8] 0, 128
      %7325 = vxpose.xlu0.c.b16.cont [4/8] 0, 128
      %7326 = vxpose.xlu0.c.b16.cont [5/8] 0, 128
      %7327 = vxpose.xlu0.c.b16.cont [6/8] 0, 128
      %7328 = vxpose.xlu0.c.b16.cont [7/8] 0, 128
      %7329 = vxpose.xlu0.c.b16.end [8/8] 0, 128
      %v7330 = vpop.trf.xlu0
      %v7331 = vpop.trf.xlu0
      %v7332 = vpop.trf.xlu0
      %v7333 = vpop.trf.xlu0
      %v7334 = vpop.trf.xlu0
      %v7335 = vpop.trf.xlu0
      %v7336 = vpop.trf.xlu0
      %v7337 = vpop.trf.xlu0
      %7338 = vxpose.xlu0.c.b16.start [1/8] %v3669, 128
      %7339 = vxpose.xlu0.c.b16.cont [2/8] 0, 128
      %7340 = vxpose.xlu0.c.b16.cont [3/8] 0, 128
      %7341 = vxpose.xlu0.c.b16.cont [4/8] 0, 128
      %7342 = vxpose.xlu0.c.b16.cont [5/8] 0, 128
      %7343 = vxpose.xlu0.c.b16.cont [6/8] 0, 128
      %7344 = vxpose.xlu0.c.b16.cont [7/8] 0, 128
      %7345 = vxpose.xlu0.c.b16.end [8/8] 0, 128
      %v7346 = vpop.trf.xlu0
      %v7347 = vpop.trf.xlu0
      %v7348 = vpop.trf.xlu0
      %v7349 = vpop.trf.xlu0
      %v7350 = vpop.trf.xlu0
      %v7351 = vpop.trf.xlu0
      %v7352 = vpop.trf.xlu0
      %v7353 = vpop.trf.xlu0
      %7354 = vxpose.xlu0.c.b16.start [1/8] %v3670, 128
      %7355 = vxpose.xlu0.c.b16.cont [2/8] 0, 128
      %7356 = vxpose.xlu0.c.b16.cont [3/8] 0, 128
      %7357 = vxpose.xlu0.c.b16.cont [4/8] 0, 128
      %7358 = vxpose.xlu0.c.b16.cont [5/8] 0, 128
      %7359 = vxpose.xlu0.c.b16.cont [6/8] 0, 128
      %7360 = vxpose.xlu0.c.b16.cont [7/8] 0, 128
      %7361 = vxpose.xlu0.c.b16.end [8/8] 0, 128
      %v7362 = vpop.trf.xlu0
      %v7363 = vpop.trf.xlu0
      %v7364 = vpop.trf.xlu0
      %v7365 = vpop.trf.xlu0
      %v7366 = vpop.trf.xlu0
      %v7367 = vpop.trf.xlu0
      %v7368 = vpop.trf.xlu0
      %v7369 = vpop.trf.xlu0
      %7370 = vxpose.xlu0.c.b16.start [1/8] %v3671, 128
      %7371 = vxpose.xlu0.c.b16.cont [2/8] 0, 128
      %7372 = vxpose.xlu0.c.b16.cont [3/8] 0, 128
      %7373 = vxpose.xlu0.c.b16.cont [4/8] 0, 128
      %7374 = vxpose.xlu0.c.b16.cont [5/8] 0, 128
      %7375 = vxpose.xlu0.c.b16.cont [6/8] 0, 128
      %7376 = vxpose.xlu0.c.b16.cont [7/8] 0, 128
      %7377 = vxpose.xlu0.c.b16.end [8/8] 0, 128
      %v7378 = vpop.trf.xlu0
      %v7379 = vpop.trf.xlu0
      %v7380 = vpop.trf.xlu0
      %v7381 = vpop.trf.xlu0
      %v7382 = vpop.trf.xlu0
      %v7383 = vpop.trf.xlu0
      %v7384 = vpop.trf.xlu0
      %v7385 = vpop.trf.xlu0
      %7386 = vxpose.xlu0.c.b16.start [1/8] %v3672, 128
      %7387 = vxpose.xlu0.c.b16.cont [2/8] 0, 128
      %7388 = vxpose.xlu0.c.b16.cont [3/8] 0, 128
      %7389 = vxpose.xlu0.c.b16.cont [4/8] 0, 128
      %7390 = vxpose.xlu0.c.b16.cont [5/8] 0, 128
      %7391 = vxpose.xlu0.c.b16.cont [6/8] 0, 128
      %7392 = vxpose.xlu0.c.b16.cont [7/8] 0, 128
      %7393 = vxpose.xlu0.c.b16.end [8/8] 0, 128
      %v7394 = vpop.trf.xlu0
      %v7395 = vpop.trf.xlu0
      %v7396 = vpop.trf.xlu0
      %v7397 = vpop.trf.xlu0
      %v7398 = vpop.trf.xlu0
      %v7399 = vpop.trf.xlu0
      %v7400 = vpop.trf.xlu0
      %v7401 = vpop.trf.xlu0
      %7402 = vxpose.xlu0.c.b16.start [1/8] %v3673, 128
      %7403 = vxpose.xlu0.c.b16.cont [2/8] 0, 128
      %7404 = vxpose.xlu0.c.b16.cont [3/8] 0, 128
      %7405 = vxpose.xlu0.c.b16.cont [4/8] 0, 128
      %7406 = vxpose.xlu0.c.b16.cont [5/8] 0, 128
      %7407 = vxpose.xlu0.c.b16.cont [6/8] 0, 128
      %7408 = vxpose.xlu0.c.b16.cont [7/8] 0, 128
      %7409 = vxpose.xlu0.c.b16.end [8/8] 0, 128
      %v7410 = vpop.trf.xlu0
      %v7411 = vpop.trf.xlu0
      %v7412 = vpop.trf.xlu0
      %v7413 = vpop.trf.xlu0
      %v7414 = vpop.trf.xlu0
      %v7415 = vpop.trf.xlu0
      %v7416 = vpop.trf.xlu0
      %v7417 = vpop.trf.xlu0
      %7418 = vxpose.xlu0.c.b16.start [1/8] %v3674, 128
      %7419 = vxpose.xlu0.c.b16.cont [2/8] 0, 128
      %7420 = vxpose.xlu0.c.b16.cont [3/8] 0, 128
      %7421 = vxpose.xlu0.c.b16.cont [4/8] 0, 128
      %7422 = vxpose.xlu0.c.b16.cont [5/8] 0, 128
      %7423 = vxpose.xlu0.c.b16.cont [6/8] 0, 128
      %7424 = vxpose.xlu0.c.b16.cont [7/8] 0, 128
      %7425 = vxpose.xlu0.c.b16.end [8/8] 0, 128
      %v7426 = vpop.trf.xlu0
      %v7427 = vpop.trf.xlu0
      %v7428 = vpop.trf.xlu0
      %v7429 = vpop.trf.xlu0
      %v7430 = vpop.trf.xlu0
      %v7431 = vpop.trf.xlu0
      %v7432 = vpop.trf.xlu0
      %v7433 = vpop.trf.xlu0
      %7434 = vxpose.xlu0.c.b16.start [1/8] %v3675, 128
      %7435 = vxpose.xlu0.c.b16.cont [2/8] 0, 128
      %7436 = vxpose.xlu0.c.b16.cont [3/8] 0, 128
      %7437 = vxpose.xlu0.c.b16.cont [4/8] 0, 128
      %7438 = vxpose.xlu0.c.b16.cont [5/8] 0, 128
      %7439 = vxpose.xlu0.c.b16.cont [6/8] 0, 128
      %7440 = vxpose.xlu0.c.b16.cont [7/8] 0, 128
      %7441 = vxpose.xlu0.c.b16.end [8/8] 0, 128
      %v7442 = vpop.trf.xlu0
      %v7443 = vpop.trf.xlu0
      %v7444 = vpop.trf.xlu0
      %v7445 = vpop.trf.xlu0
      %v7446 = vpop.trf.xlu0
      %v7447 = vpop.trf.xlu0
      %v7448 = vpop.trf.xlu0
      %v7449 = vpop.trf.xlu0
      %7450 = vxpose.xlu0.c.b16.start [1/8] %v3676, 128
      %7451 = vxpose.xlu0.c.b16.cont [2/8] 0, 128
      %7452 = vxpose.xlu0.c.b16.cont [3/8] 0, 128
      %7453 = vxpose.xlu0.c.b16.cont [4/8] 0, 128
      %7454 = vxpose.xlu0.c.b16.cont [5/8] 0, 128
      %7455 = vxpose.xlu0.c.b16.cont [6/8] 0, 128
      %7456 = vxpose.xlu0.c.b16.cont [7/8] 0, 128
      %7457 = vxpose.xlu0.c.b16.end [8/8] 0, 128
      %v7458 = vpop.trf.xlu0
      %v7459 = vpop.trf.xlu0
      %v7460 = vpop.trf.xlu0
      %v7461 = vpop.trf.xlu0
      %v7462 = vpop.trf.xlu0
      %v7463 = vpop.trf.xlu0
      %v7464 = vpop.trf.xlu0
      %v7465 = vpop.trf.xlu0
      %7466 = vxpose.xlu0.c.b16.start [1/8] %v3677, 128
      %7467 = vxpose.xlu0.c.b16.cont [2/8] 0, 128
      %7468 = vxpose.xlu0.c.b16.cont [3/8] 0, 128
      %7469 = vxpose.xlu0.c.b16.cont [4/8] 0, 128
      %7470 = vxpose.xlu0.c.b16.cont [5/8] 0, 128
      %7471 = vxpose.xlu0.c.b16.cont [6/8] 0, 128
      %7472 = vxpose.xlu0.c.b16.cont [7/8] 0, 128
      %7473 = vxpose.xlu0.c.b16.end [8/8] 0, 128
      %v7474 = vpop.trf.xlu0
      %v7475 = vpop.trf.xlu0
      %v7476 = vpop.trf.xlu0
      %v7477 = vpop.trf.xlu0
      %v7478 = vpop.trf.xlu0
      %v7479 = vpop.trf.xlu0
      %v7480 = vpop.trf.xlu0
      %v7481 = vpop.trf.xlu0
      %7482 = vxpose.xlu0.c.b16.start [1/8] %v3678, 128
      %7483 = vxpose.xlu0.c.b16.cont [2/8] 0, 128
      %7484 = vxpose.xlu0.c.b16.cont [3/8] 0, 128
      %7485 = vxpose.xlu0.c.b16.cont [4/8] 0, 128
      %7486 = vxpose.xlu0.c.b16.cont [5/8] 0, 128
      %7487 = vxpose.xlu0.c.b16.cont [6/8] 0, 128
      %7488 = vxpose.xlu0.c.b16.cont [7/8] 0, 128
      %7489 = vxpose.xlu0.c.b16.end [8/8] 0, 128
      %v7490 = vpop.trf.xlu0
      %v7491 = vpop.trf.xlu0
      %v7492 = vpop.trf.xlu0
      %v7493 = vpop.trf.xlu0
      %v7494 = vpop.trf.xlu0
      %v7495 = vpop.trf.xlu0
      %v7496 = vpop.trf.xlu0
      %v7497 = vpop.trf.xlu0
      %7498 = vxpose.xlu0.c.b16.start [1/8] %v3679, 128
      %7499 = vxpose.xlu0.c.b16.cont [2/8] 0, 128
      %7500 = vxpose.xlu0.c.b16.cont [3/8] 0, 128
      %7501 = vxpose.xlu0.c.b16.cont [4/8] 0, 128
      %7502 = vxpose.xlu0.c.b16.cont [5/8] 0, 128
      %7503 = vxpose.xlu0.c.b16.cont [6/8] 0, 128
      %7504 = vxpose.xlu0.c.b16.cont [7/8] 0, 128
      %7505 = vxpose.xlu0.c.b16.end [8/8] 0, 128
      %v7506 = vpop.trf.xlu0
      %v7507 = vpop.trf.xlu0
      %v7508 = vpop.trf.xlu0
      %v7509 = vpop.trf.xlu0
      %v7510 = vpop.trf.xlu0
      %v7511 = vpop.trf.xlu0
      %v7512 = vpop.trf.xlu0
      %v7513 = vpop.trf.xlu0
      %7514 = vxpose.xlu0.c.b16.start [1/8] %v3680, 128
      %7515 = vxpose.xlu0.c.b16.cont [2/8] 0, 128
      %7516 = vxpose.xlu0.c.b16.cont [3/8] 0, 128
      %7517 = vxpose.xlu0.c.b16.cont [4/8] 0, 128
      %7518 = vxpose.xlu0.c.b16.cont [5/8] 0, 128
      %7519 = vxpose.xlu0.c.b16.cont [6/8] 0, 128
      %7520 = vxpose.xlu0.c.b16.cont [7/8] 0, 128
      %7521 = vxpose.xlu0.c.b16.end [8/8] 0, 128
      %v7522 = vpop.trf.xlu0
      %v7523 = vpop.trf.xlu0
      %v7524 = vpop.trf.xlu0
      %v7525 = vpop.trf.xlu0
      %v7526 = vpop.trf.xlu0
      %v7527 = vpop.trf.xlu0
      %v7528 = vpop.trf.xlu0
      %v7529 = vpop.trf.xlu0
      %7530 = vxpose.xlu0.c.b16.start [1/8] %v3681, 128
      %7531 = vxpose.xlu0.c.b16.cont [2/8] 0, 128
      %7532 = vxpose.xlu0.c.b16.cont [3/8] 0, 128
      %7533 = vxpose.xlu0.c.b16.cont [4/8] 0, 128
      %7534 = vxpose.xlu0.c.b16.cont [5/8] 0, 128
      %7535 = vxpose.xlu0.c.b16.cont [6/8] 0, 128
      %7536 = vxpose.xlu0.c.b16.cont [7/8] 0, 128
      %7537 = vxpose.xlu0.c.b16.end [8/8] 0, 128
      %v7538 = vpop.trf.xlu0
      %v7539 = vpop.trf.xlu0
      %v7540 = vpop.trf.xlu0
      %v7541 = vpop.trf.xlu0
      %v7542 = vpop.trf.xlu0
      %v7543 = vpop.trf.xlu0
      %v7544 = vpop.trf.xlu0
      %v7545 = vpop.trf.xlu0
      %7546 = vxpose.xlu0.c.b16.start [1/8] %v3682, 128
      %7547 = vxpose.xlu0.c.b16.cont [2/8] 0, 128
      %7548 = vxpose.xlu0.c.b16.cont [3/8] 0, 128
      %7549 = vxpose.xlu0.c.b16.cont [4/8] 0, 128
      %7550 = vxpose.xlu0.c.b16.cont [5/8] 0, 128
      %7551 = vxpose.xlu0.c.b16.cont [6/8] 0, 128
      %7552 = vxpose.xlu0.c.b16.cont [7/8] 0, 128
      %7553 = vxpose.xlu0.c.b16.end [8/8] 0, 128
      %v7554 = vpop.trf.xlu0
      %v7555 = vpop.trf.xlu0
      %v7556 = vpop.trf.xlu0
      %v7557 = vpop.trf.xlu0
      %v7558 = vpop.trf.xlu0
      %v7559 = vpop.trf.xlu0
      %v7560 = vpop.trf.xlu0
      %v7561 = vpop.trf.xlu0
      %7562 = vxpose.xlu0.c.b16.start [1/8] %v3683, 128
      %7563 = vxpose.xlu0.c.b16.cont [2/8] 0, 128
      %7564 = vxpose.xlu0.c.b16.cont [3/8] 0, 128
      %7565 = vxpose.xlu0.c.b16.cont [4/8] 0, 128
      %7566 = vxpose.xlu0.c.b16.cont [5/8] 0, 128
      %7567 = vxpose.xlu0.c.b16.cont [6/8] 0, 128
      %7568 = vxpose.xlu0.c.b16.cont [7/8] 0, 128
      %7569 = vxpose.xlu0.c.b16.end [8/8] 0, 128
      %v7570 = vpop.trf.xlu0
      %v7571 = vpop.trf.xlu0
      %v7572 = vpop.trf.xlu0
      %v7573 = vpop.trf.xlu0
      %v7574 = vpop.trf.xlu0
      %v7575 = vpop.trf.xlu0
      %v7576 = vpop.trf.xlu0
      %v7577 = vpop.trf.xlu0
      %7578 = vxpose.xlu0.c.b16.start [1/8] %v3684, 128
      %7579 = vxpose.xlu0.c.b16.cont [2/8] 0, 128
      %7580 = vxpose.xlu0.c.b16.cont [3/8] 0, 128
      %7581 = vxpose.xlu0.c.b16.cont [4/8] 0, 128
      %7582 = vxpose.xlu0.c.b16.cont [5/8] 0, 128
      %7583 = vxpose.xlu0.c.b16.cont [6/8] 0, 128
      %7584 = vxpose.xlu0.c.b16.cont [7/8] 0, 128
      %7585 = vxpose.xlu0.c.b16.end [8/8] 0, 128
      %v7586 = vpop.trf.xlu0
      %v7587 = vpop.trf.xlu0
      %v7588 = vpop.trf.xlu0
      %v7589 = vpop.trf.xlu0
      %v7590 = vpop.trf.xlu0
      %v7591 = vpop.trf.xlu0
      %v7592 = vpop.trf.xlu0
      %v7593 = vpop.trf.xlu0
      %7594 = vxpose.xlu0.c.b16.start [1/8] %v3685, 128
      %7595 = vxpose.xlu0.c.b16.cont [2/8] 0, 128
      %7596 = vxpose.xlu0.c.b16.cont [3/8] 0, 128
      %7597 = vxpose.xlu0.c.b16.cont [4/8] 0, 128
      %7598 = vxpose.xlu0.c.b16.cont [5/8] 0, 128
      %7599 = vxpose.xlu0.c.b16.cont [6/8] 0, 128
      %7600 = vxpose.xlu0.c.b16.cont [7/8] 0, 128
      %7601 = vxpose.xlu0.c.b16.end [8/8] 0, 128
      %v7602 = vpop.trf.xlu0
      %v7603 = vpop.trf.xlu0
      %v7604 = vpop.trf.xlu0
      %v7605 = vpop.trf.xlu0
      %v7606 = vpop.trf.xlu0
      %v7607 = vpop.trf.xlu0
      %v7608 = vpop.trf.xlu0
      %v7609 = vpop.trf.xlu0
      %7610 = vxpose.xlu0.c.b16.start [1/8] %v3686, 128
      %7611 = vxpose.xlu0.c.b16.cont [2/8] 0, 128
      %7612 = vxpose.xlu0.c.b16.cont [3/8] 0, 128
      %7613 = vxpose.xlu0.c.b16.cont [4/8] 0, 128
      %7614 = vxpose.xlu0.c.b16.cont [5/8] 0, 128
      %7615 = vxpose.xlu0.c.b16.cont [6/8] 0, 128
      %7616 = vxpose.xlu0.c.b16.cont [7/8] 0, 128
      %7617 = vxpose.xlu0.c.b16.end [8/8] 0, 128
      %v7618 = vpop.trf.xlu0
      %v7619 = vpop.trf.xlu0
      %v7620 = vpop.trf.xlu0
      %v7621 = vpop.trf.xlu0
      %v7622 = vpop.trf.xlu0
      %v7623 = vpop.trf.xlu0
      %v7624 = vpop.trf.xlu0
      %v7625 = vpop.trf.xlu0
      %7626 = vxpose.xlu0.c.b16.start [1/8] %v3687, 128
      %7627 = vxpose.xlu0.c.b16.cont [2/8] 0, 128
      %7628 = vxpose.xlu0.c.b16.cont [3/8] 0, 128
      %7629 = vxpose.xlu0.c.b16.cont [4/8] 0, 128
      %7630 = vxpose.xlu0.c.b16.cont [5/8] 0, 128
      %7631 = vxpose.xlu0.c.b16.cont [6/8] 0, 128
      %7632 = vxpose.xlu0.c.b16.cont [7/8] 0, 128
      %7633 = vxpose.xlu0.c.b16.end [8/8] 0, 128
      %v7634 = vpop.trf.xlu0
      %v7635 = vpop.trf.xlu0
      %v7636 = vpop.trf.xlu0
      %v7637 = vpop.trf.xlu0
      %v7638 = vpop.trf.xlu0
      %v7639 = vpop.trf.xlu0
      %v7640 = vpop.trf.xlu0
      %v7641 = vpop.trf.xlu0
      %7642 = vxpose.xlu0.c.b16.start [1/8] %v3688, 128
      %7643 = vxpose.xlu0.c.b16.cont [2/8] 0, 128
      %7644 = vxpose.xlu0.c.b16.cont [3/8] 0, 128
      %7645 = vxpose.xlu0.c.b16.cont [4/8] 0, 128
      %7646 = vxpose.xlu0.c.b16.cont [5/8] 0, 128
      %7647 = vxpose.xlu0.c.b16.cont [6/8] 0, 128
      %7648 = vxpose.xlu0.c.b16.cont [7/8] 0, 128
      %7649 = vxpose.xlu0.c.b16.end [8/8] 0, 128
      %v7650 = vpop.trf.xlu0
      %v7651 = vpop.trf.xlu0
      %v7652 = vpop.trf.xlu0
      %v7653 = vpop.trf.xlu0
      %v7654 = vpop.trf.xlu0
      %v7655 = vpop.trf.xlu0
      %v7656 = vpop.trf.xlu0
      %v7657 = vpop.trf.xlu0
      %7658 = vxpose.xlu0.c.b16.start [1/8] %v3689, 128
      %7659 = vxpose.xlu0.c.b16.cont [2/8] 0, 128
      %7660 = vxpose.xlu0.c.b16.cont [3/8] 0, 128
      %7661 = vxpose.xlu0.c.b16.cont [4/8] 0, 128
      %7662 = vxpose.xlu0.c.b16.cont [5/8] 0, 128
      %7663 = vxpose.xlu0.c.b16.cont [6/8] 0, 128
      %7664 = vxpose.xlu0.c.b16.cont [7/8] 0, 128
      %7665 = vxpose.xlu0.c.b16.end [8/8] 0, 128
      %v7666 = vpop.trf.xlu0
      %v7667 = vpop.trf.xlu0
      %v7668 = vpop.trf.xlu0
      %v7669 = vpop.trf.xlu0
      %v7670 = vpop.trf.xlu0
      %v7671 = vpop.trf.xlu0
      %v7672 = vpop.trf.xlu0
      %v7673 = vpop.trf.xlu0
      %7674 = vxpose.xlu0.c.b16.start [1/8] %v3690, 128
      %7675 = vxpose.xlu0.c.b16.cont [2/8] 0, 128
      %7676 = vxpose.xlu0.c.b16.cont [3/8] 0, 128
      %7677 = vxpose.xlu0.c.b16.cont [4/8] 0, 128
      %7678 = vxpose.xlu0.c.b16.cont [5/8] 0, 128
      %7679 = vxpose.xlu0.c.b16.cont [6/8] 0, 128
      %7680 = vxpose.xlu0.c.b16.cont [7/8] 0, 128
      %7681 = vxpose.xlu0.c.b16.end [8/8] 0, 128
      %v7682 = vpop.trf.xlu0
      %v7683 = vpop.trf.xlu0
      %v7684 = vpop.trf.xlu0
      %v7685 = vpop.trf.xlu0
      %v7686 = vpop.trf.xlu0
      %v7687 = vpop.trf.xlu0
      %v7688 = vpop.trf.xlu0
      %v7689 = vpop.trf.xlu0
      %7690 = vxpose.xlu0.c.b16.start [1/8] %v3691, 128
      %7691 = vxpose.xlu0.c.b16.cont [2/8] 0, 128
      %7692 = vxpose.xlu0.c.b16.cont [3/8] 0, 128
      %7693 = vxpose.xlu0.c.b16.cont [4/8] 0, 128
      %7694 = vxpose.xlu0.c.b16.cont [5/8] 0, 128
      %7695 = vxpose.xlu0.c.b16.cont [6/8] 0, 128
      %7696 = vxpose.xlu0.c.b16.cont [7/8] 0, 128
      %7697 = vxpose.xlu0.c.b16.end [8/8] 0, 128
      %v7698 = vpop.trf.xlu0
      %v7699 = vpop.trf.xlu0
      %v7700 = vpop.trf.xlu0
      %v7701 = vpop.trf.xlu0
      %v7702 = vpop.trf.xlu0
      %v7703 = vpop.trf.xlu0
      %v7704 = vpop.trf.xlu0
      %v7705 = vpop.trf.xlu0
      %7706 = vxpose.xlu0.c.b16.start [1/8] %v3692, 128
      %7707 = vxpose.xlu0.c.b16.cont [2/8] 0, 128
      %7708 = vxpose.xlu0.c.b16.cont [3/8] 0, 128
      %7709 = vxpose.xlu0.c.b16.cont [4/8] 0, 128
      %7710 = vxpose.xlu0.c.b16.cont [5/8] 0, 128
      %7711 = vxpose.xlu0.c.b16.cont [6/8] 0, 128
      %7712 = vxpose.xlu0.c.b16.cont [7/8] 0, 128
      %7713 = vxpose.xlu0.c.b16.end [8/8] 0, 128
      %v7714 = vpop.trf.xlu0
      %v7715 = vpop.trf.xlu0
      %v7716 = vpop.trf.xlu0
      %v7717 = vpop.trf.xlu0
      %v7718 = vpop.trf.xlu0
      %v7719 = vpop.trf.xlu0
      %v7720 = vpop.trf.xlu0
      %v7721 = vpop.trf.xlu0
      %7722 = vxpose.xlu0.c.b16.start [1/8] %v3693, 128
      %7723 = vxpose.xlu0.c.b16.cont [2/8] 0, 128
      %7724 = vxpose.xlu0.c.b16.cont [3/8] 0, 128
      %7725 = vxpose.xlu0.c.b16.cont [4/8] 0, 128
      %7726 = vxpose.xlu0.c.b16.cont [5/8] 0, 128
      %7727 = vxpose.xlu0.c.b16.cont [6/8] 0, 128
      %7728 = vxpose.xlu0.c.b16.cont [7/8] 0, 128
      %7729 = vxpose.xlu0.c.b16.end [8/8] 0, 128
      %v7730 = vpop.trf.xlu0
      %v7731 = vpop.trf.xlu0
      %v7732 = vpop.trf.xlu0
      %v7733 = vpop.trf.xlu0
      %v7734 = vpop.trf.xlu0
      %v7735 = vpop.trf.xlu0
      %v7736 = vpop.trf.xlu0
      %v7737 = vpop.trf.xlu0
      %7738 = vxpose.xlu0.c.b16.start [1/8] %v3694, 128
      %7739 = vxpose.xlu0.c.b16.cont [2/8] 0, 128
      %7740 = vxpose.xlu0.c.b16.cont [3/8] 0, 128
      %7741 = vxpose.xlu0.c.b16.cont [4/8] 0, 128
      %7742 = vxpose.xlu0.c.b16.cont [5/8] 0, 128
      %7743 = vxpose.xlu0.c.b16.cont [6/8] 0, 128
      %7744 = vxpose.xlu0.c.b16.cont [7/8] 0, 128
      %7745 = vxpose.xlu0.c.b16.end [8/8] 0, 128
      %v7746 = vpop.trf.xlu0
      %v7747 = vpop.trf.xlu0
      %v7748 = vpop.trf.xlu0
      %v7749 = vpop.trf.xlu0
      %v7750 = vpop.trf.xlu0
      %v7751 = vpop.trf.xlu0
      %v7752 = vpop.trf.xlu0
      %v7753 = vpop.trf.xlu0
      %7754 = vxpose.xlu0.c.b16.start [1/8] %v3695, 128
      %7755 = vxpose.xlu0.c.b16.cont [2/8] 0, 128
      %7756 = vxpose.xlu0.c.b16.cont [3/8] 0, 128
      %7757 = vxpose.xlu0.c.b16.cont [4/8] 0, 128
      %7758 = vxpose.xlu0.c.b16.cont [5/8] 0, 128
      %7759 = vxpose.xlu0.c.b16.cont [6/8] 0, 128
      %7760 = vxpose.xlu0.c.b16.cont [7/8] 0, 128
      %7761 = vxpose.xlu0.c.b16.end [8/8] 0, 128
      %v7762 = vpop.trf.xlu0
      %v7763 = vpop.trf.xlu0
      %v7764 = vpop.trf.xlu0
      %v7765 = vpop.trf.xlu0
      %v7766 = vpop.trf.xlu0
      %v7767 = vpop.trf.xlu0
      %v7768 = vpop.trf.xlu0
      %v7769 = vpop.trf.xlu0
      %7770 = vxpose.xlu0.c.b16.start [1/8] %v3696, 128
      %7771 = vxpose.xlu0.c.b16.cont [2/8] 0, 128
      %7772 = vxpose.xlu0.c.b16.cont [3/8] 0, 128
      %7773 = vxpose.xlu0.c.b16.cont [4/8] 0, 128
      %7774 = vxpose.xlu0.c.b16.cont [5/8] 0, 128
      %7775 = vxpose.xlu0.c.b16.cont [6/8] 0, 128
      %7776 = vxpose.xlu0.c.b16.cont [7/8] 0, 128
      %7777 = vxpose.xlu0.c.b16.end [8/8] 0, 128
      %v7778 = vpop.trf.xlu0
      %v7779 = vpop.trf.xlu0
      %v7780 = vpop.trf.xlu0
      %v7781 = vpop.trf.xlu0
      %v7782 = vpop.trf.xlu0
      %v7783 = vpop.trf.xlu0
      %v7784 = vpop.trf.xlu0
      %v7785 = vpop.trf.xlu0
      %7786 = vxpose.xlu0.c.b16.start [1/8] %v3697, 128
      %7787 = vxpose.xlu0.c.b16.cont [2/8] 0, 128
      %7788 = vxpose.xlu0.c.b16.cont [3/8] 0, 128
      %7789 = vxpose.xlu0.c.b16.cont [4/8] 0, 128
      %7790 = vxpose.xlu0.c.b16.cont [5/8] 0, 128
      %7791 = vxpose.xlu0.c.b16.cont [6/8] 0, 128
      %7792 = vxpose.xlu0.c.b16.cont [7/8] 0, 128
      %7793 = vxpose.xlu0.c.b16.end [8/8] 0, 128
      %v7794 = vpop.trf.xlu0
      %v7795 = vpop.trf.xlu0
      %v7796 = vpop.trf.xlu0
      %v7797 = vpop.trf.xlu0
      %v7798 = vpop.trf.xlu0
      %v7799 = vpop.trf.xlu0
      %v7800 = vpop.trf.xlu0
      %v7801 = vpop.trf.xlu0
      %7802 = vxpose.xlu0.c.b16.start [1/8] %v3698, 128
      %7803 = vxpose.xlu0.c.b16.cont [2/8] 0, 128
      %7804 = vxpose.xlu0.c.b16.cont [3/8] 0, 128
      %7805 = vxpose.xlu0.c.b16.cont [4/8] 0, 128
      %7806 = vxpose.xlu0.c.b16.cont [5/8] 0, 128
      %7807 = vxpose.xlu0.c.b16.cont [6/8] 0, 128
      %7808 = vxpose.xlu0.c.b16.cont [7/8] 0, 128
      %7809 = vxpose.xlu0.c.b16.end [8/8] 0, 128
      %v7810 = vpop.trf.xlu0
      %v7811 = vpop.trf.xlu0
      %v7812 = vpop.trf.xlu0
      %v7813 = vpop.trf.xlu0
      %v7814 = vpop.trf.xlu0
      %v7815 = vpop.trf.xlu0
      %v7816 = vpop.trf.xlu0
      %v7817 = vpop.trf.xlu0
      %7818 = vxpose.xlu0.c.b16.start [1/8] %v3699, 128
      %7819 = vxpose.xlu0.c.b16.cont [2/8] 0, 128
      %7820 = vxpose.xlu0.c.b16.cont [3/8] 0, 128
      %7821 = vxpose.xlu0.c.b16.cont [4/8] 0, 128
      %7822 = vxpose.xlu0.c.b16.cont [5/8] 0, 128
      %7823 = vxpose.xlu0.c.b16.cont [6/8] 0, 128
      %7824 = vxpose.xlu0.c.b16.cont [7/8] 0, 128
      %7825 = vxpose.xlu0.c.b16.end [8/8] 0, 128
      %v7826 = vpop.trf.xlu0
      %v7827 = vpop.trf.xlu0
      %v7828 = vpop.trf.xlu0
      %v7829 = vpop.trf.xlu0
      %v7830 = vpop.trf.xlu0
      %v7831 = vpop.trf.xlu0
      %v7832 = vpop.trf.xlu0
      %v7833 = vpop.trf.xlu0
      %7834 = vxpose.xlu0.c.b16.start [1/8] %v3700, 128
      %7835 = vxpose.xlu0.c.b16.cont [2/8] 0, 128
      %7836 = vxpose.xlu0.c.b16.cont [3/8] 0, 128
      %7837 = vxpose.xlu0.c.b16.cont [4/8] 0, 128
      %7838 = vxpose.xlu0.c.b16.cont [5/8] 0, 128
      %7839 = vxpose.xlu0.c.b16.cont [6/8] 0, 128
      %7840 = vxpose.xlu0.c.b16.cont [7/8] 0, 128
      %7841 = vxpose.xlu0.c.b16.end [8/8] 0, 128
      %v7842 = vpop.trf.xlu0
      %v7843 = vpop.trf.xlu0
      %v7844 = vpop.trf.xlu0
      %v7845 = vpop.trf.xlu0
      %v7846 = vpop.trf.xlu0
      %v7847 = vpop.trf.xlu0
      %v7848 = vpop.trf.xlu0
      %v7849 = vpop.trf.xlu0
      %7850 = vxpose.xlu0.c.b16.start [1/8] %v3701, 128
      %7851 = vxpose.xlu0.c.b16.cont [2/8] 0, 128
      %7852 = vxpose.xlu0.c.b16.cont [3/8] 0, 128
      %7853 = vxpose.xlu0.c.b16.cont [4/8] 0, 128
      %7854 = vxpose.xlu0.c.b16.cont [5/8] 0, 128
      %7855 = vxpose.xlu0.c.b16.cont [6/8] 0, 128
      %7856 = vxpose.xlu0.c.b16.cont [7/8] 0, 128
      %7857 = vxpose.xlu0.c.b16.end [8/8] 0, 128
      %v7858 = vpop.trf.xlu0
      %v7859 = vpop.trf.xlu0
      %v7860 = vpop.trf.xlu0
      %v7861 = vpop.trf.xlu0
      %v7862 = vpop.trf.xlu0
      %v7863 = vpop.trf.xlu0
      %v7864 = vpop.trf.xlu0
      %v7865 = vpop.trf.xlu0
      %7866 = vxpose.xlu0.c.b16.start [1/8] %v3702, 128
      %7867 = vxpose.xlu0.c.b16.cont [2/8] 0, 128
      %7868 = vxpose.xlu0.c.b16.cont [3/8] 0, 128
      %7869 = vxpose.xlu0.c.b16.cont [4/8] 0, 128
      %7870 = vxpose.xlu0.c.b16.cont [5/8] 0, 128
      %7871 = vxpose.xlu0.c.b16.cont [6/8] 0, 128
      %7872 = vxpose.xlu0.c.b16.cont [7/8] 0, 128
      %7873 = vxpose.xlu0.c.b16.end [8/8] 0, 128
      %v7874 = vpop.trf.xlu0
      %v7875 = vpop.trf.xlu0
      %v7876 = vpop.trf.xlu0
      %v7877 = vpop.trf.xlu0
      %v7878 = vpop.trf.xlu0
      %v7879 = vpop.trf.xlu0
      %v7880 = vpop.trf.xlu0
      %v7881 = vpop.trf.xlu0
      %7882 = vxpose.xlu0.c.b16.start [1/8] %v3703, 128
      %7883 = vxpose.xlu0.c.b16.cont [2/8] 0, 128
      %7884 = vxpose.xlu0.c.b16.cont [3/8] 0, 128
      %7885 = vxpose.xlu0.c.b16.cont [4/8] 0, 128
      %7886 = vxpose.xlu0.c.b16.cont [5/8] 0, 128
      %7887 = vxpose.xlu0.c.b16.cont [6/8] 0, 128
      %7888 = vxpose.xlu0.c.b16.cont [7/8] 0, 128
      %7889 = vxpose.xlu0.c.b16.end [8/8] 0, 128
      %v7890 = vpop.trf.xlu0
      %v7891 = vpop.trf.xlu0
      %v7892 = vpop.trf.xlu0
      %v7893 = vpop.trf.xlu0
      %v7894 = vpop.trf.xlu0
      %v7895 = vpop.trf.xlu0
      %v7896 = vpop.trf.xlu0
      %v7897 = vpop.trf.xlu0
      %7898 = vxpose.xlu0.c.b16.start [1/8] %v3704, 128
      %7899 = vxpose.xlu0.c.b16.cont [2/8] 0, 128
      %7900 = vxpose.xlu0.c.b16.cont [3/8] 0, 128
      %7901 = vxpose.xlu0.c.b16.cont [4/8] 0, 128
      %7902 = vxpose.xlu0.c.b16.cont [5/8] 0, 128
      %7903 = vxpose.xlu0.c.b16.cont [6/8] 0, 128
      %7904 = vxpose.xlu0.c.b16.cont [7/8] 0, 128
      %7905 = vxpose.xlu0.c.b16.end [8/8] 0, 128
      %v7906 = vpop.trf.xlu0
      %v7907 = vpop.trf.xlu0
      %v7908 = vpop.trf.xlu0
      %v7909 = vpop.trf.xlu0
      %v7910 = vpop.trf.xlu0
      %v7911 = vpop.trf.xlu0
      %v7912 = vpop.trf.xlu0
      %v7913 = vpop.trf.xlu0
      %7914 = vxpose.xlu0.c.b16.start [1/8] %v3705, 128
      %7915 = vxpose.xlu0.c.b16.cont [2/8] 0, 128
      %7916 = vxpose.xlu0.c.b16.cont [3/8] 0, 128
      %7917 = vxpose.xlu0.c.b16.cont [4/8] 0, 128
      %7918 = vxpose.xlu0.c.b16.cont [5/8] 0, 128
      %7919 = vxpose.xlu0.c.b16.cont [6/8] 0, 128
      %7920 = vxpose.xlu0.c.b16.cont [7/8] 0, 128
      %7921 = vxpose.xlu0.c.b16.end [8/8] 0, 128
      %v7922 = vpop.trf.xlu0
      %v7923 = vpop.trf.xlu0
      %v7924 = vpop.trf.xlu0
      %v7925 = vpop.trf.xlu0
      %v7926 = vpop.trf.xlu0
      %v7927 = vpop.trf.xlu0
      %v7928 = vpop.trf.xlu0
      %v7929 = vpop.trf.xlu0
      %7930 = vxpose.xlu0.c.b16.start [1/8] %v3706, 128
      %7931 = vxpose.xlu0.c.b16.cont [2/8] 0, 128
      %7932 = vxpose.xlu0.c.b16.cont [3/8] 0, 128
      %7933 = vxpose.xlu0.c.b16.cont [4/8] 0, 128
      %7934 = vxpose.xlu0.c.b16.cont [5/8] 0, 128
      %7935 = vxpose.xlu0.c.b16.cont [6/8] 0, 128
      %7936 = vxpose.xlu0.c.b16.cont [7/8] 0, 128
      %7937 = vxpose.xlu0.c.b16.end [8/8] 0, 128
      %v7938 = vpop.trf.xlu0
      %v7939 = vpop.trf.xlu0
      %v7940 = vpop.trf.xlu0
      %v7941 = vpop.trf.xlu0
      %v7942 = vpop.trf.xlu0
      %v7943 = vpop.trf.xlu0
      %v7944 = vpop.trf.xlu0
      %v7945 = vpop.trf.xlu0
      %7946 = vxpose.xlu0.c.b16.start [1/8] %v3707, 128
      %7947 = vxpose.xlu0.c.b16.cont [2/8] 0, 128
      %7948 = vxpose.xlu0.c.b16.cont [3/8] 0, 128
      %7949 = vxpose.xlu0.c.b16.cont [4/8] 0, 128
      %7950 = vxpose.xlu0.c.b16.cont [5/8] 0, 128
      %7951 = vxpose.xlu0.c.b16.cont [6/8] 0, 128
      %7952 = vxpose.xlu0.c.b16.cont [7/8] 0, 128
      %7953 = vxpose.xlu0.c.b16.end [8/8] 0, 128
      %v7954 = vpop.trf.xlu0
      %v7955 = vpop.trf.xlu0
      %v7956 = vpop.trf.xlu0
      %v7957 = vpop.trf.xlu0
      %v7958 = vpop.trf.xlu0
      %v7959 = vpop.trf.xlu0
      %v7960 = vpop.trf.xlu0
      %v7961 = vpop.trf.xlu0
      %7962 = vxpose.xlu0.c.b16.start [1/8] %v3708, 128
      %7963 = vxpose.xlu0.c.b16.cont [2/8] 0, 128
      %7964 = vxpose.xlu0.c.b16.cont [3/8] 0, 128
      %7965 = vxpose.xlu0.c.b16.cont [4/8] 0, 128
      %7966 = vxpose.xlu0.c.b16.cont [5/8] 0, 128
      %7967 = vxpose.xlu0.c.b16.cont [6/8] 0, 128
      %7968 = vxpose.xlu0.c.b16.cont [7/8] 0, 128
      %7969 = vxpose.xlu0.c.b16.end [8/8] 0, 128
      %v7970 = vpop.trf.xlu0
      %v7971 = vpop.trf.xlu0
      %v7972 = vpop.trf.xlu0
      %v7973 = vpop.trf.xlu0
      %v7974 = vpop.trf.xlu0
      %v7975 = vpop.trf.xlu0
      %v7976 = vpop.trf.xlu0
      %v7977 = vpop.trf.xlu0
      %7978 = vxpose.xlu0.c.b16.start [1/8] %v3709, 128
      %7979 = vxpose.xlu0.c.b16.cont [2/8] 0, 128
      %7980 = vxpose.xlu0.c.b16.cont [3/8] 0, 128
      %7981 = vxpose.xlu0.c.b16.cont [4/8] 0, 128
      %7982 = vxpose.xlu0.c.b16.cont [5/8] 0, 128
      %7983 = vxpose.xlu0.c.b16.cont [6/8] 0, 128
      %7984 = vxpose.xlu0.c.b16.cont [7/8] 0, 128
      %7985 = vxpose.xlu0.c.b16.end [8/8] 0, 128
      %v7986 = vpop.trf.xlu0
      %v7987 = vpop.trf.xlu0
      %v7988 = vpop.trf.xlu0
      %v7989 = vpop.trf.xlu0
      %v7990 = vpop.trf.xlu0
      %v7991 = vpop.trf.xlu0
      %v7992 = vpop.trf.xlu0
      %v7993 = vpop.trf.xlu0
      %7994 = vxpose.xlu0.c.b16.start [1/8] %v3710, 128
      %7995 = vxpose.xlu0.c.b16.cont [2/8] 0, 128
      %7996 = vxpose.xlu0.c.b16.cont [3/8] 0, 128
      %7997 = vxpose.xlu0.c.b16.cont [4/8] 0, 128
      %7998 = vxpose.xlu0.c.b16.cont [5/8] 0, 128
      %7999 = vxpose.xlu0.c.b16.cont [6/8] 0, 128
      %8000 = vxpose.xlu0.c.b16.cont [7/8] 0, 128
      %8001 = vxpose.xlu0.c.b16.end [8/8] 0, 128
      %v8002 = vpop.trf.xlu0
      %v8003 = vpop.trf.xlu0
      %v8004 = vpop.trf.xlu0
      %v8005 = vpop.trf.xlu0
      %v8006 = vpop.trf.xlu0
      %v8007 = vpop.trf.xlu0
      %v8008 = vpop.trf.xlu0
      %v8009 = vpop.trf.xlu0
      %8010 = vxpose.xlu0.c.b16.start [1/8] %v3711, 128
      %8011 = vxpose.xlu0.c.b16.cont [2/8] 0, 128
      %8012 = vxpose.xlu0.c.b16.cont [3/8] 0, 128
      %8013 = vxpose.xlu0.c.b16.cont [4/8] 0, 128
      %8014 = vxpose.xlu0.c.b16.cont [5/8] 0, 128
      %8015 = vxpose.xlu0.c.b16.cont [6/8] 0, 128
      %8016 = vxpose.xlu0.c.b16.cont [7/8] 0, 128
      %8017 = vxpose.xlu0.c.b16.end [8/8] 0, 128
      %v8018 = vpop.trf.xlu0
      %v8019 = vpop.trf.xlu0
      %v8020 = vpop.trf.xlu0
      %v8021 = vpop.trf.xlu0
      %v8022 = vpop.trf.xlu0
      %v8023 = vpop.trf.xlu0
      %v8024 = vpop.trf.xlu0
      %v8025 = vpop.trf.xlu0
      %8026 = vxpose.xlu0.c.b16.start [1/8] %v3712, 128
      %8027 = vxpose.xlu0.c.b16.cont [2/8] 0, 128
      %8028 = vxpose.xlu0.c.b16.cont [3/8] 0, 128
      %8029 = vxpose.xlu0.c.b16.cont [4/8] 0, 128
      %8030 = vxpose.xlu0.c.b16.cont [5/8] 0, 128
      %8031 = vxpose.xlu0.c.b16.cont [6/8] 0, 128
      %8032 = vxpose.xlu0.c.b16.cont [7/8] 0, 128
      %8033 = vxpose.xlu0.c.b16.end [8/8] 0, 128
      %v8034 = vpop.trf.xlu0
      %v8035 = vpop.trf.xlu0
      %v8036 = vpop.trf.xlu0
      %v8037 = vpop.trf.xlu0
      %v8038 = vpop.trf.xlu0
      %v8039 = vpop.trf.xlu0
      %v8040 = vpop.trf.xlu0
      %v8041 = vpop.trf.xlu0
      %8042 = vxpose.xlu0.c.b16.start [1/8] %v3713, 128
      %8043 = vxpose.xlu0.c.b16.cont [2/8] 0, 128
      %8044 = vxpose.xlu0.c.b16.cont [3/8] 0, 128
      %8045 = vxpose.xlu0.c.b16.cont [4/8] 0, 128
      %8046 = vxpose.xlu0.c.b16.cont [5/8] 0, 128
      %8047 = vxpose.xlu0.c.b16.cont [6/8] 0, 128
      %8048 = vxpose.xlu0.c.b16.cont [7/8] 0, 128
      %8049 = vxpose.xlu0.c.b16.end [8/8] 0, 128
      %v8050 = vpop.trf.xlu0
      %v8051 = vpop.trf.xlu0
      %v8052 = vpop.trf.xlu0
      %v8053 = vpop.trf.xlu0
      %v8054 = vpop.trf.xlu0
      %v8055 = vpop.trf.xlu0
      %v8056 = vpop.trf.xlu0
      %v8057 = vpop.trf.xlu0
      %8058 = vxpose.xlu0.c.b16.start [1/8] %v3714, 128
      %8059 = vxpose.xlu0.c.b16.cont [2/8] 0, 128
      %8060 = vxpose.xlu0.c.b16.cont [3/8] 0, 128
      %8061 = vxpose.xlu0.c.b16.cont [4/8] 0, 128
      %8062 = vxpose.xlu0.c.b16.cont [5/8] 0, 128
      %8063 = vxpose.xlu0.c.b16.cont [6/8] 0, 128
      %8064 = vxpose.xlu0.c.b16.cont [7/8] 0, 128
      %8065 = vxpose.xlu0.c.b16.end [8/8] 0, 128
      %v8066 = vpop.trf.xlu0
      %v8067 = vpop.trf.xlu0
      %v8068 = vpop.trf.xlu0
      %v8069 = vpop.trf.xlu0
      %v8070 = vpop.trf.xlu0
      %v8071 = vpop.trf.xlu0
      %v8072 = vpop.trf.xlu0
      %v8073 = vpop.trf.xlu0
      %8074 = vxpose.xlu0.c.b16.start [1/8] %v3715, 128
      %8075 = vxpose.xlu0.c.b16.cont [2/8] 0, 128
      %8076 = vxpose.xlu0.c.b16.cont [3/8] 0, 128
      %8077 = vxpose.xlu0.c.b16.cont [4/8] 0, 128
      %8078 = vxpose.xlu0.c.b16.cont [5/8] 0, 128
      %8079 = vxpose.xlu0.c.b16.cont [6/8] 0, 128
      %8080 = vxpose.xlu0.c.b16.cont [7/8] 0, 128
      %8081 = vxpose.xlu0.c.b16.end [8/8] 0, 128
      %v8082 = vpop.trf.xlu0
      %v8083 = vpop.trf.xlu0
      %v8084 = vpop.trf.xlu0
      %v8085 = vpop.trf.xlu0
      %v8086 = vpop.trf.xlu0
      %v8087 = vpop.trf.xlu0
      %v8088 = vpop.trf.xlu0
      %v8089 = vpop.trf.xlu0
      %8090 = vxpose.xlu0.c.b16.start [1/8] %v3716, 128
      %8091 = vxpose.xlu0.c.b16.cont [2/8] 0, 128
      %8092 = vxpose.xlu0.c.b16.cont [3/8] 0, 128
      %8093 = vxpose.xlu0.c.b16.cont [4/8] 0, 128
      %8094 = vxpose.xlu0.c.b16.cont [5/8] 0, 128
      %8095 = vxpose.xlu0.c.b16.cont [6/8] 0, 128
      %8096 = vxpose.xlu0.c.b16.cont [7/8] 0, 128
      %8097 = vxpose.xlu0.c.b16.end [8/8] 0, 128
      %v8098 = vpop.trf.xlu0
      %v8099 = vpop.trf.xlu0
      %v8100 = vpop.trf.xlu0
      %v8101 = vpop.trf.xlu0
      %v8102 = vpop.trf.xlu0
      %v8103 = vpop.trf.xlu0
      %v8104 = vpop.trf.xlu0
      %v8105 = vpop.trf.xlu0
      %8106 = vxpose.xlu0.c.b16.start [1/8] %v3717, 128
      %8107 = vxpose.xlu0.c.b16.cont [2/8] 0, 128
      %8108 = vxpose.xlu0.c.b16.cont [3/8] 0, 128
      %8109 = vxpose.xlu0.c.b16.cont [4/8] 0, 128
      %8110 = vxpose.xlu0.c.b16.cont [5/8] 0, 128
      %8111 = vxpose.xlu0.c.b16.cont [6/8] 0, 128
      %8112 = vxpose.xlu0.c.b16.cont [7/8] 0, 128
      %8113 = vxpose.xlu0.c.b16.end [8/8] 0, 128
      %v8114 = vpop.trf.xlu0
      %v8115 = vpop.trf.xlu0
      %v8116 = vpop.trf.xlu0
      %v8117 = vpop.trf.xlu0
      %v8118 = vpop.trf.xlu0
      %v8119 = vpop.trf.xlu0
      %v8120 = vpop.trf.xlu0
      %v8121 = vpop.trf.xlu0
      %8122 = vxpose.xlu0.c.b16.start [1/8] %v3718, 128
      %8123 = vxpose.xlu0.c.b16.cont [2/8] 0, 128
      %8124 = vxpose.xlu0.c.b16.cont [3/8] 0, 128
      %8125 = vxpose.xlu0.c.b16.cont [4/8] 0, 128
      %8126 = vxpose.xlu0.c.b16.cont [5/8] 0, 128
      %8127 = vxpose.xlu0.c.b16.cont [6/8] 0, 128
      %8128 = vxpose.xlu0.c.b16.cont [7/8] 0, 128
      %8129 = vxpose.xlu0.c.b16.end [8/8] 0, 128
      %v8130 = vpop.trf.xlu0
      %v8131 = vpop.trf.xlu0
      %v8132 = vpop.trf.xlu0
      %v8133 = vpop.trf.xlu0
      %v8134 = vpop.trf.xlu0
      %v8135 = vpop.trf.xlu0
      %v8136 = vpop.trf.xlu0
      %v8137 = vpop.trf.xlu0
      %8138 = vxpose.xlu0.c.b16.start [1/8] %v3719, 128
      %8139 = vxpose.xlu0.c.b16.cont [2/8] 0, 128
      %8140 = vxpose.xlu0.c.b16.cont [3/8] 0, 128
      %8141 = vxpose.xlu0.c.b16.cont [4/8] 0, 128
      %8142 = vxpose.xlu0.c.b16.cont [5/8] 0, 128
      %8143 = vxpose.xlu0.c.b16.cont [6/8] 0, 128
      %8144 = vxpose.xlu0.c.b16.cont [7/8] 0, 128
      %8145 = vxpose.xlu0.c.b16.end [8/8] 0, 128
      %v8146 = vpop.trf.xlu0
      %v8147 = vpop.trf.xlu0
      %v8148 = vpop.trf.xlu0
      %v8149 = vpop.trf.xlu0
      %v8150 = vpop.trf.xlu0
      %v8151 = vpop.trf.xlu0
      %v8152 = vpop.trf.xlu0
      %v8153 = vpop.trf.xlu0
      %8154 = vxpose.xlu0.c.b16.start [1/8] %v3720, 128
      %8155 = vxpose.xlu0.c.b16.cont [2/8] 0, 128
      %8156 = vxpose.xlu0.c.b16.cont [3/8] 0, 128
      %8157 = vxpose.xlu0.c.b16.cont [4/8] 0, 128
      %8158 = vxpose.xlu0.c.b16.cont [5/8] 0, 128
      %8159 = vxpose.xlu0.c.b16.cont [6/8] 0, 128
      %8160 = vxpose.xlu0.c.b16.cont [7/8] 0, 128
      %8161 = vxpose.xlu0.c.b16.end [8/8] 0, 128
      %v8162 = vpop.trf.xlu0
      %v8163 = vpop.trf.xlu0
      %v8164 = vpop.trf.xlu0
      %v8165 = vpop.trf.xlu0
      %v8166 = vpop.trf.xlu0
      %v8167 = vpop.trf.xlu0
      %v8168 = vpop.trf.xlu0
      %v8169 = vpop.trf.xlu0
      %8170 = vxpose.xlu0.c.b16.start [1/8] %v3721, 128
      %8171 = vxpose.xlu0.c.b16.cont [2/8] 0, 128
      %8172 = vxpose.xlu0.c.b16.cont [3/8] 0, 128
      %8173 = vxpose.xlu0.c.b16.cont [4/8] 0, 128
      %8174 = vxpose.xlu0.c.b16.cont [5/8] 0, 128
      %8175 = vxpose.xlu0.c.b16.cont [6/8] 0, 128
      %8176 = vxpose.xlu0.c.b16.cont [7/8] 0, 128
      %8177 = vxpose.xlu0.c.b16.end [8/8] 0, 128
      %v8178 = vpop.trf.xlu0
      %v8179 = vpop.trf.xlu0
      %v8180 = vpop.trf.xlu0
      %v8181 = vpop.trf.xlu0
      %v8182 = vpop.trf.xlu0
      %v8183 = vpop.trf.xlu0
      %v8184 = vpop.trf.xlu0
      %v8185 = vpop.trf.xlu0
      %8186 = vxpose.xlu0.c.b16.start [1/8] %v3722, 128
      %8187 = vxpose.xlu0.c.b16.cont [2/8] 0, 128
      %8188 = vxpose.xlu0.c.b16.cont [3/8] 0, 128
      %8189 = vxpose.xlu0.c.b16.cont [4/8] 0, 128
      %8190 = vxpose.xlu0.c.b16.cont [5/8] 0, 128
      %8191 = vxpose.xlu0.c.b16.cont [6/8] 0, 128
      %8192 = vxpose.xlu0.c.b16.cont [7/8] 0, 128
      %8193 = vxpose.xlu0.c.b16.end [8/8] 0, 128
      %v8194 = vpop.trf.xlu0
      %v8195 = vpop.trf.xlu0
      %v8196 = vpop.trf.xlu0
      %v8197 = vpop.trf.xlu0
      %v8198 = vpop.trf.xlu0
      %v8199 = vpop.trf.xlu0
      %v8200 = vpop.trf.xlu0
      %v8201 = vpop.trf.xlu0
      %8202 = vxpose.xlu0.c.b16.start [1/8] %v3723, 128
      %8203 = vxpose.xlu0.c.b16.cont [2/8] 0, 128
      %8204 = vxpose.xlu0.c.b16.cont [3/8] 0, 128
      %8205 = vxpose.xlu0.c.b16.cont [4/8] 0, 128
      %8206 = vxpose.xlu0.c.b16.cont [5/8] 0, 128
      %8207 = vxpose.xlu0.c.b16.cont [6/8] 0, 128
      %8208 = vxpose.xlu0.c.b16.cont [7/8] 0, 128
      %8209 = vxpose.xlu0.c.b16.end [8/8] 0, 128
      %v8210 = vpop.trf.xlu0
      %v8211 = vpop.trf.xlu0
      %v8212 = vpop.trf.xlu0
      %v8213 = vpop.trf.xlu0
      %v8214 = vpop.trf.xlu0
      %v8215 = vpop.trf.xlu0
      %v8216 = vpop.trf.xlu0
      %v8217 = vpop.trf.xlu0
      %8218 = vxpose.xlu0.c.b16.start [1/8] %v3724, 128
      %8219 = vxpose.xlu0.c.b16.cont [2/8] 0, 128
      %8220 = vxpose.xlu0.c.b16.cont [3/8] 0, 128
      %8221 = vxpose.xlu0.c.b16.cont [4/8] 0, 128
      %8222 = vxpose.xlu0.c.b16.cont [5/8] 0, 128
      %8223 = vxpose.xlu0.c.b16.cont [6/8] 0, 128
      %8224 = vxpose.xlu0.c.b16.cont [7/8] 0, 128
      %8225 = vxpose.xlu0.c.b16.end [8/8] 0, 128
      %v8226 = vpop.trf.xlu0
      %v8227 = vpop.trf.xlu0
      %v8228 = vpop.trf.xlu0
      %v8229 = vpop.trf.xlu0
      %v8230 = vpop.trf.xlu0
      %v8231 = vpop.trf.xlu0
      %v8232 = vpop.trf.xlu0
      %v8233 = vpop.trf.xlu0
      %v8234 = vcombine.low %v7218, %v7282
      %v8235 = vcombine.high %v7218, %v7282
      %v8237 = vunpack.c.l.s4 1983009808
      %v8238 = vunpack.c.0.s8 %v8237
      %v8239 = vlaneseq
      %v8240 = vshrl.u32 %v8239, 7
      %v8241 = vsub.s32 %v8238, %v8240
      %v8242 = vrot.slane %v8234, %v8241
      %v8244 = vunpack.c.l.s4 1983009808
      %v8245 = vunpack.c.0.s8 %v8244
      %v8246 = vlaneseq
      %v8247 = vshrl.u32 %v8246, 7
      %v8248 = vsub.s32 %v8245, %v8247
      %v8249 = vrot.slane %v8235, %v8248
      %v8250 = vcombine.low %v7250, %v7314
      %v8251 = vcombine.high %v7250, %v7314
      %v8253 = vunpack.c.l.s4 1983009808
      %v8254 = vunpack.c.0.s8 %v8253
      %v8255 = vlaneseq
      %v8256 = vshrl.u32 %v8255, 7
      %v8257 = vsub.s32 %v8254, %v8256
      %v8258 = vrot.slane %v8250, %v8257
      %v8260 = vunpack.c.l.s4 1983009808
      %v8261 = vunpack.c.0.s8 %v8260
      %v8262 = vlaneseq
      %v8263 = vshrl.u32 %v8262, 7
      %v8264 = vsub.s32 %v8261, %v8263
      %v8265 = vrot.slane %v8251, %v8264
      %v8266 = vcombine.low %v7346, %v7410
      %v8267 = vcombine.high %v7346, %v7410
      %v8269 = vunpack.c.l.s4 1983009808
      %v8270 = vunpack.c.0.s8 %v8269
      %v8271 = vlaneseq
      %v8272 = vshrl.u32 %v8271, 7
      %v8273 = vsub.s32 %v8270, %v8272
      %v8274 = vrot.slane %v8266, %v8273
      %v8276 = vunpack.c.l.s4 1983009808
      %v8277 = vunpack.c.0.s8 %v8276
      %v8278 = vlaneseq
      %v8279 = vshrl.u32 %v8278, 7
      %v8280 = vsub.s32 %v8277, %v8279
      %v8281 = vrot.slane %v8267, %v8280
      %v8282 = vcombine.low %v7378, %v7442
      %v8283 = vcombine.high %v7378, %v7442
      %v8285 = vunpack.c.l.s4 1983009808
      %v8286 = vunpack.c.0.s8 %v8285
      %v8287 = vlaneseq
      %v8288 = vshrl.u32 %v8287, 7
      %v8289 = vsub.s32 %v8286, %v8288
      %v8290 = vrot.slane %v8282, %v8289
      %v8292 = vunpack.c.l.s4 1983009808
      %v8293 = vunpack.c.0.s8 %v8292
      %v8294 = vlaneseq
      %v8295 = vshrl.u32 %v8294, 7
      %v8296 = vsub.s32 %v8293, %v8295
      %v8297 = vrot.slane %v8283, %v8296
      %v8298 = vcombine.low %v8242, %v8258
      %v8299 = vcombine.high %v8242, %v8258
      %v8301 = vunpack.c.l.s4 1934713408
      %v8302 = vunpack.c.0.s8 %v8301
      %v8303 = vlaneseq
      %v8304 = vshrl.u32 %v8303, 7
      %v8305 = vsub.s32 %v8302, %v8304
      %v8306 = vrot.slane %v8298, %v8305
      %v8308 = vunpack.c.l.s4 1934713408
      %v8309 = vunpack.c.0.s8 %v8308
      %v8310 = vlaneseq
      %v8311 = vshrl.u32 %v8310, 7
      %v8312 = vsub.s32 %v8309, %v8311
      %v8313 = vrot.slane %v8299, %v8312
      %v8314 = vcombine.low %v8249, %v8265
      %v8315 = vcombine.high %v8249, %v8265
      %v8317 = vunpack.c.l.s4 1934713408
      %v8318 = vunpack.c.0.s8 %v8317
      %v8319 = vlaneseq
      %v8320 = vshrl.u32 %v8319, 7
      %v8321 = vsub.s32 %v8318, %v8320
      %v8322 = vrot.slane %v8314, %v8321
      %v8324 = vunpack.c.l.s4 1934713408
      %v8325 = vunpack.c.0.s8 %v8324
      %v8326 = vlaneseq
      %v8327 = vshrl.u32 %v8326, 7
      %v8328 = vsub.s32 %v8325, %v8327
      %v8329 = vrot.slane %v8315, %v8328
      %v8330 = vcombine.low %v8274, %v8290
      %v8331 = vcombine.high %v8274, %v8290
      %v8333 = vunpack.c.l.s4 1934713408
      %v8334 = vunpack.c.0.s8 %v8333
      %v8335 = vlaneseq
      %v8336 = vshrl.u32 %v8335, 7
      %v8337 = vsub.s32 %v8334, %v8336
      %v8338 = vrot.slane %v8330, %v8337
      %v8340 = vunpack.c.l.s4 1934713408
      %v8341 = vunpack.c.0.s8 %v8340
      %v8342 = vlaneseq
      %v8343 = vshrl.u32 %v8342, 7
      %v8344 = vsub.s32 %v8341, %v8343
      %v8345 = vrot.slane %v8331, %v8344
      %v8346 = vcombine.low %v8281, %v8297
      %v8347 = vcombine.high %v8281, %v8297
      %v8349 = vunpack.c.l.s4 1934713408
      %v8350 = vunpack.c.0.s8 %v8349
      %v8351 = vlaneseq
      %v8352 = vshrl.u32 %v8351, 7
      %v8353 = vsub.s32 %v8350, %v8352
      %v8354 = vrot.slane %v8346, %v8353
      %v8356 = vunpack.c.l.s4 1934713408
      %v8357 = vunpack.c.0.s8 %v8356
      %v8358 = vlaneseq
      %v8359 = vshrl.u32 %v8358, 7
      %v8360 = vsub.s32 %v8357, %v8359
      %v8361 = vrot.slane %v8347, %v8360
      %v8362 = vcombine.low %v8306, %v8338
      %v8363 = vcombine.high %v8306, %v8338
      %v8364 = vcombine.low %v8313, %v8345
      %v8365 = vcombine.high %v8313, %v8345
      %v8366 = vcombine.low %v8322, %v8354
      %v8367 = vcombine.high %v8322, %v8354
      %v8368 = vcombine.low %v8329, %v8361
      %v8369 = vcombine.high %v8329, %v8361
      %v8370 = vcombine.low %v7234, %v7298
      %v8371 = vcombine.high %v7234, %v7298
      %v8373 = vunpack.c.l.s4 1983009808
      %v8374 = vunpack.c.0.s8 %v8373
      %v8375 = vlaneseq
      %v8376 = vshrl.u32 %v8375, 7
      %v8377 = vsub.s32 %v8374, %v8376
      %v8378 = vrot.slane %v8370, %v8377
      %v8380 = vunpack.c.l.s4 1983009808
      %v8381 = vunpack.c.0.s8 %v8380
      %v8382 = vlaneseq
      %v8383 = vshrl.u32 %v8382, 7
      %v8384 = vsub.s32 %v8381, %v8383
      %v8385 = vrot.slane %v8371, %v8384
      %v8386 = vcombine.low %v7266, %v7330
      %v8387 = vcombine.high %v7266, %v7330
      %v8389 = vunpack.c.l.s4 1983009808
      %v8390 = vunpack.c.0.s8 %v8389
      %v8391 = vlaneseq
      %v8392 = vshrl.u32 %v8391, 7
      %v8393 = vsub.s32 %v8390, %v8392
      %v8394 = vrot.slane %v8386, %v8393
      %v8396 = vunpack.c.l.s4 1983009808
      %v8397 = vunpack.c.0.s8 %v8396
      %v8398 = vlaneseq
      %v8399 = vshrl.u32 %v8398, 7
      %v8400 = vsub.s32 %v8397, %v8399
      %v8401 = vrot.slane %v8387, %v8400
      %v8402 = vcombine.low %v7362, %v7426
      %v8403 = vcombine.high %v7362, %v7426
      %v8405 = vunpack.c.l.s4 1983009808
      %v8406 = vunpack.c.0.s8 %v8405
      %v8407 = vlaneseq
      %v8408 = vshrl.u32 %v8407, 7
      %v8409 = vsub.s32 %v8406, %v8408
      %v8410 = vrot.slane %v8402, %v8409
      %v8412 = vunpack.c.l.s4 1983009808
      %v8413 = vunpack.c.0.s8 %v8412
      %v8414 = vlaneseq
      %v8415 = vshrl.u32 %v8414, 7
      %v8416 = vsub.s32 %v8413, %v8415
      %v8417 = vrot.slane %v8403, %v8416
      %v8418 = vcombine.low %v7394, %v7458
      %v8419 = vcombine.high %v7394, %v7458
      %v8421 = vunpack.c.l.s4 1983009808
      %v8422 = vunpack.c.0.s8 %v8421
      %v8423 = vlaneseq
      %v8424 = vshrl.u32 %v8423, 7
      %v8425 = vsub.s32 %v8422, %v8424
      %v8426 = vrot.slane %v8418, %v8425
      %v8428 = vunpack.c.l.s4 1983009808
      %v8429 = vunpack.c.0.s8 %v8428
      %v8430 = vlaneseq
      %v8431 = vshrl.u32 %v8430, 7
      %v8432 = vsub.s32 %v8429, %v8431
      %v8433 = vrot.slane %v8419, %v8432
      %v8434 = vcombine.low %v8378, %v8394
      %v8435 = vcombine.high %v8378, %v8394
      %v8437 = vunpack.c.l.s4 1934713408
      %v8438 = vunpack.c.0.s8 %v8437
      %v8439 = vlaneseq
      %v8440 = vshrl.u32 %v8439, 7
      %v8441 = vsub.s32 %v8438, %v8440
      %v8442 = vrot.slane %v8434, %v8441
      %v8444 = vunpack.c.l.s4 1934713408
      %v8445 = vunpack.c.0.s8 %v8444
      %v8446 = vlaneseq
      %v8447 = vshrl.u32 %v8446, 7
      %v8448 = vsub.s32 %v8445, %v8447
      %v8449 = vrot.slane %v8435, %v8448
      %v8450 = vcombine.low %v8385, %v8401
      %v8451 = vcombine.high %v8385, %v8401
      %v8453 = vunpack.c.l.s4 1934713408
      %v8454 = vunpack.c.0.s8 %v8453
      %v8455 = vlaneseq
      %v8456 = vshrl.u32 %v8455, 7
      %v8457 = vsub.s32 %v8454, %v8456
      %v8458 = vrot.slane %v8450, %v8457
      %v8460 = vunpack.c.l.s4 1934713408
      %v8461 = vunpack.c.0.s8 %v8460
      %v8462 = vlaneseq
      %v8463 = vshrl.u32 %v8462, 7
      %v8464 = vsub.s32 %v8461, %v8463
      %v8465 = vrot.slane %v8451, %v8464
      %v8466 = vcombine.low %v8410, %v8426
      %v8467 = vcombine.high %v8410, %v8426
      %v8469 = vunpack.c.l.s4 1934713408
      %v8470 = vunpack.c.0.s8 %v8469
      %v8471 = vlaneseq
      %v8472 = vshrl.u32 %v8471, 7
      %v8473 = vsub.s32 %v8470, %v8472
      %v8474 = vrot.slane %v8466, %v8473
      %v8476 = vunpack.c.l.s4 1934713408
      %v8477 = vunpack.c.0.s8 %v8476
      %v8478 = vlaneseq
      %v8479 = vshrl.u32 %v8478, 7
      %v8480 = vsub.s32 %v8477, %v8479
      %v8481 = vrot.slane %v8467, %v8480
      %v8482 = vcombine.low %v8417, %v8433
      %v8483 = vcombine.high %v8417, %v8433
      %v8485 = vunpack.c.l.s4 1934713408
      %v8486 = vunpack.c.0.s8 %v8485
      %v8487 = vlaneseq
      %v8488 = vshrl.u32 %v8487, 7
      %v8489 = vsub.s32 %v8486, %v8488
      %v8490 = vrot.slane %v8482, %v8489
      %v8492 = vunpack.c.l.s4 1934713408
      %v8493 = vunpack.c.0.s8 %v8492
      %v8494 = vlaneseq
      %v8495 = vshrl.u32 %v8494, 7
      %v8496 = vsub.s32 %v8493, %v8495
      %v8497 = vrot.slane %v8483, %v8496
      %v8498 = vcombine.low %v8442, %v8474
      %v8499 = vcombine.high %v8442, %v8474
      %v8500 = vcombine.low %v8449, %v8481
      %v8501 = vcombine.high %v8449, %v8481
      %v8502 = vcombine.low %v8458, %v8490
      %v8503 = vcombine.high %v8458, %v8490
      %v8504 = vcombine.low %v8465, %v8497
      %v8505 = vcombine.high %v8465, %v8497
      %v8506 = vcombine.low %v7474, %v7538
      %v8507 = vcombine.high %v7474, %v7538
      %v8509 = vunpack.c.l.s4 1983009808
      %v8510 = vunpack.c.0.s8 %v8509
      %v8511 = vlaneseq
      %v8512 = vshrl.u32 %v8511, 7
      %v8513 = vsub.s32 %v8510, %v8512
      %v8514 = vrot.slane %v8506, %v8513
      %v8516 = vunpack.c.l.s4 1983009808
      %v8517 = vunpack.c.0.s8 %v8516
      %v8518 = vlaneseq
      %v8519 = vshrl.u32 %v8518, 7
      %v8520 = vsub.s32 %v8517, %v8519
      %v8521 = vrot.slane %v8507, %v8520
      %v8522 = vcombine.low %v7506, %v7570
      %v8523 = vcombine.high %v7506, %v7570
      %v8525 = vunpack.c.l.s4 1983009808
      %v8526 = vunpack.c.0.s8 %v8525
      %v8527 = vlaneseq
      %v8528 = vshrl.u32 %v8527, 7
      %v8529 = vsub.s32 %v8526, %v8528
      %v8530 = vrot.slane %v8522, %v8529
      %v8532 = vunpack.c.l.s4 1983009808
      %v8533 = vunpack.c.0.s8 %v8532
      %v8534 = vlaneseq
      %v8535 = vshrl.u32 %v8534, 7
      %v8536 = vsub.s32 %v8533, %v8535
      %v8537 = vrot.slane %v8523, %v8536
      %v8538 = vcombine.low %v7602, %v7666
      %v8539 = vcombine.high %v7602, %v7666
      %v8541 = vunpack.c.l.s4 1983009808
      %v8542 = vunpack.c.0.s8 %v8541
      %v8543 = vlaneseq
      %v8544 = vshrl.u32 %v8543, 7
      %v8545 = vsub.s32 %v8542, %v8544
      %v8546 = vrot.slane %v8538, %v8545
      %v8548 = vunpack.c.l.s4 1983009808
      %v8549 = vunpack.c.0.s8 %v8548
      %v8550 = vlaneseq
      %v8551 = vshrl.u32 %v8550, 7
      %v8552 = vsub.s32 %v8549, %v8551
      %v8553 = vrot.slane %v8539, %v8552
      %v8554 = vcombine.low %v7634, %v7698
      %v8555 = vcombine.high %v7634, %v7698
      %v8557 = vunpack.c.l.s4 1983009808
      %v8558 = vunpack.c.0.s8 %v8557
      %v8559 = vlaneseq
      %v8560 = vshrl.u32 %v8559, 7
      %v8561 = vsub.s32 %v8558, %v8560
      %v8562 = vrot.slane %v8554, %v8561
      %v8564 = vunpack.c.l.s4 1983009808
      %v8565 = vunpack.c.0.s8 %v8564
      %v8566 = vlaneseq
      %v8567 = vshrl.u32 %v8566, 7
      %v8568 = vsub.s32 %v8565, %v8567
      %v8569 = vrot.slane %v8555, %v8568
      %v8570 = vcombine.low %v8514, %v8530
      %v8571 = vcombine.high %v8514, %v8530
      %v8573 = vunpack.c.l.s4 1934713408
      %v8574 = vunpack.c.0.s8 %v8573
      %v8575 = vlaneseq
      %v8576 = vshrl.u32 %v8575, 7
      %v8577 = vsub.s32 %v8574, %v8576
      %v8578 = vrot.slane %v8570, %v8577
      %v8580 = vunpack.c.l.s4 1934713408
      %v8581 = vunpack.c.0.s8 %v8580
      %v8582 = vlaneseq
      %v8583 = vshrl.u32 %v8582, 7
      %v8584 = vsub.s32 %v8581, %v8583
      %v8585 = vrot.slane %v8571, %v8584
      %v8586 = vcombine.low %v8521, %v8537
      %v8587 = vcombine.high %v8521, %v8537
      %v8589 = vunpack.c.l.s4 1934713408
      %v8590 = vunpack.c.0.s8 %v8589
      %v8591 = vlaneseq
      %v8592 = vshrl.u32 %v8591, 7
      %v8593 = vsub.s32 %v8590, %v8592
      %v8594 = vrot.slane %v8586, %v8593
      %v8596 = vunpack.c.l.s4 1934713408
      %v8597 = vunpack.c.0.s8 %v8596
      %v8598 = vlaneseq
      %v8599 = vshrl.u32 %v8598, 7
      %v8600 = vsub.s32 %v8597, %v8599
      %v8601 = vrot.slane %v8587, %v8600
      %v8602 = vcombine.low %v8546, %v8562
      %v8603 = vcombine.high %v8546, %v8562
      %v8605 = vunpack.c.l.s4 1934713408
      %v8606 = vunpack.c.0.s8 %v8605
      %v8607 = vlaneseq
      %v8608 = vshrl.u32 %v8607, 7
      %v8609 = vsub.s32 %v8606, %v8608
      %v8610 = vrot.slane %v8602, %v8609
      %v8612 = vunpack.c.l.s4 1934713408
      %v8613 = vunpack.c.0.s8 %v8612
      %v8614 = vlaneseq
      %v8615 = vshrl.u32 %v8614, 7
      %v8616 = vsub.s32 %v8613, %v8615
      %v8617 = vrot.slane %v8603, %v8616
      %v8618 = vcombine.low %v8553, %v8569
      %v8619 = vcombine.high %v8553, %v8569
      %v8621 = vunpack.c.l.s4 1934713408
      %v8622 = vunpack.c.0.s8 %v8621
      %v8623 = vlaneseq
      %v8624 = vshrl.u32 %v8623, 7
      %v8625 = vsub.s32 %v8622, %v8624
      %v8626 = vrot.slane %v8618, %v8625
      %v8628 = vunpack.c.l.s4 1934713408
      %v8629 = vunpack.c.0.s8 %v8628
      %v8630 = vlaneseq
      %v8631 = vshrl.u32 %v8630, 7
      %v8632 = vsub.s32 %v8629, %v8631
      %v8633 = vrot.slane %v8619, %v8632
      %v8634 = vcombine.low %v8578, %v8610
      %v8635 = vcombine.high %v8578, %v8610
      %v8636 = vcombine.low %v8585, %v8617
      %v8637 = vcombine.high %v8585, %v8617
      %v8638 = vcombine.low %v8594, %v8626
      %v8639 = vcombine.high %v8594, %v8626
      %v8640 = vcombine.low %v8601, %v8633
      %v8641 = vcombine.high %v8601, %v8633
      %v8642 = vcombine.low %v7490, %v7554
      %v8643 = vcombine.high %v7490, %v7554
      %v8645 = vunpack.c.l.s4 1983009808
      %v8646 = vunpack.c.0.s8 %v8645
      %v8647 = vlaneseq
      %v8648 = vshrl.u32 %v8647, 7
      %v8649 = vsub.s32 %v8646, %v8648
      %v8650 = vrot.slane %v8642, %v8649
      %v8652 = vunpack.c.l.s4 1983009808
      %v8653 = vunpack.c.0.s8 %v8652
      %v8654 = vlaneseq
      %v8655 = vshrl.u32 %v8654, 7
      %v8656 = vsub.s32 %v8653, %v8655
      %v8657 = vrot.slane %v8643, %v8656
      %v8658 = vcombine.low %v7522, %v7586
      %v8659 = vcombine.high %v7522, %v7586
      %v8661 = vunpack.c.l.s4 1983009808
      %v8662 = vunpack.c.0.s8 %v8661
      %v8663 = vlaneseq
      %v8664 = vshrl.u32 %v8663, 7
      %v8665 = vsub.s32 %v8662, %v8664
      %v8666 = vrot.slane %v8658, %v8665
      %v8668 = vunpack.c.l.s4 1983009808
      %v8669 = vunpack.c.0.s8 %v8668
      %v8670 = vlaneseq
      %v8671 = vshrl.u32 %v8670, 7
      %v8672 = vsub.s32 %v8669, %v8671
      %v8673 = vrot.slane %v8659, %v8672
      %v8674 = vcombine.low %v7618, %v7682
      %v8675 = vcombine.high %v7618, %v7682
      %v8677 = vunpack.c.l.s4 1983009808
      %v8678 = vunpack.c.0.s8 %v8677
      %v8679 = vlaneseq
      %v8680 = vshrl.u32 %v8679, 7
      %v8681 = vsub.s32 %v8678, %v8680
      %v8682 = vrot.slane %v8674, %v8681
      %v8684 = vunpack.c.l.s4 1983009808
      %v8685 = vunpack.c.0.s8 %v8684
      %v8686 = vlaneseq
      %v8687 = vshrl.u32 %v8686, 7
      %v8688 = vsub.s32 %v8685, %v8687
      %v8689 = vrot.slane %v8675, %v8688
      %v8690 = vcombine.low %v7650, %v7714
      %v8691 = vcombine.high %v7650, %v7714
      %v8693 = vunpack.c.l.s4 1983009808
      %v8694 = vunpack.c.0.s8 %v8693
      %v8695 = vlaneseq
      %v8696 = vshrl.u32 %v8695, 7
      %v8697 = vsub.s32 %v8694, %v8696
      %v8698 = vrot.slane %v8690, %v8697
      %v8700 = vunpack.c.l.s4 1983009808
      %v8701 = vunpack.c.0.s8 %v8700
      %v8702 = vlaneseq
      %v8703 = vshrl.u32 %v8702, 7
      %v8704 = vsub.s32 %v8701, %v8703
      %v8705 = vrot.slane %v8691, %v8704
      %v8706 = vcombine.low %v8650, %v8666
      %v8707 = vcombine.high %v8650, %v8666
      %v8709 = vunpack.c.l.s4 1934713408
      %v8710 = vunpack.c.0.s8 %v8709
      %v8711 = vlaneseq
      %v8712 = vshrl.u32 %v8711, 7
      %v8713 = vsub.s32 %v8710, %v8712
      %v8714 = vrot.slane %v8706, %v8713
      %v8716 = vunpack.c.l.s4 1934713408
      %v8717 = vunpack.c.0.s8 %v8716
      %v8718 = vlaneseq
      %v8719 = vshrl.u32 %v8718, 7
      %v8720 = vsub.s32 %v8717, %v8719
      %v8721 = vrot.slane %v8707, %v8720
      %v8722 = vcombine.low %v8657, %v8673
      %v8723 = vcombine.high %v8657, %v8673
      %v8725 = vunpack.c.l.s4 1934713408
      %v8726 = vunpack.c.0.s8 %v8725
      %v8727 = vlaneseq
      %v8728 = vshrl.u32 %v8727, 7
      %v8729 = vsub.s32 %v8726, %v8728
      %v8730 = vrot.slane %v8722, %v8729
      %v8732 = vunpack.c.l.s4 1934713408
      %v8733 = vunpack.c.0.s8 %v8732
      %v8734 = vlaneseq
      %v8735 = vshrl.u32 %v8734, 7
      %v8736 = vsub.s32 %v8733, %v8735
      %v8737 = vrot.slane %v8723, %v8736
      %v8738 = vcombine.low %v8682, %v8698
      %v8739 = vcombine.high %v8682, %v8698
      %v8741 = vunpack.c.l.s4 1934713408
      %v8742 = vunpack.c.0.s8 %v8741
      %v8743 = vlaneseq
      %v8744 = vshrl.u32 %v8743, 7
      %v8745 = vsub.s32 %v8742, %v8744
      %v8746 = vrot.slane %v8738, %v8745
      %v8748 = vunpack.c.l.s4 1934713408
      %v8749 = vunpack.c.0.s8 %v8748
      %v8750 = vlaneseq
      %v8751 = vshrl.u32 %v8750, 7
      %v8752 = vsub.s32 %v8749, %v8751
      %v8753 = vrot.slane %v8739, %v8752
      %v8754 = vcombine.low %v8689, %v8705
      %v8755 = vcombine.high %v8689, %v8705
      %v8757 = vunpack.c.l.s4 1934713408
      %v8758 = vunpack.c.0.s8 %v8757
      %v8759 = vlaneseq
      %v8760 = vshrl.u32 %v8759, 7
      %v8761 = vsub.s32 %v8758, %v8760
      %v8762 = vrot.slane %v8754, %v8761
      %v8764 = vunpack.c.l.s4 1934713408
      %v8765 = vunpack.c.0.s8 %v8764
      %v8766 = vlaneseq
      %v8767 = vshrl.u32 %v8766, 7
      %v8768 = vsub.s32 %v8765, %v8767
      %v8769 = vrot.slane %v8755, %v8768
      %v8770 = vcombine.low %v8714, %v8746
      %v8771 = vcombine.high %v8714, %v8746
      %v8772 = vcombine.low %v8721, %v8753
      %v8773 = vcombine.high %v8721, %v8753
      %v8774 = vcombine.low %v8730, %v8762
      %v8775 = vcombine.high %v8730, %v8762
      %v8776 = vcombine.low %v8737, %v8769
      %v8777 = vcombine.high %v8737, %v8769
      %v8778 = vcombine.low %v7730, %v7794
      %v8779 = vcombine.high %v7730, %v7794
      %v8781 = vunpack.c.l.s4 1983009808
      %v8782 = vunpack.c.0.s8 %v8781
      %v8783 = vlaneseq
      %v8784 = vshrl.u32 %v8783, 7
      %v8785 = vsub.s32 %v8782, %v8784
      %v8786 = vrot.slane %v8778, %v8785
      %v8788 = vunpack.c.l.s4 1983009808
      %v8789 = vunpack.c.0.s8 %v8788
      %v8790 = vlaneseq
      %v8791 = vshrl.u32 %v8790, 7
      %v8792 = vsub.s32 %v8789, %v8791
      %v8793 = vrot.slane %v8779, %v8792
      %v8794 = vcombine.low %v7762, %v7826
      %v8795 = vcombine.high %v7762, %v7826
      %v8797 = vunpack.c.l.s4 1983009808
      %v8798 = vunpack.c.0.s8 %v8797
      %v8799 = vlaneseq
      %v8800 = vshrl.u32 %v8799, 7
      %v8801 = vsub.s32 %v8798, %v8800
      %v8802 = vrot.slane %v8794, %v8801
      %v8804 = vunpack.c.l.s4 1983009808
      %v8805 = vunpack.c.0.s8 %v8804
      %v8806 = vlaneseq
      %v8807 = vshrl.u32 %v8806, 7
      %v8808 = vsub.s32 %v8805, %v8807
      %v8809 = vrot.slane %v8795, %v8808
      %v8810 = vcombine.low %v7858, %v7922
      %v8811 = vcombine.high %v7858, %v7922
      %v8813 = vunpack.c.l.s4 1983009808
      %v8814 = vunpack.c.0.s8 %v8813
      %v8815 = vlaneseq
      %v8816 = vshrl.u32 %v8815, 7
      %v8817 = vsub.s32 %v8814, %v8816
      %v8818 = vrot.slane %v8810, %v8817
      %v8820 = vunpack.c.l.s4 1983009808
      %v8821 = vunpack.c.0.s8 %v8820
      %v8822 = vlaneseq
      %v8823 = vshrl.u32 %v8822, 7
      %v8824 = vsub.s32 %v8821, %v8823
      %v8825 = vrot.slane %v8811, %v8824
      %v8826 = vcombine.low %v7890, %v7954
      %v8827 = vcombine.high %v7890, %v7954
      %v8829 = vunpack.c.l.s4 1983009808
      %v8830 = vunpack.c.0.s8 %v8829
      %v8831 = vlaneseq
      %v8832 = vshrl.u32 %v8831, 7
      %v8833 = vsub.s32 %v8830, %v8832
      %v8834 = vrot.slane %v8826, %v8833
      %v8836 = vunpack.c.l.s4 1983009808
      %v8837 = vunpack.c.0.s8 %v8836
      %v8838 = vlaneseq
      %v8839 = vshrl.u32 %v8838, 7
      %v8840 = vsub.s32 %v8837, %v8839
      %v8841 = vrot.slane %v8827, %v8840
      %v8842 = vcombine.low %v8786, %v8802
      %v8843 = vcombine.high %v8786, %v8802
      %v8845 = vunpack.c.l.s4 1934713408
      %v8846 = vunpack.c.0.s8 %v8845
      %v8847 = vlaneseq
      %v8848 = vshrl.u32 %v8847, 7
      %v8849 = vsub.s32 %v8846, %v8848
      %v8850 = vrot.slane %v8842, %v8849
      %v8852 = vunpack.c.l.s4 1934713408
      %v8853 = vunpack.c.0.s8 %v8852
      %v8854 = vlaneseq
      %v8855 = vshrl.u32 %v8854, 7
      %v8856 = vsub.s32 %v8853, %v8855
      %v8857 = vrot.slane %v8843, %v8856
      %v8858 = vcombine.low %v8793, %v8809
      %v8859 = vcombine.high %v8793, %v8809
      %v8861 = vunpack.c.l.s4 1934713408
      %v8862 = vunpack.c.0.s8 %v8861
      %v8863 = vlaneseq
      %v8864 = vshrl.u32 %v8863, 7
      %v8865 = vsub.s32 %v8862, %v8864
      %v8866 = vrot.slane %v8858, %v8865
      %v8868 = vunpack.c.l.s4 1934713408
      %v8869 = vunpack.c.0.s8 %v8868
      %v8870 = vlaneseq
      %v8871 = vshrl.u32 %v8870, 7
      %v8872 = vsub.s32 %v8869, %v8871
      %v8873 = vrot.slane %v8859, %v8872
      %v8874 = vcombine.low %v8818, %v8834
      %v8875 = vcombine.high %v8818, %v8834
      %v8877 = vunpack.c.l.s4 1934713408
      %v8878 = vunpack.c.0.s8 %v8877
      %v8879 = vlaneseq
      %v8880 = vshrl.u32 %v8879, 7
      %v8881 = vsub.s32 %v8878, %v8880
      %v8882 = vrot.slane %v8874, %v8881
      %v8884 = vunpack.c.l.s4 1934713408
      %v8885 = vunpack.c.0.s8 %v8884
      %v8886 = vlaneseq
      %v8887 = vshrl.u32 %v8886, 7
      %v8888 = vsub.s32 %v8885, %v8887
      %v8889 = vrot.slane %v8875, %v8888
      %v8890 = vcombine.low %v8825, %v8841
      %v8891 = vcombine.high %v8825, %v8841
      %v8893 = vunpack.c.l.s4 1934713408
      %v8894 = vunpack.c.0.s8 %v8893
      %v8895 = vlaneseq
      %v8896 = vshrl.u32 %v8895, 7
      %v8897 = vsub.s32 %v8894, %v8896
      %v8898 = vrot.slane %v8890, %v8897
      %v8900 = vunpack.c.l.s4 1934713408
      %v8901 = vunpack.c.0.s8 %v8900
      %v8902 = vlaneseq
      %v8903 = vshrl.u32 %v8902, 7
      %v8904 = vsub.s32 %v8901, %v8903
      %v8905 = vrot.slane %v8891, %v8904
      %v8906 = vcombine.low %v8850, %v8882
      %v8907 = vcombine.high %v8850, %v8882
      %v8908 = vcombine.low %v8857, %v8889
      %v8909 = vcombine.high %v8857, %v8889
      %v8910 = vcombine.low %v8866, %v8898
      %v8911 = vcombine.high %v8866, %v8898
      %v8912 = vcombine.low %v8873, %v8905
      %v8913 = vcombine.high %v8873, %v8905
      %v8914 = vcombine.low %v7746, %v7810
      %v8915 = vcombine.high %v7746, %v7810
      %v8917 = vunpack.c.l.s4 1983009808
      %v8918 = vunpack.c.0.s8 %v8917
      %v8919 = vlaneseq
      %v8920 = vshrl.u32 %v8919, 7
      %v8921 = vsub.s32 %v8918, %v8920
      %v8922 = vrot.slane %v8914, %v8921
      %v8924 = vunpack.c.l.s4 1983009808
      %v8925 = vunpack.c.0.s8 %v8924
      %v8926 = vlaneseq
      %v8927 = vshrl.u32 %v8926, 7
      %v8928 = vsub.s32 %v8925, %v8927
      %v8929 = vrot.slane %v8915, %v8928
      %v8930 = vcombine.low %v7778, %v7842
      %v8931 = vcombine.high %v7778, %v7842
      %v8933 = vunpack.c.l.s4 1983009808
      %v8934 = vunpack.c.0.s8 %v8933
      %v8935 = vlaneseq
      %v8936 = vshrl.u32 %v8935, 7
      %v8937 = vsub.s32 %v8934, %v8936
      %v8938 = vrot.slane %v8930, %v8937
      %v8940 = vunpack.c.l.s4 1983009808
      %v8941 = vunpack.c.0.s8 %v8940
      %v8942 = vlaneseq
      %v8943 = vshrl.u32 %v8942, 7
      %v8944 = vsub.s32 %v8941, %v8943
      %v8945 = vrot.slane %v8931, %v8944
      %v8946 = vcombine.low %v7874, %v7938
      %v8947 = vcombine.high %v7874, %v7938
      %v8949 = vunpack.c.l.s4 1983009808
      %v8950 = vunpack.c.0.s8 %v8949
      %v8951 = vlaneseq
      %v8952 = vshrl.u32 %v8951, 7
      %v8953 = vsub.s32 %v8950, %v8952
      %v8954 = vrot.slane %v8946, %v8953
      %v8956 = vunpack.c.l.s4 1983009808
      %v8957 = vunpack.c.0.s8 %v8956
      %v8958 = vlaneseq
      %v8959 = vshrl.u32 %v8958, 7
      %v8960 = vsub.s32 %v8957, %v8959
      %v8961 = vrot.slane %v8947, %v8960
      %v8962 = vcombine.low %v7906, %v7970
      %v8963 = vcombine.high %v7906, %v7970
      %v8965 = vunpack.c.l.s4 1983009808
      %v8966 = vunpack.c.0.s8 %v8965
      %v8967 = vlaneseq
      %v8968 = vshrl.u32 %v8967, 7
      %v8969 = vsub.s32 %v8966, %v8968
      %v8970 = vrot.slane %v8962, %v8969
      %v8972 = vunpack.c.l.s4 1983009808
      %v8973 = vunpack.c.0.s8 %v8972
      %v8974 = vlaneseq
      %v8975 = vshrl.u32 %v8974, 7
      %v8976 = vsub.s32 %v8973, %v8975
      %v8977 = vrot.slane %v8963, %v8976
      %v8978 = vcombine.low %v8922, %v8938
      %v8979 = vcombine.high %v8922, %v8938
      %v8981 = vunpack.c.l.s4 1934713408
      %v8982 = vunpack.c.0.s8 %v8981
      %v8983 = vlaneseq
      %v8984 = vshrl.u32 %v8983, 7
      %v8985 = vsub.s32 %v8982, %v8984
      %v8986 = vrot.slane %v8978, %v8985
      %v8988 = vunpack.c.l.s4 1934713408
      %v8989 = vunpack.c.0.s8 %v8988
      %v8990 = vlaneseq
      %v8991 = vshrl.u32 %v8990, 7
      %v8992 = vsub.s32 %v8989, %v8991
      %v8993 = vrot.slane %v8979, %v8992
      %v8994 = vcombine.low %v8929, %v8945
      %v8995 = vcombine.high %v8929, %v8945
      %v8997 = vunpack.c.l.s4 1934713408
      %v8998 = vunpack.c.0.s8 %v8997
      %v8999 = vlaneseq
      %v9000 = vshrl.u32 %v8999, 7
      %v9001 = vsub.s32 %v8998, %v9000
      %v9002 = vrot.slane %v8994, %v9001
      %v9004 = vunpack.c.l.s4 1934713408
      %v9005 = vunpack.c.0.s8 %v9004
      %v9006 = vlaneseq
      %v9007 = vshrl.u32 %v9006, 7
      %v9008 = vsub.s32 %v9005, %v9007
      %v9009 = vrot.slane %v8995, %v9008
      %v9010 = vcombine.low %v8954, %v8970
      %v9011 = vcombine.high %v8954, %v8970
      %v9013 = vunpack.c.l.s4 1934713408
      %v9014 = vunpack.c.0.s8 %v9013
      %v9015 = vlaneseq
      %v9016 = vshrl.u32 %v9015, 7
      %v9017 = vsub.s32 %v9014, %v9016
      %v9018 = vrot.slane %v9010, %v9017
      %v9020 = vunpack.c.l.s4 1934713408
      %v9021 = vunpack.c.0.s8 %v9020
      %v9022 = vlaneseq
      %v9023 = vshrl.u32 %v9022, 7
      %v9024 = vsub.s32 %v9021, %v9023
      %v9025 = vrot.slane %v9011, %v9024
      %v9026 = vcombine.low %v8961, %v8977
      %v9027 = vcombine.high %v8961, %v8977
      %v9029 = vunpack.c.l.s4 1934713408
      %v9030 = vunpack.c.0.s8 %v9029
      %v9031 = vlaneseq
      %v9032 = vshrl.u32 %v9031, 7
      %v9033 = vsub.s32 %v9030, %v9032
      %v9034 = vrot.slane %v9026, %v9033
      %v9036 = vunpack.c.l.s4 1934713408
      %v9037 = vunpack.c.0.s8 %v9036
      %v9038 = vlaneseq
      %v9039 = vshrl.u32 %v9038, 7
      %v9040 = vsub.s32 %v9037, %v9039
      %v9041 = vrot.slane %v9027, %v9040
      %v9042 = vcombine.low %v8986, %v9018
      %v9043 = vcombine.high %v8986, %v9018
      %v9044 = vcombine.low %v8993, %v9025
      %v9045 = vcombine.high %v8993, %v9025
      %v9046 = vcombine.low %v9002, %v9034
      %v9047 = vcombine.high %v9002, %v9034
      %v9048 = vcombine.low %v9009, %v9041
      %v9049 = vcombine.high %v9009, %v9041
      %v9050 = vcombine.low %v7986, %v8050
      %v9051 = vcombine.high %v7986, %v8050
      %v9053 = vunpack.c.l.s4 1983009808
      %v9054 = vunpack.c.0.s8 %v9053
      %v9055 = vlaneseq
      %v9056 = vshrl.u32 %v9055, 7
      %v9057 = vsub.s32 %v9054, %v9056
      %v9058 = vrot.slane %v9050, %v9057
      %v9060 = vunpack.c.l.s4 1983009808
      %v9061 = vunpack.c.0.s8 %v9060
      %v9062 = vlaneseq
      %v9063 = vshrl.u32 %v9062, 7
      %v9064 = vsub.s32 %v9061, %v9063
      %v9065 = vrot.slane %v9051, %v9064
      %v9066 = vcombine.low %v8018, %v8082
      %v9067 = vcombine.high %v8018, %v8082
      %v9069 = vunpack.c.l.s4 1983009808
      %v9070 = vunpack.c.0.s8 %v9069
      %v9071 = vlaneseq
      %v9072 = vshrl.u32 %v9071, 7
      %v9073 = vsub.s32 %v9070, %v9072
      %v9074 = vrot.slane %v9066, %v9073
      %v9076 = vunpack.c.l.s4 1983009808
      %v9077 = vunpack.c.0.s8 %v9076
      %v9078 = vlaneseq
      %v9079 = vshrl.u32 %v9078, 7
      %v9080 = vsub.s32 %v9077, %v9079
      %v9081 = vrot.slane %v9067, %v9080
      %v9082 = vcombine.low %v8114, %v8178
      %v9083 = vcombine.high %v8114, %v8178
      %v9085 = vunpack.c.l.s4 1983009808
      %v9086 = vunpack.c.0.s8 %v9085
      %v9087 = vlaneseq
      %v9088 = vshrl.u32 %v9087, 7
      %v9089 = vsub.s32 %v9086, %v9088
      %v9090 = vrot.slane %v9082, %v9089
      %v9092 = vunpack.c.l.s4 1983009808
      %v9093 = vunpack.c.0.s8 %v9092
      %v9094 = vlaneseq
      %v9095 = vshrl.u32 %v9094, 7
      %v9096 = vsub.s32 %v9093, %v9095
      %v9097 = vrot.slane %v9083, %v9096
      %v9098 = vcombine.low %v8146, %v8210
      %v9099 = vcombine.high %v8146, %v8210
      %v9101 = vunpack.c.l.s4 1983009808
      %v9102 = vunpack.c.0.s8 %v9101
      %v9103 = vlaneseq
      %v9104 = vshrl.u32 %v9103, 7
      %v9105 = vsub.s32 %v9102, %v9104
      %v9106 = vrot.slane %v9098, %v9105
      %v9108 = vunpack.c.l.s4 1983009808
      %v9109 = vunpack.c.0.s8 %v9108
      %v9110 = vlaneseq
      %v9111 = vshrl.u32 %v9110, 7
      %v9112 = vsub.s32 %v9109, %v9111
      %v9113 = vrot.slane %v9099, %v9112
      %v9114 = vcombine.low %v9058, %v9074
      %v9115 = vcombine.high %v9058, %v9074
      %v9117 = vunpack.c.l.s4 1934713408
      %v9118 = vunpack.c.0.s8 %v9117
      %v9119 = vlaneseq
      %v9120 = vshrl.u32 %v9119, 7
      %v9121 = vsub.s32 %v9118, %v9120
      %v9122 = vrot.slane %v9114, %v9121
      %v9124 = vunpack.c.l.s4 1934713408
      %v9125 = vunpack.c.0.s8 %v9124
      %v9126 = vlaneseq
      %v9127 = vshrl.u32 %v9126, 7
      %v9128 = vsub.s32 %v9125, %v9127
      %v9129 = vrot.slane %v9115, %v9128
      %v9130 = vcombine.low %v9065, %v9081
      %v9131 = vcombine.high %v9065, %v9081
      %v9133 = vunpack.c.l.s4 1934713408
      %v9134 = vunpack.c.0.s8 %v9133
      %v9135 = vlaneseq
      %v9136 = vshrl.u32 %v9135, 7
      %v9137 = vsub.s32 %v9134, %v9136
      %v9138 = vrot.slane %v9130, %v9137
      %v9140 = vunpack.c.l.s4 1934713408
      %v9141 = vunpack.c.0.s8 %v9140
      %v9142 = vlaneseq
      %v9143 = vshrl.u32 %v9142, 7
      %v9144 = vsub.s32 %v9141, %v9143
      %v9145 = vrot.slane %v9131, %v9144
      %v9146 = vcombine.low %v9090, %v9106
      %v9147 = vcombine.high %v9090, %v9106
      %v9149 = vunpack.c.l.s4 1934713408
      %v9150 = vunpack.c.0.s8 %v9149
      %v9151 = vlaneseq
      %v9152 = vshrl.u32 %v9151, 7
      %v9153 = vsub.s32 %v9150, %v9152
      %v9154 = vrot.slane %v9146, %v9153
      %v9156 = vunpack.c.l.s4 1934713408
      %v9157 = vunpack.c.0.s8 %v9156
      %v9158 = vlaneseq
      %v9159 = vshrl.u32 %v9158, 7
      %v9160 = vsub.s32 %v9157, %v9159
      %v9161 = vrot.slane %v9147, %v9160
      %v9162 = vcombine.low %v9097, %v9113
      %v9163 = vcombine.high %v9097, %v9113
      %v9165 = vunpack.c.l.s4 1934713408
      %v9166 = vunpack.c.0.s8 %v9165
      %v9167 = vlaneseq
      %v9168 = vshrl.u32 %v9167, 7
      %v9169 = vsub.s32 %v9166, %v9168
      %v9170 = vrot.slane %v9162, %v9169
      %v9172 = vunpack.c.l.s4 1934713408
      %v9173 = vunpack.c.0.s8 %v9172
      %v9174 = vlaneseq
      %v9175 = vshrl.u32 %v9174, 7
      %v9176 = vsub.s32 %v9173, %v9175
      %v9177 = vrot.slane %v9163, %v9176
      %v9178 = vcombine.low %v9122, %v9154
      %v9179 = vcombine.high %v9122, %v9154
      %v9180 = vcombine.low %v9129, %v9161
      %v9181 = vcombine.high %v9129, %v9161
      %v9182 = vcombine.low %v9138, %v9170
      %v9183 = vcombine.high %v9138, %v9170
      %v9184 = vcombine.low %v9145, %v9177
      %v9185 = vcombine.high %v9145, %v9177
      %v9186 = vcombine.low %v8002, %v8066
      %v9187 = vcombine.high %v8002, %v8066
      %v9189 = vunpack.c.l.s4 1983009808
      %v9190 = vunpack.c.0.s8 %v9189
      %v9191 = vlaneseq
      %v9192 = vshrl.u32 %v9191, 7
      %v9193 = vsub.s32 %v9190, %v9192
      %v9194 = vrot.slane %v9186, %v9193
      %v9196 = vunpack.c.l.s4 1983009808
      %v9197 = vunpack.c.0.s8 %v9196
      %v9198 = vlaneseq
      %v9199 = vshrl.u32 %v9198, 7
      %v9200 = vsub.s32 %v9197, %v9199
      %v9201 = vrot.slane %v9187, %v9200
      %v9202 = vcombine.low %v8034, %v8098
      %v9203 = vcombine.high %v8034, %v8098
      %v9205 = vunpack.c.l.s4 1983009808
      %v9206 = vunpack.c.0.s8 %v9205
      %v9207 = vlaneseq
      %v9208 = vshrl.u32 %v9207, 7
      %v9209 = vsub.s32 %v9206, %v9208
      %v9210 = vrot.slane %v9202, %v9209
      %v9212 = vunpack.c.l.s4 1983009808
      %v9213 = vunpack.c.0.s8 %v9212
      %v9214 = vlaneseq
      %v9215 = vshrl.u32 %v9214, 7
      %v9216 = vsub.s32 %v9213, %v9215
      %v9217 = vrot.slane %v9203, %v9216
      %v9218 = vcombine.low %v8130, %v8194
      %v9219 = vcombine.high %v8130, %v8194
      %v9221 = vunpack.c.l.s4 1983009808
      %v9222 = vunpack.c.0.s8 %v9221
      %v9223 = vlaneseq
      %v9224 = vshrl.u32 %v9223, 7
      %v9225 = vsub.s32 %v9222, %v9224
      %v9226 = vrot.slane %v9218, %v9225
      %v9228 = vunpack.c.l.s4 1983009808
      %v9229 = vunpack.c.0.s8 %v9228
      %v9230 = vlaneseq
      %v9231 = vshrl.u32 %v9230, 7
      %v9232 = vsub.s32 %v9229, %v9231
      %v9233 = vrot.slane %v9219, %v9232
      %v9234 = vcombine.low %v8162, %v8226
      %v9235 = vcombine.high %v8162, %v8226
      %v9237 = vunpack.c.l.s4 1983009808
      %v9238 = vunpack.c.0.s8 %v9237
      %v9239 = vlaneseq
      %v9240 = vshrl.u32 %v9239, 7
      %v9241 = vsub.s32 %v9238, %v9240
      %v9242 = vrot.slane %v9234, %v9241
      %v9244 = vunpack.c.l.s4 1983009808
      %v9245 = vunpack.c.0.s8 %v9244
      %v9246 = vlaneseq
      %v9247 = vshrl.u32 %v9246, 7
      %v9248 = vsub.s32 %v9245, %v9247
      %v9249 = vrot.slane %v9235, %v9248
      %v9250 = vcombine.low %v9194, %v9210
      %v9251 = vcombine.high %v9194, %v9210
      %v9253 = vunpack.c.l.s4 1934713408
      %v9254 = vunpack.c.0.s8 %v9253
      %v9255 = vlaneseq
      %v9256 = vshrl.u32 %v9255, 7
      %v9257 = vsub.s32 %v9254, %v9256
      %v9258 = vrot.slane %v9250, %v9257
      %v9260 = vunpack.c.l.s4 1934713408
      %v9261 = vunpack.c.0.s8 %v9260
      %v9262 = vlaneseq
      %v9263 = vshrl.u32 %v9262, 7
      %v9264 = vsub.s32 %v9261, %v9263
      %v9265 = vrot.slane %v9251, %v9264
      %v9266 = vcombine.low %v9201, %v9217
      %v9267 = vcombine.high %v9201, %v9217
      %v9269 = vunpack.c.l.s4 1934713408
      %v9270 = vunpack.c.0.s8 %v9269
      %v9271 = vlaneseq
      %v9272 = vshrl.u32 %v9271, 7
      %v9273 = vsub.s32 %v9270, %v9272
      %v9274 = vrot.slane %v9266, %v9273
      %v9276 = vunpack.c.l.s4 1934713408
      %v9277 = vunpack.c.0.s8 %v9276
      %v9278 = vlaneseq
      %v9279 = vshrl.u32 %v9278, 7
      %v9280 = vsub.s32 %v9277, %v9279
      %v9281 = vrot.slane %v9267, %v9280
      %v9282 = vcombine.low %v9226, %v9242
      %v9283 = vcombine.high %v9226, %v9242
      %v9285 = vunpack.c.l.s4 1934713408
      %v9286 = vunpack.c.0.s8 %v9285
      %v9287 = vlaneseq
      %v9288 = vshrl.u32 %v9287, 7
      %v9289 = vsub.s32 %v9286, %v9288
      %v9290 = vrot.slane %v9282, %v9289
      %v9292 = vunpack.c.l.s4 1934713408
      %v9293 = vunpack.c.0.s8 %v9292
      %v9294 = vlaneseq
      %v9295 = vshrl.u32 %v9294, 7
      %v9296 = vsub.s32 %v9293, %v9295
      %v9297 = vrot.slane %v9283, %v9296
      %v9298 = vcombine.low %v9233, %v9249
      %v9299 = vcombine.high %v9233, %v9249
      %v9301 = vunpack.c.l.s4 1934713408
      %v9302 = vunpack.c.0.s8 %v9301
      %v9303 = vlaneseq
      %v9304 = vshrl.u32 %v9303, 7
      %v9305 = vsub.s32 %v9302, %v9304
      %v9306 = vrot.slane %v9298, %v9305
      %v9308 = vunpack.c.l.s4 1934713408
      %v9309 = vunpack.c.0.s8 %v9308
      %v9310 = vlaneseq
      %v9311 = vshrl.u32 %v9310, 7
      %v9312 = vsub.s32 %v9309, %v9311
      %v9313 = vrot.slane %v9299, %v9312
      %v9314 = vcombine.low %v9258, %v9290
      %v9315 = vcombine.high %v9258, %v9290
      %v9316 = vcombine.low %v9265, %v9297
      %v9317 = vcombine.high %v9265, %v9297
      %v9318 = vcombine.low %v9274, %v9306
      %v9319 = vcombine.high %v9274, %v9306
      %v9320 = vcombine.low %v9281, %v9313
      %v9321 = vcombine.high %v9281, %v9313
      %v9324 = vpack.i.b16 %v8498, %v8362
      %v9326 = vshrl.u32 %v8362, 16
      %v9327 = vshrl.u32 %v8498, 16
      %v9328 = vpack.i.b16 %v9327, %v9326
      %v9332 = vpack.i.b16 %v8499, %v8363
      %v9334 = vshrl.u32 %v8363, 16
      %v9335 = vshrl.u32 %v8499, 16
      %v9336 = vpack.i.b16 %v9335, %v9334
      %v9340 = vpack.i.b16 %v8500, %v8364
      %v9342 = vshrl.u32 %v8364, 16
      %v9343 = vshrl.u32 %v8500, 16
      %v9344 = vpack.i.b16 %v9343, %v9342
      %v9348 = vpack.i.b16 %v8501, %v8365
      %v9350 = vshrl.u32 %v8365, 16
      %v9351 = vshrl.u32 %v8501, 16
      %v9352 = vpack.i.b16 %v9351, %v9350
      %v9356 = vpack.i.b16 %v8502, %v8366
      %v9358 = vshrl.u32 %v8366, 16
      %v9359 = vshrl.u32 %v8502, 16
      %v9360 = vpack.i.b16 %v9359, %v9358
      %v9364 = vpack.i.b16 %v8503, %v8367
      %v9366 = vshrl.u32 %v8367, 16
      %v9367 = vshrl.u32 %v8503, 16
      %v9368 = vpack.i.b16 %v9367, %v9366
      %v9372 = vpack.i.b16 %v8504, %v8368
      %v9374 = vshrl.u32 %v8368, 16
      %v9375 = vshrl.u32 %v8504, 16
      %v9376 = vpack.i.b16 %v9375, %v9374
      %v9380 = vpack.i.b16 %v8505, %v8369
      %v9382 = vshrl.u32 %v8369, 16
      %v9383 = vshrl.u32 %v8505, 16
      %v9384 = vpack.i.b16 %v9383, %v9382
      %v9388 = vpack.i.b16 %v8770, %v8634
      %v9390 = vshrl.u32 %v8634, 16
      %v9391 = vshrl.u32 %v8770, 16
      %v9392 = vpack.i.b16 %v9391, %v9390
      %v9396 = vpack.i.b16 %v8771, %v8635
      %v9398 = vshrl.u32 %v8635, 16
      %v9399 = vshrl.u32 %v8771, 16
      %v9400 = vpack.i.b16 %v9399, %v9398
      %v9404 = vpack.i.b16 %v8772, %v8636
      %v9406 = vshrl.u32 %v8636, 16
      %v9407 = vshrl.u32 %v8772, 16
      %v9408 = vpack.i.b16 %v9407, %v9406
      %v9412 = vpack.i.b16 %v8773, %v8637
      %v9414 = vshrl.u32 %v8637, 16
      %v9415 = vshrl.u32 %v8773, 16
      %v9416 = vpack.i.b16 %v9415, %v9414
      %v9420 = vpack.i.b16 %v8774, %v8638
      %v9422 = vshrl.u32 %v8638, 16
      %v9423 = vshrl.u32 %v8774, 16
      %v9424 = vpack.i.b16 %v9423, %v9422
      %v9428 = vpack.i.b16 %v8775, %v8639
      %v9430 = vshrl.u32 %v8639, 16
      %v9431 = vshrl.u32 %v8775, 16
      %v9432 = vpack.i.b16 %v9431, %v9430
      %v9436 = vpack.i.b16 %v8776, %v8640
      %v9438 = vshrl.u32 %v8640, 16
      %v9439 = vshrl.u32 %v8776, 16
      %v9440 = vpack.i.b16 %v9439, %v9438
      %v9444 = vpack.i.b16 %v8777, %v8641
      %v9446 = vshrl.u32 %v8641, 16
      %v9447 = vshrl.u32 %v8777, 16
      %v9448 = vpack.i.b16 %v9447, %v9446
      %v9452 = vpack.i.b16 %v9042, %v8906
      %v9454 = vshrl.u32 %v8906, 16
      %v9455 = vshrl.u32 %v9042, 16
      %v9456 = vpack.i.b16 %v9455, %v9454
      %v9460 = vpack.i.b16 %v9043, %v8907
      %v9462 = vshrl.u32 %v8907, 16
      %v9463 = vshrl.u32 %v9043, 16
      %v9464 = vpack.i.b16 %v9463, %v9462
      %v9468 = vpack.i.b16 %v9044, %v8908
      %v9470 = vshrl.u32 %v8908, 16
      %v9471 = vshrl.u32 %v9044, 16
      %v9472 = vpack.i.b16 %v9471, %v9470
      %v9476 = vpack.i.b16 %v9045, %v8909
      %v9478 = vshrl.u32 %v8909, 16
      %v9479 = vshrl.u32 %v9045, 16
      %v9480 = vpack.i.b16 %v9479, %v9478
      %v9484 = vpack.i.b16 %v9046, %v8910
      %v9486 = vshrl.u32 %v8910, 16
      %v9487 = vshrl.u32 %v9046, 16
      %v9488 = vpack.i.b16 %v9487, %v9486
      %v9492 = vpack.i.b16 %v9047, %v8911
      %v9494 = vshrl.u32 %v8911, 16
      %v9495 = vshrl.u32 %v9047, 16
      %v9496 = vpack.i.b16 %v9495, %v9494
      %v9500 = vpack.i.b16 %v9048, %v8912
      %v9502 = vshrl.u32 %v8912, 16
      %v9503 = vshrl.u32 %v9048, 16
      %v9504 = vpack.i.b16 %v9503, %v9502
      %v9508 = vpack.i.b16 %v9049, %v8913
      %v9510 = vshrl.u32 %v8913, 16
      %v9511 = vshrl.u32 %v9049, 16
      %v9512 = vpack.i.b16 %v9511, %v9510
      %v9516 = vpack.i.b16 %v9314, %v9178
      %v9518 = vshrl.u32 %v9178, 16
      %v9519 = vshrl.u32 %v9314, 16
      %v9520 = vpack.i.b16 %v9519, %v9518
      %v9524 = vpack.i.b16 %v9315, %v9179
      %v9526 = vshrl.u32 %v9179, 16
      %v9527 = vshrl.u32 %v9315, 16
      %v9528 = vpack.i.b16 %v9527, %v9526
      %v9532 = vpack.i.b16 %v9316, %v9180
      %v9534 = vshrl.u32 %v9180, 16
      %v9535 = vshrl.u32 %v9316, 16
      %v9536 = vpack.i.b16 %v9535, %v9534
      %v9540 = vpack.i.b16 %v9317, %v9181
      %v9542 = vshrl.u32 %v9181, 16
      %v9543 = vshrl.u32 %v9317, 16
      %v9544 = vpack.i.b16 %v9543, %v9542
      %v9548 = vpack.i.b16 %v9318, %v9182
      %v9550 = vshrl.u32 %v9182, 16
      %v9551 = vshrl.u32 %v9318, 16
      %v9552 = vpack.i.b16 %v9551, %v9550
      %v9556 = vpack.i.b16 %v9319, %v9183
      %v9558 = vshrl.u32 %v9183, 16
      %v9559 = vshrl.u32 %v9319, 16
      %v9560 = vpack.i.b16 %v9559, %v9558
      %v9564 = vpack.i.b16 %v9320, %v9184
      %v9566 = vshrl.u32 %v9184, 16
      %v9567 = vshrl.u32 %v9320, 16
      %v9568 = vpack.i.b16 %v9567, %v9566
      %v9572 = vpack.i.b16 %v9321, %v9185
      %v9574 = vshrl.u32 %v9185, 16
      %v9575 = vshrl.u32 %v9321, 16
      %v9576 = vpack.i.b16 %v9575, %v9574
      %9578 = vxpose.xlu0.c.b16.start [1/8] %v9324, 128
      %9579 = vxpose.xlu0.c.b16.cont [2/8] %v9388, 128
      %9580 = vxpose.xlu0.c.b16.cont [3/8] %v9452, 128
      %9581 = vxpose.xlu0.c.b16.cont [4/8] %v9516, 128
      %9582 = vxpose.xlu0.c.b16.cont [5/8] 0, 128
      %9583 = vxpose.xlu0.c.b16.cont [6/8] 0, 128
      %9584 = vxpose.xlu0.c.b16.cont [7/8] 0, 128
      %9585 = vxpose.xlu0.c.b16.end [8/8] 0, 128
      %v9586 = vpop.trf.xlu0
      %v9587 = vpop.trf.xlu0
      %v9588 = vpop.trf.xlu0
      %v9589 = vpop.trf.xlu0
      %v9590 = vpop.trf.xlu0
      %v9591 = vpop.trf.xlu0
      %v9592 = vpop.trf.xlu0
      %v9593 = vpop.trf.xlu0
      %9594 = vxpose.xlu0.c.b16.start [1/8] %v9328, 128
      %9595 = vxpose.xlu0.c.b16.cont [2/8] %v9392, 128
      %9596 = vxpose.xlu0.c.b16.cont [3/8] %v9456, 128
      %9597 = vxpose.xlu0.c.b16.cont [4/8] %v9520, 128
      %9598 = vxpose.xlu0.c.b16.cont [5/8] 0, 128
      %9599 = vxpose.xlu0.c.b16.cont [6/8] 0, 128
      %9600 = vxpose.xlu0.c.b16.cont [7/8] 0, 128
      %9601 = vxpose.xlu0.c.b16.end [8/8] 0, 128
      %v9602 = vpop.trf.xlu0
      %v9603 = vpop.trf.xlu0
      %v9604 = vpop.trf.xlu0
      %v9605 = vpop.trf.xlu0
      %v9606 = vpop.trf.xlu0
      %v9607 = vpop.trf.xlu0
      %v9608 = vpop.trf.xlu0
      %v9609 = vpop.trf.xlu0
      %9610 = vxpose.xlu0.c.b16.start [1/8] %v9332, 128
      %9611 = vxpose.xlu0.c.b16.cont [2/8] %v9396, 128
      %9612 = vxpose.xlu0.c.b16.cont [3/8] %v9460, 128
      %9613 = vxpose.xlu0.c.b16.cont [4/8] %v9524, 128
      %9614 = vxpose.xlu0.c.b16.cont [5/8] 0, 128
      %9615 = vxpose.xlu0.c.b16.cont [6/8] 0, 128
      %9616 = vxpose.xlu0.c.b16.cont [7/8] 0, 128
      %9617 = vxpose.xlu0.c.b16.end [8/8] 0, 128
      %v9618 = vpop.trf.xlu0
      %v9619 = vpop.trf.xlu0
      %v9620 = vpop.trf.xlu0
      %v9621 = vpop.trf.xlu0
      %v9622 = vpop.trf.xlu0
      %v9623 = vpop.trf.xlu0
      %v9624 = vpop.trf.xlu0
      %v9625 = vpop.trf.xlu0
      %9626 = vxpose.xlu0.c.b16.start [1/8] %v9336, 128
      %9627 = vxpose.xlu0.c.b16.cont [2/8] %v9400, 128
      %9628 = vxpose.xlu0.c.b16.cont [3/8] %v9464, 128
      %9629 = vxpose.xlu0.c.b16.cont [4/8] %v9528, 128
      %9630 = vxpose.xlu0.c.b16.cont [5/8] 0, 128
      %9631 = vxpose.xlu0.c.b16.cont [6/8] 0, 128
      %9632 = vxpose.xlu0.c.b16.cont [7/8] 0, 128
      %9633 = vxpose.xlu0.c.b16.end [8/8] 0, 128
      %v9634 = vpop.trf.xlu0
      %v9635 = vpop.trf.xlu0
      %v9636 = vpop.trf.xlu0
      %v9637 = vpop.trf.xlu0
      %v9638 = vpop.trf.xlu0
      %v9639 = vpop.trf.xlu0
      %v9640 = vpop.trf.xlu0
      %v9641 = vpop.trf.xlu0
      %9642 = vxpose.xlu0.c.b16.start [1/8] %v9340, 128
      %9643 = vxpose.xlu0.c.b16.cont [2/8] %v9404, 128
      %9644 = vxpose.xlu0.c.b16.cont [3/8] %v9468, 128
      %9645 = vxpose.xlu0.c.b16.cont [4/8] %v9532, 128
      %9646 = vxpose.xlu0.c.b16.cont [5/8] 0, 128
      %9647 = vxpose.xlu0.c.b16.cont [6/8] 0, 128
      %9648 = vxpose.xlu0.c.b16.cont [7/8] 0, 128
      %9649 = vxpose.xlu0.c.b16.end [8/8] 0, 128
      %v9650 = vpop.trf.xlu0
      %v9651 = vpop.trf.xlu0
      %v9652 = vpop.trf.xlu0
      %v9653 = vpop.trf.xlu0
      %v9654 = vpop.trf.xlu0
      %v9655 = vpop.trf.xlu0
      %v9656 = vpop.trf.xlu0
      %v9657 = vpop.trf.xlu0
      %9658 = vxpose.xlu0.c.b16.start [1/8] %v9344, 128
      %9659 = vxpose.xlu0.c.b16.cont [2/8] %v9408, 128
      %9660 = vxpose.xlu0.c.b16.cont [3/8] %v9472, 128
      %9661 = vxpose.xlu0.c.b16.cont [4/8] %v9536, 128
      %9662 = vxpose.xlu0.c.b16.cont [5/8] 0, 128
      %9663 = vxpose.xlu0.c.b16.cont [6/8] 0, 128
      %9664 = vxpose.xlu0.c.b16.cont [7/8] 0, 128
      %9665 = vxpose.xlu0.c.b16.end [8/8] 0, 128
      %v9666 = vpop.trf.xlu0
      %v9667 = vpop.trf.xlu0
      %v9668 = vpop.trf.xlu0
      %v9669 = vpop.trf.xlu0
      %v9670 = vpop.trf.xlu0
      %v9671 = vpop.trf.xlu0
      %v9672 = vpop.trf.xlu0
      %v9673 = vpop.trf.xlu0
      %9674 = vxpose.xlu0.c.b16.start [1/8] %v9348, 128
      %9675 = vxpose.xlu0.c.b16.cont [2/8] %v9412, 128
      %9676 = vxpose.xlu0.c.b16.cont [3/8] %v9476, 128
      %9677 = vxpose.xlu0.c.b16.cont [4/8] %v9540, 128
      %9678 = vxpose.xlu0.c.b16.cont [5/8] 0, 128
      %9679 = vxpose.xlu0.c.b16.cont [6/8] 0, 128
      %9680 = vxpose.xlu0.c.b16.cont [7/8] 0, 128
      %9681 = vxpose.xlu0.c.b16.end [8/8] 0, 128
      %v9682 = vpop.trf.xlu0
      %v9683 = vpop.trf.xlu0
      %v9684 = vpop.trf.xlu0
      %v9685 = vpop.trf.xlu0
      %v9686 = vpop.trf.xlu0
      %v9687 = vpop.trf.xlu0
      %v9688 = vpop.trf.xlu0
      %v9689 = vpop.trf.xlu0
      %9690 = vxpose.xlu0.c.b16.start [1/8] %v9352, 128
      %9691 = vxpose.xlu0.c.b16.cont [2/8] %v9416, 128
      %9692 = vxpose.xlu0.c.b16.cont [3/8] %v9480, 128
      %9693 = vxpose.xlu0.c.b16.cont [4/8] %v9544, 128
      %9694 = vxpose.xlu0.c.b16.cont [5/8] 0, 128
      %9695 = vxpose.xlu0.c.b16.cont [6/8] 0, 128
      %9696 = vxpose.xlu0.c.b16.cont [7/8] 0, 128
      %9697 = vxpose.xlu0.c.b16.end [8/8] 0, 128
      %v9698 = vpop.trf.xlu0
      %v9699 = vpop.trf.xlu0
      %v9700 = vpop.trf.xlu0
      %v9701 = vpop.trf.xlu0
      %v9702 = vpop.trf.xlu0
      %v9703 = vpop.trf.xlu0
      %v9704 = vpop.trf.xlu0
      %v9705 = vpop.trf.xlu0
      %9706 = vxpose.xlu0.c.b16.start [1/8] %v9356, 128
      %9707 = vxpose.xlu0.c.b16.cont [2/8] %v9420, 128
      %9708 = vxpose.xlu0.c.b16.cont [3/8] %v9484, 128
      %9709 = vxpose.xlu0.c.b16.cont [4/8] %v9548, 128
      %9710 = vxpose.xlu0.c.b16.cont [5/8] 0, 128
      %9711 = vxpose.xlu0.c.b16.cont [6/8] 0, 128
      %9712 = vxpose.xlu0.c.b16.cont [7/8] 0, 128
      %9713 = vxpose.xlu0.c.b16.end [8/8] 0, 128
      %v9714 = vpop.trf.xlu0
      %v9715 = vpop.trf.xlu0
      %v9716 = vpop.trf.xlu0
      %v9717 = vpop.trf.xlu0
      %v9718 = vpop.trf.xlu0
      %v9719 = vpop.trf.xlu0
      %v9720 = vpop.trf.xlu0
      %v9721 = vpop.trf.xlu0
      %9722 = vxpose.xlu0.c.b16.start [1/8] %v9360, 128
      %9723 = vxpose.xlu0.c.b16.cont [2/8] %v9424, 128
      %9724 = vxpose.xlu0.c.b16.cont [3/8] %v9488, 128
      %9725 = vxpose.xlu0.c.b16.cont [4/8] %v9552, 128
      %9726 = vxpose.xlu0.c.b16.cont [5/8] 0, 128
      %9727 = vxpose.xlu0.c.b16.cont [6/8] 0, 128
      %9728 = vxpose.xlu0.c.b16.cont [7/8] 0, 128
      %9729 = vxpose.xlu0.c.b16.end [8/8] 0, 128
      %v9730 = vpop.trf.xlu0
      %v9731 = vpop.trf.xlu0
      %v9732 = vpop.trf.xlu0
      %v9733 = vpop.trf.xlu0
      %v9734 = vpop.trf.xlu0
      %v9735 = vpop.trf.xlu0
      %v9736 = vpop.trf.xlu0
      %v9737 = vpop.trf.xlu0
      %9738 = vxpose.xlu0.c.b16.start [1/8] %v9364, 128
      %9739 = vxpose.xlu0.c.b16.cont [2/8] %v9428, 128
      %9740 = vxpose.xlu0.c.b16.cont [3/8] %v9492, 128
      %9741 = vxpose.xlu0.c.b16.cont [4/8] %v9556, 128
      %9742 = vxpose.xlu0.c.b16.cont [5/8] 0, 128
      %9743 = vxpose.xlu0.c.b16.cont [6/8] 0, 128
      %9744 = vxpose.xlu0.c.b16.cont [7/8] 0, 128
      %9745 = vxpose.xlu0.c.b16.end [8/8] 0, 128
      %v9746 = vpop.trf.xlu0
      %v9747 = vpop.trf.xlu0
      %v9748 = vpop.trf.xlu0
      %v9749 = vpop.trf.xlu0
      %v9750 = vpop.trf.xlu0
      %v9751 = vpop.trf.xlu0
      %v9752 = vpop.trf.xlu0
      %v9753 = vpop.trf.xlu0
      %9754 = vxpose.xlu0.c.b16.start [1/8] %v9368, 128
      %9755 = vxpose.xlu0.c.b16.cont [2/8] %v9432, 128
      %9756 = vxpose.xlu0.c.b16.cont [3/8] %v9496, 128
      %9757 = vxpose.xlu0.c.b16.cont [4/8] %v9560, 128
      %9758 = vxpose.xlu0.c.b16.cont [5/8] 0, 128
      %9759 = vxpose.xlu0.c.b16.cont [6/8] 0, 128
      %9760 = vxpose.xlu0.c.b16.cont [7/8] 0, 128
      %9761 = vxpose.xlu0.c.b16.end [8/8] 0, 128
      %v9762 = vpop.trf.xlu0
      %v9763 = vpop.trf.xlu0
      %v9764 = vpop.trf.xlu0
      %v9765 = vpop.trf.xlu0
      %v9766 = vpop.trf.xlu0
      %v9767 = vpop.trf.xlu0
      %v9768 = vpop.trf.xlu0
      %v9769 = vpop.trf.xlu0
      %9770 = vxpose.xlu0.c.b16.start [1/8] %v9372, 128
      %9771 = vxpose.xlu0.c.b16.cont [2/8] %v9436, 128
      %9772 = vxpose.xlu0.c.b16.cont [3/8] %v9500, 128
      %9773 = vxpose.xlu0.c.b16.cont [4/8] %v9564, 128
      %9774 = vxpose.xlu0.c.b16.cont [5/8] 0, 128
      %9775 = vxpose.xlu0.c.b16.cont [6/8] 0, 128
      %9776 = vxpose.xlu0.c.b16.cont [7/8] 0, 128
      %9777 = vxpose.xlu0.c.b16.end [8/8] 0, 128
      %v9778 = vpop.trf.xlu0
      %v9779 = vpop.trf.xlu0
      %v9780 = vpop.trf.xlu0
      %v9781 = vpop.trf.xlu0
      %v9782 = vpop.trf.xlu0
      %v9783 = vpop.trf.xlu0
      %v9784 = vpop.trf.xlu0
      %v9785 = vpop.trf.xlu0
      %9786 = vxpose.xlu0.c.b16.start [1/8] %v9376, 128
      %9787 = vxpose.xlu0.c.b16.cont [2/8] %v9440, 128
      %9788 = vxpose.xlu0.c.b16.cont [3/8] %v9504, 128
      %9789 = vxpose.xlu0.c.b16.cont [4/8] %v9568, 128
      %9790 = vxpose.xlu0.c.b16.cont [5/8] 0, 128
      %9791 = vxpose.xlu0.c.b16.cont [6/8] 0, 128
      %9792 = vxpose.xlu0.c.b16.cont [7/8] 0, 128
      %9793 = vxpose.xlu0.c.b16.end [8/8] 0, 128
      %v9794 = vpop.trf.xlu0
      %v9795 = vpop.trf.xlu0
      %v9796 = vpop.trf.xlu0
      %v9797 = vpop.trf.xlu0
      %v9798 = vpop.trf.xlu0
      %v9799 = vpop.trf.xlu0
      %v9800 = vpop.trf.xlu0
      %v9801 = vpop.trf.xlu0
      %9802 = vxpose.xlu0.c.b16.start [1/8] %v9380, 128
      %9803 = vxpose.xlu0.c.b16.cont [2/8] %v9444, 128
      %9804 = vxpose.xlu0.c.b16.cont [3/8] %v9508, 128
      %9805 = vxpose.xlu0.c.b16.cont [4/8] %v9572, 128
      %9806 = vxpose.xlu0.c.b16.cont [5/8] 0, 128
      %9807 = vxpose.xlu0.c.b16.cont [6/8] 0, 128
      %9808 = vxpose.xlu0.c.b16.cont [7/8] 0, 128
      %9809 = vxpose.xlu0.c.b16.end [8/8] 0, 128
      %v9810 = vpop.trf.xlu0
      %v9811 = vpop.trf.xlu0
      %v9812 = vpop.trf.xlu0
      %v9813 = vpop.trf.xlu0
      %v9814 = vpop.trf.xlu0
      %v9815 = vpop.trf.xlu0
      %v9816 = vpop.trf.xlu0
      %v9817 = vpop.trf.xlu0
      %9818 = vxpose.xlu0.c.b16.start [1/8] %v9384, 128
      %9819 = vxpose.xlu0.c.b16.cont [2/8] %v9448, 128
      %9820 = vxpose.xlu0.c.b16.cont [3/8] %v9512, 128
      %9821 = vxpose.xlu0.c.b16.cont [4/8] %v9576, 128
      %9822 = vxpose.xlu0.c.b16.cont [5/8] 0, 128
      %9823 = vxpose.xlu0.c.b16.cont [6/8] 0, 128
      %9824 = vxpose.xlu0.c.b16.cont [7/8] 0, 128
      %9825 = vxpose.xlu0.c.b16.end [8/8] 0, 128
      %v9826 = vpop.trf.xlu0
      %v9827 = vpop.trf.xlu0
      %v9828 = vpop.trf.xlu0
      %v9829 = vpop.trf.xlu0
      %v9830 = vpop.trf.xlu0
      %v9831 = vpop.trf.xlu0
      %v9832 = vpop.trf.xlu0
      %v9833 = vpop.trf.xlu0
      %v9834 = vcombine.low %v9586, %v9650
      %v9836 = vunpack.c.l.s4 1983009808
      %v9837 = vunpack.c.0.s8 %v9836
      %v9838 = vlaneseq
      %v9839 = vshrl.u32 %v9838, 7
      %v9840 = vsub.s32 %v9837, %v9839
      %v9841 = vrot.slane %v9834, %v9840
      %v9842 = vcombine.low %v9618, %v9682
      %v9844 = vunpack.c.l.s4 1983009808
      %v9845 = vunpack.c.0.s8 %v9844
      %v9846 = vlaneseq
      %v9847 = vshrl.u32 %v9846, 7
      %v9848 = vsub.s32 %v9845, %v9847
      %v9849 = vrot.slane %v9842, %v9848
      %v9850 = vcombine.low %v9714, %v9778
      %v9852 = vunpack.c.l.s4 1983009808
      %v9853 = vunpack.c.0.s8 %v9852
      %v9854 = vlaneseq
      %v9855 = vshrl.u32 %v9854, 7
      %v9856 = vsub.s32 %v9853, %v9855
      %v9857 = vrot.slane %v9850, %v9856
      %v9858 = vcombine.low %v9746, %v9810
      %v9860 = vunpack.c.l.s4 1983009808
      %v9861 = vunpack.c.0.s8 %v9860
      %v9862 = vlaneseq
      %v9863 = vshrl.u32 %v9862, 7
      %v9864 = vsub.s32 %v9861, %v9863
      %v9865 = vrot.slane %v9858, %v9864
      %v9866 = vcombine.low %v9841, %v9849
      %v9868 = vunpack.c.l.s4 1934713408
      %v9869 = vunpack.c.0.s8 %v9868
      %v9870 = vlaneseq
      %v9871 = vshrl.u32 %v9870, 7
      %v9872 = vsub.s32 %v9869, %v9871
      %v9873 = vrot.slane %v9866, %v9872
      %v9874 = vcombine.low %v9857, %v9865
      %v9876 = vunpack.c.l.s4 1934713408
      %v9877 = vunpack.c.0.s8 %v9876
      %v9878 = vlaneseq
      %v9879 = vshrl.u32 %v9878, 7
      %v9880 = vsub.s32 %v9877, %v9879
      %v9881 = vrot.slane %v9874, %v9880
      %v9882 = vcombine.low %v9873, %v9881
      %v9883 = vcombine.low %v9602, %v9666
      %v9885 = vunpack.c.l.s4 1983009808
      %v9886 = vunpack.c.0.s8 %v9885
      %v9887 = vlaneseq
      %v9888 = vshrl.u32 %v9887, 7
      %v9889 = vsub.s32 %v9886, %v9888
      %v9890 = vrot.slane %v9883, %v9889
      %v9891 = vcombine.low %v9634, %v9698
      %v9893 = vunpack.c.l.s4 1983009808
      %v9894 = vunpack.c.0.s8 %v9893
      %v9895 = vlaneseq
      %v9896 = vshrl.u32 %v9895, 7
      %v9897 = vsub.s32 %v9894, %v9896
      %v9898 = vrot.slane %v9891, %v9897
      %v9899 = vcombine.low %v9730, %v9794
      %v9901 = vunpack.c.l.s4 1983009808
      %v9902 = vunpack.c.0.s8 %v9901
      %v9903 = vlaneseq
      %v9904 = vshrl.u32 %v9903, 7
      %v9905 = vsub.s32 %v9902, %v9904
      %v9906 = vrot.slane %v9899, %v9905
      %v9907 = vcombine.low %v9762, %v9826
      %v9909 = vunpack.c.l.s4 1983009808
      %v9910 = vunpack.c.0.s8 %v9909
      %v9911 = vlaneseq
      %v9912 = vshrl.u32 %v9911, 7
      %v9913 = vsub.s32 %v9910, %v9912
      %v9914 = vrot.slane %v9907, %v9913
      %v9915 = vcombine.low %v9890, %v9898
      %v9917 = vunpack.c.l.s4 1934713408
      %v9918 = vunpack.c.0.s8 %v9917
      %v9919 = vlaneseq
      %v9920 = vshrl.u32 %v9919, 7
      %v9921 = vsub.s32 %v9918, %v9920
      %v9922 = vrot.slane %v9915, %v9921
      %v9923 = vcombine.low %v9906, %v9914
      %v9925 = vunpack.c.l.s4 1934713408
      %v9926 = vunpack.c.0.s8 %v9925
      %v9927 = vlaneseq
      %v9928 = vshrl.u32 %v9927, 7
      %v9929 = vsub.s32 %v9926, %v9928
      %v9930 = vrot.slane %v9923, %v9929
      %v9931 = vcombine.low %v9922, %v9930
      %v9934 = vpack.i.b16 %v9931, %v9882
      %v9935 = vshrl.u32 %v9882, 16
      %v9936 = vshrl.u32 %v9931, 16
      %v9937 = vpack.i.b16 %v9936, %v9935
      %v9939 = vsel %vm1474, %v9934, 0
      %v9942 = vsel %vm1474, %v7202, 0
      %v9945 = vsel %vm1474, %v7203, 0
      %v9948 = vsel %vm1474, %v7204, 0
      %v9951 = vsel %vm1474, %v7205, 0
      %9953 = vmatprep.subr.bf16.mxu0 0
      %9954 = vmatpush1.bf16.xpose.msra.mxu0 %v9942
      %9955 = vmatprep.subr.bf16.mxu0 0
      %9956 = vmatpush1.bf16.xpose.msra.mxu0 %v9945
      %9957 = vmatprep.subr.bf16.mxu0 0
      %9958 = vmatpush1.bf16.xpose.msra.mxu0 %v9948
      %9959 = vmatprep.subr.bf16.mxu0 0
      %9960 = vmatpush1.bf16.xpose.msra.mxu0 %v9951
      %9961 = vmatprep.subr.bf16.mxu0 0
      %9962 = vmatpush1.bf16.xpose.msra.mxu0 0
      %9963 = vmatprep.subr.bf16.mxu0 0
      %9964 = vmatpush1.bf16.xpose.msra.mxu0 0
      %9965 = vmatprep.subr.bf16.mxu0 0
      %9966 = vmatpush1.bf16.xpose.msra.mxu0 0
      %9967 = vmatprep.subr.bf16.mxu0 0
      %9968 = vmatpush1.bf16.xpose.msra.mxu0 0
      %9969 = vmatprep.subr.bf16.mxu0 0
      %9970 = vmatpush1.bf16.xpose.msra.mxu0 0
      %9971 = vmatprep.subr.bf16.mxu0 0
      %9972 = vmatpush1.bf16.xpose.msra.mxu0 0
      %9973 = vmatprep.subr.bf16.mxu0 0
      %9974 = vmatpush1.bf16.xpose.msra.mxu0 0
      %9975 = vmatprep.subr.bf16.mxu0 0
      %9976 = vmatpush1.bf16.xpose.msra.mxu0 0
      %9977 = vmatprep.subr.bf16.mxu0 0
      %9978 = vmatpush1.bf16.xpose.msra.mxu0 0
      %9979 = vmatprep.subr.bf16.mxu0 0
      %9980 = vmatpush1.bf16.xpose.msra.mxu0 0
      %9981 = vmatprep.subr.bf16.mxu0 0
      %9982 = vmatpush1.bf16.xpose.msra.mxu0 0
      %9983 = vmatprep.subr.bf16.mxu0 0
      %9984 = vmatpush1.bf16.xpose.msra.mxu0 0
      %9985 = vmatprep.mubr.bf16.mxu0 0
      %9986 = vmatmul.mubr.bf16.gmra.mrb[0].mxu0 %v9939
      %v9987 = vpop.f32.mrb[0].mxu0
      %v9988 = vadd.f32 0.0, %v9987
      %v9989 = vpop.f32.mrb[0].mxu0
      %v9990 = vpop.f32.mrb[0].mxu0
      %v9991 = vadd.f32 0.0, %v9990
      %v9992 = vpop.f32.mrb[0].mxu0
      %9993 = vdwg.mxu0
      %v9995 = vsel %vm1474, %v9937, 0
      %v9998 = vsel %vm1474, %v7206, 0
      %v10001 = vsel %vm1474, %v7207, 0
      %v10004 = vsel %vm1474, %v7208, 0
      %v10007 = vsel %vm1474, %v7209, 0
      %10009 = vmatprep.subr.bf16.mxu0 0
      %10010 = vmatpush1.bf16.xpose.msra.mxu0 %v9998
      %10011 = vmatprep.subr.bf16.mxu0 0
      %10012 = vmatpush1.bf16.xpose.msra.mxu0 %v10001
      %10013 = vmatprep.subr.bf16.mxu0 0
      %10014 = vmatpush1.bf16.xpose.msra.mxu0 %v10004
      %10015 = vmatprep.subr.bf16.mxu0 0
      %10016 = vmatpush1.bf16.xpose.msra.mxu0 %v10007
      %10017 = vmatprep.subr.bf16.mxu0 0
      %10018 = vmatpush1.bf16.xpose.msra.mxu0 0
      %10019 = vmatprep.subr.bf16.mxu0 0
      %10020 = vmatpush1.bf16.xpose.msra.mxu0 0
      %10021 = vmatprep.subr.bf16.mxu0 0
      %10022 = vmatpush1.bf16.xpose.msra.mxu0 0
      %10023 = vmatprep.subr.bf16.mxu0 0
      %10024 = vmatpush1.bf16.xpose.msra.mxu0 0
      %10025 = vmatprep.subr.bf16.mxu0 0
      %10026 = vmatpush1.bf16.xpose.msra.mxu0 0
      %10027 = vmatprep.subr.bf16.mxu0 0
      %10028 = vmatpush1.bf16.xpose.msra.mxu0 0
      %10029 = vmatprep.subr.bf16.mxu0 0
      %10030 = vmatpush1.bf16.xpose.msra.mxu0 0
      %10031 = vmatprep.subr.bf16.mxu0 0
      %10032 = vmatpush1.bf16.xpose.msra.mxu0 0
      %10033 = vmatprep.subr.bf16.mxu0 0
      %10034 = vmatpush1.bf16.xpose.msra.mxu0 0
      %10035 = vmatprep.subr.bf16.mxu0 0
      %10036 = vmatpush1.bf16.xpose.msra.mxu0 0
      %10037 = vmatprep.subr.bf16.mxu0 0
      %10038 = vmatpush1.bf16.xpose.msra.mxu0 0
      %10039 = vmatprep.subr.bf16.mxu0 0
      %10040 = vmatpush1.bf16.xpose.msra.mxu0 0
      %10041 = vmatprep.mubr.bf16.mxu0 0
      %10042 = vmatmul.mubr.bf16.gmra.mrb[0].mxu0 %v9995
      %v10043 = vpop.f32.mrb[0].mxu0
      %v10044 = vadd.f32 0.0, %v10043
      %v10045 = vpop.f32.mrb[0].mxu0
      %v10046 = vpop.f32.mrb[0].mxu0
      %v10047 = vadd.f32 0.0, %v10046
      %v10048 = vpop.f32.mrb[0].mxu0
      %10049 = vdwg.mxu0
      %10050 = vxpose.xlu0.b32.start [1/16] %v9988, 128
      %10051 = vxpose.xlu0.b32.cont [2/16] %v9991, 128
      %10052 = vxpose.xlu0.b32.cont [3/16] 0.0, 128
      %10053 = vxpose.xlu0.b32.cont [4/16] 0.0, 128
      %10054 = vxpose.xlu0.b32.cont [5/16] 0.0, 128
      %10055 = vxpose.xlu0.b32.cont [6/16] 0.0, 128
      %10056 = vxpose.xlu0.b32.cont [7/16] 0.0, 128
      %10057 = vxpose.xlu0.b32.cont [8/16] 0.0, 128
      %10058 = vxpose.xlu0.b32.cont [9/16] 0.0, 128
      %10059 = vxpose.xlu0.b32.cont [10/16] 0.0, 128
      %10060 = vxpose.xlu0.b32.cont [11/16] 0.0, 128
      %10061 = vxpose.xlu0.b32.cont [12/16] 0.0, 128
      %10062 = vxpose.xlu0.b32.cont [13/16] 0.0, 128
      %10063 = vxpose.xlu0.b32.cont [14/16] 0.0, 128
      %10064 = vxpose.xlu0.b32.cont [15/16] 0.0, 128
      %10065 = vxpose.xlu0.b32.end [16/16] 0.0, 128
      %v10066 = vpop.trf.xlu0
      %v10067 = vpop.trf.xlu0
      %v10068 = vpop.trf.xlu0
      %v10069 = vpop.trf.xlu0
      %v10070 = vpop.trf.xlu0
      %v10071 = vpop.trf.xlu0
      %v10072 = vpop.trf.xlu0
      %v10073 = vpop.trf.xlu0
      %v10074 = vpop.trf.xlu0
      %v10075 = vpop.trf.xlu0
      %v10076 = vpop.trf.xlu0
      %v10077 = vpop.trf.xlu0
      %v10078 = vpop.trf.xlu0
      %v10079 = vpop.trf.xlu0
      %v10080 = vpop.trf.xlu0
      %v10081 = vpop.trf.xlu0
      %10082 = vxpose.xlu0.b32.start [1/16] %v10044, 128
      %10083 = vxpose.xlu0.b32.cont [2/16] %v10047, 128
      %10084 = vxpose.xlu0.b32.cont [3/16] 0.0, 128
      %10085 = vxpose.xlu0.b32.cont [4/16] 0.0, 128
      %10086 = vxpose.xlu0.b32.cont [5/16] 0.0, 128
      %10087 = vxpose.xlu0.b32.cont [6/16] 0.0, 128
      %10088 = vxpose.xlu0.b32.cont [7/16] 0.0, 128
      %10089 = vxpose.xlu0.b32.cont [8/16] 0.0, 128
      %10090 = vxpose.xlu0.b32.cont [9/16] 0.0, 128
      %10091 = vxpose.xlu0.b32.cont [10/16] 0.0, 128
      %10092 = vxpose.xlu0.b32.cont [11/16] 0.0, 128
      %10093 = vxpose.xlu0.b32.cont [12/16] 0.0, 128
      %10094 = vxpose.xlu0.b32.cont [13/16] 0.0, 128
      %10095 = vxpose.xlu0.b32.cont [14/16] 0.0, 128
      %10096 = vxpose.xlu0.b32.cont [15/16] 0.0, 128
      %10097 = vxpose.xlu0.b32.end [16/16] 0.0, 128
      %v10098 = vpop.trf.xlu0
      %v10099 = vpop.trf.xlu0
      %v10100 = vpop.trf.xlu0
      %v10101 = vpop.trf.xlu0
      %v10102 = vpop.trf.xlu0
      %v10103 = vpop.trf.xlu0
      %v10104 = vpop.trf.xlu0
      %v10105 = vpop.trf.xlu0
      %v10106 = vpop.trf.xlu0
      %v10107 = vpop.trf.xlu0
      %v10108 = vpop.trf.xlu0
      %v10109 = vpop.trf.xlu0
      %v10110 = vpop.trf.xlu0
      %v10111 = vpop.trf.xlu0
      %v10112 = vpop.trf.xlu0
      %v10113 = vpop.trf.xlu0
      %v10114 = vcombine.high %v10066, 0.0
      %v10116 = vunpack.c.l.s4 1983009808
      %v10117 = vunpack.c.0.s8 %v10116
      %v10118 = vlaneseq
      %v10119 = vshrl.u32 %v10118, 7
      %v10120 = vsub.s32 %v10117, %v10119
      %v10121 = vrot.slane %v10066, %v10120
      %v10123 = vunpack.c.l.s4 1983009808
      %v10124 = vunpack.c.0.s8 %v10123
      %v10125 = vlaneseq
      %v10126 = vshrl.u32 %v10125, 7
      %v10127 = vsub.s32 %v10124, %v10126
      %v10128 = vrot.slane %v10114, %v10127
      %v10129 = vcombine.high %v10098, 0.0
      %v10131 = vunpack.c.l.s4 1983009808
      %v10132 = vunpack.c.0.s8 %v10131
      %v10133 = vlaneseq
      %v10134 = vshrl.u32 %v10133, 7
      %v10135 = vsub.s32 %v10132, %v10134
      %v10136 = vrot.slane %v10098, %v10135
      %v10138 = vunpack.c.l.s4 1983009808
      %v10139 = vunpack.c.0.s8 %v10138
      %v10140 = vlaneseq
      %v10141 = vshrl.u32 %v10140, 7
      %v10142 = vsub.s32 %v10139, %v10141
      %v10143 = vrot.slane %v10129, %v10142
      %v10144 = vcombine.low %v10121, %v10136
      %v10145 = vcombine.high %v10121, %v10136
      %v10147 = vunpack.c.l.s4 1934713408
      %v10148 = vunpack.c.0.s8 %v10147
      %v10149 = vlaneseq
      %v10150 = vshrl.u32 %v10149, 7
      %v10151 = vsub.s32 %v10148, %v10150
      %v10152 = vrot.slane %v10144, %v10151
      %v10154 = vunpack.c.l.s4 1934713408
      %v10155 = vunpack.c.0.s8 %v10154
      %v10156 = vlaneseq
      %v10157 = vshrl.u32 %v10156, 7
      %v10158 = vsub.s32 %v10155, %v10157
      %v10159 = vrot.slane %v10145, %v10158
      %v10160 = vcombine.low %v10128, %v10143
      %v10161 = vcombine.high %v10128, %v10143
      %v10163 = vunpack.c.l.s4 1934713408
      %v10164 = vunpack.c.0.s8 %v10163
      %v10165 = vlaneseq
      %v10166 = vshrl.u32 %v10165, 7
      %v10167 = vsub.s32 %v10164, %v10166
      %v10168 = vrot.slane %v10160, %v10167
      %v10170 = vunpack.c.l.s4 1934713408
      %v10171 = vunpack.c.0.s8 %v10170
      %v10172 = vlaneseq
      %v10173 = vshrl.u32 %v10172, 7
      %v10174 = vsub.s32 %v10171, %v10173
      %v10175 = vrot.slane %v10161, %v10174
      %v10176 = vcombine.high %v10152, 0.0
      %v10177 = vcombine.high %v10159, 0.0
      %v10178 = vcombine.high %v10168, 0.0
      %v10179 = vcombine.high %v10175, 0.0
      %v10180 = vcombine.high %v10067, 0.0
      %v10182 = vunpack.c.l.s4 1983009808
      %v10183 = vunpack.c.0.s8 %v10182
      %v10184 = vlaneseq
      %v10185 = vshrl.u32 %v10184, 7
      %v10186 = vsub.s32 %v10183, %v10185
      %v10187 = vrot.slane %v10067, %v10186
      %v10189 = vunpack.c.l.s4 1983009808
      %v10190 = vunpack.c.0.s8 %v10189
      %v10191 = vlaneseq
      %v10192 = vshrl.u32 %v10191, 7
      %v10193 = vsub.s32 %v10190, %v10192
      %v10194 = vrot.slane %v10180, %v10193
      %v10195 = vcombine.high %v10099, 0.0
      %v10197 = vunpack.c.l.s4 1983009808
      %v10198 = vunpack.c.0.s8 %v10197
      %v10199 = vlaneseq
      %v10200 = vshrl.u32 %v10199, 7
      %v10201 = vsub.s32 %v10198, %v10200
      %v10202 = vrot.slane %v10099, %v10201
      %v10204 = vunpack.c.l.s4 1983009808
      %v10205 = vunpack.c.0.s8 %v10204
      %v10206 = vlaneseq
      %v10207 = vshrl.u32 %v10206, 7
      %v10208 = vsub.s32 %v10205, %v10207
      %v10209 = vrot.slane %v10195, %v10208
      %v10210 = vcombine.low %v10187, %v10202
      %v10211 = vcombine.high %v10187, %v10202
      %v10213 = vunpack.c.l.s4 1934713408
      %v10214 = vunpack.c.0.s8 %v10213
      %v10215 = vlaneseq
      %v10216 = vshrl.u32 %v10215, 7
      %v10217 = vsub.s32 %v10214, %v10216
      %v10218 = vrot.slane %v10210, %v10217
      %v10220 = vunpack.c.l.s4 1934713408
      %v10221 = vunpack.c.0.s8 %v10220
      %v10222 = vlaneseq
      %v10223 = vshrl.u32 %v10222, 7
      %v10224 = vsub.s32 %v10221, %v10223
      %v10225 = vrot.slane %v10211, %v10224
      %v10226 = vcombine.low %v10194, %v10209
      %v10227 = vcombine.high %v10194, %v10209
      %v10229 = vunpack.c.l.s4 1934713408
      %v10230 = vunpack.c.0.s8 %v10229
      %v10231 = vlaneseq
      %v10232 = vshrl.u32 %v10231, 7
      %v10233 = vsub.s32 %v10230, %v10232
      %v10234 = vrot.slane %v10226, %v10233
      %v10236 = vunpack.c.l.s4 1934713408
      %v10237 = vunpack.c.0.s8 %v10236
      %v10238 = vlaneseq
      %v10239 = vshrl.u32 %v10238, 7
      %v10240 = vsub.s32 %v10237, %v10239
      %v10241 = vrot.slane %v10227, %v10240
      %v10242 = vcombine.high %v10218, 0.0
      %v10243 = vcombine.high %v10225, 0.0
      %v10244 = vcombine.high %v10234, 0.0
      %v10245 = vcombine.high %v10241, 0.0
      %v10246 = vcombine.high %v10068, 0.0
      %v10248 = vunpack.c.l.s4 1983009808
      %v10249 = vunpack.c.0.s8 %v10248
      %v10250 = vlaneseq
      %v10251 = vshrl.u32 %v10250, 7
      %v10252 = vsub.s32 %v10249, %v10251
      %v10253 = vrot.slane %v10068, %v10252
      %v10255 = vunpack.c.l.s4 1983009808
      %v10256 = vunpack.c.0.s8 %v10255
      %v10257 = vlaneseq
      %v10258 = vshrl.u32 %v10257, 7
      %v10259 = vsub.s32 %v10256, %v10258
      %v10260 = vrot.slane %v10246, %v10259
      %v10261 = vcombine.high %v10100, 0.0
      %v10263 = vunpack.c.l.s4 1983009808
      %v10264 = vunpack.c.0.s8 %v10263
      %v10265 = vlaneseq
      %v10266 = vshrl.u32 %v10265, 7
      %v10267 = vsub.s32 %v10264, %v10266
      %v10268 = vrot.slane %v10100, %v10267
      %v10270 = vunpack.c.l.s4 1983009808
      %v10271 = vunpack.c.0.s8 %v10270
      %v10272 = vlaneseq
      %v10273 = vshrl.u32 %v10272, 7
      %v10274 = vsub.s32 %v10271, %v10273
      %v10275 = vrot.slane %v10261, %v10274
      %v10276 = vcombine.low %v10253, %v10268
      %v10277 = vcombine.high %v10253, %v10268
      %v10279 = vunpack.c.l.s4 1934713408
      %v10280 = vunpack.c.0.s8 %v10279
      %v10281 = vlaneseq
      %v10282 = vshrl.u32 %v10281, 7
      %v10283 = vsub.s32 %v10280, %v10282
      %v10284 = vrot.slane %v10276, %v10283
      %v10286 = vunpack.c.l.s4 1934713408
      %v10287 = vunpack.c.0.s8 %v10286
      %v10288 = vlaneseq
      %v10289 = vshrl.u32 %v10288, 7
      %v10290 = vsub.s32 %v10287, %v10289
      %v10291 = vrot.slane %v10277, %v10290
      %v10292 = vcombine.low %v10260, %v10275
      %v10293 = vcombine.high %v10260, %v10275
      %v10295 = vunpack.c.l.s4 1934713408
      %v10296 = vunpack.c.0.s8 %v10295
      %v10297 = vlaneseq
      %v10298 = vshrl.u32 %v10297, 7
      %v10299 = vsub.s32 %v10296, %v10298
      %v10300 = vrot.slane %v10292, %v10299
      %v10302 = vunpack.c.l.s4 1934713408
      %v10303 = vunpack.c.0.s8 %v10302
      %v10304 = vlaneseq
      %v10305 = vshrl.u32 %v10304, 7
      %v10306 = vsub.s32 %v10303, %v10305
      %v10307 = vrot.slane %v10293, %v10306
      %v10308 = vcombine.high %v10284, 0.0
      %v10309 = vcombine.high %v10291, 0.0
      %v10310 = vcombine.high %v10300, 0.0
      %v10311 = vcombine.high %v10307, 0.0
      %v10312 = vcombine.high %v10069, 0.0
      %v10314 = vunpack.c.l.s4 1983009808
      %v10315 = vunpack.c.0.s8 %v10314
      %v10316 = vlaneseq
      %v10317 = vshrl.u32 %v10316, 7
      %v10318 = vsub.s32 %v10315, %v10317
      %v10319 = vrot.slane %v10069, %v10318
      %v10321 = vunpack.c.l.s4 1983009808
      %v10322 = vunpack.c.0.s8 %v10321
      %v10323 = vlaneseq
      %v10324 = vshrl.u32 %v10323, 7
      %v10325 = vsub.s32 %v10322, %v10324
      %v10326 = vrot.slane %v10312, %v10325
      %v10327 = vcombine.high %v10101, 0.0
      %v10329 = vunpack.c.l.s4 1983009808
      %v10330 = vunpack.c.0.s8 %v10329
      %v10331 = vlaneseq
      %v10332 = vshrl.u32 %v10331, 7
      %v10333 = vsub.s32 %v10330, %v10332
      %v10334 = vrot.slane %v10101, %v10333
      %v10336 = vunpack.c.l.s4 1983009808
      %v10337 = vunpack.c.0.s8 %v10336
      %v10338 = vlaneseq
      %v10339 = vshrl.u32 %v10338, 7
      %v10340 = vsub.s32 %v10337, %v10339
      %v10341 = vrot.slane %v10327, %v10340
      %v10342 = vcombine.low %v10319, %v10334
      %v10343 = vcombine.high %v10319, %v10334
      %v10345 = vunpack.c.l.s4 1934713408
      %v10346 = vunpack.c.0.s8 %v10345
      %v10347 = vlaneseq
      %v10348 = vshrl.u32 %v10347, 7
      %v10349 = vsub.s32 %v10346, %v10348
      %v10350 = vrot.slane %v10342, %v10349
      %v10352 = vunpack.c.l.s4 1934713408
      %v10353 = vunpack.c.0.s8 %v10352
      %v10354 = vlaneseq
      %v10355 = vshrl.u32 %v10354, 7
      %v10356 = vsub.s32 %v10353, %v10355
      %v10357 = vrot.slane %v10343, %v10356
      %v10358 = vcombine.low %v10326, %v10341
      %v10359 = vcombine.high %v10326, %v10341
      %v10361 = vunpack.c.l.s4 1934713408
      %v10362 = vunpack.c.0.s8 %v10361
      %v10363 = vlaneseq
      %v10364 = vshrl.u32 %v10363, 7
      %v10365 = vsub.s32 %v10362, %v10364
      %v10366 = vrot.slane %v10358, %v10365
      %v10368 = vunpack.c.l.s4 1934713408
      %v10369 = vunpack.c.0.s8 %v10368
      %v10370 = vlaneseq
      %v10371 = vshrl.u32 %v10370, 7
      %v10372 = vsub.s32 %v10369, %v10371
      %v10373 = vrot.slane %v10359, %v10372
      %v10374 = vcombine.high %v10350, 0.0
      %v10375 = vcombine.high %v10357, 0.0
      %v10376 = vcombine.high %v10366, 0.0
      %v10377 = vcombine.high %v10373, 0.0
      %v10378 = vcombine.high %v10070, 0.0
      %v10380 = vunpack.c.l.s4 1983009808
      %v10381 = vunpack.c.0.s8 %v10380
      %v10382 = vlaneseq
      %v10383 = vshrl.u32 %v10382, 7
      %v10384 = vsub.s32 %v10381, %v10383
      %v10385 = vrot.slane %v10070, %v10384
      %v10387 = vunpack.c.l.s4 1983009808
      %v10388 = vunpack.c.0.s8 %v10387
      %v10389 = vlaneseq
      %v10390 = vshrl.u32 %v10389, 7
      %v10391 = vsub.s32 %v10388, %v10390
      %v10392 = vrot.slane %v10378, %v10391
      %v10393 = vcombine.high %v10102, 0.0
      %v10395 = vunpack.c.l.s4 1983009808
      %v10396 = vunpack.c.0.s8 %v10395
      %v10397 = vlaneseq
      %v10398 = vshrl.u32 %v10397, 7
      %v10399 = vsub.s32 %v10396, %v10398
      %v10400 = vrot.slane %v10102, %v10399
      %v10402 = vunpack.c.l.s4 1983009808
      %v10403 = vunpack.c.0.s8 %v10402
      %v10404 = vlaneseq
      %v10405 = vshrl.u32 %v10404, 7
      %v10406 = vsub.s32 %v10403, %v10405
      %v10407 = vrot.slane %v10393, %v10406
      %v10408 = vcombine.low %v10385, %v10400
      %v10409 = vcombine.high %v10385, %v10400
      %v10411 = vunpack.c.l.s4 1934713408
      %v10412 = vunpack.c.0.s8 %v10411
      %v10413 = vlaneseq
      %v10414 = vshrl.u32 %v10413, 7
      %v10415 = vsub.s32 %v10412, %v10414
      %v10416 = vrot.slane %v10408, %v10415
      %v10418 = vunpack.c.l.s4 1934713408
      %v10419 = vunpack.c.0.s8 %v10418
      %v10420 = vlaneseq
      %v10421 = vshrl.u32 %v10420, 7
      %v10422 = vsub.s32 %v10419, %v10421
      %v10423 = vrot.slane %v10409, %v10422
      %v10424 = vcombine.low %v10392, %v10407
      %v10425 = vcombine.high %v10392, %v10407
      %v10427 = vunpack.c.l.s4 1934713408
      %v10428 = vunpack.c.0.s8 %v10427
      %v10429 = vlaneseq
      %v10430 = vshrl.u32 %v10429, 7
      %v10431 = vsub.s32 %v10428, %v10430
      %v10432 = vrot.slane %v10424, %v10431
      %v10434 = vunpack.c.l.s4 1934713408
      %v10435 = vunpack.c.0.s8 %v10434
      %v10436 = vlaneseq
      %v10437 = vshrl.u32 %v10436, 7
      %v10438 = vsub.s32 %v10435, %v10437
      %v10439 = vrot.slane %v10425, %v10438
      %v10440 = vcombine.high %v10416, 0.0
      %v10441 = vcombine.high %v10423, 0.0
      %v10442 = vcombine.high %v10432, 0.0
      %v10443 = vcombine.high %v10439, 0.0
      %v10444 = vcombine.high %v10071, 0.0
      %v10446 = vunpack.c.l.s4 1983009808
      %v10447 = vunpack.c.0.s8 %v10446
      %v10448 = vlaneseq
      %v10449 = vshrl.u32 %v10448, 7
      %v10450 = vsub.s32 %v10447, %v10449
      %v10451 = vrot.slane %v10071, %v10450
      %v10453 = vunpack.c.l.s4 1983009808
      %v10454 = vunpack.c.0.s8 %v10453
      %v10455 = vlaneseq
      %v10456 = vshrl.u32 %v10455, 7
      %v10457 = vsub.s32 %v10454, %v10456
      %v10458 = vrot.slane %v10444, %v10457
      %v10459 = vcombine.high %v10103, 0.0
      %v10461 = vunpack.c.l.s4 1983009808
      %v10462 = vunpack.c.0.s8 %v10461
      %v10463 = vlaneseq
      %v10464 = vshrl.u32 %v10463, 7
      %v10465 = vsub.s32 %v10462, %v10464
      %v10466 = vrot.slane %v10103, %v10465
      %v10468 = vunpack.c.l.s4 1983009808
      %v10469 = vunpack.c.0.s8 %v10468
      %v10470 = vlaneseq
      %v10471 = vshrl.u32 %v10470, 7
      %v10472 = vsub.s32 %v10469, %v10471
      %v10473 = vrot.slane %v10459, %v10472
      %v10474 = vcombine.low %v10451, %v10466
      %v10475 = vcombine.high %v10451, %v10466
      %v10477 = vunpack.c.l.s4 1934713408
      %v10478 = vunpack.c.0.s8 %v10477
      %v10479 = vlaneseq
      %v10480 = vshrl.u32 %v10479, 7
      %v10481 = vsub.s32 %v10478, %v10480
      %v10482 = vrot.slane %v10474, %v10481
      %v10484 = vunpack.c.l.s4 1934713408
      %v10485 = vunpack.c.0.s8 %v10484
      %v10486 = vlaneseq
      %v10487 = vshrl.u32 %v10486, 7
      %v10488 = vsub.s32 %v10485, %v10487
      %v10489 = vrot.slane %v10475, %v10488
      %v10490 = vcombine.low %v10458, %v10473
      %v10491 = vcombine.high %v10458, %v10473
      %v10493 = vunpack.c.l.s4 1934713408
      %v10494 = vunpack.c.0.s8 %v10493
      %v10495 = vlaneseq
      %v10496 = vshrl.u32 %v10495, 7
      %v10497 = vsub.s32 %v10494, %v10496
      %v10498 = vrot.slane %v10490, %v10497
      %v10500 = vunpack.c.l.s4 1934713408
      %v10501 = vunpack.c.0.s8 %v10500
      %v10502 = vlaneseq
      %v10503 = vshrl.u32 %v10502, 7
      %v10504 = vsub.s32 %v10501, %v10503
      %v10505 = vrot.slane %v10491, %v10504
      %v10506 = vcombine.high %v10482, 0.0
      %v10507 = vcombine.high %v10489, 0.0
      %v10508 = vcombine.high %v10498, 0.0
      %v10509 = vcombine.high %v10505, 0.0
      %v10510 = vcombine.high %v10072, 0.0
      %v10512 = vunpack.c.l.s4 1983009808
      %v10513 = vunpack.c.0.s8 %v10512
      %v10514 = vlaneseq
      %v10515 = vshrl.u32 %v10514, 7
      %v10516 = vsub.s32 %v10513, %v10515
      %v10517 = vrot.slane %v10072, %v10516
      %v10519 = vunpack.c.l.s4 1983009808
      %v10520 = vunpack.c.0.s8 %v10519
      %v10521 = vlaneseq
      %v10522 = vshrl.u32 %v10521, 7
      %v10523 = vsub.s32 %v10520, %v10522
      %v10524 = vrot.slane %v10510, %v10523
      %v10525 = vcombine.high %v10104, 0.0
      %v10527 = vunpack.c.l.s4 1983009808
      %v10528 = vunpack.c.0.s8 %v10527
      %v10529 = vlaneseq
      %v10530 = vshrl.u32 %v10529, 7
      %v10531 = vsub.s32 %v10528, %v10530
      %v10532 = vrot.slane %v10104, %v10531
      %v10534 = vunpack.c.l.s4 1983009808
      %v10535 = vunpack.c.0.s8 %v10534
      %v10536 = vlaneseq
      %v10537 = vshrl.u32 %v10536, 7
      %v10538 = vsub.s32 %v10535, %v10537
      %v10539 = vrot.slane %v10525, %v10538
      %v10540 = vcombine.low %v10517, %v10532
      %v10541 = vcombine.high %v10517, %v10532
      %v10543 = vunpack.c.l.s4 1934713408
      %v10544 = vunpack.c.0.s8 %v10543
      %v10545 = vlaneseq
      %v10546 = vshrl.u32 %v10545, 7
      %v10547 = vsub.s32 %v10544, %v10546
      %v10548 = vrot.slane %v10540, %v10547
      %v10550 = vunpack.c.l.s4 1934713408
      %v10551 = vunpack.c.0.s8 %v10550
      %v10552 = vlaneseq
      %v10553 = vshrl.u32 %v10552, 7
      %v10554 = vsub.s32 %v10551, %v10553
      %v10555 = vrot.slane %v10541, %v10554
      %v10556 = vcombine.low %v10524, %v10539
      %v10557 = vcombine.high %v10524, %v10539
      %v10559 = vunpack.c.l.s4 1934713408
      %v10560 = vunpack.c.0.s8 %v10559
      %v10561 = vlaneseq
      %v10562 = vshrl.u32 %v10561, 7
      %v10563 = vsub.s32 %v10560, %v10562
      %v10564 = vrot.slane %v10556, %v10563
      %v10566 = vunpack.c.l.s4 1934713408
      %v10567 = vunpack.c.0.s8 %v10566
      %v10568 = vlaneseq
      %v10569 = vshrl.u32 %v10568, 7
      %v10570 = vsub.s32 %v10567, %v10569
      %v10571 = vrot.slane %v10557, %v10570
      %v10572 = vcombine.high %v10548, 0.0
      %v10573 = vcombine.high %v10555, 0.0
      %v10574 = vcombine.high %v10564, 0.0
      %v10575 = vcombine.high %v10571, 0.0
      %v10576 = vcombine.high %v10073, 0.0
      %v10578 = vunpack.c.l.s4 1983009808
      %v10579 = vunpack.c.0.s8 %v10578
      %v10580 = vlaneseq
      %v10581 = vshrl.u32 %v10580, 7
      %v10582 = vsub.s32 %v10579, %v10581
      %v10583 = vrot.slane %v10073, %v10582
      %v10585 = vunpack.c.l.s4 1983009808
      %v10586 = vunpack.c.0.s8 %v10585
      %v10587 = vlaneseq
      %v10588 = vshrl.u32 %v10587, 7
      %v10589 = vsub.s32 %v10586, %v10588
      %v10590 = vrot.slane %v10576, %v10589
      %v10591 = vcombine.high %v10105, 0.0
      %v10593 = vunpack.c.l.s4 1983009808
      %v10594 = vunpack.c.0.s8 %v10593
      %v10595 = vlaneseq
      %v10596 = vshrl.u32 %v10595, 7
      %v10597 = vsub.s32 %v10594, %v10596
      %v10598 = vrot.slane %v10105, %v10597
      %v10600 = vunpack.c.l.s4 1983009808
      %v10601 = vunpack.c.0.s8 %v10600
      %v10602 = vlaneseq
      %v10603 = vshrl.u32 %v10602, 7
      %v10604 = vsub.s32 %v10601, %v10603
      %v10605 = vrot.slane %v10591, %v10604
      %v10606 = vcombine.low %v10583, %v10598
      %v10607 = vcombine.high %v10583, %v10598
      %v10609 = vunpack.c.l.s4 1934713408
      %v10610 = vunpack.c.0.s8 %v10609
      %v10611 = vlaneseq
      %v10612 = vshrl.u32 %v10611, 7
      %v10613 = vsub.s32 %v10610, %v10612
      %v10614 = vrot.slane %v10606, %v10613
      %v10616 = vunpack.c.l.s4 1934713408
      %v10617 = vunpack.c.0.s8 %v10616
      %v10618 = vlaneseq
      %v10619 = vshrl.u32 %v10618, 7
      %v10620 = vsub.s32 %v10617, %v10619
      %v10621 = vrot.slane %v10607, %v10620
      %v10622 = vcombine.low %v10590, %v10605
      %v10623 = vcombine.high %v10590, %v10605
      %v10625 = vunpack.c.l.s4 1934713408
      %v10626 = vunpack.c.0.s8 %v10625
      %v10627 = vlaneseq
      %v10628 = vshrl.u32 %v10627, 7
      %v10629 = vsub.s32 %v10626, %v10628
      %v10630 = vrot.slane %v10622, %v10629
      %v10632 = vunpack.c.l.s4 1934713408
      %v10633 = vunpack.c.0.s8 %v10632
      %v10634 = vlaneseq
      %v10635 = vshrl.u32 %v10634, 7
      %v10636 = vsub.s32 %v10633, %v10635
      %v10637 = vrot.slane %v10623, %v10636
      %v10638 = vcombine.high %v10614, 0.0
      %v10639 = vcombine.high %v10621, 0.0
      %v10640 = vcombine.high %v10630, 0.0
      %v10641 = vcombine.high %v10637, 0.0
      %v10642 = vcombine.low %v10152, %v10159
      %v10644 = vunpack.c.l.s4 1983009808
      %v10645 = vunpack.c.0.s8 %v10644
      %v10646 = vlaneseq
      %v10647 = vshrl.u32 %v10646, 7
      %v10648 = vsub.s32 %v10645, %v10647
      %v10649 = vrot.slane %v10642, %v10648
      %v10650 = vcombine.low %v10176, %v10177
      %v10652 = vunpack.c.l.s4 1983009808
      %v10653 = vunpack.c.0.s8 %v10652
      %v10654 = vlaneseq
      %v10655 = vshrl.u32 %v10654, 7
      %v10656 = vsub.s32 %v10653, %v10655
      %v10657 = vrot.slane %v10650, %v10656
      %v10658 = vcombine.low %v10168, %v10175
      %v10660 = vunpack.c.l.s4 1983009808
      %v10661 = vunpack.c.0.s8 %v10660
      %v10662 = vlaneseq
      %v10663 = vshrl.u32 %v10662, 7
      %v10664 = vsub.s32 %v10661, %v10663
      %v10665 = vrot.slane %v10658, %v10664
      %v10666 = vcombine.low %v10178, %v10179
      %v10668 = vunpack.c.l.s4 1983009808
      %v10669 = vunpack.c.0.s8 %v10668
      %v10670 = vlaneseq
      %v10671 = vshrl.u32 %v10670, 7
      %v10672 = vsub.s32 %v10669, %v10671
      %v10673 = vrot.slane %v10666, %v10672
      %v10674 = vcombine.low %v10649, %v10657
      %v10676 = vunpack.c.l.s4 1934713408
      %v10677 = vunpack.c.0.s8 %v10676
      %v10678 = vlaneseq
      %v10679 = vshrl.u32 %v10678, 7
      %v10680 = vsub.s32 %v10677, %v10679
      %v10681 = vrot.slane %v10674, %v10680
      %v10682 = vcombine.low %v10665, %v10673
      %v10684 = vunpack.c.l.s4 1934713408
      %v10685 = vunpack.c.0.s8 %v10684
      %v10686 = vlaneseq
      %v10687 = vshrl.u32 %v10686, 7
      %v10688 = vsub.s32 %v10685, %v10687
      %v10689 = vrot.slane %v10682, %v10688
      %v10690 = vcombine.low %v10681, %v10689
      %v10691 = vcombine.high %v10681, %v10689
      %v10692 = vcombine.low %v10218, %v10225
      %v10694 = vunpack.c.l.s4 1983009808
      %v10695 = vunpack.c.0.s8 %v10694
      %v10696 = vlaneseq
      %v10697 = vshrl.u32 %v10696, 7
      %v10698 = vsub.s32 %v10695, %v10697
      %v10699 = vrot.slane %v10692, %v10698
      %v10700 = vcombine.low %v10242, %v10243
      %v10702 = vunpack.c.l.s4 1983009808
      %v10703 = vunpack.c.0.s8 %v10702
      %v10704 = vlaneseq
      %v10705 = vshrl.u32 %v10704, 7
      %v10706 = vsub.s32 %v10703, %v10705
      %v10707 = vrot.slane %v10700, %v10706
      %v10708 = vcombine.low %v10234, %v10241
      %v10710 = vunpack.c.l.s4 1983009808
      %v10711 = vunpack.c.0.s8 %v10710
      %v10712 = vlaneseq
      %v10713 = vshrl.u32 %v10712, 7
      %v10714 = vsub.s32 %v10711, %v10713
      %v10715 = vrot.slane %v10708, %v10714
      %v10716 = vcombine.low %v10244, %v10245
      %v10718 = vunpack.c.l.s4 1983009808
      %v10719 = vunpack.c.0.s8 %v10718
      %v10720 = vlaneseq
      %v10721 = vshrl.u32 %v10720, 7
      %v10722 = vsub.s32 %v10719, %v10721
      %v10723 = vrot.slane %v10716, %v10722
      %v10724 = vcombine.low %v10699, %v10707
      %v10726 = vunpack.c.l.s4 1934713408
      %v10727 = vunpack.c.0.s8 %v10726
      %v10728 = vlaneseq
      %v10729 = vshrl.u32 %v10728, 7
      %v10730 = vsub.s32 %v10727, %v10729
      %v10731 = vrot.slane %v10724, %v10730
      %v10732 = vcombine.low %v10715, %v10723
      %v10734 = vunpack.c.l.s4 1934713408
      %v10735 = vunpack.c.0.s8 %v10734
      %v10736 = vlaneseq
      %v10737 = vshrl.u32 %v10736, 7
      %v10738 = vsub.s32 %v10735, %v10737
      %v10739 = vrot.slane %v10732, %v10738
      %v10740 = vcombine.low %v10731, %v10739
      %v10741 = vcombine.high %v10731, %v10739
      %v10742 = vcombine.low %v10284, %v10291
      %v10744 = vunpack.c.l.s4 1983009808
      %v10745 = vunpack.c.0.s8 %v10744
      %v10746 = vlaneseq
      %v10747 = vshrl.u32 %v10746, 7
      %v10748 = vsub.s32 %v10745, %v10747
      %v10749 = vrot.slane %v10742, %v10748
      %v10750 = vcombine.low %v10308, %v10309
      %v10752 = vunpack.c.l.s4 1983009808
      %v10753 = vunpack.c.0.s8 %v10752
      %v10754 = vlaneseq
      %v10755 = vshrl.u32 %v10754, 7
      %v10756 = vsub.s32 %v10753, %v10755
      %v10757 = vrot.slane %v10750, %v10756
      %v10758 = vcombine.low %v10300, %v10307
      %v10760 = vunpack.c.l.s4 1983009808
      %v10761 = vunpack.c.0.s8 %v10760
      %v10762 = vlaneseq
      %v10763 = vshrl.u32 %v10762, 7
      %v10764 = vsub.s32 %v10761, %v10763
      %v10765 = vrot.slane %v10758, %v10764
      %v10766 = vcombine.low %v10310, %v10311
      %v10768 = vunpack.c.l.s4 1983009808
      %v10769 = vunpack.c.0.s8 %v10768
      %v10770 = vlaneseq
      %v10771 = vshrl.u32 %v10770, 7
      %v10772 = vsub.s32 %v10769, %v10771
      %v10773 = vrot.slane %v10766, %v10772
      %v10774 = vcombine.low %v10749, %v10757
      %v10776 = vunpack.c.l.s4 1934713408
      %v10777 = vunpack.c.0.s8 %v10776
      %v10778 = vlaneseq
      %v10779 = vshrl.u32 %v10778, 7
      %v10780 = vsub.s32 %v10777, %v10779
      %v10781 = vrot.slane %v10774, %v10780
      %v10782 = vcombine.low %v10765, %v10773
      %v10784 = vunpack.c.l.s4 1934713408
      %v10785 = vunpack.c.0.s8 %v10784
      %v10786 = vlaneseq
      %v10787 = vshrl.u32 %v10786, 7
      %v10788 = vsub.s32 %v10785, %v10787
      %v10789 = vrot.slane %v10782, %v10788
      %v10790 = vcombine.low %v10781, %v10789
      %v10791 = vcombine.high %v10781, %v10789
      %v10792 = vcombine.low %v10350, %v10357
      %v10794 = vunpack.c.l.s4 1983009808
      %v10795 = vunpack.c.0.s8 %v10794
      %v10796 = vlaneseq
      %v10797 = vshrl.u32 %v10796, 7
      %v10798 = vsub.s32 %v10795, %v10797
      %v10799 = vrot.slane %v10792, %v10798
      %v10800 = vcombine.low %v10374, %v10375
      %v10802 = vunpack.c.l.s4 1983009808
      %v10803 = vunpack.c.0.s8 %v10802
      %v10804 = vlaneseq
      %v10805 = vshrl.u32 %v10804, 7
      %v10806 = vsub.s32 %v10803, %v10805
      %v10807 = vrot.slane %v10800, %v10806
      %v10808 = vcombine.low %v10366, %v10373
      %v10810 = vunpack.c.l.s4 1983009808
      %v10811 = vunpack.c.0.s8 %v10810
      %v10812 = vlaneseq
      %v10813 = vshrl.u32 %v10812, 7
      %v10814 = vsub.s32 %v10811, %v10813
      %v10815 = vrot.slane %v10808, %v10814
      %v10816 = vcombine.low %v10376, %v10377
      %v10818 = vunpack.c.l.s4 1983009808
      %v10819 = vunpack.c.0.s8 %v10818
      %v10820 = vlaneseq
      %v10821 = vshrl.u32 %v10820, 7
      %v10822 = vsub.s32 %v10819, %v10821
      %v10823 = vrot.slane %v10816, %v10822
      %v10824 = vcombine.low %v10799, %v10807
      %v10826 = vunpack.c.l.s4 1934713408
      %v10827 = vunpack.c.0.s8 %v10826
      %v10828 = vlaneseq
      %v10829 = vshrl.u32 %v10828, 7
      %v10830 = vsub.s32 %v10827, %v10829
      %v10831 = vrot.slane %v10824, %v10830
      %v10832 = vcombine.low %v10815, %v10823
      %v10834 = vunpack.c.l.s4 1934713408
      %v10835 = vunpack.c.0.s8 %v10834
      %v10836 = vlaneseq
      %v10837 = vshrl.u32 %v10836, 7
      %v10838 = vsub.s32 %v10835, %v10837
      %v10839 = vrot.slane %v10832, %v10838
      %v10840 = vcombine.low %v10831, %v10839
      %v10841 = vcombine.high %v10831, %v10839
      %v10842 = vcombine.low %v10416, %v10423
      %v10844 = vunpack.c.l.s4 1983009808
      %v10845 = vunpack.c.0.s8 %v10844
      %v10846 = vlaneseq
      %v10847 = vshrl.u32 %v10846, 7
      %v10848 = vsub.s32 %v10845, %v10847
      %v10849 = vrot.slane %v10842, %v10848
      %v10850 = vcombine.low %v10440, %v10441
      %v10852 = vunpack.c.l.s4 1983009808
      %v10853 = vunpack.c.0.s8 %v10852
      %v10854 = vlaneseq
      %v10855 = vshrl.u32 %v10854, 7
      %v10856 = vsub.s32 %v10853, %v10855
      %v10857 = vrot.slane %v10850, %v10856
      %v10858 = vcombine.low %v10432, %v10439
      %v10860 = vunpack.c.l.s4 1983009808
      %v10861 = vunpack.c.0.s8 %v10860
      %v10862 = vlaneseq
      %v10863 = vshrl.u32 %v10862, 7
      %v10864 = vsub.s32 %v10861, %v10863
      %v10865 = vrot.slane %v10858, %v10864
      %v10866 = vcombine.low %v10442, %v10443
      %v10868 = vunpack.c.l.s4 1983009808
      %v10869 = vunpack.c.0.s8 %v10868
      %v10870 = vlaneseq
      %v10871 = vshrl.u32 %v10870, 7
      %v10872 = vsub.s32 %v10869, %v10871
      %v10873 = vrot.slane %v10866, %v10872
      %v10874 = vcombine.low %v10849, %v10857
      %v10876 = vunpack.c.l.s4 1934713408
      %v10877 = vunpack.c.0.s8 %v10876
      %v10878 = vlaneseq
      %v10879 = vshrl.u32 %v10878, 7
      %v10880 = vsub.s32 %v10877, %v10879
      %v10881 = vrot.slane %v10874, %v10880
      %v10882 = vcombine.low %v10865, %v10873
      %v10884 = vunpack.c.l.s4 1934713408
      %v10885 = vunpack.c.0.s8 %v10884
      %v10886 = vlaneseq
      %v10887 = vshrl.u32 %v10886, 7
      %v10888 = vsub.s32 %v10885, %v10887
      %v10889 = vrot.slane %v10882, %v10888
      %v10890 = vcombine.low %v10881, %v10889
      %v10891 = vcombine.high %v10881, %v10889
      %v10892 = vcombine.low %v10482, %v10489
      %v10894 = vunpack.c.l.s4 1983009808
      %v10895 = vunpack.c.0.s8 %v10894
      %v10896 = vlaneseq
      %v10897 = vshrl.u32 %v10896, 7
      %v10898 = vsub.s32 %v10895, %v10897
      %v10899 = vrot.slane %v10892, %v10898
      %v10900 = vcombine.low %v10506, %v10507
      %v10902 = vunpack.c.l.s4 1983009808
      %v10903 = vunpack.c.0.s8 %v10902
      %v10904 = vlaneseq
      %v10905 = vshrl.u32 %v10904, 7
      %v10906 = vsub.s32 %v10903, %v10905
      %v10907 = vrot.slane %v10900, %v10906
      %v10908 = vcombine.low %v10498, %v10505
      %v10910 = vunpack.c.l.s4 1983009808
      %v10911 = vunpack.c.0.s8 %v10910
      %v10912 = vlaneseq
      %v10913 = vshrl.u32 %v10912, 7
      %v10914 = vsub.s32 %v10911, %v10913
      %v10915 = vrot.slane %v10908, %v10914
      %v10916 = vcombine.low %v10508, %v10509
      %v10918 = vunpack.c.l.s4 1983009808
      %v10919 = vunpack.c.0.s8 %v10918
      %v10920 = vlaneseq
      %v10921 = vshrl.u32 %v10920, 7
      %v10922 = vsub.s32 %v10919, %v10921
      %v10923 = vrot.slane %v10916, %v10922
      %v10924 = vcombine.low %v10899, %v10907
      %v10926 = vunpack.c.l.s4 1934713408
      %v10927 = vunpack.c.0.s8 %v10926
      %v10928 = vlaneseq
      %v10929 = vshrl.u32 %v10928, 7
      %v10930 = vsub.s32 %v10927, %v10929
      %v10931 = vrot.slane %v10924, %v10930
      %v10932 = vcombine.low %v10915, %v10923
      %v10934 = vunpack.c.l.s4 1934713408
      %v10935 = vunpack.c.0.s8 %v10934
      %v10936 = vlaneseq
      %v10937 = vshrl.u32 %v10936, 7
      %v10938 = vsub.s32 %v10935, %v10937
      %v10939 = vrot.slane %v10932, %v10938
      %v10940 = vcombine.low %v10931, %v10939
      %v10941 = vcombine.high %v10931, %v10939
      %v10942 = vcombine.low %v10548, %v10555
      %v10944 = vunpack.c.l.s4 1983009808
      %v10945 = vunpack.c.0.s8 %v10944
      %v10946 = vlaneseq
      %v10947 = vshrl.u32 %v10946, 7
      %v10948 = vsub.s32 %v10945, %v10947
      %v10949 = vrot.slane %v10942, %v10948
      %v10950 = vcombine.low %v10572, %v10573
      %v10952 = vunpack.c.l.s4 1983009808
      %v10953 = vunpack.c.0.s8 %v10952
      %v10954 = vlaneseq
      %v10955 = vshrl.u32 %v10954, 7
      %v10956 = vsub.s32 %v10953, %v10955
      %v10957 = vrot.slane %v10950, %v10956
      %v10958 = vcombine.low %v10564, %v10571
      %v10960 = vunpack.c.l.s4 1983009808
      %v10961 = vunpack.c.0.s8 %v10960
      %v10962 = vlaneseq
      %v10963 = vshrl.u32 %v10962, 7
      %v10964 = vsub.s32 %v10961, %v10963
      %v10965 = vrot.slane %v10958, %v10964
      %v10966 = vcombine.low %v10574, %v10575
      %v10968 = vunpack.c.l.s4 1983009808
      %v10969 = vunpack.c.0.s8 %v10968
      %v10970 = vlaneseq
      %v10971 = vshrl.u32 %v10970, 7
      %v10972 = vsub.s32 %v10969, %v10971
      %v10973 = vrot.slane %v10966, %v10972
      %v10974 = vcombine.low %v10949, %v10957
      %v10976 = vunpack.c.l.s4 1934713408
      %v10977 = vunpack.c.0.s8 %v10976
      %v10978 = vlaneseq
      %v10979 = vshrl.u32 %v10978, 7
      %v10980 = vsub.s32 %v10977, %v10979
      %v10981 = vrot.slane %v10974, %v10980
      %v10982 = vcombine.low %v10965, %v10973
      %v10984 = vunpack.c.l.s4 1934713408
      %v10985 = vunpack.c.0.s8 %v10984
      %v10986 = vlaneseq
      %v10987 = vshrl.u32 %v10986, 7
      %v10988 = vsub.s32 %v10985, %v10987
      %v10989 = vrot.slane %v10982, %v10988
      %v10990 = vcombine.low %v10981, %v10989
      %v10991 = vcombine.high %v10981, %v10989
      %v10992 = vcombine.low %v10614, %v10621
      %v10994 = vunpack.c.l.s4 1983009808
      %v10995 = vunpack.c.0.s8 %v10994
      %v10996 = vlaneseq
      %v10997 = vshrl.u32 %v10996, 7
      %v10998 = vsub.s32 %v10995, %v10997
      %v10999 = vrot.slane %v10992, %v10998
      %v11000 = vcombine.low %v10638, %v10639
      %v11002 = vunpack.c.l.s4 1983009808
      %v11003 = vunpack.c.0.s8 %v11002
      %v11004 = vlaneseq
      %v11005 = vshrl.u32 %v11004, 7
      %v11006 = vsub.s32 %v11003, %v11005
      %v11007 = vrot.slane %v11000, %v11006
      %v11008 = vcombine.low %v10630, %v10637
      %v11010 = vunpack.c.l.s4 1983009808
      %v11011 = vunpack.c.0.s8 %v11010
      %v11012 = vlaneseq
      %v11013 = vshrl.u32 %v11012, 7
      %v11014 = vsub.s32 %v11011, %v11013
      %v11015 = vrot.slane %v11008, %v11014
      %v11016 = vcombine.low %v10640, %v10641
      %v11018 = vunpack.c.l.s4 1983009808
      %v11019 = vunpack.c.0.s8 %v11018
      %v11020 = vlaneseq
      %v11021 = vshrl.u32 %v11020, 7
      %v11022 = vsub.s32 %v11019, %v11021
      %v11023 = vrot.slane %v11016, %v11022
      %v11024 = vcombine.low %v10999, %v11007
      %v11026 = vunpack.c.l.s4 1934713408
      %v11027 = vunpack.c.0.s8 %v11026
      %v11028 = vlaneseq
      %v11029 = vshrl.u32 %v11028, 7
      %v11030 = vsub.s32 %v11027, %v11029
      %v11031 = vrot.slane %v11024, %v11030
      %v11032 = vcombine.low %v11015, %v11023
      %v11034 = vunpack.c.l.s4 1934713408
      %v11035 = vunpack.c.0.s8 %v11034
      %v11036 = vlaneseq
      %v11037 = vshrl.u32 %v11036, 7
      %v11038 = vsub.s32 %v11035, %v11037
      %v11039 = vrot.slane %v11032, %v11038
      %v11040 = vcombine.low %v11031, %v11039
      %v11041 = vcombine.high %v11031, %v11039
      %11050 = vrot.lane.b32.xlu0 %v10691, 16
      %v11051 = vpop.permute.xlu0 %11050
      %11052 = vrot.lane.b32.xlu0 %v10741, 16
      %v11053 = vpop.permute.xlu0 %11052
      %11054 = vrot.lane.b32.xlu0 %v10791, 16
      %v11055 = vpop.permute.xlu0 %11054
      %11056 = vrot.lane.b32.xlu0 %v10841, 16
      %v11057 = vpop.permute.xlu0 %11056
      %11058 = vrot.lane.b32.xlu0 %v10891, 16
      %v11059 = vpop.permute.xlu0 %11058
      %11060 = vrot.lane.b32.xlu0 %v10941, 16
      %v11061 = vpop.permute.xlu0 %11060
      %11062 = vrot.lane.b32.xlu0 %v10991, 16
      %v11063 = vpop.permute.xlu0 %11062
      %11064 = vrot.lane.b32.xlu0 %v11041, 16
      %v11065 = vpop.permute.xlu0 %11064
      %v11074 = vsel %vm6871, %v10690, %v11051
      %v11075 = vsel %vm6871, %v10740, %v11053
      %v11076 = vsel %vm6871, %v10790, %v11055
      %v11077 = vsel %vm6871, %v10840, %v11057
      %v11078 = vsel %vm6871, %v10890, %v11059
      %v11079 = vsel %vm6871, %v10940, %v11061
      %v11080 = vsel %vm6871, %v10990, %v11063
      %v11081 = vsel %vm6871, %v11040, %v11065
      %v11082 = vpack.c.bf16 %v11075, %v11074
      %v11083 = vpack.c.bf16 %v11077, %v11076
      %v11084 = vpack.c.bf16 %v11079, %v11078
      %v11085 = vpack.c.bf16 %v11081, %v11080
      %v11086 = vld [vmem:[%s641] sm:$0xf]
      %v11087 = vld [vmem:[%s641 + $0x4] sm:$0xf]
      %v11088 = vld [vmem:[%s641 + $0x8] sm:$0xf]
      %v11089 = vld [vmem:[%s641 + $0xc] sm:$0xf]
      %v11090 = vld [vmem:[%s644] sm:$0x1]
      %v11092 = vlaneseq
      %v11093 = vshrl.u32 %v11092, 7
      %v11094 = vsub.s32 0, %v11093
      %v11095 = vrot.slane %v11090, %v11094
      %v11101 = vunpack.c.l.b16 %v11086
      %v11102 = vunpack.c.l.b16 %v11087
      %v11103 = vunpack.c.l.b16 %v11088
      %v11104 = vunpack.c.l.b16 %v11089
      %v11105 = vpack.c.b16 %v11102, %v11101
      %v11106 = vpack.c.b16 %v11104, %v11103
      %v11110 = vsel %vm712, %v11082, 0
      %v11113 = vsel %vm712, %v11083, 0
      %v11116 = vsel %vm712, %v11084, 0
      %v11119 = vsel %vm712, %v11085, 0
      %11121 = vmatprep.subr.bf16.mxu0 0
      %11122 = vmatpush1.bf16.msra.mxu0 %v11105
      %11123 = vmatprep.subr.bf16.mxu0 0
      %11124 = vmatpush1.bf16.msra.mxu0 %v11106
      %11125 = vmatprep.subr.bf16.mxu0 0
      %11126 = vmatpush1.bf16.msra.mxu0 0
      %11127 = vmatprep.subr.bf16.mxu0 0
      %11128 = vmatpush1.bf16.msra.mxu0 0
      %11129 = vmatprep.subr.bf16.mxu0 0
      %11130 = vmatpush1.bf16.msra.mxu0 0
      %11131 = vmatprep.subr.bf16.mxu0 0
      %11132 = vmatpush1.bf16.msra.mxu0 0
      %11133 = vmatprep.subr.bf16.mxu0 0
      %11134 = vmatpush1.bf16.msra.mxu0 0
      %11135 = vmatprep.subr.bf16.mxu0 0
      %11136 = vmatpush1.bf16.msra.mxu0 0
      %11137 = vmatprep.subr.bf16.mxu0 0
      %11138 = vmatpush1.bf16.msra.mxu0 0
      %11139 = vmatprep.subr.bf16.mxu0 0
      %11140 = vmatpush1.bf16.msra.mxu0 0
      %11141 = vmatprep.subr.bf16.mxu0 0
      %11142 = vmatpush1.bf16.msra.mxu0 0
      %11143 = vmatprep.subr.bf16.mxu0 0
      %11144 = vmatpush1.bf16.msra.mxu0 0
      %11145 = vmatprep.subr.bf16.mxu0 0
      %11146 = vmatpush1.bf16.msra.mxu0 0
      %11147 = vmatprep.subr.bf16.mxu0 0
      %11148 = vmatpush1.bf16.msra.mxu0 0
      %11149 = vmatprep.subr.bf16.mxu0 0
      %11150 = vmatpush1.bf16.msra.mxu0 0
      %11151 = vmatprep.subr.bf16.mxu0 0
      %11152 = vmatpush1.bf16.msra.mxu0 0
      %11153 = vmatprep.mubr.bf16.mxu0 0
      %11154 = vmatmul.mubr.bf16.gmra.mrb[0].mxu0 %v11110
      %v11155 = vpop.f32.mrb[0].mxu0
      %v11156 = vadd.f32 %v11095, %v11155
      %v11157 = vpop.f32.mrb[0].mxu0
      %v11158 = vpop.f32.mrb[0].mxu0
      %v11159 = vadd.f32 %v11095, %v11158
      %v11160 = vpop.f32.mrb[0].mxu0
      %11161 = vmatprep.mubr.bf16.mxu0 0
      %11162 = vmatmul.mubr.bf16.gmra.mrb[0].mxu0 %v11113
      %v11163 = vpop.f32.mrb[0].mxu0
      %v11164 = vadd.f32 %v11095, %v11163
      %v11165 = vpop.f32.mrb[0].mxu0
      %v11166 = vpop.f32.mrb[0].mxu0
      %v11167 = vadd.f32 %v11095, %v11166
      %v11168 = vpop.f32.mrb[0].mxu0
      %11169 = vmatprep.mubr.bf16.mxu0 0
      %11170 = vmatmul.mubr.bf16.gmra.mrb[0].mxu0 %v11116
      %v11171 = vpop.f32.mrb[0].mxu0
      %v11172 = vadd.f32 %v11095, %v11171
      %v11173 = vpop.f32.mrb[0].mxu0
      %v11174 = vpop.f32.mrb[0].mxu0
      %v11175 = vadd.f32 %v11095, %v11174
      %v11176 = vpop.f32.mrb[0].mxu0
      %11177 = vmatprep.mubr.bf16.mxu0 0
      %11178 = vmatmul.mubr.bf16.gmra.mrb[0].mxu0 %v11119
      %v11179 = vpop.f32.mrb[0].mxu0
      %v11180 = vadd.f32 %v11095, %v11179
      %v11181 = vpop.f32.mrb[0].mxu0
      %v11182 = vpop.f32.mrb[0].mxu0
      %v11183 = vadd.f32 %v11095, %v11182
      %v11184 = vpop.f32.mrb[0].mxu0
      %11185 = vdwg.mxu0
      %v11186 = vadd.f32 %v694, %v11156
      %v11187 = vadd.f32 %v695, %v11159
      %v11188 = vadd.f32 %v696, %v11164
      %v11189 = vadd.f32 %v697, %v11167
      %v11190 = vadd.f32 %v698, %v11172
      %v11191 = vadd.f32 %v699, %v11175
      %v11192 = vadd.f32 %v700, %v11180
      %v11193 = vadd.f32 %v701, %v11183
      %v11194 = vld [vmem:[%s647] sm:$0x1]
      %v11195 = vld [vmem:[%s650] sm:$0x1]
      %v11196 = vsel %vm712, %v11186, 0.0
      %11197 = vadd.xlane.f32.xlu0 %v11196
      %v11198 = vpop.xlane.xlu0 %11197
      %v11199 = vsel %vm712, %v11187, 0.0
      %11200 = vadd.xlane.f32.xlu0 %v11199
      %v11201 = vpop.xlane.xlu0 %11200
      %v11202 = vsel %vm712, %v11188, 0.0
      %11203 = vadd.xlane.f32.xlu0 %v11202
      %v11204 = vpop.xlane.xlu0 %11203
      %v11205 = vsel %vm712, %v11189, 0.0
      %11206 = vadd.xlane.f32.xlu0 %v11205
      %v11207 = vpop.xlane.xlu0 %11206
      %v11208 = vsel %vm712, %v11190, 0.0
      %11209 = vadd.xlane.f32.xlu0 %v11208
      %v11210 = vpop.xlane.xlu0 %11209
      %v11211 = vsel %vm712, %v11191, 0.0
      %11212 = vadd.xlane.f32.xlu0 %v11211
      %v11213 = vpop.xlane.xlu0 %11212
      %v11214 = vsel %vm712, %v11192, 0.0
      %11215 = vadd.xlane.f32.xlu0 %v11214
      %v11216 = vpop.xlane.xlu0 %11215
      %v11217 = vsel %vm712, %v11193, 0.0
      %11218 = vadd.xlane.f32.xlu0 %v11217
      %v11219 = vpop.xlane.xlu0 %11218
      %v11220 = vmul.f32 %v11198, %v737
      %v11221 = vmul.f32 %v11201, %v737
      %v11222 = vmul.f32 %v11204, %v737
      %v11223 = vmul.f32 %v11207, %v737
      %v11224 = vmul.f32 %v11210, %v737
      %v11225 = vmul.f32 %v11213, %v737
      %v11226 = vmul.f32 %v11216, %v737
      %v11227 = vmul.f32 %v11219, %v737
      %v11228 = vsub.f32 %v11186, %v11220
      %v11229 = vsub.f32 %v11187, %v11221
      %v11230 = vsub.f32 %v11188, %v11222
      %v11231 = vsub.f32 %v11189, %v11223
      %v11232 = vsub.f32 %v11190, %v11224
      %v11233 = vsub.f32 %v11191, %v11225
      %v11234 = vsub.f32 %v11192, %v11226
      %v11235 = vsub.f32 %v11193, %v11227
      %v11236 = vmul.f32 %v11228, %v11228
      %v11237 = vmul.f32 %v11229, %v11229
      %v11238 = vmul.f32 %v11230, %v11230
      %v11239 = vmul.f32 %v11231, %v11231
      %v11240 = vmul.f32 %v11232, %v11232
      %v11241 = vmul.f32 %v11233, %v11233
      %v11242 = vmul.f32 %v11234, %v11234
      %v11243 = vmul.f32 %v11235, %v11235
      %v11244 = vsel %vm712, %v11236, 0.0
      %11245 = vadd.xlane.f32.xlu0 %v11244
      %v11246 = vpop.xlane.xlu0 %11245
      %v11247 = vsel %vm712, %v11237, 0.0
      %11248 = vadd.xlane.f32.xlu0 %v11247
      %v11249 = vpop.xlane.xlu0 %11248
      %v11250 = vsel %vm712, %v11238, 0.0
      %11251 = vadd.xlane.f32.xlu0 %v11250
      %v11252 = vpop.xlane.xlu0 %11251
      %v11253 = vsel %vm712, %v11239, 0.0
      %11254 = vadd.xlane.f32.xlu0 %v11253
      %v11255 = vpop.xlane.xlu0 %11254
      %v11256 = vsel %vm712, %v11240, 0.0
      %11257 = vadd.xlane.f32.xlu0 %v11256
      %v11258 = vpop.xlane.xlu0 %11257
      %v11259 = vsel %vm712, %v11241, 0.0
      %11260 = vadd.xlane.f32.xlu0 %v11259
      %v11261 = vpop.xlane.xlu0 %11260
      %v11262 = vsel %vm712, %v11242, 0.0
      %11263 = vadd.xlane.f32.xlu0 %v11262
      %v11264 = vpop.xlane.xlu0 %11263
      %v11265 = vsel %vm712, %v11243, 0.0
      %11266 = vadd.xlane.f32.xlu0 %v11265
      %v11267 = vpop.xlane.xlu0 %11266
      %v11268 = vmul.f32 %v11246, %v737
      %v11269 = vmul.f32 %v11249, %v737
      %v11270 = vmul.f32 %v11252, %v737
      %v11271 = vmul.f32 %v11255, %v737
      %v11272 = vmul.f32 %v11258, %v737
      %v11273 = vmul.f32 %v11261, %v737
      %v11274 = vmul.f32 %v11264, %v737
      %v11275 = vmul.f32 %v11267, %v737
      %v11276 = vadd.f32 %v11268, 1e-05
      %v11277 = vadd.f32 %v11269, 1e-05
      %v11278 = vadd.f32 %v11270, 1e-05
      %v11279 = vadd.f32 %v11271, 1e-05
      %v11280 = vadd.f32 %v11272, 1e-05
      %v11281 = vadd.f32 %v11273, 1e-05
      %v11282 = vadd.f32 %v11274, 1e-05
      %v11283 = vadd.f32 %v11275, 1e-05
      %v11284 = vrsqrt.pop %v11276
      %v11285 = vrsqrt.pop %v11277
      %v11286 = vrsqrt.pop %v11278
      %v11287 = vrsqrt.pop %v11279
      %v11288 = vrsqrt.pop %v11280
      %v11289 = vrsqrt.pop %v11281
      %v11290 = vrsqrt.pop %v11282
      %v11291 = vrsqrt.pop %v11283
      %v11292 = vmul.f32 %v11228, %v11284
      %v11293 = vmul.f32 %v11229, %v11285
      %v11294 = vmul.f32 %v11230, %v11286
      %v11295 = vmul.f32 %v11231, %v11287
      %v11296 = vmul.f32 %v11232, %v11288
      %v11297 = vmul.f32 %v11233, %v11289
      %v11298 = vmul.f32 %v11234, %v11290
      %v11299 = vmul.f32 %v11235, %v11291
      %v11301 = vlaneseq
      %v11302 = vshrl.u32 %v11301, 7
      %v11303 = vsub.s32 0, %v11302
      %v11304 = vrot.slane %v11194, %v11303
      %v11306 = vmul.f32 %v11292, %v11304
      %v11307 = vmul.f32 %v11293, %v11304
      %v11308 = vmul.f32 %v11294, %v11304
      %v11309 = vmul.f32 %v11295, %v11304
      %v11310 = vmul.f32 %v11296, %v11304
      %v11311 = vmul.f32 %v11297, %v11304
      %v11312 = vmul.f32 %v11298, %v11304
      %v11313 = vmul.f32 %v11299, %v11304
      %v11315 = vlaneseq
      %v11316 = vshrl.u32 %v11315, 7
      %v11317 = vsub.s32 0, %v11316
      %v11318 = vrot.slane %v11195, %v11317
      %v11320 = vadd.f32 %v11306, %v11318
      %v11321 = vadd.f32 %v11307, %v11318
      %v11322 = vadd.f32 %v11308, %v11318
      %v11323 = vadd.f32 %v11309, %v11318
      %v11324 = vadd.f32 %v11310, %v11318
      %v11325 = vadd.f32 %v11311, %v11318
      %v11326 = vadd.f32 %v11312, %v11318
      %v11327 = vadd.f32 %v11313, %v11318
      %v11328 = vpack.c.bf16 %v11321, %v11320
      %v11329 = vpack.c.bf16 %v11323, %v11322
      %v11330 = vpack.c.bf16 %v11325, %v11324
      %v11331 = vpack.c.bf16 %v11327, %v11326
      %v11332 = vld [vmem:[%s655] sm:$0xf]
      %v11333 = vld [vmem:[%s655 + $0x4] sm:$0xf]
      %v11334 = vld [vmem:[%s655 + $0x8] sm:$0xf]
      %v11335 = vld [vmem:[%s655 + $0xc] sm:$0xf]
      %v11336 = vld [vmem:[%s658] sm:$0x1]
      %v11338 = vlaneseq
      %v11339 = vshrl.u32 %v11338, 7
      %v11340 = vsub.s32 0, %v11339
      %v11341 = vrot.slane %v11336, %v11340
      %v11347 = vunpack.c.l.b16 %v11332
      %v11348 = vunpack.c.l.b16 %v11333
      %v11349 = vunpack.c.l.b16 %v11334
      %v11350 = vunpack.c.l.b16 %v11335
      %v11351 = vpack.c.b16 %v11348, %v11347
      %v11352 = vpack.c.b16 %v11350, %v11349
      %v11356 = vsel %vm712, %v11328, 0
      %v11359 = vsel %vm712, %v11329, 0
      %v11362 = vsel %vm712, %v11330, 0
      %v11365 = vsel %vm712, %v11331, 0
      %11367 = vmatprep.subr.bf16.mxu0 0
      %11368 = vmatpush1.bf16.msra.mxu0 %v11351
      %11369 = vmatprep.subr.bf16.mxu0 0
      %11370 = vmatpush1.bf16.msra.mxu0 %v11352
      %11371 = vmatprep.subr.bf16.mxu0 0
      %11372 = vmatpush1.bf16.msra.mxu0 0
      %11373 = vmatprep.subr.bf16.mxu0 0
      %11374 = vmatpush1.bf16.msra.mxu0 0
      %11375 = vmatprep.subr.bf16.mxu0 0
      %11376 = vmatpush1.bf16.msra.mxu0 0
      %11377 = vmatprep.subr.bf16.mxu0 0
      %11378 = vmatpush1.bf16.msra.mxu0 0
      %11379 = vmatprep.subr.bf16.mxu0 0
      %11380 = vmatpush1.bf16.msra.mxu0 0
      %11381 = vmatprep.subr.bf16.mxu0 0
      %11382 = vmatpush1.bf16.msra.mxu0 0
      %11383 = vmatprep.subr.bf16.mxu0 0
      %11384 = vmatpush1.bf16.msra.mxu0 0
      %11385 = vmatprep.subr.bf16.mxu0 0
      %11386 = vmatpush1.bf16.msra.mxu0 0
      %11387 = vmatprep.subr.bf16.mxu0 0
      %11388 = vmatpush1.bf16.msra.mxu0 0
      %11389 = vmatprep.subr.bf16.mxu0 0
      %11390 = vmatpush1.bf16.msra.mxu0 0
      %11391 = vmatprep.subr.bf16.mxu0 0
      %11392 = vmatpush1.bf16.msra.mxu0 0
      %11393 = vmatprep.subr.bf16.mxu0 0
      %11394 = vmatpush1.bf16.msra.mxu0 0
      %11395 = vmatprep.subr.bf16.mxu0 0
      %11396 = vmatpush1.bf16.msra.mxu0 0
      %11397 = vmatprep.subr.bf16.mxu0 0
      %11398 = vmatpush1.bf16.msra.mxu0 0
      %11399 = vmatprep.mubr.bf16.mxu0 0
      %11400 = vmatmul.mubr.bf16.gmra.mrb[0].mxu0 %v11356
      %v11401 = vpop.f32.mrb[0].mxu0
      %v11402 = vadd.f32 %v11341, %v11401
      %v11403 = vpop.f32.mrb[0].mxu0
      %v11404 = vpop.f32.mrb[0].mxu0
      %v11405 = vadd.f32 %v11341, %v11404
      %v11406 = vpop.f32.mrb[0].mxu0
      %11407 = vmatprep.mubr.bf16.mxu0 0
      %11408 = vmatmul.mubr.bf16.gmra.mrb[0].mxu0 %v11359
      %v11409 = vpop.f32.mrb[0].mxu0
      %v11410 = vadd.f32 %v11341, %v11409
      %v11411 = vpop.f32.mrb[0].mxu0
      %v11412 = vpop.f32.mrb[0].mxu0
      %v11413 = vadd.f32 %v11341, %v11412
      %v11414 = vpop.f32.mrb[0].mxu0
      %11415 = vmatprep.mubr.bf16.mxu0 0
      %11416 = vmatmul.mubr.bf16.gmra.mrb[0].mxu0 %v11362
      %v11417 = vpop.f32.mrb[0].mxu0
      %v11418 = vadd.f32 %v11341, %v11417
      %v11419 = vpop.f32.mrb[0].mxu0
      %v11420 = vpop.f32.mrb[0].mxu0
      %v11421 = vadd.f32 %v11341, %v11420
      %v11422 = vpop.f32.mrb[0].mxu0
      %11423 = vmatprep.mubr.bf16.mxu0 0
      %11424 = vmatmul.mubr.bf16.gmra.mrb[0].mxu0 %v11365
      %v11425 = vpop.f32.mrb[0].mxu0
      %v11426 = vadd.f32 %v11341, %v11425
      %v11427 = vpop.f32.mrb[0].mxu0
      %v11428 = vpop.f32.mrb[0].mxu0
      %v11429 = vadd.f32 %v11341, %v11428
      %v11430 = vpop.f32.mrb[0].mxu0
      %11431 = vdwg.mxu0
      %v11432 = vmul.f32 %v11402, 0.5
      %v11433 = vmul.f32 %v11405, 0.5
      %v11434 = vmul.f32 %v11410, 0.5
      %v11435 = vmul.f32 %v11413, 0.5
      %v11436 = vmul.f32 %v11418, 0.5
      %v11437 = vmul.f32 %v11421, 0.5
      %v11438 = vmul.f32 %v11426, 0.5
      %v11439 = vmul.f32 %v11429, 0.5
      %v11440 = vmul.f32 %v11402, 0.70710677
      %v11441 = vmul.f32 %v11405, 0.70710677
      %v11442 = vmul.f32 %v11410, 0.70710677
      %v11443 = vmul.f32 %v11413, 0.70710677
      %v11444 = vmul.f32 %v11418, 0.70710677
      %v11445 = vmul.f32 %v11421, 0.70710677
      %v11446 = vmul.f32 %v11426, 0.70710677
      %v11447 = vmul.f32 %v11429, 0.70710677
      %v11448 = verf.f32.pop %v11440
      %v11449 = verf.f32.pop %v11441
      %v11450 = verf.f32.pop %v11442
      %v11451 = verf.f32.pop %v11443
      %v11452 = verf.f32.pop %v11444
      %v11453 = verf.f32.pop %v11445
      %v11454 = verf.f32.pop %v11446
      %v11455 = verf.f32.pop %v11447
      %v11456 = vadd.f32 %v11448, 1.0
      %v11457 = vadd.f32 %v11449, 1.0
      %v11458 = vadd.f32 %v11450, 1.0
      %v11459 = vadd.f32 %v11451, 1.0
      %v11460 = vadd.f32 %v11452, 1.0
      %v11461 = vadd.f32 %v11453, 1.0
      %v11462 = vadd.f32 %v11454, 1.0
      %v11463 = vadd.f32 %v11455, 1.0
      %v11464 = vmul.f32 %v11432, %v11456
      %v11465 = vmul.f32 %v11433, %v11457
      %v11466 = vmul.f32 %v11434, %v11458
      %v11467 = vmul.f32 %v11435, %v11459
      %v11468 = vmul.f32 %v11436, %v11460
      %v11469 = vmul.f32 %v11437, %v11461
      %v11470 = vmul.f32 %v11438, %v11462
      %v11471 = vmul.f32 %v11439, %v11463
      %v11472 = vpack.c.bf16 %v11465, %v11464
      %v11473 = vpack.c.bf16 %v11467, %v11466
      %v11474 = vpack.c.bf16 %v11469, %v11468
      %v11475 = vpack.c.bf16 %v11471, %v11470
      %v11476 = vld [vmem:[%s663] sm:$0xf]
      %v11477 = vld [vmem:[%s663 + $0x4] sm:$0xf]
      %v11478 = vld [vmem:[%s663 + $0x8] sm:$0xf]
      %v11479 = vld [vmem:[%s663 + $0xc] sm:$0xf]
      %v11480 = vld [vmem:[%s663 + $0x10] sm:$0xf]
      %v11481 = vld [vmem:[%s663 + $0x14] sm:$0xf]
      %v11482 = vld [vmem:[%s663 + $0x18] sm:$0xf]
      %v11483 = vld [vmem:[%s663 + $0x1c] sm:$0xf]
      %v11484 = vld [vmem:[%s663 + $0x20] sm:$0xf]
      %v11485 = vld [vmem:[%s663 + $0x24] sm:$0xf]
      %v11486 = vld [vmem:[%s663 + $0x28] sm:$0xf]
      %v11487 = vld [vmem:[%s663 + $0x2c] sm:$0xf]
      %v11488 = vld [vmem:[%s663 + $0x30] sm:$0xf]
      %v11489 = vld [vmem:[%s663 + $0x34] sm:$0xf]
      %v11490 = vld [vmem:[%s663 + $0x38] sm:$0xf]
      %v11491 = vld [vmem:[%s663 + $0x3c] sm:$0xf]
      %v11492 = vld [vmem:[%s666] sm:$0x1]
      %v11494 = vlaneseq
      %v11495 = vshrl.u32 %v11494, 7
      %v11496 = vsub.s32 0, %v11495
      %v11497 = vrot.slane %v11492, %v11496
      %v11515 = vunpack.c.l.b16 %v11476
      %v11516 = vunpack.c.l.b16 %v11477
      %v11517 = vunpack.c.l.b16 %v11478
      %v11518 = vunpack.c.l.b16 %v11479
      %v11519 = vunpack.c.l.b16 %v11480
      %v11520 = vunpack.c.l.b16 %v11481
      %v11521 = vunpack.c.l.b16 %v11482
      %v11522 = vunpack.c.l.b16 %v11483
      %v11523 = vunpack.c.l.b16 %v11484
      %v11524 = vunpack.c.l.b16 %v11485
      %v11525 = vunpack.c.l.b16 %v11486
      %v11526 = vunpack.c.l.b16 %v11487
      %v11527 = vunpack.c.l.b16 %v11488
      %v11528 = vunpack.c.l.b16 %v11489
      %v11529 = vunpack.c.l.b16 %v11490
      %v11530 = vunpack.c.l.b16 %v11491
      %v11531 = vpack.c.b16 %v11516, %v11515
      %v11532 = vpack.c.b16 %v11518, %v11517
      %v11533 = vpack.c.b16 %v11520, %v11519
      %v11534 = vpack.c.b16 %v11522, %v11521
      %v11535 = vpack.c.b16 %v11524, %v11523
      %v11536 = vpack.c.b16 %v11526, %v11525
      %v11537 = vpack.c.b16 %v11528, %v11527
      %v11538 = vpack.c.b16 %v11530, %v11529
      %11547 = vmatprep.subr.bf16.mxu0 0
      %11548 = vmatpush1.bf16.msra.mxu0 %v11531
      %11549 = vmatprep.subr.bf16.mxu0 0
      %11550 = vmatpush1.bf16.msra.mxu0 %v11532
      %11551 = vmatprep.subr.bf16.mxu0 0
      %11552 = vmatpush1.bf16.msra.mxu0 %v11533
      %11553 = vmatprep.subr.bf16.mxu0 0
      %11554 = vmatpush1.bf16.msra.mxu0 %v11534
      %11555 = vmatprep.subr.bf16.mxu0 0
      %11556 = vmatpush1.bf16.msra.mxu0 %v11535
      %11557 = vmatprep.subr.bf16.mxu0 0
      %11558 = vmatpush1.bf16.msra.mxu0 %v11536
      %11559 = vmatprep.subr.bf16.mxu0 0
      %11560 = vmatpush1.bf16.msra.mxu0 %v11537
      %11561 = vmatprep.subr.bf16.mxu0 0
      %11562 = vmatpush1.bf16.msra.mxu0 %v11538
      %11563 = vmatprep.subr.bf16.mxu0 0
      %11564 = vmatpush1.bf16.msra.mxu0 0
      %11565 = vmatprep.subr.bf16.mxu0 0
      %11566 = vmatpush1.bf16.msra.mxu0 0
      %11567 = vmatprep.subr.bf16.mxu0 0
      %11568 = vmatpush1.bf16.msra.mxu0 0
      %11569 = vmatprep.subr.bf16.mxu0 0
      %11570 = vmatpush1.bf16.msra.mxu0 0
      %11571 = vmatprep.subr.bf16.mxu0 0
      %11572 = vmatpush1.bf16.msra.mxu0 0
      %11573 = vmatprep.subr.bf16.mxu0 0
      %11574 = vmatpush1.bf16.msra.mxu0 0
      %11575 = vmatprep.subr.bf16.mxu0 0
      %11576 = vmatpush1.bf16.msra.mxu0 0
      %11577 = vmatprep.subr.bf16.mxu0 0
      %11578 = vmatpush1.bf16.msra.mxu0 0
      %11579 = vmatprep.mubr.bf16.mxu0 0
      %11580 = vmatmul.mubr.bf16.gmra.mrb[0].mxu0 %v11472
      %v11581 = vpop.f32.mrb[0].mxu0
      %v11582 = vadd.f32 %v11497, %v11581
      %v11583 = vpop.f32.mrb[0].mxu0
      %v11584 = vpop.f32.mrb[0].mxu0
      %v11585 = vadd.f32 %v11497, %v11584
      %v11586 = vpop.f32.mrb[0].mxu0
      %11587 = vmatprep.mubr.bf16.mxu0 0
      %11588 = vmatmul.mubr.bf16.gmra.mrb[0].mxu0 %v11473
      %v11589 = vpop.f32.mrb[0].mxu0
      %v11590 = vadd.f32 %v11497, %v11589
      %v11591 = vpop.f32.mrb[0].mxu0
      %v11592 = vpop.f32.mrb[0].mxu0
      %v11593 = vadd.f32 %v11497, %v11592
      %v11594 = vpop.f32.mrb[0].mxu0
      %11595 = vmatprep.mubr.bf16.mxu0 0
      %11596 = vmatmul.mubr.bf16.gmra.mrb[0].mxu0 %v11474
      %v11597 = vpop.f32.mrb[0].mxu0
      %v11598 = vadd.f32 %v11497, %v11597
      %v11599 = vpop.f32.mrb[0].mxu0
      %v11600 = vpop.f32.mrb[0].mxu0
      %v11601 = vadd.f32 %v11497, %v11600
      %v11602 = vpop.f32.mrb[0].mxu0
      %11603 = vmatprep.mubr.bf16.mxu0 0
      %11604 = vmatmul.mubr.bf16.gmra.mrb[0].mxu0 %v11475
      %v11605 = vpop.f32.mrb[0].mxu0
      %v11606 = vadd.f32 %v11497, %v11605
      %v11607 = vpop.f32.mrb[0].mxu0
      %v11608 = vpop.f32.mrb[0].mxu0
      %v11609 = vadd.f32 %v11497, %v11608
      %v11610 = vpop.f32.mrb[0].mxu0
      %11611 = vdwg.mxu0
      %v11612 = vadd.f32 %v11186, %v11582
      %v11613 = vadd.f32 %v11187, %v11585
      %v11614 = vadd.f32 %v11188, %v11590
      %v11615 = vadd.f32 %v11189, %v11593
      %v11616 = vadd.f32 %v11190, %v11598
      %v11617 = vadd.f32 %v11191, %v11601
      %v11618 = vadd.f32 %v11192, %v11606
      %v11619 = vadd.f32 %v11193, %v11609
      %11620 = vst.msk [vmem:[%s671] sm:$0xff] %vm712, %v11612
      %11621 = vst.msk [vmem:[%s671 + $0x8] sm:$0xff] %vm712, %v11613
      %11622 = vst.msk [vmem:[%s671 + $0x10] sm:$0xff] %vm712, %v11614
      %11623 = vst.msk [vmem:[%s671 + $0x18] sm:$0xff] %vm712, %v11615
      %11624 = vst.msk [vmem:[%s671 + $0x20] sm:$0xff] %vm712, %v11616
      %11625 = vst.msk [vmem:[%s671 + $0x28] sm:$0xff] %vm712, %v11617
      %11626 = vst.msk [vmem:[%s671 + $0x30] sm:$0xff] %vm712, %v11618
      %11627 = vst.msk [vmem:[%s671 + $0x38] sm:$0xff] %vm712, %v11619
      %p11628 = scmp.lt.s32.totalorder %s29, 1
      %s11629 = scalar_select %p11628, %s29, 1
      %s11630 = smul.addr %s11629, 8
      %s11631 = smul.addr %s11630, 8
      %s11632 = scalar_lea.vmem %s14, %s11631
      // Predicated region
      $region81: #{transformer_forward.1} parent=75 // pred_check
        %p11633 = pneg %p414
      $region82: #{transformer_forward.1} parent=75 // pred_check_branch
        %11635 = sbr.rel (%p11633) target = $region84
      $region83: #{transformer_forward.1} parent=75 // pred_region
        _
      $region84: #{transformer_forward.1} parent=75 // pred_fallthru
        _
    $region76: #{transformer_forward.1} parent=5 // pred_fallthru
      _
    %p11636 = scmp.le.s32.totalorder 2, %s20
    // Predicated region
    $region85: #{transformer_forward.1} parent=5 // pred_check
      %p11637 = pneg %p11636
    $region86: #{transformer_forward.1} parent=5 // pred_check_branch
      %11639 = sbr.rel (%p11637) target = $region88
    $region87: #{transformer_forward.1} parent=5 // pred_region
      %s11640 = ssub.s32 %s20, 2
      // Predicated region
      $region89: #{transformer_forward.1} parent=87 // pred_check
        %p11641 = pneg %p420
      $region90: #{transformer_forward.1} parent=87 // pred_check_branch
        %11643 = sbr.rel (%p11641) target = $region92
      $region91: #{transformer_forward.1} parent=87 // pred_region
        %p11644 = scmp.lt.s32.totalorder %s31, 1
        %s11645 = scalar_select %p11644, %s31, 1
        %s11646 = smul.addr %s11645, 8
        %s11647 = smul.addr %s11646, 8
        %s11648 = scalar_lea.vmem %s14, %s11647
      $region92: #{transformer_forward.1} parent=87 // pred_fallthru
        _
    $region88: #{transformer_forward.1} parent=5 // pred_fallthru
      _
  $region6: #{transformer_forward.1} parent=0 // loop_footer
    %s24 = sadd.s32 1, %s20
  $region7: #{transformer_forward.1} parent=0 // loop_footer_branch
    %19 = sbr.rel target = $region3
  $region8: #{transformer_forward.1} parent=0 // loop_exit
    _

</llo_original>
